<compile_context>
chip_gen: v7x
topology: tpu7x:2x2x1
jax: 0.10.0
libtpu: 0.0.40
codegen_flags: <defaults>
</compile_context>

<pallas_src>
import jax
import jax.numpy as jnp
from jax.experimental import pallas as pl
from jax.experimental.pallas import tpu as pltpu


# ----------------------------------------------------------------------------
# Generation-aware sizing helpers.
# ----------------------------------------------------------------------------
def _vmem_limit_bytes():
    """~48 MiB on v7x (64 MiB physical), ~96 MiB on v5e/v6e (128 MiB)."""
    try:
        phys = int(pltpu.get_tpu_info().vmem_capacity_bytes)
    except Exception:
        phys = 64 * 1024 * 1024            # v7x-safe assumption
    return max(32 * 1024 * 1024, min((phys * 3) // 4, 96 * 1024 * 1024))


def _node_tiling(n, cap, min_tiles=4):
    """Pick (tn, n_pad): sublane-aligned node tile.  Prefers tn | n so no
    padding copy of z is needed; >= min_tiles grid steps when possible."""
    cap = max(8, (min(cap, ((n + 7) // 8) * 8) // 8) * 8)

    def pick(nn):
        best_mt = best_any = 0
        for d in range(8, min(cap, nn) + 1, 8):
            if nn % d == 0:
                best_any = d
                if nn // d >= min_tiles:
                    best_mt = d
        return best_mt or best_any

    if n >= 8 and n % 8 == 0:
        tn = pick(n)
        if tn >= 128 or n <= 4 * cap:      # good divisor tile -> no pad copy
            return tn, n
    # Fallback (ragged / pathological N): pad upward (one extra HBM copy of z).
    n_pad = -(-n // cap) * cap if n > 4 * cap else ((n + 7) // 8) * 8
    return pick(n_pad), n_pad


# ----------------------------------------------------------------------------
# Kernel A: per-metapath column sums of h = tanh(z @ w1 + b1) for one node
# tile.  z_ref: (tn, M*D) lane-dense view.  Output hsum_ref: (M, H).
# The w2 projection / mean / softmax are done in tiny plain-JAX glue.
# ----------------------------------------------------------------------------
def _scores_kernel(z_ref, w1_ref, b1_ref, hsum_ref):
    d = w1_ref.shape[0]
    n_meta = hsum_ref.shape[0]
    for m in range(n_meta):                                   # M small & static
        h = jnp.tanh(
            jnp.dot(z_ref[:, m * d:(m + 1) * d], w1_ref[...],
                    preferred_element_type=jnp.float32)
            + b1_ref[...]
        )                                                     # (tn, H)
        # Sublane reduce over rows: full-width VPU vreg adds.
        hsum_ref[m:m + 1, :] = jnp.sum(h, axis=0, keepdims=True)   # (1, H)


# ----------------------------------------------------------------------------
# Kernel B: weighted sum over metapaths for one node tile.
#   beta_ref: (M,) f32 in SMEM (scalar broadcasts), z_ref: (tn, M*D),
#   out_ref: (tn, D) lane-dense.
# ----------------------------------------------------------------------------
def _weighted_sum_kernel(beta_ref, z_ref, out_ref):
    d = out_ref.shape[-1]
    n_meta = z_ref.shape[-1] // d
    acc = z_ref[:, 0:d] * beta_ref[0]
    for m in range(1, n_meta):
        acc = acc + z_ref[:, m * d:(m + 1) * d] * beta_ref[m]
    out_ref[...] = acc


# ----------------------------------------------------------------------------
# Fused small-N kernel: z resident in VMEM, read from HBM once.
#   z_ref: (N, M*D), w1_ref: (D, H), b1_ref/w2_ref: (1, H), out_ref: (N, D).
# ----------------------------------------------------------------------------
def _fused_kernel(z_ref, w1_ref, b1_ref, w2_ref, out_ref):
    n = z_ref.shape[0]
    d = w1_ref.shape[0]
    n_meta = z_ref.shape[-1] // d

    # Per-metapath mean score, kept as (1, 1) arrays.
    s = []
    for m in range(n_meta):
        h = jnp.tanh(
            jnp.dot(z_ref[:, m * d:(m + 1) * d], w1_ref[...],
                    preferred_element_type=jnp.float32)
            + b1_ref[...]
        )                                                     # (n, H)
        colsum = jnp.sum(h, axis=0, keepdims=True)            # (1, H)
        s.append(jnp.sum(colsum * w2_ref[...], axis=1, keepdims=True) / n)

    # Numerically stable softmax over the M scores.
    s_max = s[0]
    for v in s[1:]:
        s_max = jnp.maximum(s_max, v)
    e = [jnp.exp(v - s_max) for v in s]
    denom = e[0]
    for v in e[1:]:
        denom = denom + v
    inv = 1.0 / denom                                         # exact (tiny op)

    acc = z_ref[:, 0:d] * (e[0] * inv)
    for m in range(1, n_meta):
        acc = acc + z_ref[:, m * d:(m + 1) * d] * (e[m] * inv)
    out_ref[...] = acc


# ----------------------------------------------------------------------------
# Wrapper.
# ----------------------------------------------------------------------------
def semantic_attention(z, w1, b1, w2, *, node_tile=None, allow_fused=True):
    """z: (N, M, D) float32, w1: (D, H), b1: (H,), w2: (H, 1) -> (N, D)."""
    N, M, D = z.shape
    H = w1.shape[1]

    vmem_limit = _vmem_limit_bytes()
    cparams = pltpu.CompilerParams(
        dimension_semantics=("parallel",),     # independent N-tiles (megacore)
        vmem_limit_bytes=vmem_limit,
    )

    b1_row = b1.reshape(1, H)
    w2_row = w2.reshape(1, H)
    z_wide = z.reshape(N, M * D)               # free reshape, lane-dense view

    # ---- fused single-pass fast path (z read from HBM exactly once) ---------
    fused_bytes = 2 * (N * M * D + N * D) * 4 + 2 * (D * H + 2 * H) * 4
    if allow_fused and fused_bytes <= vmem_limit - (4 << 20):
        return pl.pallas_call(
            _fused_kernel,
            out_shape=jax.ShapeDtypeStruct((N, D), jnp.float32),
            grid=(1,),
            in_specs=[
                pl.BlockSpec((N, M * D), lambda i: (0, 0)),
                pl.BlockSpec((D, H), lambda i: (0, 0)),
                pl.BlockSpec((1, H), lambda i: (0, 0)),
                pl.BlockSpec((1, H), lambda i: (0, 0)),
            ],
            out_specs=pl.BlockSpec((N, D), lambda i: (0, 0)),
            compiler_params=cparams,
        )(z_wide, w1, b1_row, w2_row)

    # ---- node-axis tiling (generation-aware cap, prefer divisor tiles) ------
    row_bytes = M * D * 4
    cap_rows = (vmem_limit // 6) // row_bytes
    cap_rows = max(8, min(8192, (cap_rows // 8) * 8))
    if node_tile is not None:
        cap_rows = max(8, min(cap_rows, (int(node_tile) // 8) * 8))
    tn, n_pad = _node_tiling(N, cap_rows)
    g = n_pad // tn

    if n_pad != N:
        # Only for ragged / pathological N (full extra copy of z).  Zero pad
        # rows add the same tanh(b1)@w2 constant to every metapath score and
        # softmax is shift-invariant, so beta is unaffected; the mean below
        # divides by the true N.
        z_wide_p = jnp.pad(z_wide, ((0, n_pad - N), (0, 0)))
    else:
        z_wide_p = z_wide

    # ---- pass 1: per-metapath column sums of h, per node tile ---------------
    hsums = pl.pallas_call(
        _scores_kernel,
        out_shape=jax.ShapeDtypeStruct((g, M, H), jnp.float32),
        grid=(g,),
        in_specs=[
            pl.BlockSpec((tn, M * D), lambda i: (i, 0)),
            pl.BlockSpec((D, H), lambda i: (0, 0)),
            pl.BlockSpec((1, H), lambda i: (0, 0)),
        ],
        out_specs=pl.BlockSpec((None, M, H), lambda i: (i, 0, 0)),
        compiler_params=cparams,
    )(z_wide_p, w1, b1_row)

    # Tiny length-M glue: combine tile partials, project with w2, mean, softmax.
    colsum = jnp.sum(hsums, axis=0)                          # (M, H)
    scores = (colsum @ w2.reshape(H, 1)).reshape(M) / N      # true N for mean
    beta = jax.nn.softmax(scores)                            # (M,) f32

    # ---- pass 2: weighted sum over metapaths ---------------------------------
    out = pl.pallas_call(
        _weighted_sum_kernel,
        out_shape=jax.ShapeDtypeStruct((n_pad, D), jnp.float32),
        grid=(g,),
        in_specs=[
            pl.BlockSpec(memory_space=pltpu.MemorySpace.SMEM),   # beta scalars
            pl.BlockSpec((tn, M * D), lambda i: (i, 0)),
        ],
        out_specs=pl.BlockSpec((tn, D), lambda i: (i, 0)),
        compiler_params=cparams,
    )(beta, z_wide_p)

    return out if n_pad == N else out[:N]


def semantic_attention_ref(z, w1, b1, w2):
    """Pure-JAX reference mirroring the PyTorch module."""
    w = jnp.tanh(z @ w1 + b1) @ w2          # (N, M, 1)
    w = w.mean(0)                           # (M, 1)
    beta = jax.nn.softmax(w, axis=0)        # (M, 1)
    return (beta[None, :, :] * z).sum(1)    # (N, D)


if __name__ == "__main__":
    # Keep reference matmuls in true f32 so the tolerance check is meaningful.
    jax.config.update("jax_default_matmul_precision", "highest")

    # Shapes consistent with the module: N nodes, M metapaths, D=in_size,
    # H=hidden_size (module default 128).
    N, M, D, H = 200, 4, 128, 128

    key = jax.random.PRNGKey(0)
    kz, k1, k2, k3 = jax.random.split(key, 4)

    z = jax.random.normal(kz, (N, M, D), dtype=jnp.float32)

    # Deterministic parameter init (PyTorch-Linear-style uniform bounds).
    lim1 = 1.0 / jnp.sqrt(D)
    lim2 = 1.0 / jnp.sqrt(H)
    w1 = jax.random.uniform(k1, (D, H), jnp.float32, -lim1, lim1)
    b1 = jax.random.uniform(k2, (H,), jnp.float32, -lim1, lim1)
    w2 = jax.random.uniform(k3, (H, 1), jnp.float32, -lim2, lim2)

    ref = semantic_attention_ref(z, w1, b1, w2)

    # 1) Fused small-N fast path (z read from HBM once).
    out_fused = jax.block_until_ready(semantic_attention(z, w1, b1, w2))
    assert out_fused.shape == (N, D)
    assert jnp.allclose(out_fused, ref, atol=1e-4, rtol=1e-4), "fused mismatch"

    # 2) Tiled two-pass path (N=200 -> divisor tile tn=40, 5 grid steps, no pad).
    out_tiled = jax.block_until_ready(
        semantic_attention(z, w1, b1, w2, allow_fused=False))
    assert jnp.allclose(out_tiled, ref, atol=1e-4, rtol=1e-4), "tiled mismatch"

    # 3) Ragged-N two-pass path (exercises the zero-pad fallback; N=52 -> 56).
    z52 = z[:52]
    ref52 = semantic_attention_ref(z52, w1, b1, w2)
    out52 = jax.block_until_ready(
        semantic_attention(z52, w1, b1, w2, allow_fused=False))
    assert out52.shape == (52, D)
    assert jnp.allclose(out52, ref52, atol=1e-4, rtol=1e-4), "ragged mismatch"

    print("KERNEL_OK")
</pallas_src>

<mosaic_0001>
module attributes {stable_mosaic.version = 11 : i64} {
  func.func @_fused_kernel(%arg0: i32, %arg1: memref<200x512xf32, #tpu.memory_space<vmem>>, %arg2: memref<128x128xf32, #tpu.memory_space<vmem>>, %arg3: memref<1x128xf32, #tpu.memory_space<vmem>>, %arg4: memref<1x128xf32, #tpu.memory_space<vmem>>, %arg5: memref<200x128xf32, #tpu.memory_space<vmem>>) attributes {dimension_semantics = [#tpu.dimension_semantics<parallel>], iteration_bounds = array<i64: 1>, scalar_prefetch = 0 : i64, scratch_operands = 0 : i64, tpu.core_type = #tpu.core_type<tc>, window_params = [{pipeline_mode = #tpu.pipeline_mode<synchronous>, transform_indices = @transform_0, window_bounds = array<i64: 200, 512>}, {pipeline_mode = #tpu.pipeline_mode<synchronous>, transform_indices = @transform_1, window_bounds = array<i64: 128, 128>}, {pipeline_mode = #tpu.pipeline_mode<synchronous>, transform_indices = @transform_2, window_bounds = array<i64: 1, 128>}, {pipeline_mode = #tpu.pipeline_mode<synchronous>, transform_indices = @transform_3, window_bounds = array<i64: 1, 128>}, {pipeline_mode = #tpu.pipeline_mode<synchronous>, transform_indices = @transform_4, window_bounds = array<i64: 200, 128>}]} {
    %c0 = arith.constant 0 : index
    %c0_0 = arith.constant 0 : index
    %0 = vector.load %arg1[%c0, %c0_0] : memref<200x512xf32, #tpu.memory_space<vmem>>, vector<200x128xf32>
    %c0_1 = arith.constant 0 : index
    %c0_2 = arith.constant 0 : index
    %1 = vector.load %arg2[%c0_1, %c0_2] : memref<128x128xf32, #tpu.memory_space<vmem>>, vector<128x128xf32>
    %cst = arith.constant dense<0.000000e+00> : vector<200x128xf32>
    %2 = tpu.matmul %0, %1, %cst {dimension_numbers = #tpu.dot_dimension_numbers<[1], [0], [0], [1], [0, 0, 1, 1], [], []>, precision = #tpu.contract_precision<fp32>} : vector<200x128xf32>, vector<128x128xf32>, vector<200x128xf32> -> vector<200x128xf32>
    %c0_3 = arith.constant 0 : index
    %c0_4 = arith.constant 0 : index
    %3 = vector.load %arg3[%c0_3, %c0_4] : memref<1x128xf32, #tpu.memory_space<vmem>>, vector<1x128xf32>
    %4 = vector.broadcast %3 : vector<1x128xf32> to vector<200x128xf32>
    %5 = arith.addf %2, %4 : vector<200x128xf32>
    %6 = math.tanh %5 : vector<200x128xf32>
    %cst_5 = arith.constant dense<0.000000e+00> : vector<128xf32>
    %7 = vector.multi_reduction <add>, %6, %cst_5 [0] : vector<200x128xf32> to vector<128xf32>
    %8 = vector.shape_cast %7 : vector<128xf32> to vector<1x128xf32>
    %c0_6 = arith.constant 0 : index
    %c0_7 = arith.constant 0 : index
    %9 = vector.load %arg4[%c0_6, %c0_7] : memref<1x128xf32, #tpu.memory_space<vmem>>, vector<1x128xf32>
    %10 = arith.mulf %8, %9 : vector<1x128xf32>
    %cst_8 = arith.constant dense<0.000000e+00> : vector<1xf32>
    %11 = vector.multi_reduction <add>, %10, %cst_8 [1] : vector<1x128xf32> to vector<1xf32>
    %12 = vector.shape_cast %11 : vector<1xf32> to vector<1x1xf32>
    %cst_9 = arith.constant 2.000000e+02 : f32
    %13 = vector.broadcast %cst_9 : f32 to vector<1x1xf32>
    %14 = arith.divf %12, %13 : vector<1x1xf32>
    %c0_10 = arith.constant 0 : index
    %c128 = arith.constant 128 : index
    %15 = vector.load %arg1[%c0_10, %c128] : memref<200x512xf32, #tpu.memory_space<vmem>>, vector<200x128xf32>
    %c0_11 = arith.constant 0 : index
    %c0_12 = arith.constant 0 : index
    %16 = vector.load %arg2[%c0_11, %c0_12] : memref<128x128xf32, #tpu.memory_space<vmem>>, vector<128x128xf32>
    %cst_13 = arith.constant dense<0.000000e+00> : vector<200x128xf32>
    %17 = tpu.matmul %15, %16, %cst_13 {dimension_numbers = #tpu.dot_dimension_numbers<[1], [0], [0], [1], [0, 0, 1, 1], [], []>, precision = #tpu.contract_precision<fp32>} : vector<200x128xf32>, vector<128x128xf32>, vector<200x128xf32> -> vector<200x128xf32>
    %c0_14 = arith.constant 0 : index
    %c0_15 = arith.constant 0 : index
    %18 = vector.load %arg3[%c0_14, %c0_15] : memref<1x128xf32, #tpu.memory_space<vmem>>, vector<1x128xf32>
    %19 = vector.broadcast %18 : vector<1x128xf32> to vector<200x128xf32>
    %20 = arith.addf %17, %19 : vector<200x128xf32>
    %21 = math.tanh %20 : vector<200x128xf32>
    %cst_16 = arith.constant dense<0.000000e+00> : vector<128xf32>
    %22 = vector.multi_reduction <add>, %21, %cst_16 [0] : vector<200x128xf32> to vector<128xf32>
    %23 = vector.shape_cast %22 : vector<128xf32> to vector<1x128xf32>
    %c0_17 = arith.constant 0 : index
    %c0_18 = arith.constant 0 : index
    %24 = vector.load %arg4[%c0_17, %c0_18] : memref<1x128xf32, #tpu.memory_space<vmem>>, vector<1x128xf32>
    %25 = arith.mulf %23, %24 : vector<1x128xf32>
    %cst_19 = arith.constant dense<0.000000e+00> : vector<1xf32>
    %26 = vector.multi_reduction <add>, %25, %cst_19 [1] : vector<1x128xf32> to vector<1xf32>
    %27 = vector.shape_cast %26 : vector<1xf32> to vector<1x1xf32>
    %cst_20 = arith.constant 2.000000e+02 : f32
    %28 = vector.broadcast %cst_20 : f32 to vector<1x1xf32>
    %29 = arith.divf %27, %28 : vector<1x1xf32>
    %c0_21 = arith.constant 0 : index
    %c256 = arith.constant 256 : index
    %30 = vector.load %arg1[%c0_21, %c256] : memref<200x512xf32, #tpu.memory_space<vmem>>, vector<200x128xf32>
    %c0_22 = arith.constant 0 : index
    %c0_23 = arith.constant 0 : index
    %31 = vector.load %arg2[%c0_22, %c0_23] : memref<128x128xf32, #tpu.memory_space<vmem>>, vector<128x128xf32>
    %cst_24 = arith.constant dense<0.000000e+00> : vector<200x128xf32>
    %32 = tpu.matmul %30, %31, %cst_24 {dimension_numbers = #tpu.dot_dimension_numbers<[1], [0], [0], [1], [0, 0, 1, 1], [], []>, precision = #tpu.contract_precision<fp32>} : vector<200x128xf32>, vector<128x128xf32>, vector<200x128xf32> -> vector<200x128xf32>
    %c0_25 = arith.constant 0 : index
    %c0_26 = arith.constant 0 : index
    %33 = vector.load %arg3[%c0_25, %c0_26] : memref<1x128xf32, #tpu.memory_space<vmem>>, vector<1x128xf32>
    %34 = vector.broadcast %33 : vector<1x128xf32> to vector<200x128xf32>
    %35 = arith.addf %32, %34 : vector<200x128xf32>
    %36 = math.tanh %35 : vector<200x128xf32>
    %cst_27 = arith.constant dense<0.000000e+00> : vector<128xf32>
    %37 = vector.multi_reduction <add>, %36, %cst_27 [0] : vector<200x128xf32> to vector<128xf32>
    %38 = vector.shape_cast %37 : vector<128xf32> to vector<1x128xf32>
    %c0_28 = arith.constant 0 : index
    %c0_29 = arith.constant 0 : index
    %39 = vector.load %arg4[%c0_28, %c0_29] : memref<1x128xf32, #tpu.memory_space<vmem>>, vector<1x128xf32>
    %40 = arith.mulf %38, %39 : vector<1x128xf32>
    %cst_30 = arith.constant dense<0.000000e+00> : vector<1xf32>
    %41 = vector.multi_reduction <add>, %40, %cst_30 [1] : vector<1x128xf32> to vector<1xf32>
    %42 = vector.shape_cast %41 : vector<1xf32> to vector<1x1xf32>
    %cst_31 = arith.constant 2.000000e+02 : f32
    %43 = vector.broadcast %cst_31 : f32 to vector<1x1xf32>
    %44 = arith.divf %42, %43 : vector<1x1xf32>
    %c0_32 = arith.constant 0 : index
    %c384 = arith.constant 384 : index
    %45 = vector.load %arg1[%c0_32, %c384] : memref<200x512xf32, #tpu.memory_space<vmem>>, vector<200x128xf32>
    %c0_33 = arith.constant 0 : index
    %c0_34 = arith.constant 0 : index
    %46 = vector.load %arg2[%c0_33, %c0_34] : memref<128x128xf32, #tpu.memory_space<vmem>>, vector<128x128xf32>
    %cst_35 = arith.constant dense<0.000000e+00> : vector<200x128xf32>
    %47 = tpu.matmul %45, %46, %cst_35 {dimension_numbers = #tpu.dot_dimension_numbers<[1], [0], [0], [1], [0, 0, 1, 1], [], []>, precision = #tpu.contract_precision<fp32>} : vector<200x128xf32>, vector<128x128xf32>, vector<200x128xf32> -> vector<200x128xf32>
    %c0_36 = arith.constant 0 : index
    %c0_37 = arith.constant 0 : index
    %48 = vector.load %arg3[%c0_36, %c0_37] : memref<1x128xf32, #tpu.memory_space<vmem>>, vector<1x128xf32>
    %49 = vector.broadcast %48 : vector<1x128xf32> to vector<200x128xf32>
    %50 = arith.addf %47, %49 : vector<200x128xf32>
    %51 = math.tanh %50 : vector<200x128xf32>
    %cst_38 = arith.constant dense<0.000000e+00> : vector<128xf32>
    %52 = vector.multi_reduction <add>, %51, %cst_38 [0] : vector<200x128xf32> to vector<128xf32>
    %53 = vector.shape_cast %52 : vector<128xf32> to vector<1x128xf32>
    %c0_39 = arith.constant 0 : index
    %c0_40 = arith.constant 0 : index
    %54 = vector.load %arg4[%c0_39, %c0_40] : memref<1x128xf32, #tpu.memory_space<vmem>>, vector<1x128xf32>
    %55 = arith.mulf %53, %54 : vector<1x128xf32>
    %cst_41 = arith.constant dense<0.000000e+00> : vector<1xf32>
    %56 = vector.multi_reduction <add>, %55, %cst_41 [1] : vector<1x128xf32> to vector<1xf32>
    %57 = vector.shape_cast %56 : vector<1xf32> to vector<1x1xf32>
    %cst_42 = arith.constant 2.000000e+02 : f32
    %58 = vector.broadcast %cst_42 : f32 to vector<1x1xf32>
    %59 = arith.divf %57, %58 : vector<1x1xf32>
    %60 = arith.maximumf %14, %29 : vector<1x1xf32>
    %61 = arith.maximumf %60, %44 : vector<1x1xf32>
    %62 = arith.maximumf %61, %59 : vector<1x1xf32>
    %63 = arith.subf %14, %62 : vector<1x1xf32>
    %64 = math.exp %63 : vector<1x1xf32>
    %65 = arith.subf %29, %62 : vector<1x1xf32>
    %66 = math.exp %65 : vector<1x1xf32>
    %67 = arith.subf %44, %62 : vector<1x1xf32>
    %68 = math.exp %67 : vector<1x1xf32>
    %69 = arith.subf %59, %62 : vector<1x1xf32>
    %70 = math.exp %69 : vector<1x1xf32>
    %71 = arith.addf %64, %66 : vector<1x1xf32>
    %72 = arith.addf %71, %68 : vector<1x1xf32>
    %73 = arith.addf %72, %70 : vector<1x1xf32>
    %cst_43 = arith.constant 1.000000e+00 : f32
    %74 = vector.broadcast %cst_43 : f32 to vector<1x1xf32>
    %75 = arith.divf %74, %73 : vector<1x1xf32>
    %c0_44 = arith.constant 0 : index
    %c0_45 = arith.constant 0 : index
    %76 = vector.load %arg1[%c0_44, %c0_45] : memref<200x512xf32, #tpu.memory_space<vmem>>, vector<200x128xf32>
    %77 = arith.mulf %64, %75 : vector<1x1xf32>
    %78 = vector.broadcast %77 : vector<1x1xf32> to vector<200x128xf32>
    %79 = arith.mulf %76, %78 : vector<200x128xf32>
    %c0_46 = arith.constant 0 : index
    %c128_47 = arith.constant 128 : index
    %80 = vector.load %arg1[%c0_46, %c128_47] : memref<200x512xf32, #tpu.memory_space<vmem>>, vector<200x128xf32>
    %81 = arith.mulf %66, %75 : vector<1x1xf32>
    %82 = vector.broadcast %81 : vector<1x1xf32> to vector<200x128xf32>
    %83 = arith.mulf %80, %82 : vector<200x128xf32>
    %84 = arith.addf %79, %83 : vector<200x128xf32>
    %c0_48 = arith.constant 0 : index
    %c256_49 = arith.constant 256 : index
    %85 = vector.load %arg1[%c0_48, %c256_49] : memref<200x512xf32, #tpu.memory_space<vmem>>, vector<200x128xf32>
    %86 = arith.mulf %68, %75 : vector<1x1xf32>
    %87 = vector.broadcast %86 : vector<1x1xf32> to vector<200x128xf32>
    %88 = arith.mulf %85, %87 : vector<200x128xf32>
    %89 = arith.addf %84, %88 : vector<200x128xf32>
    %c0_50 = arith.constant 0 : index
    %c384_51 = arith.constant 384 : index
    %90 = vector.load %arg1[%c0_50, %c384_51] : memref<200x512xf32, #tpu.memory_space<vmem>>, vector<200x128xf32>
    %91 = arith.mulf %70, %75 : vector<1x1xf32>
    %92 = vector.broadcast %91 : vector<1x1xf32> to vector<200x128xf32>
    %93 = arith.mulf %90, %92 : vector<200x128xf32>
    %94 = arith.addf %89, %93 : vector<200x128xf32>
    %c0_52 = arith.constant 0 : index
    %c0_53 = arith.constant 0 : index
    %95 = vector.load %arg5[%c0_52, %c0_53] : memref<200x128xf32, #tpu.memory_space<vmem>>, vector<200x128xf32>
    tpu.vector_store %arg5[%c0_52, %c0_53], %94 {strides = array<i32>} : memref<200x128xf32, #tpu.memory_space<vmem>>, vector<200x128xf32>,
    return
  }
  func.func @transform_0(%arg0: i32) -> (i32, i32) {
    %c0_i32 = arith.constant 0 : i32
    %c0_i32_0 = arith.constant 0 : i32
    %c0_i32_1 = arith.constant 0 : i32
    return %c0_i32, %c0_i32_0 : i32, i32
  }
  func.func @transform_1(%arg0: i32) -> (i32, i32) {
    %c0_i32 = arith.constant 0 : i32
    %c0_i32_0 = arith.constant 0 : i32
    %c0_i32_1 = arith.constant 0 : i32
    return %c0_i32, %c0_i32_0 : i32, i32
  }
  func.func @transform_2(%arg0: i32) -> (i32, i32) {
    %c0_i32 = arith.constant 0 : i32
    %c0_i32_0 = arith.constant 0 : i32
    %c0_i32_1 = arith.constant 0 : i32
    return %c0_i32, %c0_i32_0 : i32, i32
  }
  func.func @transform_3(%arg0: i32) -> (i32, i32) {
    %c0_i32 = arith.constant 0 : i32
    %c0_i32_0 = arith.constant 0 : i32
    %c0_i32_1 = arith.constant 0 : i32
    return %c0_i32, %c0_i32_0 : i32, i32
  }
  func.func @transform_4(%arg0: i32) -> (i32, i32) {
    %c0_i32 = arith.constant 0 : i32
    %c0_i32_0 = arith.constant 0 : i32
    %c0_i32_1 = arith.constant 0 : i32
    return %c0_i32, %c0_i32_0 : i32, i32
  }
}

</mosaic_0001>

<llo_original>
// kernel: tpu_custom_call.1
$region0: #{tpu_custom_call.1}
  #allocation0 [shape = 'u32[]', space=smem, size = 0x4, offset = 0x4, fixed_abs, tag = 'smem constant byte address 0x4 - core index']
  #allocation1 [shape = 'u32[144,128]{1,0:T(1,128)}', space=vmem, size = 0x12000, scoped, tag = 'internal scratch']
  %s0 = inlined_call_operand.hbm [shape: f32[200,512], index: 0, kind: input, shape index: {}]
  %s1 = inlined_call_operand.hbm [shape: f32[128,128], index: 1, kind: input, shape index: {}]
  %s2 = inlined_call_operand.vmem [shape: f32[1,128], index: 2, kind: input, shape index: {}]
  %s3 = inlined_call_operand.vmem [shape: f32[1,128], index: 3, kind: input, shape index: {}]
  %s4 = inlined_call_operand.hbm [shape: f32[200,128], index: 4, kind: output, shape index: {}]
  %s5 = sld [smem:[#allocation0]]
  $region34: #{tpu_custom_call.1} parent=0
    _
  %s7 = ssub.s32 1, %s5
  %s8 = scalar_select 0, %s7, %s5
  $region1: #{tpu_custom_call.1} parent=0
    #allocation2 [shape = 'u8[409600]{0}', space=vmem, size = 0x64000, scoped, tag = 'input window, operand 0, single buffered']
    #allocation3 [shape = 's32[1]{0}', space=sflag, size = 0x4, scoped, tag = 'scoped memory for tpu_custom_call.1']
    #allocation4 [shape = 's32[1]{0}', space=sflag, size = 0x4, scoped, tag = 'scoped memory for tpu_custom_call.1']
    #allocation5 [shape = 'u8[65536]{0}', space=vmem, size = 0x10000, scoped, tag = 'input window, operand 1, single buffered']
    #allocation6 [shape = 's32[1]{0}', space=sflag, size = 0x4, scoped, tag = 'scoped memory for tpu_custom_call.1']
    #allocation7 [shape = 'u8[102400]{0}', space=vmem, size = 0x19000, scoped, tag = 'output window, operand 0, single buffered']
    %9 = vsyncpa [#allocation3], 0
    %10 = vsyncpa [#allocation6], 0
    %11 = vsyncpa [#allocation4], 0
    // Predicated region
    $region2: #{tpu_custom_call.1} parent=1 // pred_check
      _
    $region3: #{tpu_custom_call.1} parent=1 // pred_check_branch
      %13 = sbr.rel (0) target = $region5
    $region4: #{tpu_custom_call.1} parent=1 // pred_region
      %s15 = ssub.s32 12800, 12800
      %16 = vsyncadd [#allocation3], %s15
      %s17 = sshll.u32 [#allocation2], 4
      %s18 = int_to_ptr.vmem [resolvable:$true] %s17
      %23 = dma.hbm_to_vmem [thread:$0]  %s0, 12800, %s18, [#allocation3], 512, 512, 32
    $region5: #{tpu_custom_call.1} parent=1 // pred_fallthru
      _
    // Predicated region
    $region6: #{tpu_custom_call.1} parent=1 // pred_check
      _
    $region7: #{tpu_custom_call.1} parent=1 // pred_check_branch
      %25 = sbr.rel (0) target = $region9
    $region8: #{tpu_custom_call.1} parent=1 // pred_region
      %s27 = ssub.s32 2048, 2048
      %28 = vsyncadd [#allocation6], %s27
      %s29 = sshll.u32 [#allocation5], 4
      %s30 = int_to_ptr.vmem [resolvable:$true] %s29
      %35 = dma.hbm_to_vmem [thread:$0]  %s1, 2048, %s30, [#allocation6], 128, 128, 8
    $region9: #{tpu_custom_call.1} parent=1 // pred_fallthru
      _
    // Predicated region
    $region10: #{tpu_custom_call.1} parent=1 // pred_check
      _
    $region11: #{tpu_custom_call.1} parent=1 // pred_check_branch
      %37 = sbr.rel (0) target = $region13
    $region12: #{tpu_custom_call.1} parent=1 // pred_region
      _
    $region13: #{tpu_custom_call.1} parent=1 // pred_fallthru
      _
    // Predicated region
    $region14: #{tpu_custom_call.1} parent=1 // pred_check
      _
    $region15: #{tpu_custom_call.1} parent=1 // pred_check_branch
      %39 = sbr.rel (0) target = $region17
    $region16: #{tpu_custom_call.1} parent=1 // pred_region
      _
    $region17: #{tpu_custom_call.1} parent=1 // pred_fallthru
      _
    // Predicated region
    $region18: #{tpu_custom_call.1} parent=1 // pred_check
      _
    $region19: #{tpu_custom_call.1} parent=1 // pred_check_branch
      %41 = sbr.rel (0) target = $region21
    $region20: #{tpu_custom_call.1} parent=1 // pred_region
      %42 = dma.done [#allocation3], 12800
    $region21: #{tpu_custom_call.1} parent=1 // pred_fallthru
      _
    // Predicated region
    $region22: #{tpu_custom_call.1} parent=1 // pred_check
      _
    $region23: #{tpu_custom_call.1} parent=1 // pred_check_branch
      %44 = sbr.rel (0) target = $region25
    $region24: #{tpu_custom_call.1} parent=1 // pred_region
      %45 = dma.done [#allocation6], 2048
    $region25: #{tpu_custom_call.1} parent=1 // pred_fallthru
      _
    %v46 = vld [vmem:[#allocation2] sm:$0xff]
    %v47 = vld [vmem:[#allocation2 + $0x20] sm:$0xff]
    %v48 = vld [vmem:[#allocation2 + $0x40] sm:$0xff]
    %v49 = vld [vmem:[#allocation2 + $0x60] sm:$0xff]
    %v50 = vld [vmem:[#allocation2 + $0x80] sm:$0xff]
    %v51 = vld [vmem:[#allocation2 + $0xa0] sm:$0xff]
    %v52 = vld [vmem:[#allocation2 + $0xc0] sm:$0xff]
    %v53 = vld [vmem:[#allocation2 + $0xe0] sm:$0xff]
    %v54 = vld [vmem:[#allocation2 + $0x100] sm:$0xff]
    %v55 = vld [vmem:[#allocation2 + $0x120] sm:$0xff]
    %v56 = vld [vmem:[#allocation2 + $0x140] sm:$0xff]
    %v57 = vld [vmem:[#allocation2 + $0x160] sm:$0xff]
    %v58 = vld [vmem:[#allocation2 + $0x180] sm:$0xff]
    %v59 = vld [vmem:[#allocation2 + $0x1a0] sm:$0xff]
    %v60 = vld [vmem:[#allocation2 + $0x1c0] sm:$0xff]
    %v61 = vld [vmem:[#allocation2 + $0x1e0] sm:$0xff]
    %v62 = vld [vmem:[#allocation2 + $0x200] sm:$0xff]
    %v63 = vld [vmem:[#allocation2 + $0x220] sm:$0xff]
    %v64 = vld [vmem:[#allocation2 + $0x240] sm:$0xff]
    %v65 = vld [vmem:[#allocation2 + $0x260] sm:$0xff]
    %v66 = vld [vmem:[#allocation2 + $0x280] sm:$0xff]
    %v67 = vld [vmem:[#allocation2 + $0x2a0] sm:$0xff]
    %v68 = vld [vmem:[#allocation2 + $0x2c0] sm:$0xff]
    %v69 = vld [vmem:[#allocation2 + $0x2e0] sm:$0xff]
    %v70 = vld [vmem:[#allocation2 + $0x300] sm:$0xff]
    %v71 = vld [vmem:[#allocation5] sm:$0xff]
    %v72 = vld [vmem:[#allocation5 + $0x8] sm:$0xff]
    %v73 = vld [vmem:[#allocation5 + $0x10] sm:$0xff]
    %v74 = vld [vmem:[#allocation5 + $0x18] sm:$0xff]
    %v75 = vld [vmem:[#allocation5 + $0x20] sm:$0xff]
    %v76 = vld [vmem:[#allocation5 + $0x28] sm:$0xff]
    %v77 = vld [vmem:[#allocation5 + $0x30] sm:$0xff]
    %v78 = vld [vmem:[#allocation5 + $0x38] sm:$0xff]
    %v79 = vld [vmem:[#allocation5 + $0x40] sm:$0xff]
    %v80 = vld [vmem:[#allocation5 + $0x48] sm:$0xff]
    %v81 = vld [vmem:[#allocation5 + $0x50] sm:$0xff]
    %v82 = vld [vmem:[#allocation5 + $0x58] sm:$0xff]
    %v83 = vld [vmem:[#allocation5 + $0x60] sm:$0xff]
    %v84 = vld [vmem:[#allocation5 + $0x68] sm:$0xff]
    %v85 = vld [vmem:[#allocation5 + $0x70] sm:$0xff]
    %v86 = vld [vmem:[#allocation5 + $0x78] sm:$0xff]
    %v87 = vld [vmem:[%s2] sm:$0x1]
    %v89 = vlaneseq
    %v90 = vshrl.u32 %v89, 7
    %v91 = vsub.s32 0, %v90
    %v92 = vrot.slane %v87, %v91
    %94 = vmatprep.subr.mxu0 0.0
    %v95 = vand.u32 %v71, 4294901760
    %96 = vmatpush1.msra.mxu0 %v95
    %97 = vmatprep.subr.mxu0 0.0
    %v98 = vand.u32 %v72, 4294901760
    %99 = vmatpush1.msra.mxu0 %v98
    %100 = vmatprep.subr.mxu0 0.0
    %v101 = vand.u32 %v73, 4294901760
    %102 = vmatpush1.msra.mxu0 %v101
    %103 = vmatprep.subr.mxu0 0.0
    %v104 = vand.u32 %v74, 4294901760
    %105 = vmatpush1.msra.mxu0 %v104
    %106 = vmatprep.subr.mxu0 0.0
    %v107 = vand.u32 %v75, 4294901760
    %108 = vmatpush1.msra.mxu0 %v107
    %109 = vmatprep.subr.mxu0 0.0
    %v110 = vand.u32 %v76, 4294901760
    %111 = vmatpush1.msra.mxu0 %v110
    %112 = vmatprep.subr.mxu0 0.0
    %v113 = vand.u32 %v77, 4294901760
    %114 = vmatpush1.msra.mxu0 %v113
    %115 = vmatprep.subr.mxu0 0.0
    %v116 = vand.u32 %v78, 4294901760
    %117 = vmatpush1.msra.mxu0 %v116
    %118 = vmatprep.subr.mxu0 0.0
    %v119 = vand.u32 %v79, 4294901760
    %120 = vmatpush1.msra.mxu0 %v119
    %121 = vmatprep.subr.mxu0 0.0
    %v122 = vand.u32 %v80, 4294901760
    %123 = vmatpush1.msra.mxu0 %v122
    %124 = vmatprep.subr.mxu0 0.0
    %v125 = vand.u32 %v81, 4294901760
    %126 = vmatpush1.msra.mxu0 %v125
    %127 = vmatprep.subr.mxu0 0.0
    %v128 = vand.u32 %v82, 4294901760
    %129 = vmatpush1.msra.mxu0 %v128
    %130 = vmatprep.subr.mxu0 0.0
    %v131 = vand.u32 %v83, 4294901760
    %132 = vmatpush1.msra.mxu0 %v131
    %133 = vmatprep.subr.mxu0 0.0
    %v134 = vand.u32 %v84, 4294901760
    %135 = vmatpush1.msra.mxu0 %v134
    %136 = vmatprep.subr.mxu0 0.0
    %v137 = vand.u32 %v85, 4294901760
    %138 = vmatpush1.msra.mxu0 %v137
    %139 = vmatprep.subr.mxu0 0.0
    %v140 = vand.u32 %v86, 4294901760
    %141 = vmatpush1.msra.mxu0 %v140
    %142 = vmatprep.subr.mxu0 0.0
    %143 = vmatpush1.msra.mxu0 0.0
    %144 = vmatprep.subr.mxu0 0.0
    %145 = vmatpush1.msra.mxu0 0.0
    %146 = vmatprep.subr.mxu0 0.0
    %147 = vmatpush1.msra.mxu0 0.0
    %148 = vmatprep.subr.mxu0 0.0
    %149 = vmatpush1.msra.mxu0 0.0
    %150 = vmatprep.subr.mxu0 0.0
    %151 = vmatpush1.msra.mxu0 0.0
    %152 = vmatprep.subr.mxu0 0.0
    %153 = vmatpush1.msra.mxu0 0.0
    %154 = vmatprep.subr.mxu0 0.0
    %155 = vmatpush1.msra.mxu0 0.0
    %156 = vmatprep.subr.mxu0 0.0
    %157 = vmatpush1.msra.mxu0 0.0
    %158 = vmatprep.subr.mxu0 0.0
    %159 = vmatpush1.msra.mxu0 0.0
    %160 = vmatprep.subr.mxu0 0.0
    %161 = vmatpush1.msra.mxu0 0.0
    %162 = vmatprep.subr.mxu0 0.0
    %163 = vmatpush1.msra.mxu0 0.0
    %164 = vmatprep.subr.mxu0 0.0
    %165 = vmatpush1.msra.mxu0 0.0
    %166 = vmatprep.subr.mxu0 0.0
    %167 = vmatpush1.msra.mxu0 0.0
    %168 = vmatprep.subr.mxu0 0.0
    %169 = vmatpush1.msra.mxu0 0.0
    %170 = vmatprep.subr.mxu0 0.0
    %171 = vmatpush1.msra.mxu0 0.0
    %172 = vmatprep.subr.mxu0 0.0
    %173 = vmatpush1.msra.mxu0 0.0
    %174 = vmatprep.mubr.f32.mxu0 0.0
    %v175 = vand.u32 %v46, 4294901760
    %v176 = vsub.f32 %v46, %v175
    %v177 = vand.u32 %v176, 4294901760
    %v178 = vsub.f32 %v176, %v177
    %v179 = vand.u32 %v178, 4294901760
    %180 = vmatmul.mubr.f32.gmra.mrb[0].mxu0 %v179
    %v181 = vpop.f32.mrb[0].mxu0
    %v182 = vadd.f32 %v92, %v181
    %v183 = vpop.f32.mrb[0].mxu0
    %184 = vmatprep.mubr.f32.mxu0 0.0
    %v185 = vand.u32 %v47, 4294901760
    %v186 = vsub.f32 %v47, %v185
    %v187 = vand.u32 %v186, 4294901760
    %v188 = vsub.f32 %v186, %v187
    %v189 = vand.u32 %v188, 4294901760
    %190 = vmatmul.mubr.f32.gmra.mrb[0].mxu0 %v189
    %v191 = vpop.f32.mrb[0].mxu0
    %v192 = vadd.f32 %v92, %v191
    %v193 = vpop.f32.mrb[0].mxu0
    %194 = vmatprep.mubr.f32.mxu0 0.0
    %v195 = vand.u32 %v48, 4294901760
    %v196 = vsub.f32 %v48, %v195
    %v197 = vand.u32 %v196, 4294901760
    %v198 = vsub.f32 %v196, %v197
    %v199 = vand.u32 %v198, 4294901760
    %200 = vmatmul.mubr.f32.gmra.mrb[0].mxu0 %v199
    %v201 = vpop.f32.mrb[0].mxu0
    %v202 = vadd.f32 %v92, %v201
    %v203 = vpop.f32.mrb[0].mxu0
    %204 = vmatprep.mubr.f32.mxu0 0.0
    %v205 = vand.u32 %v49, 4294901760
    %v206 = vsub.f32 %v49, %v205
    %v207 = vand.u32 %v206, 4294901760
    %v208 = vsub.f32 %v206, %v207
    %v209 = vand.u32 %v208, 4294901760
    %210 = vmatmul.mubr.f32.gmra.mrb[0].mxu0 %v209
    %v211 = vpop.f32.mrb[0].mxu0
    %v212 = vadd.f32 %v92, %v211
    %v213 = vpop.f32.mrb[0].mxu0
    %214 = vmatprep.mubr.f32.mxu0 0.0
    %v215 = vand.u32 %v50, 4294901760
    %v216 = vsub.f32 %v50, %v215
    %v217 = vand.u32 %v216, 4294901760
    %v218 = vsub.f32 %v216, %v217
    %v219 = vand.u32 %v218, 4294901760
    %220 = vmatmul.mubr.f32.gmra.mrb[0].mxu0 %v219
    %v221 = vpop.f32.mrb[0].mxu0
    %v222 = vadd.f32 %v92, %v221
    %v223 = vpop.f32.mrb[0].mxu0
    %224 = vmatprep.mubr.f32.mxu0 0.0
    %v225 = vand.u32 %v51, 4294901760
    %v226 = vsub.f32 %v51, %v225
    %v227 = vand.u32 %v226, 4294901760
    %v228 = vsub.f32 %v226, %v227
    %v229 = vand.u32 %v228, 4294901760
    %230 = vmatmul.mubr.f32.gmra.mrb[0].mxu0 %v229
    %v231 = vpop.f32.mrb[0].mxu0
    %v232 = vadd.f32 %v92, %v231
    %v233 = vpop.f32.mrb[0].mxu0
    %234 = vmatprep.mubr.f32.mxu0 0.0
    %v235 = vand.u32 %v52, 4294901760
    %v236 = vsub.f32 %v52, %v235
    %v237 = vand.u32 %v236, 4294901760
    %v238 = vsub.f32 %v236, %v237
    %v239 = vand.u32 %v238, 4294901760
    %240 = vmatmul.mubr.f32.gmra.mrb[0].mxu0 %v239
    %v241 = vpop.f32.mrb[0].mxu0
    %v242 = vadd.f32 %v92, %v241
    %v243 = vpop.f32.mrb[0].mxu0
    %244 = vmatprep.mubr.f32.mxu0 0.0
    %v245 = vand.u32 %v53, 4294901760
    %v246 = vsub.f32 %v53, %v245
    %v247 = vand.u32 %v246, 4294901760
    %v248 = vsub.f32 %v246, %v247
    %v249 = vand.u32 %v248, 4294901760
    %250 = vmatmul.mubr.f32.gmra.mrb[0].mxu0 %v249
    %v251 = vpop.f32.mrb[0].mxu0
    %v252 = vadd.f32 %v92, %v251
    %v253 = vpop.f32.mrb[0].mxu0
    %254 = vmatprep.mubr.f32.mxu0 0.0
    %v255 = vand.u32 %v54, 4294901760
    %v256 = vsub.f32 %v54, %v255
    %v257 = vand.u32 %v256, 4294901760
    %v258 = vsub.f32 %v256, %v257
    %v259 = vand.u32 %v258, 4294901760
    %260 = vmatmul.mubr.f32.gmra.mrb[0].mxu0 %v259
    %v261 = vpop.f32.mrb[0].mxu0
    %v262 = vadd.f32 %v92, %v261
    %v263 = vpop.f32.mrb[0].mxu0
    %264 = vmatprep.mubr.f32.mxu0 0.0
    %v265 = vand.u32 %v55, 4294901760
    %v266 = vsub.f32 %v55, %v265
    %v267 = vand.u32 %v266, 4294901760
    %v268 = vsub.f32 %v266, %v267
    %v269 = vand.u32 %v268, 4294901760
    %270 = vmatmul.mubr.f32.gmra.mrb[0].mxu0 %v269
    %v271 = vpop.f32.mrb[0].mxu0
    %v272 = vadd.f32 %v92, %v271
    %v273 = vpop.f32.mrb[0].mxu0
    %274 = vmatprep.mubr.f32.mxu0 0.0
    %v275 = vand.u32 %v56, 4294901760
    %v276 = vsub.f32 %v56, %v275
    %v277 = vand.u32 %v276, 4294901760
    %v278 = vsub.f32 %v276, %v277
    %v279 = vand.u32 %v278, 4294901760
    %280 = vmatmul.mubr.f32.gmra.mrb[0].mxu0 %v279
    %v281 = vpop.f32.mrb[0].mxu0
    %v282 = vadd.f32 %v92, %v281
    %v283 = vpop.f32.mrb[0].mxu0
    %284 = vmatprep.mubr.f32.mxu0 0.0
    %v285 = vand.u32 %v57, 4294901760
    %v286 = vsub.f32 %v57, %v285
    %v287 = vand.u32 %v286, 4294901760
    %v288 = vsub.f32 %v286, %v287
    %v289 = vand.u32 %v288, 4294901760
    %290 = vmatmul.mubr.f32.gmra.mrb[0].mxu0 %v289
    %v291 = vpop.f32.mrb[0].mxu0
    %v292 = vadd.f32 %v92, %v291
    %v293 = vpop.f32.mrb[0].mxu0
    %294 = vmatprep.mubr.f32.mxu0 0.0
    %v295 = vand.u32 %v58, 4294901760
    %v296 = vsub.f32 %v58, %v295
    %v297 = vand.u32 %v296, 4294901760
    %v298 = vsub.f32 %v296, %v297
    %v299 = vand.u32 %v298, 4294901760
    %300 = vmatmul.mubr.f32.gmra.mrb[0].mxu0 %v299
    %v301 = vpop.f32.mrb[0].mxu0
    %v302 = vadd.f32 %v92, %v301
    %v303 = vpop.f32.mrb[0].mxu0
    %304 = vmatprep.mubr.f32.mxu0 0.0
    %v305 = vand.u32 %v59, 4294901760
    %v306 = vsub.f32 %v59, %v305
    %v307 = vand.u32 %v306, 4294901760
    %v308 = vsub.f32 %v306, %v307
    %v309 = vand.u32 %v308, 4294901760
    %310 = vmatmul.mubr.f32.gmra.mrb[0].mxu0 %v309
    %v311 = vpop.f32.mrb[0].mxu0
    %v312 = vadd.f32 %v92, %v311
    %v313 = vpop.f32.mrb[0].mxu0
    %314 = vmatprep.mubr.f32.mxu0 0.0
    %v315 = vand.u32 %v60, 4294901760
    %v316 = vsub.f32 %v60, %v315
    %v317 = vand.u32 %v316, 4294901760
    %v318 = vsub.f32 %v316, %v317
    %v319 = vand.u32 %v318, 4294901760
    %320 = vmatmul.mubr.f32.gmra.mrb[0].mxu0 %v319
    %v321 = vpop.f32.mrb[0].mxu0
    %v322 = vadd.f32 %v92, %v321
    %v323 = vpop.f32.mrb[0].mxu0
    %324 = vmatprep.mubr.f32.mxu0 0.0
    %v325 = vand.u32 %v61, 4294901760
    %v326 = vsub.f32 %v61, %v325
    %v327 = vand.u32 %v326, 4294901760
    %v328 = vsub.f32 %v326, %v327
    %v329 = vand.u32 %v328, 4294901760
    %330 = vmatmul.mubr.f32.gmra.mrb[0].mxu0 %v329
    %v331 = vpop.f32.mrb[0].mxu0
    %v332 = vadd.f32 %v92, %v331
    %v333 = vpop.f32.mrb[0].mxu0
    %334 = vmatprep.mubr.f32.mxu0 0.0
    %v335 = vand.u32 %v62, 4294901760
    %v336 = vsub.f32 %v62, %v335
    %v337 = vand.u32 %v336, 4294901760
    %v338 = vsub.f32 %v336, %v337
    %v339 = vand.u32 %v338, 4294901760
    %340 = vmatmul.mubr.f32.gmra.mrb[0].mxu0 %v339
    %v341 = vpop.f32.mrb[0].mxu0
    %v342 = vadd.f32 %v92, %v341
    %v343 = vpop.f32.mrb[0].mxu0
    %344 = vmatprep.mubr.f32.mxu0 0.0
    %v345 = vand.u32 %v63, 4294901760
    %v346 = vsub.f32 %v63, %v345
    %v347 = vand.u32 %v346, 4294901760
    %v348 = vsub.f32 %v346, %v347
    %v349 = vand.u32 %v348, 4294901760
    %350 = vmatmul.mubr.f32.gmra.mrb[0].mxu0 %v349
    %v351 = vpop.f32.mrb[0].mxu0
    %v352 = vadd.f32 %v92, %v351
    %v353 = vpop.f32.mrb[0].mxu0
    %354 = vmatprep.mubr.f32.mxu0 0.0
    %v355 = vand.u32 %v64, 4294901760
    %v356 = vsub.f32 %v64, %v355
    %v357 = vand.u32 %v356, 4294901760
    %v358 = vsub.f32 %v356, %v357
    %v359 = vand.u32 %v358, 4294901760
    %360 = vmatmul.mubr.f32.gmra.mrb[0].mxu0 %v359
    %v361 = vpop.f32.mrb[0].mxu0
    %v362 = vadd.f32 %v92, %v361
    %v363 = vpop.f32.mrb[0].mxu0
    %364 = vmatprep.mubr.f32.mxu0 0.0
    %v365 = vand.u32 %v65, 4294901760
    %v366 = vsub.f32 %v65, %v365
    %v367 = vand.u32 %v366, 4294901760
    %v368 = vsub.f32 %v366, %v367
    %v369 = vand.u32 %v368, 4294901760
    %370 = vmatmul.mubr.f32.gmra.mrb[0].mxu0 %v369
    %v371 = vpop.f32.mrb[0].mxu0
    %v372 = vadd.f32 %v92, %v371
    %v373 = vpop.f32.mrb[0].mxu0
    %374 = vmatprep.mubr.f32.mxu0 0.0
    %v375 = vand.u32 %v66, 4294901760
    %v376 = vsub.f32 %v66, %v375
    %v377 = vand.u32 %v376, 4294901760
    %v378 = vsub.f32 %v376, %v377
    %v379 = vand.u32 %v378, 4294901760
    %380 = vmatmul.mubr.f32.gmra.mrb[0].mxu0 %v379
    %v381 = vpop.f32.mrb[0].mxu0
    %v382 = vadd.f32 %v92, %v381
    %v383 = vpop.f32.mrb[0].mxu0
    %384 = vmatprep.mubr.f32.mxu0 0.0
    %v385 = vand.u32 %v67, 4294901760
    %v386 = vsub.f32 %v67, %v385
    %v387 = vand.u32 %v386, 4294901760
    %v388 = vsub.f32 %v386, %v387
    %v389 = vand.u32 %v388, 4294901760
    %390 = vmatmul.mubr.f32.gmra.mrb[0].mxu0 %v389
    %v391 = vpop.f32.mrb[0].mxu0
    %v392 = vadd.f32 %v92, %v391
    %v393 = vpop.f32.mrb[0].mxu0
    %394 = vmatprep.mubr.f32.mxu0 0.0
    %v395 = vand.u32 %v68, 4294901760
    %v396 = vsub.f32 %v68, %v395
    %v397 = vand.u32 %v396, 4294901760
    %v398 = vsub.f32 %v396, %v397
    %v399 = vand.u32 %v398, 4294901760
    %400 = vmatmul.mubr.f32.gmra.mrb[0].mxu0 %v399
    %v401 = vpop.f32.mrb[0].mxu0
    %v402 = vadd.f32 %v92, %v401
    %v403 = vpop.f32.mrb[0].mxu0
    %404 = vmatprep.mubr.f32.mxu0 0.0
    %v405 = vand.u32 %v69, 4294901760
    %v406 = vsub.f32 %v69, %v405
    %v407 = vand.u32 %v406, 4294901760
    %v408 = vsub.f32 %v406, %v407
    %v409 = vand.u32 %v408, 4294901760
    %410 = vmatmul.mubr.f32.gmra.mrb[0].mxu0 %v409
    %v411 = vpop.f32.mrb[0].mxu0
    %v412 = vadd.f32 %v92, %v411
    %v413 = vpop.f32.mrb[0].mxu0
    %414 = vmatprep.mubr.f32.mxu0 0.0
    %v415 = vand.u32 %v70, 4294901760
    %v416 = vsub.f32 %v70, %v415
    %v417 = vand.u32 %v416, 4294901760
    %v418 = vsub.f32 %v416, %v417
    %v419 = vand.u32 %v418, 4294901760
    %420 = vmatmul.mubr.f32.gmra.mrb[0].mxu0 %v419
    %v421 = vpop.f32.mrb[0].mxu0
    %v422 = vadd.f32 %v92, %v421
    %v423 = vpop.f32.mrb[0].mxu0
    %424 = vdwg.mxu0
    %425 = vmatprep.subr.mxu0 0.0
    %v426 = vand.u32 %v71, 4294901760
    %v427 = vsub.f32 %v71, %v426
    %v428 = vand.u32 %v427, 4294901760
    %v429 = vsub.f32 %v427, %v428
    %v430 = vand.u32 %v429, 4294901760
    %431 = vmatpush1.msra.mxu0 %v430
    %432 = vmatprep.subr.mxu0 0.0
    %v433 = vand.u32 %v72, 4294901760
    %v434 = vsub.f32 %v72, %v433
    %v435 = vand.u32 %v434, 4294901760
    %v436 = vsub.f32 %v434, %v435
    %v437 = vand.u32 %v436, 4294901760
    %438 = vmatpush1.msra.mxu0 %v437
    %439 = vmatprep.subr.mxu0 0.0
    %v440 = vand.u32 %v73, 4294901760
    %v441 = vsub.f32 %v73, %v440
    %v442 = vand.u32 %v441, 4294901760
    %v443 = vsub.f32 %v441, %v442
    %v444 = vand.u32 %v443, 4294901760
    %445 = vmatpush1.msra.mxu0 %v444
    %446 = vmatprep.subr.mxu0 0.0
    %v447 = vand.u32 %v74, 4294901760
    %v448 = vsub.f32 %v74, %v447
    %v449 = vand.u32 %v448, 4294901760
    %v450 = vsub.f32 %v448, %v449
    %v451 = vand.u32 %v450, 4294901760
    %452 = vmatpush1.msra.mxu0 %v451
    %453 = vmatprep.subr.mxu0 0.0
    %v454 = vand.u32 %v75, 4294901760
    %v455 = vsub.f32 %v75, %v454
    %v456 = vand.u32 %v455, 4294901760
    %v457 = vsub.f32 %v455, %v456
    %v458 = vand.u32 %v457, 4294901760
    %459 = vmatpush1.msra.mxu0 %v458
    %460 = vmatprep.subr.mxu0 0.0
    %v461 = vand.u32 %v76, 4294901760
    %v462 = vsub.f32 %v76, %v461
    %v463 = vand.u32 %v462, 4294901760
    %v464 = vsub.f32 %v462, %v463
    %v465 = vand.u32 %v464, 4294901760
    %466 = vmatpush1.msra.mxu0 %v465
    %467 = vmatprep.subr.mxu0 0.0
    %v468 = vand.u32 %v77, 4294901760
    %v469 = vsub.f32 %v77, %v468
    %v470 = vand.u32 %v469, 4294901760
    %v471 = vsub.f32 %v469, %v470
    %v472 = vand.u32 %v471, 4294901760
    %473 = vmatpush1.msra.mxu0 %v472
    %474 = vmatprep.subr.mxu0 0.0
    %v475 = vand.u32 %v78, 4294901760
    %v476 = vsub.f32 %v78, %v475
    %v477 = vand.u32 %v476, 4294901760
    %v478 = vsub.f32 %v476, %v477
    %v479 = vand.u32 %v478, 4294901760
    %480 = vmatpush1.msra.mxu0 %v479
    %481 = vmatprep.subr.mxu0 0.0
    %v482 = vand.u32 %v79, 4294901760
    %v483 = vsub.f32 %v79, %v482
    %v484 = vand.u32 %v483, 4294901760
    %v485 = vsub.f32 %v483, %v484
    %v486 = vand.u32 %v485, 4294901760
    %487 = vmatpush1.msra.mxu0 %v486
    %488 = vmatprep.subr.mxu0 0.0
    %v489 = vand.u32 %v80, 4294901760
    %v490 = vsub.f32 %v80, %v489
    %v491 = vand.u32 %v490, 4294901760
    %v492 = vsub.f32 %v490, %v491
    %v493 = vand.u32 %v492, 4294901760
    %494 = vmatpush1.msra.mxu0 %v493
    %495 = vmatprep.subr.mxu0 0.0
    %v496 = vand.u32 %v81, 4294901760
    %v497 = vsub.f32 %v81, %v496
    %v498 = vand.u32 %v497, 4294901760
    %v499 = vsub.f32 %v497, %v498
    %v500 = vand.u32 %v499, 4294901760
    %501 = vmatpush1.msra.mxu0 %v500
    %502 = vmatprep.subr.mxu0 0.0
    %v503 = vand.u32 %v82, 4294901760
    %v504 = vsub.f32 %v82, %v503
    %v505 = vand.u32 %v504, 4294901760
    %v506 = vsub.f32 %v504, %v505
    %v507 = vand.u32 %v506, 4294901760
    %508 = vmatpush1.msra.mxu0 %v507
    %509 = vmatprep.subr.mxu0 0.0
    %v510 = vand.u32 %v83, 4294901760
    %v511 = vsub.f32 %v83, %v510
    %v512 = vand.u32 %v511, 4294901760
    %v513 = vsub.f32 %v511, %v512
    %v514 = vand.u32 %v513, 4294901760
    %515 = vmatpush1.msra.mxu0 %v514
    %516 = vmatprep.subr.mxu0 0.0
    %v517 = vand.u32 %v84, 4294901760
    %v518 = vsub.f32 %v84, %v517
    %v519 = vand.u32 %v518, 4294901760
    %v520 = vsub.f32 %v518, %v519
    %v521 = vand.u32 %v520, 4294901760
    %522 = vmatpush1.msra.mxu0 %v521
    %523 = vmatprep.subr.mxu0 0.0
    %v524 = vand.u32 %v85, 4294901760
    %v525 = vsub.f32 %v85, %v524
    %v526 = vand.u32 %v525, 4294901760
    %v527 = vsub.f32 %v525, %v526
    %v528 = vand.u32 %v527, 4294901760
    %529 = vmatpush1.msra.mxu0 %v528
    %530 = vmatprep.subr.mxu0 0.0
    %v531 = vand.u32 %v86, 4294901760
    %v532 = vsub.f32 %v86, %v531
    %v533 = vand.u32 %v532, 4294901760
    %v534 = vsub.f32 %v532, %v533
    %v535 = vand.u32 %v534, 4294901760
    %536 = vmatpush1.msra.mxu0 %v535
    %537 = vmatprep.subr.mxu0 0.0
    %538 = vmatpush1.msra.mxu0 0.0
    %539 = vmatprep.subr.mxu0 0.0
    %540 = vmatpush1.msra.mxu0 0.0
    %541 = vmatprep.subr.mxu0 0.0
    %542 = vmatpush1.msra.mxu0 0.0
    %543 = vmatprep.subr.mxu0 0.0
    %544 = vmatpush1.msra.mxu0 0.0
    %545 = vmatprep.subr.mxu0 0.0
    %546 = vmatpush1.msra.mxu0 0.0
    %547 = vmatprep.subr.mxu0 0.0
    %548 = vmatpush1.msra.mxu0 0.0
    %549 = vmatprep.subr.mxu0 0.0
    %550 = vmatpush1.msra.mxu0 0.0
    %551 = vmatprep.subr.mxu0 0.0
    %552 = vmatpush1.msra.mxu0 0.0
    %553 = vmatprep.subr.mxu0 0.0
    %554 = vmatpush1.msra.mxu0 0.0
    %555 = vmatprep.subr.mxu0 0.0
    %556 = vmatpush1.msra.mxu0 0.0
    %557 = vmatprep.subr.mxu0 0.0
    %558 = vmatpush1.msra.mxu0 0.0
    %559 = vmatprep.subr.mxu0 0.0
    %560 = vmatpush1.msra.mxu0 0.0
    %561 = vmatprep.subr.mxu0 0.0
    %562 = vmatpush1.msra.mxu0 0.0
    %563 = vmatprep.subr.mxu0 0.0
    %564 = vmatpush1.msra.mxu0 0.0
    %565 = vmatprep.subr.mxu0 0.0
    %566 = vmatpush1.msra.mxu0 0.0
    %567 = vmatprep.subr.mxu0 0.0
    %568 = vmatpush1.msra.mxu0 0.0
    %569 = vmatprep.mubr.f32.mxu0 0.0
    %v570 = vand.u32 %v46, 4294901760
    %571 = vmatmul.mubr.f32.gmra.mrb[0].mxu0 %v570
    %v572 = vpop.f32.mrb[0].mxu0
    %v573 = vadd.f32 %v182, %v572
    %v574 = vpop.f32.mrb[0].mxu0
    %575 = vmatprep.mubr.f32.mxu0 0.0
    %v576 = vand.u32 %v47, 4294901760
    %577 = vmatmul.mubr.f32.gmra.mrb[0].mxu0 %v576
    %v578 = vpop.f32.mrb[0].mxu0
    %v579 = vadd.f32 %v192, %v578
    %v580 = vpop.f32.mrb[0].mxu0
    %581 = vmatprep.mubr.f32.mxu0 0.0
    %v582 = vand.u32 %v48, 4294901760
    %583 = vmatmul.mubr.f32.gmra.mrb[0].mxu0 %v582
    %v584 = vpop.f32.mrb[0].mxu0
    %v585 = vadd.f32 %v202, %v584
    %v586 = vpop.f32.mrb[0].mxu0
    %587 = vmatprep.mubr.f32.mxu0 0.0
    %v588 = vand.u32 %v49, 4294901760
    %589 = vmatmul.mubr.f32.gmra.mrb[0].mxu0 %v588
    %v590 = vpop.f32.mrb[0].mxu0
    %v591 = vadd.f32 %v212, %v590
    %v592 = vpop.f32.mrb[0].mxu0
    %593 = vmatprep.mubr.f32.mxu0 0.0
    %v594 = vand.u32 %v50, 4294901760
    %595 = vmatmul.mubr.f32.gmra.mrb[0].mxu0 %v594
    %v596 = vpop.f32.mrb[0].mxu0
    %v597 = vadd.f32 %v222, %v596
    %v598 = vpop.f32.mrb[0].mxu0
    %599 = vmatprep.mubr.f32.mxu0 0.0
    %v600 = vand.u32 %v51, 4294901760
    %601 = vmatmul.mubr.f32.gmra.mrb[0].mxu0 %v600
    %v602 = vpop.f32.mrb[0].mxu0
    %v603 = vadd.f32 %v232, %v602
    %v604 = vpop.f32.mrb[0].mxu0
    %605 = vmatprep.mubr.f32.mxu0 0.0
    %v606 = vand.u32 %v52, 4294901760
    %607 = vmatmul.mubr.f32.gmra.mrb[0].mxu0 %v606
    %v608 = vpop.f32.mrb[0].mxu0
    %v609 = vadd.f32 %v242, %v608
    %v610 = vpop.f32.mrb[0].mxu0
    %611 = vmatprep.mubr.f32.mxu0 0.0
    %v612 = vand.u32 %v53, 4294901760
    %613 = vmatmul.mubr.f32.gmra.mrb[0].mxu0 %v612
    %v614 = vpop.f32.mrb[0].mxu0
    %v615 = vadd.f32 %v252, %v614
    %v616 = vpop.f32.mrb[0].mxu0
    %617 = vmatprep.mubr.f32.mxu0 0.0
    %v618 = vand.u32 %v54, 4294901760
    %619 = vmatmul.mubr.f32.gmra.mrb[0].mxu0 %v618
    %v620 = vpop.f32.mrb[0].mxu0
    %v621 = vadd.f32 %v262, %v620
    %v622 = vpop.f32.mrb[0].mxu0
    %623 = vmatprep.mubr.f32.mxu0 0.0
    %v624 = vand.u32 %v55, 4294901760
    %625 = vmatmul.mubr.f32.gmra.mrb[0].mxu0 %v624
    %v626 = vpop.f32.mrb[0].mxu0
    %v627 = vadd.f32 %v272, %v626
    %v628 = vpop.f32.mrb[0].mxu0
    %629 = vmatprep.mubr.f32.mxu0 0.0
    %v630 = vand.u32 %v56, 4294901760
    %631 = vmatmul.mubr.f32.gmra.mrb[0].mxu0 %v630
    %v632 = vpop.f32.mrb[0].mxu0
    %v633 = vadd.f32 %v282, %v632
    %v634 = vpop.f32.mrb[0].mxu0
    %635 = vmatprep.mubr.f32.mxu0 0.0
    %v636 = vand.u32 %v57, 4294901760
    %637 = vmatmul.mubr.f32.gmra.mrb[0].mxu0 %v636
    %v638 = vpop.f32.mrb[0].mxu0
    %v639 = vadd.f32 %v292, %v638
    %v640 = vpop.f32.mrb[0].mxu0
    %641 = vmatprep.mubr.f32.mxu0 0.0
    %v642 = vand.u32 %v58, 4294901760
    %643 = vmatmul.mubr.f32.gmra.mrb[0].mxu0 %v642
    %v644 = vpop.f32.mrb[0].mxu0
    %v645 = vadd.f32 %v302, %v644
    %v646 = vpop.f32.mrb[0].mxu0
    %647 = vmatprep.mubr.f32.mxu0 0.0
    %v648 = vand.u32 %v59, 4294901760
    %649 = vmatmul.mubr.f32.gmra.mrb[0].mxu0 %v648
    %v650 = vpop.f32.mrb[0].mxu0
    %v651 = vadd.f32 %v312, %v650
    %v652 = vpop.f32.mrb[0].mxu0
    %653 = vmatprep.mubr.f32.mxu0 0.0
    %v654 = vand.u32 %v60, 4294901760
    %655 = vmatmul.mubr.f32.gmra.mrb[0].mxu0 %v654
    %v656 = vpop.f32.mrb[0].mxu0
    %v657 = vadd.f32 %v322, %v656
    %v658 = vpop.f32.mrb[0].mxu0
    %659 = vmatprep.mubr.f32.mxu0 0.0
    %v660 = vand.u32 %v61, 4294901760
    %661 = vmatmul.mubr.f32.gmra.mrb[0].mxu0 %v660
    %v662 = vpop.f32.mrb[0].mxu0
    %v663 = vadd.f32 %v332, %v662
    %v664 = vpop.f32.mrb[0].mxu0
    %665 = vmatprep.mubr.f32.mxu0 0.0
    %v666 = vand.u32 %v62, 4294901760
    %667 = vmatmul.mubr.f32.gmra.mrb[0].mxu0 %v666
    %v668 = vpop.f32.mrb[0].mxu0
    %v669 = vadd.f32 %v342, %v668
    %v670 = vpop.f32.mrb[0].mxu0
    %671 = vmatprep.mubr.f32.mxu0 0.0
    %v672 = vand.u32 %v63, 4294901760
    %673 = vmatmul.mubr.f32.gmra.mrb[0].mxu0 %v672
    %v674 = vpop.f32.mrb[0].mxu0
    %v675 = vadd.f32 %v352, %v674
    %v676 = vpop.f32.mrb[0].mxu0
    %677 = vmatprep.mubr.f32.mxu0 0.0
    %v678 = vand.u32 %v64, 4294901760
    %679 = vmatmul.mubr.f32.gmra.mrb[0].mxu0 %v678
    %v680 = vpop.f32.mrb[0].mxu0
    %v681 = vadd.f32 %v362, %v680
    %v682 = vpop.f32.mrb[0].mxu0
    %683 = vmatprep.mubr.f32.mxu0 0.0
    %v684 = vand.u32 %v65, 4294901760
    %685 = vmatmul.mubr.f32.gmra.mrb[0].mxu0 %v684
    %v686 = vpop.f32.mrb[0].mxu0
    %v687 = vadd.f32 %v372, %v686
    %v688 = vpop.f32.mrb[0].mxu0
    %689 = vmatprep.mubr.f32.mxu0 0.0
    %v690 = vand.u32 %v66, 4294901760
    %691 = vmatmul.mubr.f32.gmra.mrb[0].mxu0 %v690
    %v692 = vpop.f32.mrb[0].mxu0
    %v693 = vadd.f32 %v382, %v692
    %v694 = vpop.f32.mrb[0].mxu0
    %695 = vmatprep.mubr.f32.mxu0 0.0
    %v696 = vand.u32 %v67, 4294901760
    %697 = vmatmul.mubr.f32.gmra.mrb[0].mxu0 %v696
    %v698 = vpop.f32.mrb[0].mxu0
    %v699 = vadd.f32 %v392, %v698
    %v700 = vpop.f32.mrb[0].mxu0
    %701 = vmatprep.mubr.f32.mxu0 0.0
    %v702 = vand.u32 %v68, 4294901760
    %703 = vmatmul.mubr.f32.gmra.mrb[0].mxu0 %v702
    %v704 = vpop.f32.mrb[0].mxu0
    %v705 = vadd.f32 %v402, %v704
    %v706 = vpop.f32.mrb[0].mxu0
    %707 = vmatprep.mubr.f32.mxu0 0.0
    %v708 = vand.u32 %v69, 4294901760
    %709 = vmatmul.mubr.f32.gmra.mrb[0].mxu0 %v708
    %v710 = vpop.f32.mrb[0].mxu0
    %v711 = vadd.f32 %v412, %v710
    %v712 = vpop.f32.mrb[0].mxu0
    %713 = vmatprep.mubr.f32.mxu0 0.0
    %v714 = vand.u32 %v70, 4294901760
    %715 = vmatmul.mubr.f32.gmra.mrb[0].mxu0 %v714
    %v716 = vpop.f32.mrb[0].mxu0
    %v717 = vadd.f32 %v422, %v716
    %v718 = vpop.f32.mrb[0].mxu0
    %719 = vdwg.mxu0
    %720 = vmatprep.subr.mxu0 0.0
    %v721 = vand.u32 %v71, 4294901760
    %v722 = vsub.f32 %v71, %v721
    %723 = vmatpush1.msra.mxu0 %v722
    %724 = vmatprep.subr.mxu0 0.0
    %v725 = vand.u32 %v72, 4294901760
    %v726 = vsub.f32 %v72, %v725
    %727 = vmatpush1.msra.mxu0 %v726
    %728 = vmatprep.subr.mxu0 0.0
    %v729 = vand.u32 %v73, 4294901760
    %v730 = vsub.f32 %v73, %v729
    %731 = vmatpush1.msra.mxu0 %v730
    %732 = vmatprep.subr.mxu0 0.0
    %v733 = vand.u32 %v74, 4294901760
    %v734 = vsub.f32 %v74, %v733
    %735 = vmatpush1.msra.mxu0 %v734
    %736 = vmatprep.subr.mxu0 0.0
    %v737 = vand.u32 %v75, 4294901760
    %v738 = vsub.f32 %v75, %v737
    %739 = vmatpush1.msra.mxu0 %v738
    %740 = vmatprep.subr.mxu0 0.0
    %v741 = vand.u32 %v76, 4294901760
    %v742 = vsub.f32 %v76, %v741
    %743 = vmatpush1.msra.mxu0 %v742
    %744 = vmatprep.subr.mxu0 0.0
    %v745 = vand.u32 %v77, 4294901760
    %v746 = vsub.f32 %v77, %v745
    %747 = vmatpush1.msra.mxu0 %v746
    %748 = vmatprep.subr.mxu0 0.0
    %v749 = vand.u32 %v78, 4294901760
    %v750 = vsub.f32 %v78, %v749
    %751 = vmatpush1.msra.mxu0 %v750
    %752 = vmatprep.subr.mxu0 0.0
    %v753 = vand.u32 %v79, 4294901760
    %v754 = vsub.f32 %v79, %v753
    %755 = vmatpush1.msra.mxu0 %v754
    %756 = vmatprep.subr.mxu0 0.0
    %v757 = vand.u32 %v80, 4294901760
    %v758 = vsub.f32 %v80, %v757
    %759 = vmatpush1.msra.mxu0 %v758
    %760 = vmatprep.subr.mxu0 0.0
    %v761 = vand.u32 %v81, 4294901760
    %v762 = vsub.f32 %v81, %v761
    %763 = vmatpush1.msra.mxu0 %v762
    %764 = vmatprep.subr.mxu0 0.0
    %v765 = vand.u32 %v82, 4294901760
    %v766 = vsub.f32 %v82, %v765
    %767 = vmatpush1.msra.mxu0 %v766
    %768 = vmatprep.subr.mxu0 0.0
    %v769 = vand.u32 %v83, 4294901760
    %v770 = vsub.f32 %v83, %v769
    %771 = vmatpush1.msra.mxu0 %v770
    %772 = vmatprep.subr.mxu0 0.0
    %v773 = vand.u32 %v84, 4294901760
    %v774 = vsub.f32 %v84, %v773
    %775 = vmatpush1.msra.mxu0 %v774
    %776 = vmatprep.subr.mxu0 0.0
    %v777 = vand.u32 %v85, 4294901760
    %v778 = vsub.f32 %v85, %v777
    %779 = vmatpush1.msra.mxu0 %v778
    %780 = vmatprep.subr.mxu0 0.0
    %v781 = vand.u32 %v86, 4294901760
    %v782 = vsub.f32 %v86, %v781
    %783 = vmatpush1.msra.mxu0 %v782
    %784 = vmatprep.subr.mxu0 0.0
    %785 = vmatpush1.msra.mxu0 0.0
    %786 = vmatprep.subr.mxu0 0.0
    %787 = vmatpush1.msra.mxu0 0.0
    %788 = vmatprep.subr.mxu0 0.0
    %789 = vmatpush1.msra.mxu0 0.0
    %790 = vmatprep.subr.mxu0 0.0
    %791 = vmatpush1.msra.mxu0 0.0
    %792 = vmatprep.subr.mxu0 0.0
    %793 = vmatpush1.msra.mxu0 0.0
    %794 = vmatprep.subr.mxu0 0.0
    %795 = vmatpush1.msra.mxu0 0.0
    %796 = vmatprep.subr.mxu0 0.0
    %797 = vmatpush1.msra.mxu0 0.0
    %798 = vmatprep.subr.mxu0 0.0
    %799 = vmatpush1.msra.mxu0 0.0
    %800 = vmatprep.subr.mxu0 0.0
    %801 = vmatpush1.msra.mxu0 0.0
    %802 = vmatprep.subr.mxu0 0.0
    %803 = vmatpush1.msra.mxu0 0.0
    %804 = vmatprep.subr.mxu0 0.0
    %805 = vmatpush1.msra.mxu0 0.0
    %806 = vmatprep.subr.mxu0 0.0
    %807 = vmatpush1.msra.mxu0 0.0
    %808 = vmatprep.subr.mxu0 0.0
    %809 = vmatpush1.msra.mxu0 0.0
    %810 = vmatprep.subr.mxu0 0.0
    %811 = vmatpush1.msra.mxu0 0.0
    %812 = vmatprep.subr.mxu0 0.0
    %813 = vmatpush1.msra.mxu0 0.0
    %814 = vmatprep.subr.mxu0 0.0
    %815 = vmatpush1.msra.mxu0 0.0
    %816 = vmatprep.mubr.f32.mxu0 0.0
    %v817 = vand.u32 %v46, 4294901760
    %v818 = vsub.f32 %v46, %v817
    %819 = vmatmul.mubr.f32.gmra.mrb[0].mxu0 %v818
    %v820 = vpop.f32.mrb[0].mxu0
    %v821 = vadd.f32 %v573, %v820
    %v822 = vpop.f32.mrb[0].mxu0
    %823 = vmatprep.mubr.f32.mxu0 0.0
    %v824 = vand.u32 %v47, 4294901760
    %v825 = vsub.f32 %v47, %v824
    %826 = vmatmul.mubr.f32.gmra.mrb[0].mxu0 %v825
    %v827 = vpop.f32.mrb[0].mxu0
    %v828 = vadd.f32 %v579, %v827
    %v829 = vpop.f32.mrb[0].mxu0
    %830 = vmatprep.mubr.f32.mxu0 0.0
    %v831 = vand.u32 %v48, 4294901760
    %v832 = vsub.f32 %v48, %v831
    %833 = vmatmul.mubr.f32.gmra.mrb[0].mxu0 %v832
    %v834 = vpop.f32.mrb[0].mxu0
    %v835 = vadd.f32 %v585, %v834
    %v836 = vpop.f32.mrb[0].mxu0
    %837 = vmatprep.mubr.f32.mxu0 0.0
    %v838 = vand.u32 %v49, 4294901760
    %v839 = vsub.f32 %v49, %v838
    %840 = vmatmul.mubr.f32.gmra.mrb[0].mxu0 %v839
    %v841 = vpop.f32.mrb[0].mxu0
    %v842 = vadd.f32 %v591, %v841
    %v843 = vpop.f32.mrb[0].mxu0
    %844 = vmatprep.mubr.f32.mxu0 0.0
    %v845 = vand.u32 %v50, 4294901760
    %v846 = vsub.f32 %v50, %v845
    %847 = vmatmul.mubr.f32.gmra.mrb[0].mxu0 %v846
    %v848 = vpop.f32.mrb[0].mxu0
    %v849 = vadd.f32 %v597, %v848
    %v850 = vpop.f32.mrb[0].mxu0
    %851 = vmatprep.mubr.f32.mxu0 0.0
    %v852 = vand.u32 %v51, 4294901760
    %v853 = vsub.f32 %v51, %v852
    %854 = vmatmul.mubr.f32.gmra.mrb[0].mxu0 %v853
    %v855 = vpop.f32.mrb[0].mxu0
    %v856 = vadd.f32 %v603, %v855
    %v857 = vpop.f32.mrb[0].mxu0
    %858 = vmatprep.mubr.f32.mxu0 0.0
    %v859 = vand.u32 %v52, 4294901760
    %v860 = vsub.f32 %v52, %v859
    %861 = vmatmul.mubr.f32.gmra.mrb[0].mxu0 %v860
    %v862 = vpop.f32.mrb[0].mxu0
    %v863 = vadd.f32 %v609, %v862
    %v864 = vpop.f32.mrb[0].mxu0
    %865 = vmatprep.mubr.f32.mxu0 0.0
    %v866 = vand.u32 %v53, 4294901760
    %v867 = vsub.f32 %v53, %v866
    %868 = vmatmul.mubr.f32.gmra.mrb[0].mxu0 %v867
    %v869 = vpop.f32.mrb[0].mxu0
    %v870 = vadd.f32 %v615, %v869
    %v871 = vpop.f32.mrb[0].mxu0
    %872 = vmatprep.mubr.f32.mxu0 0.0
    %v873 = vand.u32 %v54, 4294901760
    %v874 = vsub.f32 %v54, %v873
    %875 = vmatmul.mubr.f32.gmra.mrb[0].mxu0 %v874
    %v876 = vpop.f32.mrb[0].mxu0
    %v877 = vadd.f32 %v621, %v876
    %v878 = vpop.f32.mrb[0].mxu0
    %879 = vmatprep.mubr.f32.mxu0 0.0
    %v880 = vand.u32 %v55, 4294901760
    %v881 = vsub.f32 %v55, %v880
    %882 = vmatmul.mubr.f32.gmra.mrb[0].mxu0 %v881
    %v883 = vpop.f32.mrb[0].mxu0
    %v884 = vadd.f32 %v627, %v883
    %v885 = vpop.f32.mrb[0].mxu0
    %886 = vmatprep.mubr.f32.mxu0 0.0
    %v887 = vand.u32 %v56, 4294901760
    %v888 = vsub.f32 %v56, %v887
    %889 = vmatmul.mubr.f32.gmra.mrb[0].mxu0 %v888
    %v890 = vpop.f32.mrb[0].mxu0
    %v891 = vadd.f32 %v633, %v890
    %v892 = vpop.f32.mrb[0].mxu0
    %893 = vmatprep.mubr.f32.mxu0 0.0
    %v894 = vand.u32 %v57, 4294901760
    %v895 = vsub.f32 %v57, %v894
    %896 = vmatmul.mubr.f32.gmra.mrb[0].mxu0 %v895
    %v897 = vpop.f32.mrb[0].mxu0
    %v898 = vadd.f32 %v639, %v897
    %v899 = vpop.f32.mrb[0].mxu0
    %900 = vmatprep.mubr.f32.mxu0 0.0
    %v901 = vand.u32 %v58, 4294901760
    %v902 = vsub.f32 %v58, %v901
    %903 = vmatmul.mubr.f32.gmra.mrb[0].mxu0 %v902
    %v904 = vpop.f32.mrb[0].mxu0
    %v905 = vadd.f32 %v645, %v904
    %v906 = vpop.f32.mrb[0].mxu0
    %907 = vmatprep.mubr.f32.mxu0 0.0
    %v908 = vand.u32 %v59, 4294901760
    %v909 = vsub.f32 %v59, %v908
    %910 = vmatmul.mubr.f32.gmra.mrb[0].mxu0 %v909
    %v911 = vpop.f32.mrb[0].mxu0
    %v912 = vadd.f32 %v651, %v911
    %v913 = vpop.f32.mrb[0].mxu0
    %914 = vmatprep.mubr.f32.mxu0 0.0
    %v915 = vand.u32 %v60, 4294901760
    %v916 = vsub.f32 %v60, %v915
    %917 = vmatmul.mubr.f32.gmra.mrb[0].mxu0 %v916
    %v918 = vpop.f32.mrb[0].mxu0
    %v919 = vadd.f32 %v657, %v918
    %v920 = vpop.f32.mrb[0].mxu0
    %921 = vmatprep.mubr.f32.mxu0 0.0
    %v922 = vand.u32 %v61, 4294901760
    %v923 = vsub.f32 %v61, %v922
    %924 = vmatmul.mubr.f32.gmra.mrb[0].mxu0 %v923
    %v925 = vpop.f32.mrb[0].mxu0
    %v926 = vadd.f32 %v663, %v925
    %v927 = vpop.f32.mrb[0].mxu0
    %928 = vmatprep.mubr.f32.mxu0 0.0
    %v929 = vand.u32 %v62, 4294901760
    %v930 = vsub.f32 %v62, %v929
    %931 = vmatmul.mubr.f32.gmra.mrb[0].mxu0 %v930
    %v932 = vpop.f32.mrb[0].mxu0
    %v933 = vadd.f32 %v669, %v932
    %v934 = vpop.f32.mrb[0].mxu0
    %935 = vmatprep.mubr.f32.mxu0 0.0
    %v936 = vand.u32 %v63, 4294901760
    %v937 = vsub.f32 %v63, %v936
    %938 = vmatmul.mubr.f32.gmra.mrb[0].mxu0 %v937
    %v939 = vpop.f32.mrb[0].mxu0
    %v940 = vadd.f32 %v675, %v939
    %v941 = vpop.f32.mrb[0].mxu0
    %942 = vmatprep.mubr.f32.mxu0 0.0
    %v943 = vand.u32 %v64, 4294901760
    %v944 = vsub.f32 %v64, %v943
    %945 = vmatmul.mubr.f32.gmra.mrb[0].mxu0 %v944
    %v946 = vpop.f32.mrb[0].mxu0
    %v947 = vadd.f32 %v681, %v946
    %v948 = vpop.f32.mrb[0].mxu0
    %949 = vmatprep.mubr.f32.mxu0 0.0
    %v950 = vand.u32 %v65, 4294901760
    %v951 = vsub.f32 %v65, %v950
    %952 = vmatmul.mubr.f32.gmra.mrb[0].mxu0 %v951
    %v953 = vpop.f32.mrb[0].mxu0
    %v954 = vadd.f32 %v687, %v953
    %v955 = vpop.f32.mrb[0].mxu0
    %956 = vmatprep.mubr.f32.mxu0 0.0
    %v957 = vand.u32 %v66, 4294901760
    %v958 = vsub.f32 %v66, %v957
    %959 = vmatmul.mubr.f32.gmra.mrb[0].mxu0 %v958
    %v960 = vpop.f32.mrb[0].mxu0
    %v961 = vadd.f32 %v693, %v960
    %v962 = vpop.f32.mrb[0].mxu0
    %963 = vmatprep.mubr.f32.mxu0 0.0
    %v964 = vand.u32 %v67, 4294901760
    %v965 = vsub.f32 %v67, %v964
    %966 = vmatmul.mubr.f32.gmra.mrb[0].mxu0 %v965
    %v967 = vpop.f32.mrb[0].mxu0
    %v968 = vadd.f32 %v699, %v967
    %v969 = vpop.f32.mrb[0].mxu0
    %970 = vmatprep.mubr.f32.mxu0 0.0
    %v971 = vand.u32 %v68, 4294901760
    %v972 = vsub.f32 %v68, %v971
    %973 = vmatmul.mubr.f32.gmra.mrb[0].mxu0 %v972
    %v974 = vpop.f32.mrb[0].mxu0
    %v975 = vadd.f32 %v705, %v974
    %v976 = vpop.f32.mrb[0].mxu0
    %977 = vmatprep.mubr.f32.mxu0 0.0
    %v978 = vand.u32 %v69, 4294901760
    %v979 = vsub.f32 %v69, %v978
    %980 = vmatmul.mubr.f32.gmra.mrb[0].mxu0 %v979
    %v981 = vpop.f32.mrb[0].mxu0
    %v982 = vadd.f32 %v711, %v981
    %v983 = vpop.f32.mrb[0].mxu0
    %984 = vmatprep.mubr.f32.mxu0 0.0
    %v985 = vand.u32 %v70, 4294901760
    %v986 = vsub.f32 %v70, %v985
    %987 = vmatmul.mubr.f32.gmra.mrb[0].mxu0 %v986
    %v988 = vpop.f32.mrb[0].mxu0
    %v989 = vadd.f32 %v717, %v988
    %v990 = vpop.f32.mrb[0].mxu0
    %991 = vdwg.mxu0
    %992 = vmatprep.subr.mxu0 0.0
    %v993 = vand.u32 %v71, 4294901760
    %994 = vmatpush1.msra.mxu0 %v993
    %995 = vmatprep.subr.mxu0 0.0
    %v996 = vand.u32 %v72, 4294901760
    %997 = vmatpush1.msra.mxu0 %v996
    %998 = vmatprep.subr.mxu0 0.0
    %v999 = vand.u32 %v73, 4294901760
    %1000 = vmatpush1.msra.mxu0 %v999
    %1001 = vmatprep.subr.mxu0 0.0
    %v1002 = vand.u32 %v74, 4294901760
    %1003 = vmatpush1.msra.mxu0 %v1002
    %1004 = vmatprep.subr.mxu0 0.0
    %v1005 = vand.u32 %v75, 4294901760
    %1006 = vmatpush1.msra.mxu0 %v1005
    %1007 = vmatprep.subr.mxu0 0.0
    %v1008 = vand.u32 %v76, 4294901760
    %1009 = vmatpush1.msra.mxu0 %v1008
    %1010 = vmatprep.subr.mxu0 0.0
    %v1011 = vand.u32 %v77, 4294901760
    %1012 = vmatpush1.msra.mxu0 %v1011
    %1013 = vmatprep.subr.mxu0 0.0
    %v1014 = vand.u32 %v78, 4294901760
    %1015 = vmatpush1.msra.mxu0 %v1014
    %1016 = vmatprep.subr.mxu0 0.0
    %v1017 = vand.u32 %v79, 4294901760
    %1018 = vmatpush1.msra.mxu0 %v1017
    %1019 = vmatprep.subr.mxu0 0.0
    %v1020 = vand.u32 %v80, 4294901760
    %1021 = vmatpush1.msra.mxu0 %v1020
    %1022 = vmatprep.subr.mxu0 0.0
    %v1023 = vand.u32 %v81, 4294901760
    %1024 = vmatpush1.msra.mxu0 %v1023
    %1025 = vmatprep.subr.mxu0 0.0
    %v1026 = vand.u32 %v82, 4294901760
    %1027 = vmatpush1.msra.mxu0 %v1026
    %1028 = vmatprep.subr.mxu0 0.0
    %v1029 = vand.u32 %v83, 4294901760
    %1030 = vmatpush1.msra.mxu0 %v1029
    %1031 = vmatprep.subr.mxu0 0.0
    %v1032 = vand.u32 %v84, 4294901760
    %1033 = vmatpush1.msra.mxu0 %v1032
    %1034 = vmatprep.subr.mxu0 0.0
    %v1035 = vand.u32 %v85, 4294901760
    %1036 = vmatpush1.msra.mxu0 %v1035
    %1037 = vmatprep.subr.mxu0 0.0
    %v1038 = vand.u32 %v86, 4294901760
    %1039 = vmatpush1.msra.mxu0 %v1038
    %1040 = vmatprep.subr.mxu0 0.0
    %1041 = vmatpush1.msra.mxu0 0.0
    %1042 = vmatprep.subr.mxu0 0.0
    %1043 = vmatpush1.msra.mxu0 0.0
    %1044 = vmatprep.subr.mxu0 0.0
    %1045 = vmatpush1.msra.mxu0 0.0
    %1046 = vmatprep.subr.mxu0 0.0
    %1047 = vmatpush1.msra.mxu0 0.0
    %1048 = vmatprep.subr.mxu0 0.0
    %1049 = vmatpush1.msra.mxu0 0.0
    %1050 = vmatprep.subr.mxu0 0.0
    %1051 = vmatpush1.msra.mxu0 0.0
    %1052 = vmatprep.subr.mxu0 0.0
    %1053 = vmatpush1.msra.mxu0 0.0
    %1054 = vmatprep.subr.mxu0 0.0
    %1055 = vmatpush1.msra.mxu0 0.0
    %1056 = vmatprep.subr.mxu0 0.0
    %1057 = vmatpush1.msra.mxu0 0.0
    %1058 = vmatprep.subr.mxu0 0.0
    %1059 = vmatpush1.msra.mxu0 0.0
    %1060 = vmatprep.subr.mxu0 0.0
    %1061 = vmatpush1.msra.mxu0 0.0
    %1062 = vmatprep.subr.mxu0 0.0
    %1063 = vmatpush1.msra.mxu0 0.0
    %1064 = vmatprep.subr.mxu0 0.0
    %1065 = vmatpush1.msra.mxu0 0.0
    %1066 = vmatprep.subr.mxu0 0.0
    %1067 = vmatpush1.msra.mxu0 0.0
    %1068 = vmatprep.subr.mxu0 0.0
    %1069 = vmatpush1.msra.mxu0 0.0
    %1070 = vmatprep.subr.mxu0 0.0
    %1071 = vmatpush1.msra.mxu0 0.0
    %1072 = vmatprep.mubr.f32.mxu0 0.0
    %v1073 = vand.u32 %v46, 4294901760
    %v1074 = vsub.f32 %v46, %v1073
    %v1075 = vand.u32 %v1074, 4294901760
    %1076 = vmatmul.mubr.f32.gmra.mrb[0].mxu0 %v1075
    %v1077 = vpop.f32.mrb[0].mxu0
    %v1078 = vadd.f32 %v821, %v1077
    %v1079 = vpop.f32.mrb[0].mxu0
    %1080 = vmatprep.mubr.f32.mxu0 0.0
    %v1081 = vand.u32 %v47, 4294901760
    %v1082 = vsub.f32 %v47, %v1081
    %v1083 = vand.u32 %v1082, 4294901760
    %1084 = vmatmul.mubr.f32.gmra.mrb[0].mxu0 %v1083
    %v1085 = vpop.f32.mrb[0].mxu0
    %v1086 = vadd.f32 %v828, %v1085
    %v1087 = vpop.f32.mrb[0].mxu0
    %1088 = vmatprep.mubr.f32.mxu0 0.0
    %v1089 = vand.u32 %v48, 4294901760
    %v1090 = vsub.f32 %v48, %v1089
    %v1091 = vand.u32 %v1090, 4294901760
    %1092 = vmatmul.mubr.f32.gmra.mrb[0].mxu0 %v1091
    %v1093 = vpop.f32.mrb[0].mxu0
    %v1094 = vadd.f32 %v835, %v1093
    %v1095 = vpop.f32.mrb[0].mxu0
    %1096 = vmatprep.mubr.f32.mxu0 0.0
    %v1097 = vand.u32 %v49, 4294901760
    %v1098 = vsub.f32 %v49, %v1097
    %v1099 = vand.u32 %v1098, 4294901760
    %1100 = vmatmul.mubr.f32.gmra.mrb[0].mxu0 %v1099
    %v1101 = vpop.f32.mrb[0].mxu0
    %v1102 = vadd.f32 %v842, %v1101
    %v1103 = vpop.f32.mrb[0].mxu0
    %1104 = vmatprep.mubr.f32.mxu0 0.0
    %v1105 = vand.u32 %v50, 4294901760
    %v1106 = vsub.f32 %v50, %v1105
    %v1107 = vand.u32 %v1106, 4294901760
    %1108 = vmatmul.mubr.f32.gmra.mrb[0].mxu0 %v1107
    %v1109 = vpop.f32.mrb[0].mxu0
    %v1110 = vadd.f32 %v849, %v1109
    %v1111 = vpop.f32.mrb[0].mxu0
    %1112 = vmatprep.mubr.f32.mxu0 0.0
    %v1113 = vand.u32 %v51, 4294901760
    %v1114 = vsub.f32 %v51, %v1113
    %v1115 = vand.u32 %v1114, 4294901760
    %1116 = vmatmul.mubr.f32.gmra.mrb[0].mxu0 %v1115
    %v1117 = vpop.f32.mrb[0].mxu0
    %v1118 = vadd.f32 %v856, %v1117
    %v1119 = vpop.f32.mrb[0].mxu0
    %1120 = vmatprep.mubr.f32.mxu0 0.0
    %v1121 = vand.u32 %v52, 4294901760
    %v1122 = vsub.f32 %v52, %v1121
    %v1123 = vand.u32 %v1122, 4294901760
    %1124 = vmatmul.mubr.f32.gmra.mrb[0].mxu0 %v1123
    %v1125 = vpop.f32.mrb[0].mxu0
    %v1126 = vadd.f32 %v863, %v1125
    %v1127 = vpop.f32.mrb[0].mxu0
    %1128 = vmatprep.mubr.f32.mxu0 0.0
    %v1129 = vand.u32 %v53, 4294901760
    %v1130 = vsub.f32 %v53, %v1129
    %v1131 = vand.u32 %v1130, 4294901760
    %1132 = vmatmul.mubr.f32.gmra.mrb[0].mxu0 %v1131
    %v1133 = vpop.f32.mrb[0].mxu0
    %v1134 = vadd.f32 %v870, %v1133
    %v1135 = vpop.f32.mrb[0].mxu0
    %1136 = vmatprep.mubr.f32.mxu0 0.0
    %v1137 = vand.u32 %v54, 4294901760
    %v1138 = vsub.f32 %v54, %v1137
    %v1139 = vand.u32 %v1138, 4294901760
    %1140 = vmatmul.mubr.f32.gmra.mrb[0].mxu0 %v1139
    %v1141 = vpop.f32.mrb[0].mxu0
    %v1142 = vadd.f32 %v877, %v1141
    %v1143 = vpop.f32.mrb[0].mxu0
    %1144 = vmatprep.mubr.f32.mxu0 0.0
    %v1145 = vand.u32 %v55, 4294901760
    %v1146 = vsub.f32 %v55, %v1145
    %v1147 = vand.u32 %v1146, 4294901760
    %1148 = vmatmul.mubr.f32.gmra.mrb[0].mxu0 %v1147
    %v1149 = vpop.f32.mrb[0].mxu0
    %v1150 = vadd.f32 %v884, %v1149
    %v1151 = vpop.f32.mrb[0].mxu0
    %1152 = vmatprep.mubr.f32.mxu0 0.0
    %v1153 = vand.u32 %v56, 4294901760
    %v1154 = vsub.f32 %v56, %v1153
    %v1155 = vand.u32 %v1154, 4294901760
    %1156 = vmatmul.mubr.f32.gmra.mrb[0].mxu0 %v1155
    %v1157 = vpop.f32.mrb[0].mxu0
    %v1158 = vadd.f32 %v891, %v1157
    %v1159 = vpop.f32.mrb[0].mxu0
    %1160 = vmatprep.mubr.f32.mxu0 0.0
    %v1161 = vand.u32 %v57, 4294901760
    %v1162 = vsub.f32 %v57, %v1161
    %v1163 = vand.u32 %v1162, 4294901760
    %1164 = vmatmul.mubr.f32.gmra.mrb[0].mxu0 %v1163
    %v1165 = vpop.f32.mrb[0].mxu0
    %v1166 = vadd.f32 %v898, %v1165
    %v1167 = vpop.f32.mrb[0].mxu0
    %1168 = vmatprep.mubr.f32.mxu0 0.0
    %v1169 = vand.u32 %v58, 4294901760
    %v1170 = vsub.f32 %v58, %v1169
    %v1171 = vand.u32 %v1170, 4294901760
    %1172 = vmatmul.mubr.f32.gmra.mrb[0].mxu0 %v1171
    %v1173 = vpop.f32.mrb[0].mxu0
    %v1174 = vadd.f32 %v905, %v1173
    %v1175 = vpop.f32.mrb[0].mxu0
    %1176 = vmatprep.mubr.f32.mxu0 0.0
    %v1177 = vand.u32 %v59, 4294901760
    %v1178 = vsub.f32 %v59, %v1177
    %v1179 = vand.u32 %v1178, 4294901760
    %1180 = vmatmul.mubr.f32.gmra.mrb[0].mxu0 %v1179
    %v1181 = vpop.f32.mrb[0].mxu0
    %v1182 = vadd.f32 %v912, %v1181
    %v1183 = vpop.f32.mrb[0].mxu0
    %1184 = vmatprep.mubr.f32.mxu0 0.0
    %v1185 = vand.u32 %v60, 4294901760
    %v1186 = vsub.f32 %v60, %v1185
    %v1187 = vand.u32 %v1186, 4294901760
    %1188 = vmatmul.mubr.f32.gmra.mrb[0].mxu0 %v1187
    %v1189 = vpop.f32.mrb[0].mxu0
    %v1190 = vadd.f32 %v919, %v1189
    %v1191 = vpop.f32.mrb[0].mxu0
    %1192 = vmatprep.mubr.f32.mxu0 0.0
    %v1193 = vand.u32 %v61, 4294901760
    %v1194 = vsub.f32 %v61, %v1193
    %v1195 = vand.u32 %v1194, 4294901760
    %1196 = vmatmul.mubr.f32.gmra.mrb[0].mxu0 %v1195
    %v1197 = vpop.f32.mrb[0].mxu0
    %v1198 = vadd.f32 %v926, %v1197
    %v1199 = vpop.f32.mrb[0].mxu0
    %1200 = vmatprep.mubr.f32.mxu0 0.0
    %v1201 = vand.u32 %v62, 4294901760
    %v1202 = vsub.f32 %v62, %v1201
    %v1203 = vand.u32 %v1202, 4294901760
    %1204 = vmatmul.mubr.f32.gmra.mrb[0].mxu0 %v1203
    %v1205 = vpop.f32.mrb[0].mxu0
    %v1206 = vadd.f32 %v933, %v1205
    %v1207 = vpop.f32.mrb[0].mxu0
    %1208 = vmatprep.mubr.f32.mxu0 0.0
    %v1209 = vand.u32 %v63, 4294901760
    %v1210 = vsub.f32 %v63, %v1209
    %v1211 = vand.u32 %v1210, 4294901760
    %1212 = vmatmul.mubr.f32.gmra.mrb[0].mxu0 %v1211
    %v1213 = vpop.f32.mrb[0].mxu0
    %v1214 = vadd.f32 %v940, %v1213
    %v1215 = vpop.f32.mrb[0].mxu0
    %1216 = vmatprep.mubr.f32.mxu0 0.0
    %v1217 = vand.u32 %v64, 4294901760
    %v1218 = vsub.f32 %v64, %v1217
    %v1219 = vand.u32 %v1218, 4294901760
    %1220 = vmatmul.mubr.f32.gmra.mrb[0].mxu0 %v1219
    %v1221 = vpop.f32.mrb[0].mxu0
    %v1222 = vadd.f32 %v947, %v1221
    %v1223 = vpop.f32.mrb[0].mxu0
    %1224 = vmatprep.mubr.f32.mxu0 0.0
    %v1225 = vand.u32 %v65, 4294901760
    %v1226 = vsub.f32 %v65, %v1225
    %v1227 = vand.u32 %v1226, 4294901760
    %1228 = vmatmul.mubr.f32.gmra.mrb[0].mxu0 %v1227
    %v1229 = vpop.f32.mrb[0].mxu0
    %v1230 = vadd.f32 %v954, %v1229
    %v1231 = vpop.f32.mrb[0].mxu0
    %1232 = vmatprep.mubr.f32.mxu0 0.0
    %v1233 = vand.u32 %v66, 4294901760
    %v1234 = vsub.f32 %v66, %v1233
    %v1235 = vand.u32 %v1234, 4294901760
    %1236 = vmatmul.mubr.f32.gmra.mrb[0].mxu0 %v1235
    %v1237 = vpop.f32.mrb[0].mxu0
    %v1238 = vadd.f32 %v961, %v1237
    %v1239 = vpop.f32.mrb[0].mxu0
    %1240 = vmatprep.mubr.f32.mxu0 0.0
    %v1241 = vand.u32 %v67, 4294901760
    %v1242 = vsub.f32 %v67, %v1241
    %v1243 = vand.u32 %v1242, 4294901760
    %1244 = vmatmul.mubr.f32.gmra.mrb[0].mxu0 %v1243
    %v1245 = vpop.f32.mrb[0].mxu0
    %v1246 = vadd.f32 %v968, %v1245
    %v1247 = vpop.f32.mrb[0].mxu0
    %1248 = vmatprep.mubr.f32.mxu0 0.0
    %v1249 = vand.u32 %v68, 4294901760
    %v1250 = vsub.f32 %v68, %v1249
    %v1251 = vand.u32 %v1250, 4294901760
    %1252 = vmatmul.mubr.f32.gmra.mrb[0].mxu0 %v1251
    %v1253 = vpop.f32.mrb[0].mxu0
    %v1254 = vadd.f32 %v975, %v1253
    %v1255 = vpop.f32.mrb[0].mxu0
    %1256 = vmatprep.mubr.f32.mxu0 0.0
    %v1257 = vand.u32 %v69, 4294901760
    %v1258 = vsub.f32 %v69, %v1257
    %v1259 = vand.u32 %v1258, 4294901760
    %1260 = vmatmul.mubr.f32.gmra.mrb[0].mxu0 %v1259
    %v1261 = vpop.f32.mrb[0].mxu0
    %v1262 = vadd.f32 %v982, %v1261
    %v1263 = vpop.f32.mrb[0].mxu0
    %1264 = vmatprep.mubr.f32.mxu0 0.0
    %v1265 = vand.u32 %v70, 4294901760
    %v1266 = vsub.f32 %v70, %v1265
    %v1267 = vand.u32 %v1266, 4294901760
    %1268 = vmatmul.mubr.f32.gmra.mrb[0].mxu0 %v1267
    %v1269 = vpop.f32.mrb[0].mxu0
    %v1270 = vadd.f32 %v989, %v1269
    %v1271 = vpop.f32.mrb[0].mxu0
    %1272 = vdwg.mxu0
    %1273 = vmatprep.subr.mxu0 0.0
    %v1274 = vand.u32 %v71, 4294901760
    %v1275 = vsub.f32 %v71, %v1274
    %v1276 = vand.u32 %v1275, 4294901760
    %1277 = vmatpush1.msra.mxu0 %v1276
    %1278 = vmatprep.subr.mxu0 0.0
    %v1279 = vand.u32 %v72, 4294901760
    %v1280 = vsub.f32 %v72, %v1279
    %v1281 = vand.u32 %v1280, 4294901760
    %1282 = vmatpush1.msra.mxu0 %v1281
    %1283 = vmatprep.subr.mxu0 0.0
    %v1284 = vand.u32 %v73, 4294901760
    %v1285 = vsub.f32 %v73, %v1284
    %v1286 = vand.u32 %v1285, 4294901760
    %1287 = vmatpush1.msra.mxu0 %v1286
    %1288 = vmatprep.subr.mxu0 0.0
    %v1289 = vand.u32 %v74, 4294901760
    %v1290 = vsub.f32 %v74, %v1289
    %v1291 = vand.u32 %v1290, 4294901760
    %1292 = vmatpush1.msra.mxu0 %v1291
    %1293 = vmatprep.subr.mxu0 0.0
    %v1294 = vand.u32 %v75, 4294901760
    %v1295 = vsub.f32 %v75, %v1294
    %v1296 = vand.u32 %v1295, 4294901760
    %1297 = vmatpush1.msra.mxu0 %v1296
    %1298 = vmatprep.subr.mxu0 0.0
    %v1299 = vand.u32 %v76, 4294901760
    %v1300 = vsub.f32 %v76, %v1299
    %v1301 = vand.u32 %v1300, 4294901760
    %1302 = vmatpush1.msra.mxu0 %v1301
    %1303 = vmatprep.subr.mxu0 0.0
    %v1304 = vand.u32 %v77, 4294901760
    %v1305 = vsub.f32 %v77, %v1304
    %v1306 = vand.u32 %v1305, 4294901760
    %1307 = vmatpush1.msra.mxu0 %v1306
    %1308 = vmatprep.subr.mxu0 0.0
    %v1309 = vand.u32 %v78, 4294901760
    %v1310 = vsub.f32 %v78, %v1309
    %v1311 = vand.u32 %v1310, 4294901760
    %1312 = vmatpush1.msra.mxu0 %v1311
    %1313 = vmatprep.subr.mxu0 0.0
    %v1314 = vand.u32 %v79, 4294901760
    %v1315 = vsub.f32 %v79, %v1314
    %v1316 = vand.u32 %v1315, 4294901760
    %1317 = vmatpush1.msra.mxu0 %v1316
    %1318 = vmatprep.subr.mxu0 0.0
    %v1319 = vand.u32 %v80, 4294901760
    %v1320 = vsub.f32 %v80, %v1319
    %v1321 = vand.u32 %v1320, 4294901760
    %1322 = vmatpush1.msra.mxu0 %v1321
    %1323 = vmatprep.subr.mxu0 0.0
    %v1324 = vand.u32 %v81, 4294901760
    %v1325 = vsub.f32 %v81, %v1324
    %v1326 = vand.u32 %v1325, 4294901760
    %1327 = vmatpush1.msra.mxu0 %v1326
    %1328 = vmatprep.subr.mxu0 0.0
    %v1329 = vand.u32 %v82, 4294901760
    %v1330 = vsub.f32 %v82, %v1329
    %v1331 = vand.u32 %v1330, 4294901760
    %1332 = vmatpush1.msra.mxu0 %v1331
    %1333 = vmatprep.subr.mxu0 0.0
    %v1334 = vand.u32 %v83, 4294901760
    %v1335 = vsub.f32 %v83, %v1334
    %v1336 = vand.u32 %v1335, 4294901760
    %1337 = vmatpush1.msra.mxu0 %v1336
    %1338 = vmatprep.subr.mxu0 0.0
    %v1339 = vand.u32 %v84, 4294901760
    %v1340 = vsub.f32 %v84, %v1339
    %v1341 = vand.u32 %v1340, 4294901760
    %1342 = vmatpush1.msra.mxu0 %v1341
    %1343 = vmatprep.subr.mxu0 0.0
    %v1344 = vand.u32 %v85, 4294901760
    %v1345 = vsub.f32 %v85, %v1344
    %v1346 = vand.u32 %v1345, 4294901760
    %1347 = vmatpush1.msra.mxu0 %v1346
    %1348 = vmatprep.subr.mxu0 0.0
    %v1349 = vand.u32 %v86, 4294901760
    %v1350 = vsub.f32 %v86, %v1349
    %v1351 = vand.u32 %v1350, 4294901760
    %1352 = vmatpush1.msra.mxu0 %v1351
    %1353 = vmatprep.subr.mxu0 0.0
    %1354 = vmatpush1.msra.mxu0 0.0
    %1355 = vmatprep.subr.mxu0 0.0
    %1356 = vmatpush1.msra.mxu0 0.0
    %1357 = vmatprep.subr.mxu0 0.0
    %1358 = vmatpush1.msra.mxu0 0.0
    %1359 = vmatprep.subr.mxu0 0.0
    %1360 = vmatpush1.msra.mxu0 0.0
    %1361 = vmatprep.subr.mxu0 0.0
    %1362 = vmatpush1.msra.mxu0 0.0
    %1363 = vmatprep.subr.mxu0 0.0
    %1364 = vmatpush1.msra.mxu0 0.0
    %1365 = vmatprep.subr.mxu0 0.0
    %1366 = vmatpush1.msra.mxu0 0.0
    %1367 = vmatprep.subr.mxu0 0.0
    %1368 = vmatpush1.msra.mxu0 0.0
    %1369 = vmatprep.subr.mxu0 0.0
    %1370 = vmatpush1.msra.mxu0 0.0
    %1371 = vmatprep.subr.mxu0 0.0
    %1372 = vmatpush1.msra.mxu0 0.0
    %1373 = vmatprep.subr.mxu0 0.0
    %1374 = vmatpush1.msra.mxu0 0.0
    %1375 = vmatprep.subr.mxu0 0.0
    %1376 = vmatpush1.msra.mxu0 0.0
    %1377 = vmatprep.subr.mxu0 0.0
    %1378 = vmatpush1.msra.mxu0 0.0
    %1379 = vmatprep.subr.mxu0 0.0
    %1380 = vmatpush1.msra.mxu0 0.0
    %1381 = vmatprep.subr.mxu0 0.0
    %1382 = vmatpush1.msra.mxu0 0.0
    %1383 = vmatprep.subr.mxu0 0.0
    %1384 = vmatpush1.msra.mxu0 0.0
    %1385 = vmatprep.mubr.f32.mxu0 0.0
    %v1386 = vand.u32 %v46, 4294901760
    %1387 = vmatmul.mubr.f32.gmra.mrb[0].mxu0 %v1386
    %v1388 = vpop.f32.mrb[0].mxu0
    %v1389 = vadd.f32 %v1078, %v1388
    %v1390 = vpop.f32.mrb[0].mxu0
    %1391 = vmatprep.mubr.f32.mxu0 0.0
    %v1392 = vand.u32 %v47, 4294901760
    %1393 = vmatmul.mubr.f32.gmra.mrb[0].mxu0 %v1392
    %v1394 = vpop.f32.mrb[0].mxu0
    %v1395 = vadd.f32 %v1086, %v1394
    %v1396 = vpop.f32.mrb[0].mxu0
    %1397 = vmatprep.mubr.f32.mxu0 0.0
    %v1398 = vand.u32 %v48, 4294901760
    %1399 = vmatmul.mubr.f32.gmra.mrb[0].mxu0 %v1398
    %v1400 = vpop.f32.mrb[0].mxu0
    %v1401 = vadd.f32 %v1094, %v1400
    %v1402 = vpop.f32.mrb[0].mxu0
    %1403 = vmatprep.mubr.f32.mxu0 0.0
    %v1404 = vand.u32 %v49, 4294901760
    %1405 = vmatmul.mubr.f32.gmra.mrb[0].mxu0 %v1404
    %v1406 = vpop.f32.mrb[0].mxu0
    %v1407 = vadd.f32 %v1102, %v1406
    %v1408 = vpop.f32.mrb[0].mxu0
    %1409 = vmatprep.mubr.f32.mxu0 0.0
    %v1410 = vand.u32 %v50, 4294901760
    %1411 = vmatmul.mubr.f32.gmra.mrb[0].mxu0 %v1410
    %v1412 = vpop.f32.mrb[0].mxu0
    %v1413 = vadd.f32 %v1110, %v1412
    %v1414 = vpop.f32.mrb[0].mxu0
    %1415 = vmatprep.mubr.f32.mxu0 0.0
    %v1416 = vand.u32 %v51, 4294901760
    %1417 = vmatmul.mubr.f32.gmra.mrb[0].mxu0 %v1416
    %v1418 = vpop.f32.mrb[0].mxu0
    %v1419 = vadd.f32 %v1118, %v1418
    %v1420 = vpop.f32.mrb[0].mxu0
    %1421 = vmatprep.mubr.f32.mxu0 0.0
    %v1422 = vand.u32 %v52, 4294901760
    %1423 = vmatmul.mubr.f32.gmra.mrb[0].mxu0 %v1422
    %v1424 = vpop.f32.mrb[0].mxu0
    %v1425 = vadd.f32 %v1126, %v1424
    %v1426 = vpop.f32.mrb[0].mxu0
    %1427 = vmatprep.mubr.f32.mxu0 0.0
    %v1428 = vand.u32 %v53, 4294901760
    %1429 = vmatmul.mubr.f32.gmra.mrb[0].mxu0 %v1428
    %v1430 = vpop.f32.mrb[0].mxu0
    %v1431 = vadd.f32 %v1134, %v1430
    %v1432 = vpop.f32.mrb[0].mxu0
    %1433 = vmatprep.mubr.f32.mxu0 0.0
    %v1434 = vand.u32 %v54, 4294901760
    %1435 = vmatmul.mubr.f32.gmra.mrb[0].mxu0 %v1434
    %v1436 = vpop.f32.mrb[0].mxu0
    %v1437 = vadd.f32 %v1142, %v1436
    %v1438 = vpop.f32.mrb[0].mxu0
    %1439 = vmatprep.mubr.f32.mxu0 0.0
    %v1440 = vand.u32 %v55, 4294901760
    %1441 = vmatmul.mubr.f32.gmra.mrb[0].mxu0 %v1440
    %v1442 = vpop.f32.mrb[0].mxu0
    %v1443 = vadd.f32 %v1150, %v1442
    %v1444 = vpop.f32.mrb[0].mxu0
    %1445 = vmatprep.mubr.f32.mxu0 0.0
    %v1446 = vand.u32 %v56, 4294901760
    %1447 = vmatmul.mubr.f32.gmra.mrb[0].mxu0 %v1446
    %v1448 = vpop.f32.mrb[0].mxu0
    %v1449 = vadd.f32 %v1158, %v1448
    %v1450 = vpop.f32.mrb[0].mxu0
    %1451 = vmatprep.mubr.f32.mxu0 0.0
    %v1452 = vand.u32 %v57, 4294901760
    %1453 = vmatmul.mubr.f32.gmra.mrb[0].mxu0 %v1452
    %v1454 = vpop.f32.mrb[0].mxu0
    %v1455 = vadd.f32 %v1166, %v1454
    %v1456 = vpop.f32.mrb[0].mxu0
    %1457 = vmatprep.mubr.f32.mxu0 0.0
    %v1458 = vand.u32 %v58, 4294901760
    %1459 = vmatmul.mubr.f32.gmra.mrb[0].mxu0 %v1458
    %v1460 = vpop.f32.mrb[0].mxu0
    %v1461 = vadd.f32 %v1174, %v1460
    %v1462 = vpop.f32.mrb[0].mxu0
    %1463 = vmatprep.mubr.f32.mxu0 0.0
    %v1464 = vand.u32 %v59, 4294901760
    %1465 = vmatmul.mubr.f32.gmra.mrb[0].mxu0 %v1464
    %v1466 = vpop.f32.mrb[0].mxu0
    %v1467 = vadd.f32 %v1182, %v1466
    %v1468 = vpop.f32.mrb[0].mxu0
    %1469 = vmatprep.mubr.f32.mxu0 0.0
    %v1470 = vand.u32 %v60, 4294901760
    %1471 = vmatmul.mubr.f32.gmra.mrb[0].mxu0 %v1470
    %v1472 = vpop.f32.mrb[0].mxu0
    %v1473 = vadd.f32 %v1190, %v1472
    %v1474 = vpop.f32.mrb[0].mxu0
    %1475 = vmatprep.mubr.f32.mxu0 0.0
    %v1476 = vand.u32 %v61, 4294901760
    %1477 = vmatmul.mubr.f32.gmra.mrb[0].mxu0 %v1476
    %v1478 = vpop.f32.mrb[0].mxu0
    %v1479 = vadd.f32 %v1198, %v1478
    %v1480 = vpop.f32.mrb[0].mxu0
    %1481 = vmatprep.mubr.f32.mxu0 0.0
    %v1482 = vand.u32 %v62, 4294901760
    %1483 = vmatmul.mubr.f32.gmra.mrb[0].mxu0 %v1482
    %v1484 = vpop.f32.mrb[0].mxu0
    %v1485 = vadd.f32 %v1206, %v1484
    %v1486 = vpop.f32.mrb[0].mxu0
    %1487 = vmatprep.mubr.f32.mxu0 0.0
    %v1488 = vand.u32 %v63, 4294901760
    %1489 = vmatmul.mubr.f32.gmra.mrb[0].mxu0 %v1488
    %v1490 = vpop.f32.mrb[0].mxu0
    %v1491 = vadd.f32 %v1214, %v1490
    %v1492 = vpop.f32.mrb[0].mxu0
    %1493 = vmatprep.mubr.f32.mxu0 0.0
    %v1494 = vand.u32 %v64, 4294901760
    %1495 = vmatmul.mubr.f32.gmra.mrb[0].mxu0 %v1494
    %v1496 = vpop.f32.mrb[0].mxu0
    %v1497 = vadd.f32 %v1222, %v1496
    %v1498 = vpop.f32.mrb[0].mxu0
    %1499 = vmatprep.mubr.f32.mxu0 0.0
    %v1500 = vand.u32 %v65, 4294901760
    %1501 = vmatmul.mubr.f32.gmra.mrb[0].mxu0 %v1500
    %v1502 = vpop.f32.mrb[0].mxu0
    %v1503 = vadd.f32 %v1230, %v1502
    %v1504 = vpop.f32.mrb[0].mxu0
    %1505 = vmatprep.mubr.f32.mxu0 0.0
    %v1506 = vand.u32 %v66, 4294901760
    %1507 = vmatmul.mubr.f32.gmra.mrb[0].mxu0 %v1506
    %v1508 = vpop.f32.mrb[0].mxu0
    %v1509 = vadd.f32 %v1238, %v1508
    %v1510 = vpop.f32.mrb[0].mxu0
    %1511 = vmatprep.mubr.f32.mxu0 0.0
    %v1512 = vand.u32 %v67, 4294901760
    %1513 = vmatmul.mubr.f32.gmra.mrb[0].mxu0 %v1512
    %v1514 = vpop.f32.mrb[0].mxu0
    %v1515 = vadd.f32 %v1246, %v1514
    %v1516 = vpop.f32.mrb[0].mxu0
    %1517 = vmatprep.mubr.f32.mxu0 0.0
    %v1518 = vand.u32 %v68, 4294901760
    %1519 = vmatmul.mubr.f32.gmra.mrb[0].mxu0 %v1518
    %v1520 = vpop.f32.mrb[0].mxu0
    %v1521 = vadd.f32 %v1254, %v1520
    %v1522 = vpop.f32.mrb[0].mxu0
    %1523 = vmatprep.mubr.f32.mxu0 0.0
    %v1524 = vand.u32 %v69, 4294901760
    %1525 = vmatmul.mubr.f32.gmra.mrb[0].mxu0 %v1524
    %v1526 = vpop.f32.mrb[0].mxu0
    %v1527 = vadd.f32 %v1262, %v1526
    %v1528 = vpop.f32.mrb[0].mxu0
    %1529 = vmatprep.mubr.f32.mxu0 0.0
    %v1530 = vand.u32 %v70, 4294901760
    %1531 = vmatmul.mubr.f32.gmra.mrb[0].mxu0 %v1530
    %v1532 = vpop.f32.mrb[0].mxu0
    %v1533 = vadd.f32 %v1270, %v1532
    %v1534 = vpop.f32.mrb[0].mxu0
    %1535 = vdwg.mxu0
    %1536 = vmatprep.subr.mxu0 0.0
    %v1537 = vand.u32 %v71, 4294901760
    %1538 = vmatpush1.msra.mxu0 %v1537
    %1539 = vmatprep.subr.mxu0 0.0
    %v1540 = vand.u32 %v72, 4294901760
    %1541 = vmatpush1.msra.mxu0 %v1540
    %1542 = vmatprep.subr.mxu0 0.0
    %v1543 = vand.u32 %v73, 4294901760
    %1544 = vmatpush1.msra.mxu0 %v1543
    %1545 = vmatprep.subr.mxu0 0.0
    %v1546 = vand.u32 %v74, 4294901760
    %1547 = vmatpush1.msra.mxu0 %v1546
    %1548 = vmatprep.subr.mxu0 0.0
    %v1549 = vand.u32 %v75, 4294901760
    %1550 = vmatpush1.msra.mxu0 %v1549
    %1551 = vmatprep.subr.mxu0 0.0
    %v1552 = vand.u32 %v76, 4294901760
    %1553 = vmatpush1.msra.mxu0 %v1552
    %1554 = vmatprep.subr.mxu0 0.0
    %v1555 = vand.u32 %v77, 4294901760
    %1556 = vmatpush1.msra.mxu0 %v1555
    %1557 = vmatprep.subr.mxu0 0.0
    %v1558 = vand.u32 %v78, 4294901760
    %1559 = vmatpush1.msra.mxu0 %v1558
    %1560 = vmatprep.subr.mxu0 0.0
    %v1561 = vand.u32 %v79, 4294901760
    %1562 = vmatpush1.msra.mxu0 %v1561
    %1563 = vmatprep.subr.mxu0 0.0
    %v1564 = vand.u32 %v80, 4294901760
    %1565 = vmatpush1.msra.mxu0 %v1564
    %1566 = vmatprep.subr.mxu0 0.0
    %v1567 = vand.u32 %v81, 4294901760
    %1568 = vmatpush1.msra.mxu0 %v1567
    %1569 = vmatprep.subr.mxu0 0.0
    %v1570 = vand.u32 %v82, 4294901760
    %1571 = vmatpush1.msra.mxu0 %v1570
    %1572 = vmatprep.subr.mxu0 0.0
    %v1573 = vand.u32 %v83, 4294901760
    %1574 = vmatpush1.msra.mxu0 %v1573
    %1575 = vmatprep.subr.mxu0 0.0
    %v1576 = vand.u32 %v84, 4294901760
    %1577 = vmatpush1.msra.mxu0 %v1576
    %1578 = vmatprep.subr.mxu0 0.0
    %v1579 = vand.u32 %v85, 4294901760
    %1580 = vmatpush1.msra.mxu0 %v1579
    %1581 = vmatprep.subr.mxu0 0.0
    %v1582 = vand.u32 %v86, 4294901760
    %1583 = vmatpush1.msra.mxu0 %v1582
    %1584 = vmatprep.subr.mxu0 0.0
    %1585 = vmatpush1.msra.mxu0 0.0
    %1586 = vmatprep.subr.mxu0 0.0
    %1587 = vmatpush1.msra.mxu0 0.0
    %1588 = vmatprep.subr.mxu0 0.0
    %1589 = vmatpush1.msra.mxu0 0.0
    %1590 = vmatprep.subr.mxu0 0.0
    %1591 = vmatpush1.msra.mxu0 0.0
    %1592 = vmatprep.subr.mxu0 0.0
    %1593 = vmatpush1.msra.mxu0 0.0
    %1594 = vmatprep.subr.mxu0 0.0
    %1595 = vmatpush1.msra.mxu0 0.0
    %1596 = vmatprep.subr.mxu0 0.0
    %1597 = vmatpush1.msra.mxu0 0.0
    %1598 = vmatprep.subr.mxu0 0.0
    %1599 = vmatpush1.msra.mxu0 0.0
    %1600 = vmatprep.subr.mxu0 0.0
    %1601 = vmatpush1.msra.mxu0 0.0
    %1602 = vmatprep.subr.mxu0 0.0
    %1603 = vmatpush1.msra.mxu0 0.0
    %1604 = vmatprep.subr.mxu0 0.0
    %1605 = vmatpush1.msra.mxu0 0.0
    %1606 = vmatprep.subr.mxu0 0.0
    %1607 = vmatpush1.msra.mxu0 0.0
    %1608 = vmatprep.subr.mxu0 0.0
    %1609 = vmatpush1.msra.mxu0 0.0
    %1610 = vmatprep.subr.mxu0 0.0
    %1611 = vmatpush1.msra.mxu0 0.0
    %1612 = vmatprep.subr.mxu0 0.0
    %1613 = vmatpush1.msra.mxu0 0.0
    %1614 = vmatprep.subr.mxu0 0.0
    %1615 = vmatpush1.msra.mxu0 0.0
    %1616 = vmatprep.mubr.f32.mxu0 0.0
    %v1617 = vand.u32 %v46, 4294901760
    %1618 = vmatmul.mubr.f32.gmra.mrb[0].mxu0 %v1617
    %v1619 = vpop.f32.mrb[0].mxu0
    %v1620 = vadd.f32 %v1389, %v1619
    %v1621 = vpop.f32.mrb[0].mxu0
    %1622 = vmatprep.mubr.f32.mxu0 0.0
    %v1623 = vand.u32 %v47, 4294901760
    %1624 = vmatmul.mubr.f32.gmra.mrb[0].mxu0 %v1623
    %v1625 = vpop.f32.mrb[0].mxu0
    %v1626 = vadd.f32 %v1395, %v1625
    %v1627 = vpop.f32.mrb[0].mxu0
    %1628 = vmatprep.mubr.f32.mxu0 0.0
    %v1629 = vand.u32 %v48, 4294901760
    %1630 = vmatmul.mubr.f32.gmra.mrb[0].mxu0 %v1629
    %v1631 = vpop.f32.mrb[0].mxu0
    %v1632 = vadd.f32 %v1401, %v1631
    %v1633 = vpop.f32.mrb[0].mxu0
    %1634 = vmatprep.mubr.f32.mxu0 0.0
    %v1635 = vand.u32 %v49, 4294901760
    %1636 = vmatmul.mubr.f32.gmra.mrb[0].mxu0 %v1635
    %v1637 = vpop.f32.mrb[0].mxu0
    %v1638 = vadd.f32 %v1407, %v1637
    %v1639 = vpop.f32.mrb[0].mxu0
    %1640 = vmatprep.mubr.f32.mxu0 0.0
    %v1641 = vand.u32 %v50, 4294901760
    %1642 = vmatmul.mubr.f32.gmra.mrb[0].mxu0 %v1641
    %v1643 = vpop.f32.mrb[0].mxu0
    %v1644 = vadd.f32 %v1413, %v1643
    %v1645 = vpop.f32.mrb[0].mxu0
    %1646 = vmatprep.mubr.f32.mxu0 0.0
    %v1647 = vand.u32 %v51, 4294901760
    %1648 = vmatmul.mubr.f32.gmra.mrb[0].mxu0 %v1647
    %v1649 = vpop.f32.mrb[0].mxu0
    %v1650 = vadd.f32 %v1419, %v1649
    %v1651 = vpop.f32.mrb[0].mxu0
    %1652 = vmatprep.mubr.f32.mxu0 0.0
    %v1653 = vand.u32 %v52, 4294901760
    %1654 = vmatmul.mubr.f32.gmra.mrb[0].mxu0 %v1653
    %v1655 = vpop.f32.mrb[0].mxu0
    %v1656 = vadd.f32 %v1425, %v1655
    %v1657 = vpop.f32.mrb[0].mxu0
    %1658 = vmatprep.mubr.f32.mxu0 0.0
    %v1659 = vand.u32 %v53, 4294901760
    %1660 = vmatmul.mubr.f32.gmra.mrb[0].mxu0 %v1659
    %v1661 = vpop.f32.mrb[0].mxu0
    %v1662 = vadd.f32 %v1431, %v1661
    %v1663 = vpop.f32.mrb[0].mxu0
    %1664 = vmatprep.mubr.f32.mxu0 0.0
    %v1665 = vand.u32 %v54, 4294901760
    %1666 = vmatmul.mubr.f32.gmra.mrb[0].mxu0 %v1665
    %v1667 = vpop.f32.mrb[0].mxu0
    %v1668 = vadd.f32 %v1437, %v1667
    %v1669 = vpop.f32.mrb[0].mxu0
    %1670 = vmatprep.mubr.f32.mxu0 0.0
    %v1671 = vand.u32 %v55, 4294901760
    %1672 = vmatmul.mubr.f32.gmra.mrb[0].mxu0 %v1671
    %v1673 = vpop.f32.mrb[0].mxu0
    %v1674 = vadd.f32 %v1443, %v1673
    %v1675 = vpop.f32.mrb[0].mxu0
    %1676 = vmatprep.mubr.f32.mxu0 0.0
    %v1677 = vand.u32 %v56, 4294901760
    %1678 = vmatmul.mubr.f32.gmra.mrb[0].mxu0 %v1677
    %v1679 = vpop.f32.mrb[0].mxu0
    %v1680 = vadd.f32 %v1449, %v1679
    %v1681 = vpop.f32.mrb[0].mxu0
    %1682 = vmatprep.mubr.f32.mxu0 0.0
    %v1683 = vand.u32 %v57, 4294901760
    %1684 = vmatmul.mubr.f32.gmra.mrb[0].mxu0 %v1683
    %v1685 = vpop.f32.mrb[0].mxu0
    %v1686 = vadd.f32 %v1455, %v1685
    %v1687 = vpop.f32.mrb[0].mxu0
    %1688 = vmatprep.mubr.f32.mxu0 0.0
    %v1689 = vand.u32 %v58, 4294901760
    %1690 = vmatmul.mubr.f32.gmra.mrb[0].mxu0 %v1689
    %v1691 = vpop.f32.mrb[0].mxu0
    %v1692 = vadd.f32 %v1461, %v1691
    %v1693 = vpop.f32.mrb[0].mxu0
    %1694 = vmatprep.mubr.f32.mxu0 0.0
    %v1695 = vand.u32 %v59, 4294901760
    %1696 = vmatmul.mubr.f32.gmra.mrb[0].mxu0 %v1695
    %v1697 = vpop.f32.mrb[0].mxu0
    %v1698 = vadd.f32 %v1467, %v1697
    %v1699 = vpop.f32.mrb[0].mxu0
    %1700 = vmatprep.mubr.f32.mxu0 0.0
    %v1701 = vand.u32 %v60, 4294901760
    %1702 = vmatmul.mubr.f32.gmra.mrb[0].mxu0 %v1701
    %v1703 = vpop.f32.mrb[0].mxu0
    %v1704 = vadd.f32 %v1473, %v1703
    %v1705 = vpop.f32.mrb[0].mxu0
    %1706 = vmatprep.mubr.f32.mxu0 0.0
    %v1707 = vand.u32 %v61, 4294901760
    %1708 = vmatmul.mubr.f32.gmra.mrb[0].mxu0 %v1707
    %v1709 = vpop.f32.mrb[0].mxu0
    %v1710 = vadd.f32 %v1479, %v1709
    %v1711 = vpop.f32.mrb[0].mxu0
    %1712 = vmatprep.mubr.f32.mxu0 0.0
    %v1713 = vand.u32 %v62, 4294901760
    %1714 = vmatmul.mubr.f32.gmra.mrb[0].mxu0 %v1713
    %v1715 = vpop.f32.mrb[0].mxu0
    %v1716 = vadd.f32 %v1485, %v1715
    %v1717 = vpop.f32.mrb[0].mxu0
    %1718 = vmatprep.mubr.f32.mxu0 0.0
    %v1719 = vand.u32 %v63, 4294901760
    %1720 = vmatmul.mubr.f32.gmra.mrb[0].mxu0 %v1719
    %v1721 = vpop.f32.mrb[0].mxu0
    %v1722 = vadd.f32 %v1491, %v1721
    %v1723 = vpop.f32.mrb[0].mxu0
    %1724 = vmatprep.mubr.f32.mxu0 0.0
    %v1725 = vand.u32 %v64, 4294901760
    %1726 = vmatmul.mubr.f32.gmra.mrb[0].mxu0 %v1725
    %v1727 = vpop.f32.mrb[0].mxu0
    %v1728 = vadd.f32 %v1497, %v1727
    %v1729 = vpop.f32.mrb[0].mxu0
    %1730 = vmatprep.mubr.f32.mxu0 0.0
    %v1731 = vand.u32 %v65, 4294901760
    %1732 = vmatmul.mubr.f32.gmra.mrb[0].mxu0 %v1731
    %v1733 = vpop.f32.mrb[0].mxu0
    %v1734 = vadd.f32 %v1503, %v1733
    %v1735 = vpop.f32.mrb[0].mxu0
    %1736 = vmatprep.mubr.f32.mxu0 0.0
    %v1737 = vand.u32 %v66, 4294901760
    %1738 = vmatmul.mubr.f32.gmra.mrb[0].mxu0 %v1737
    %v1739 = vpop.f32.mrb[0].mxu0
    %v1740 = vadd.f32 %v1509, %v1739
    %v1741 = vpop.f32.mrb[0].mxu0
    %1742 = vmatprep.mubr.f32.mxu0 0.0
    %v1743 = vand.u32 %v67, 4294901760
    %1744 = vmatmul.mubr.f32.gmra.mrb[0].mxu0 %v1743
    %v1745 = vpop.f32.mrb[0].mxu0
    %v1746 = vadd.f32 %v1515, %v1745
    %v1747 = vpop.f32.mrb[0].mxu0
    %1748 = vmatprep.mubr.f32.mxu0 0.0
    %v1749 = vand.u32 %v68, 4294901760
    %1750 = vmatmul.mubr.f32.gmra.mrb[0].mxu0 %v1749
    %v1751 = vpop.f32.mrb[0].mxu0
    %v1752 = vadd.f32 %v1521, %v1751
    %v1753 = vpop.f32.mrb[0].mxu0
    %1754 = vmatprep.mubr.f32.mxu0 0.0
    %v1755 = vand.u32 %v69, 4294901760
    %1756 = vmatmul.mubr.f32.gmra.mrb[0].mxu0 %v1755
    %v1757 = vpop.f32.mrb[0].mxu0
    %v1758 = vadd.f32 %v1527, %v1757
    %v1759 = vpop.f32.mrb[0].mxu0
    %1760 = vmatprep.mubr.f32.mxu0 0.0
    %v1761 = vand.u32 %v70, 4294901760
    %1762 = vmatmul.mubr.f32.gmra.mrb[0].mxu0 %v1761
    %v1763 = vpop.f32.mrb[0].mxu0
    %v1764 = vadd.f32 %v1533, %v1763
    %v1765 = vpop.f32.mrb[0].mxu0
    %1766 = vdwg.mxu0
    %v1767 = vtanh.pop %v1620
    %v1768 = vtanh.pop %v1626
    %v1769 = vtanh.pop %v1632
    %v1770 = vtanh.pop %v1638
    %v1771 = vtanh.pop %v1644
    %v1772 = vtanh.pop %v1650
    %v1773 = vtanh.pop %v1656
    %v1774 = vtanh.pop %v1662
    %v1775 = vtanh.pop %v1668
    %v1776 = vtanh.pop %v1674
    %v1777 = vtanh.pop %v1680
    %v1778 = vtanh.pop %v1686
    %v1779 = vtanh.pop %v1692
    %v1780 = vtanh.pop %v1698
    %v1781 = vtanh.pop %v1704
    %v1782 = vtanh.pop %v1710
    %v1783 = vtanh.pop %v1716
    %v1784 = vtanh.pop %v1722
    %v1785 = vtanh.pop %v1728
    %v1786 = vtanh.pop %v1734
    %v1787 = vtanh.pop %v1740
    %v1788 = vtanh.pop %v1746
    %v1789 = vtanh.pop %v1752
    %v1790 = vtanh.pop %v1758
    %v1791 = vtanh.pop %v1764
    %v1792 = vadd.f32 %v1767, %v1768
    %v1793 = vadd.f32 %v1792, %v1769
    %v1794 = vadd.f32 %v1793, %v1770
    %v1795 = vadd.f32 %v1794, %v1771
    %v1796 = vadd.f32 %v1795, %v1772
    %v1797 = vadd.f32 %v1796, %v1773
    %v1798 = vadd.f32 %v1797, %v1774
    %v1799 = vadd.f32 %v1798, %v1775
    %v1800 = vadd.f32 %v1799, %v1776
    %v1801 = vadd.f32 %v1800, %v1777
    %v1802 = vadd.f32 %v1801, %v1778
    %v1803 = vadd.f32 %v1802, %v1779
    %v1804 = vadd.f32 %v1803, %v1780
    %v1805 = vadd.f32 %v1804, %v1781
    %v1806 = vadd.f32 %v1805, %v1782
    %v1807 = vadd.f32 %v1806, %v1783
    %v1808 = vadd.f32 %v1807, %v1784
    %v1809 = vadd.f32 %v1808, %v1785
    %v1810 = vadd.f32 %v1809, %v1786
    %v1811 = vadd.f32 %v1810, %v1787
    %v1812 = vadd.f32 %v1811, %v1788
    %v1813 = vadd.f32 %v1812, %v1789
    %v1814 = vadd.f32 %v1813, %v1790
    %v1815 = vadd.f32 %v1814, %v1791
    %v1816 = vrot.slane %v1815, 4
    %v1817 = vadd.f32 %v1815, %v1816
    %v1818 = vrot.slane %v1817, 2
    %v1819 = vadd.f32 %v1817, %v1818
    %v1820 = vrot.slane %v1819, 1
    %v1821 = vadd.f32 %v1819, %v1820
    %v1822 = vld [vmem:[%s3] sm:$0x1]
    %v1823 = vmul.f32 %v1821, %v1822
    %vm1824 = vcmask 1040384
    %v1825 = vsel %vm1824, %v1823, 0.0
    %1826 = vadd.xlane.f32.xlu0 %v1825
    %v1827 = vpop.xlane.xlu0 %1826
    %v1828 = vrcp.pop 200.0
    %v1829 = vmul.f32 %v1827, %v1828
    %v1830 = vld [vmem:[#allocation2 + $0x8] sm:$0xff]
    %v1831 = vld [vmem:[#allocation2 + $0x28] sm:$0xff]
    %v1832 = vld [vmem:[#allocation2 + $0x48] sm:$0xff]
    %v1833 = vld [vmem:[#allocation2 + $0x68] sm:$0xff]
    %v1834 = vld [vmem:[#allocation2 + $0x88] sm:$0xff]
    %v1835 = vld [vmem:[#allocation2 + $0xa8] sm:$0xff]
    %v1836 = vld [vmem:[#allocation2 + $0xc8] sm:$0xff]
    %v1837 = vld [vmem:[#allocation2 + $0xe8] sm:$0xff]
    %v1838 = vld [vmem:[#allocation2 + $0x108] sm:$0xff]
    %v1839 = vld [vmem:[#allocation2 + $0x128] sm:$0xff]
    %v1840 = vld [vmem:[#allocation2 + $0x148] sm:$0xff]
    %v1841 = vld [vmem:[#allocation2 + $0x168] sm:$0xff]
    %v1842 = vld [vmem:[#allocation2 + $0x188] sm:$0xff]
    %v1843 = vld [vmem:[#allocation2 + $0x1a8] sm:$0xff]
    %v1844 = vld [vmem:[#allocation2 + $0x1c8] sm:$0xff]
    %v1845 = vld [vmem:[#allocation2 + $0x1e8] sm:$0xff]
    %v1846 = vld [vmem:[#allocation2 + $0x208] sm:$0xff]
    %v1847 = vld [vmem:[#allocation2 + $0x228] sm:$0xff]
    %v1848 = vld [vmem:[#allocation2 + $0x248] sm:$0xff]
    %v1849 = vld [vmem:[#allocation2 + $0x268] sm:$0xff]
    %v1850 = vld [vmem:[#allocation2 + $0x288] sm:$0xff]
    %v1851 = vld [vmem:[#allocation2 + $0x2a8] sm:$0xff]
    %v1852 = vld [vmem:[#allocation2 + $0x2c8] sm:$0xff]
    %v1853 = vld [vmem:[#allocation2 + $0x2e8] sm:$0xff]
    %v1854 = vld [vmem:[#allocation2 + $0x308] sm:$0xff]
    %1855 = vmatprep.subr.mxu0 0.0
    %v1856 = vand.u32 %v71, 4294901760
    %1857 = vmatpush1.msra.mxu0 %v1856
    %1858 = vmatprep.subr.mxu0 0.0
    %v1859 = vand.u32 %v72, 4294901760
    %1860 = vmatpush1.msra.mxu0 %v1859
    %1861 = vmatprep.subr.mxu0 0.0
    %v1862 = vand.u32 %v73, 4294901760
    %1863 = vmatpush1.msra.mxu0 %v1862
    %1864 = vmatprep.subr.mxu0 0.0
    %v1865 = vand.u32 %v74, 4294901760
    %1866 = vmatpush1.msra.mxu0 %v1865
    %1867 = vmatprep.subr.mxu0 0.0
    %v1868 = vand.u32 %v75, 4294901760
    %1869 = vmatpush1.msra.mxu0 %v1868
    %1870 = vmatprep.subr.mxu0 0.0
    %v1871 = vand.u32 %v76, 4294901760
    %1872 = vmatpush1.msra.mxu0 %v1871
    %1873 = vmatprep.subr.mxu0 0.0
    %v1874 = vand.u32 %v77, 4294901760
    %1875 = vmatpush1.msra.mxu0 %v1874
    %1876 = vmatprep.subr.mxu0 0.0
    %v1877 = vand.u32 %v78, 4294901760
    %1878 = vmatpush1.msra.mxu0 %v1877
    %1879 = vmatprep.subr.mxu0 0.0
    %v1880 = vand.u32 %v79, 4294901760
    %1881 = vmatpush1.msra.mxu0 %v1880
    %1882 = vmatprep.subr.mxu0 0.0
    %v1883 = vand.u32 %v80, 4294901760
    %1884 = vmatpush1.msra.mxu0 %v1883
    %1885 = vmatprep.subr.mxu0 0.0
    %v1886 = vand.u32 %v81, 4294901760
    %1887 = vmatpush1.msra.mxu0 %v1886
    %1888 = vmatprep.subr.mxu0 0.0
    %v1889 = vand.u32 %v82, 4294901760
    %1890 = vmatpush1.msra.mxu0 %v1889
    %1891 = vmatprep.subr.mxu0 0.0
    %v1892 = vand.u32 %v83, 4294901760
    %1893 = vmatpush1.msra.mxu0 %v1892
    %1894 = vmatprep.subr.mxu0 0.0
    %v1895 = vand.u32 %v84, 4294901760
    %1896 = vmatpush1.msra.mxu0 %v1895
    %1897 = vmatprep.subr.mxu0 0.0
    %v1898 = vand.u32 %v85, 4294901760
    %1899 = vmatpush1.msra.mxu0 %v1898
    %1900 = vmatprep.subr.mxu0 0.0
    %v1901 = vand.u32 %v86, 4294901760
    %1902 = vmatpush1.msra.mxu0 %v1901
    %1903 = vmatprep.subr.mxu0 0.0
    %1904 = vmatpush1.msra.mxu0 0.0
    %1905 = vmatprep.subr.mxu0 0.0
    %1906 = vmatpush1.msra.mxu0 0.0
    %1907 = vmatprep.subr.mxu0 0.0
    %1908 = vmatpush1.msra.mxu0 0.0
    %1909 = vmatprep.subr.mxu0 0.0
    %1910 = vmatpush1.msra.mxu0 0.0
    %1911 = vmatprep.subr.mxu0 0.0
    %1912 = vmatpush1.msra.mxu0 0.0
    %1913 = vmatprep.subr.mxu0 0.0
    %1914 = vmatpush1.msra.mxu0 0.0
    %1915 = vmatprep.subr.mxu0 0.0
    %1916 = vmatpush1.msra.mxu0 0.0
    %1917 = vmatprep.subr.mxu0 0.0
    %1918 = vmatpush1.msra.mxu0 0.0
    %1919 = vmatprep.subr.mxu0 0.0
    %1920 = vmatpush1.msra.mxu0 0.0
    %1921 = vmatprep.subr.mxu0 0.0
    %1922 = vmatpush1.msra.mxu0 0.0
    %1923 = vmatprep.subr.mxu0 0.0
    %1924 = vmatpush1.msra.mxu0 0.0
    %1925 = vmatprep.subr.mxu0 0.0
    %1926 = vmatpush1.msra.mxu0 0.0
    %1927 = vmatprep.subr.mxu0 0.0
    %1928 = vmatpush1.msra.mxu0 0.0
    %1929 = vmatprep.subr.mxu0 0.0
    %1930 = vmatpush1.msra.mxu0 0.0
    %1931 = vmatprep.subr.mxu0 0.0
    %1932 = vmatpush1.msra.mxu0 0.0
    %1933 = vmatprep.subr.mxu0 0.0
    %1934 = vmatpush1.msra.mxu0 0.0
    %1935 = vmatprep.mubr.f32.mxu0 0.0
    %v1936 = vand.u32 %v1830, 4294901760
    %v1937 = vsub.f32 %v1830, %v1936
    %v1938 = vand.u32 %v1937, 4294901760
    %v1939 = vsub.f32 %v1937, %v1938
    %v1940 = vand.u32 %v1939, 4294901760
    %1941 = vmatmul.mubr.f32.gmra.mrb[0].mxu0 %v1940
    %v1942 = vpop.f32.mrb[0].mxu0
    %v1943 = vadd.f32 %v92, %v1942
    %v1944 = vpop.f32.mrb[0].mxu0
    %1945 = vmatprep.mubr.f32.mxu0 0.0
    %v1946 = vand.u32 %v1831, 4294901760
    %v1947 = vsub.f32 %v1831, %v1946
    %v1948 = vand.u32 %v1947, 4294901760
    %v1949 = vsub.f32 %v1947, %v1948
    %v1950 = vand.u32 %v1949, 4294901760
    %1951 = vmatmul.mubr.f32.gmra.mrb[0].mxu0 %v1950
    %v1952 = vpop.f32.mrb[0].mxu0
    %v1953 = vadd.f32 %v92, %v1952
    %v1954 = vpop.f32.mrb[0].mxu0
    %1955 = vmatprep.mubr.f32.mxu0 0.0
    %v1956 = vand.u32 %v1832, 4294901760
    %v1957 = vsub.f32 %v1832, %v1956
    %v1958 = vand.u32 %v1957, 4294901760
    %v1959 = vsub.f32 %v1957, %v1958
    %v1960 = vand.u32 %v1959, 4294901760
    %1961 = vmatmul.mubr.f32.gmra.mrb[0].mxu0 %v1960
    %v1962 = vpop.f32.mrb[0].mxu0
    %v1963 = vadd.f32 %v92, %v1962
    %v1964 = vpop.f32.mrb[0].mxu0
    %1965 = vmatprep.mubr.f32.mxu0 0.0
    %v1966 = vand.u32 %v1833, 4294901760
    %v1967 = vsub.f32 %v1833, %v1966
    %v1968 = vand.u32 %v1967, 4294901760
    %v1969 = vsub.f32 %v1967, %v1968
    %v1970 = vand.u32 %v1969, 4294901760
    %1971 = vmatmul.mubr.f32.gmra.mrb[0].mxu0 %v1970
    %v1972 = vpop.f32.mrb[0].mxu0
    %v1973 = vadd.f32 %v92, %v1972
    %v1974 = vpop.f32.mrb[0].mxu0
    %1975 = vmatprep.mubr.f32.mxu0 0.0
    %v1976 = vand.u32 %v1834, 4294901760
    %v1977 = vsub.f32 %v1834, %v1976
    %v1978 = vand.u32 %v1977, 4294901760
    %v1979 = vsub.f32 %v1977, %v1978
    %v1980 = vand.u32 %v1979, 4294901760
    %1981 = vmatmul.mubr.f32.gmra.mrb[0].mxu0 %v1980
    %v1982 = vpop.f32.mrb[0].mxu0
    %v1983 = vadd.f32 %v92, %v1982
    %v1984 = vpop.f32.mrb[0].mxu0
    %1985 = vmatprep.mubr.f32.mxu0 0.0
    %v1986 = vand.u32 %v1835, 4294901760
    %v1987 = vsub.f32 %v1835, %v1986
    %v1988 = vand.u32 %v1987, 4294901760
    %v1989 = vsub.f32 %v1987, %v1988
    %v1990 = vand.u32 %v1989, 4294901760
    %1991 = vmatmul.mubr.f32.gmra.mrb[0].mxu0 %v1990
    %v1992 = vpop.f32.mrb[0].mxu0
    %v1993 = vadd.f32 %v92, %v1992
    %v1994 = vpop.f32.mrb[0].mxu0
    %1995 = vmatprep.mubr.f32.mxu0 0.0
    %v1996 = vand.u32 %v1836, 4294901760
    %v1997 = vsub.f32 %v1836, %v1996
    %v1998 = vand.u32 %v1997, 4294901760
    %v1999 = vsub.f32 %v1997, %v1998
    %v2000 = vand.u32 %v1999, 4294901760
    %2001 = vmatmul.mubr.f32.gmra.mrb[0].mxu0 %v2000
    %v2002 = vpop.f32.mrb[0].mxu0
    %v2003 = vadd.f32 %v92, %v2002
    %v2004 = vpop.f32.mrb[0].mxu0
    %2005 = vmatprep.mubr.f32.mxu0 0.0
    %v2006 = vand.u32 %v1837, 4294901760
    %v2007 = vsub.f32 %v1837, %v2006
    %v2008 = vand.u32 %v2007, 4294901760
    %v2009 = vsub.f32 %v2007, %v2008
    %v2010 = vand.u32 %v2009, 4294901760
    %2011 = vmatmul.mubr.f32.gmra.mrb[0].mxu0 %v2010
    %v2012 = vpop.f32.mrb[0].mxu0
    %v2013 = vadd.f32 %v92, %v2012
    %v2014 = vpop.f32.mrb[0].mxu0
    %2015 = vmatprep.mubr.f32.mxu0 0.0
    %v2016 = vand.u32 %v1838, 4294901760
    %v2017 = vsub.f32 %v1838, %v2016
    %v2018 = vand.u32 %v2017, 4294901760
    %v2019 = vsub.f32 %v2017, %v2018
    %v2020 = vand.u32 %v2019, 4294901760
    %2021 = vmatmul.mubr.f32.gmra.mrb[0].mxu0 %v2020
    %v2022 = vpop.f32.mrb[0].mxu0
    %v2023 = vadd.f32 %v92, %v2022
    %v2024 = vpop.f32.mrb[0].mxu0
    %2025 = vmatprep.mubr.f32.mxu0 0.0
    %v2026 = vand.u32 %v1839, 4294901760
    %v2027 = vsub.f32 %v1839, %v2026
    %v2028 = vand.u32 %v2027, 4294901760
    %v2029 = vsub.f32 %v2027, %v2028
    %v2030 = vand.u32 %v2029, 4294901760
    %2031 = vmatmul.mubr.f32.gmra.mrb[0].mxu0 %v2030
    %v2032 = vpop.f32.mrb[0].mxu0
    %v2033 = vadd.f32 %v92, %v2032
    %v2034 = vpop.f32.mrb[0].mxu0
    %2035 = vmatprep.mubr.f32.mxu0 0.0
    %v2036 = vand.u32 %v1840, 4294901760
    %v2037 = vsub.f32 %v1840, %v2036
    %v2038 = vand.u32 %v2037, 4294901760
    %v2039 = vsub.f32 %v2037, %v2038
    %v2040 = vand.u32 %v2039, 4294901760
    %2041 = vmatmul.mubr.f32.gmra.mrb[0].mxu0 %v2040
    %v2042 = vpop.f32.mrb[0].mxu0
    %v2043 = vadd.f32 %v92, %v2042
    %v2044 = vpop.f32.mrb[0].mxu0
    %2045 = vmatprep.mubr.f32.mxu0 0.0
    %v2046 = vand.u32 %v1841, 4294901760
    %v2047 = vsub.f32 %v1841, %v2046
    %v2048 = vand.u32 %v2047, 4294901760
    %v2049 = vsub.f32 %v2047, %v2048
    %v2050 = vand.u32 %v2049, 4294901760
    %2051 = vmatmul.mubr.f32.gmra.mrb[0].mxu0 %v2050
    %v2052 = vpop.f32.mrb[0].mxu0
    %v2053 = vadd.f32 %v92, %v2052
    %v2054 = vpop.f32.mrb[0].mxu0
    %2055 = vmatprep.mubr.f32.mxu0 0.0
    %v2056 = vand.u32 %v1842, 4294901760
    %v2057 = vsub.f32 %v1842, %v2056
    %v2058 = vand.u32 %v2057, 4294901760
    %v2059 = vsub.f32 %v2057, %v2058
    %v2060 = vand.u32 %v2059, 4294901760
    %2061 = vmatmul.mubr.f32.gmra.mrb[0].mxu0 %v2060
    %v2062 = vpop.f32.mrb[0].mxu0
    %v2063 = vadd.f32 %v92, %v2062
    %v2064 = vpop.f32.mrb[0].mxu0
    %2065 = vmatprep.mubr.f32.mxu0 0.0
    %v2066 = vand.u32 %v1843, 4294901760
    %v2067 = vsub.f32 %v1843, %v2066
    %v2068 = vand.u32 %v2067, 4294901760
    %v2069 = vsub.f32 %v2067, %v2068
    %v2070 = vand.u32 %v2069, 4294901760
    %2071 = vmatmul.mubr.f32.gmra.mrb[0].mxu0 %v2070
    %v2072 = vpop.f32.mrb[0].mxu0
    %v2073 = vadd.f32 %v92, %v2072
    %v2074 = vpop.f32.mrb[0].mxu0
    %2075 = vmatprep.mubr.f32.mxu0 0.0
    %v2076 = vand.u32 %v1844, 4294901760
    %v2077 = vsub.f32 %v1844, %v2076
    %v2078 = vand.u32 %v2077, 4294901760
    %v2079 = vsub.f32 %v2077, %v2078
    %v2080 = vand.u32 %v2079, 4294901760
    %2081 = vmatmul.mubr.f32.gmra.mrb[0].mxu0 %v2080
    %v2082 = vpop.f32.mrb[0].mxu0
    %v2083 = vadd.f32 %v92, %v2082
    %v2084 = vpop.f32.mrb[0].mxu0
    %2085 = vmatprep.mubr.f32.mxu0 0.0
    %v2086 = vand.u32 %v1845, 4294901760
    %v2087 = vsub.f32 %v1845, %v2086
    %v2088 = vand.u32 %v2087, 4294901760
    %v2089 = vsub.f32 %v2087, %v2088
    %v2090 = vand.u32 %v2089, 4294901760
    %2091 = vmatmul.mubr.f32.gmra.mrb[0].mxu0 %v2090
    %v2092 = vpop.f32.mrb[0].mxu0
    %v2093 = vadd.f32 %v92, %v2092
    %v2094 = vpop.f32.mrb[0].mxu0
    %2095 = vmatprep.mubr.f32.mxu0 0.0
    %v2096 = vand.u32 %v1846, 4294901760
    %v2097 = vsub.f32 %v1846, %v2096
    %v2098 = vand.u32 %v2097, 4294901760
    %v2099 = vsub.f32 %v2097, %v2098
    %v2100 = vand.u32 %v2099, 4294901760
    %2101 = vmatmul.mubr.f32.gmra.mrb[0].mxu0 %v2100
    %v2102 = vpop.f32.mrb[0].mxu0
    %v2103 = vadd.f32 %v92, %v2102
    %v2104 = vpop.f32.mrb[0].mxu0
    %2105 = vmatprep.mubr.f32.mxu0 0.0
    %v2106 = vand.u32 %v1847, 4294901760
    %v2107 = vsub.f32 %v1847, %v2106
    %v2108 = vand.u32 %v2107, 4294901760
    %v2109 = vsub.f32 %v2107, %v2108
    %v2110 = vand.u32 %v2109, 4294901760
    %2111 = vmatmul.mubr.f32.gmra.mrb[0].mxu0 %v2110
    %v2112 = vpop.f32.mrb[0].mxu0
    %v2113 = vadd.f32 %v92, %v2112
    %v2114 = vpop.f32.mrb[0].mxu0
    %2115 = vmatprep.mubr.f32.mxu0 0.0
    %v2116 = vand.u32 %v1848, 4294901760
    %v2117 = vsub.f32 %v1848, %v2116
    %v2118 = vand.u32 %v2117, 4294901760
    %v2119 = vsub.f32 %v2117, %v2118
    %v2120 = vand.u32 %v2119, 4294901760
    %2121 = vmatmul.mubr.f32.gmra.mrb[0].mxu0 %v2120
    %v2122 = vpop.f32.mrb[0].mxu0
    %v2123 = vadd.f32 %v92, %v2122
    %v2124 = vpop.f32.mrb[0].mxu0
    %2125 = vmatprep.mubr.f32.mxu0 0.0
    %v2126 = vand.u32 %v1849, 4294901760
    %v2127 = vsub.f32 %v1849, %v2126
    %v2128 = vand.u32 %v2127, 4294901760
    %v2129 = vsub.f32 %v2127, %v2128
    %v2130 = vand.u32 %v2129, 4294901760
    %2131 = vmatmul.mubr.f32.gmra.mrb[0].mxu0 %v2130
    %v2132 = vpop.f32.mrb[0].mxu0
    %v2133 = vadd.f32 %v92, %v2132
    %v2134 = vpop.f32.mrb[0].mxu0
    %2135 = vmatprep.mubr.f32.mxu0 0.0
    %v2136 = vand.u32 %v1850, 4294901760
    %v2137 = vsub.f32 %v1850, %v2136
    %v2138 = vand.u32 %v2137, 4294901760
    %v2139 = vsub.f32 %v2137, %v2138
    %v2140 = vand.u32 %v2139, 4294901760
    %2141 = vmatmul.mubr.f32.gmra.mrb[0].mxu0 %v2140
    %v2142 = vpop.f32.mrb[0].mxu0
    %v2143 = vadd.f32 %v92, %v2142
    %v2144 = vpop.f32.mrb[0].mxu0
    %2145 = vmatprep.mubr.f32.mxu0 0.0
    %v2146 = vand.u32 %v1851, 4294901760
    %v2147 = vsub.f32 %v1851, %v2146
    %v2148 = vand.u32 %v2147, 4294901760
    %v2149 = vsub.f32 %v2147, %v2148
    %v2150 = vand.u32 %v2149, 4294901760
    %2151 = vmatmul.mubr.f32.gmra.mrb[0].mxu0 %v2150
    %v2152 = vpop.f32.mrb[0].mxu0
    %v2153 = vadd.f32 %v92, %v2152
    %v2154 = vpop.f32.mrb[0].mxu0
    %2155 = vmatprep.mubr.f32.mxu0 0.0
    %v2156 = vand.u32 %v1852, 4294901760
    %v2157 = vsub.f32 %v1852, %v2156
    %v2158 = vand.u32 %v2157, 4294901760
    %v2159 = vsub.f32 %v2157, %v2158
    %v2160 = vand.u32 %v2159, 4294901760
    %2161 = vmatmul.mubr.f32.gmra.mrb[0].mxu0 %v2160
    %v2162 = vpop.f32.mrb[0].mxu0
    %v2163 = vadd.f32 %v92, %v2162
    %v2164 = vpop.f32.mrb[0].mxu0
    %2165 = vmatprep.mubr.f32.mxu0 0.0
    %v2166 = vand.u32 %v1853, 4294901760
    %v2167 = vsub.f32 %v1853, %v2166
    %v2168 = vand.u32 %v2167, 4294901760
    %v2169 = vsub.f32 %v2167, %v2168
    %v2170 = vand.u32 %v2169, 4294901760
    %2171 = vmatmul.mubr.f32.gmra.mrb[0].mxu0 %v2170
    %v2172 = vpop.f32.mrb[0].mxu0
    %v2173 = vadd.f32 %v92, %v2172
    %v2174 = vpop.f32.mrb[0].mxu0
    %2175 = vmatprep.mubr.f32.mxu0 0.0
    %v2176 = vand.u32 %v1854, 4294901760
    %v2177 = vsub.f32 %v1854, %v2176
    %v2178 = vand.u32 %v2177, 4294901760
    %v2179 = vsub.f32 %v2177, %v2178
    %v2180 = vand.u32 %v2179, 4294901760
    %2181 = vmatmul.mubr.f32.gmra.mrb[0].mxu0 %v2180
    %v2182 = vpop.f32.mrb[0].mxu0
    %v2183 = vadd.f32 %v92, %v2182
    %v2184 = vpop.f32.mrb[0].mxu0
    %2185 = vdwg.mxu0
    %2186 = vmatprep.subr.mxu0 0.0
    %v2187 = vand.u32 %v71, 4294901760
    %v2188 = vsub.f32 %v71, %v2187
    %v2189 = vand.u32 %v2188, 4294901760
    %v2190 = vsub.f32 %v2188, %v2189
    %v2191 = vand.u32 %v2190, 4294901760
    %2192 = vmatpush1.msra.mxu0 %v2191
    %2193 = vmatprep.subr.mxu0 0.0
    %v2194 = vand.u32 %v72, 4294901760
    %v2195 = vsub.f32 %v72, %v2194
    %v2196 = vand.u32 %v2195, 4294901760
    %v2197 = vsub.f32 %v2195, %v2196
    %v2198 = vand.u32 %v2197, 4294901760
    %2199 = vmatpush1.msra.mxu0 %v2198
    %2200 = vmatprep.subr.mxu0 0.0
    %v2201 = vand.u32 %v73, 4294901760
    %v2202 = vsub.f32 %v73, %v2201
    %v2203 = vand.u32 %v2202, 4294901760
    %v2204 = vsub.f32 %v2202, %v2203
    %v2205 = vand.u32 %v2204, 4294901760
    %2206 = vmatpush1.msra.mxu0 %v2205
    %2207 = vmatprep.subr.mxu0 0.0
    %v2208 = vand.u32 %v74, 4294901760
    %v2209 = vsub.f32 %v74, %v2208
    %v2210 = vand.u32 %v2209, 4294901760
    %v2211 = vsub.f32 %v2209, %v2210
    %v2212 = vand.u32 %v2211, 4294901760
    %2213 = vmatpush1.msra.mxu0 %v2212
    %2214 = vmatprep.subr.mxu0 0.0
    %v2215 = vand.u32 %v75, 4294901760
    %v2216 = vsub.f32 %v75, %v2215
    %v2217 = vand.u32 %v2216, 4294901760
    %v2218 = vsub.f32 %v2216, %v2217
    %v2219 = vand.u32 %v2218, 4294901760
    %2220 = vmatpush1.msra.mxu0 %v2219
    %2221 = vmatprep.subr.mxu0 0.0
    %v2222 = vand.u32 %v76, 4294901760
    %v2223 = vsub.f32 %v76, %v2222
    %v2224 = vand.u32 %v2223, 4294901760
    %v2225 = vsub.f32 %v2223, %v2224
    %v2226 = vand.u32 %v2225, 4294901760
    %2227 = vmatpush1.msra.mxu0 %v2226
    %2228 = vmatprep.subr.mxu0 0.0
    %v2229 = vand.u32 %v77, 4294901760
    %v2230 = vsub.f32 %v77, %v2229
    %v2231 = vand.u32 %v2230, 4294901760
    %v2232 = vsub.f32 %v2230, %v2231
    %v2233 = vand.u32 %v2232, 4294901760
    %2234 = vmatpush1.msra.mxu0 %v2233
    %2235 = vmatprep.subr.mxu0 0.0
    %v2236 = vand.u32 %v78, 4294901760
    %v2237 = vsub.f32 %v78, %v2236
    %v2238 = vand.u32 %v2237, 4294901760
    %v2239 = vsub.f32 %v2237, %v2238
    %v2240 = vand.u32 %v2239, 4294901760
    %2241 = vmatpush1.msra.mxu0 %v2240
    %2242 = vmatprep.subr.mxu0 0.0
    %v2243 = vand.u32 %v79, 4294901760
    %v2244 = vsub.f32 %v79, %v2243
    %v2245 = vand.u32 %v2244, 4294901760
    %v2246 = vsub.f32 %v2244, %v2245
    %v2247 = vand.u32 %v2246, 4294901760
    %2248 = vmatpush1.msra.mxu0 %v2247
    %2249 = vmatprep.subr.mxu0 0.0
    %v2250 = vand.u32 %v80, 4294901760
    %v2251 = vsub.f32 %v80, %v2250
    %v2252 = vand.u32 %v2251, 4294901760
    %v2253 = vsub.f32 %v2251, %v2252
    %v2254 = vand.u32 %v2253, 4294901760
    %2255 = vmatpush1.msra.mxu0 %v2254
    %2256 = vmatprep.subr.mxu0 0.0
    %v2257 = vand.u32 %v81, 4294901760
    %v2258 = vsub.f32 %v81, %v2257
    %v2259 = vand.u32 %v2258, 4294901760
    %v2260 = vsub.f32 %v2258, %v2259
    %v2261 = vand.u32 %v2260, 4294901760
    %2262 = vmatpush1.msra.mxu0 %v2261
    %2263 = vmatprep.subr.mxu0 0.0
    %v2264 = vand.u32 %v82, 4294901760
    %v2265 = vsub.f32 %v82, %v2264
    %v2266 = vand.u32 %v2265, 4294901760
    %v2267 = vsub.f32 %v2265, %v2266
    %v2268 = vand.u32 %v2267, 4294901760
    %2269 = vmatpush1.msra.mxu0 %v2268
    %2270 = vmatprep.subr.mxu0 0.0
    %v2271 = vand.u32 %v83, 4294901760
    %v2272 = vsub.f32 %v83, %v2271
    %v2273 = vand.u32 %v2272, 4294901760
    %v2274 = vsub.f32 %v2272, %v2273
    %v2275 = vand.u32 %v2274, 4294901760
    %2276 = vmatpush1.msra.mxu0 %v2275
    %2277 = vmatprep.subr.mxu0 0.0
    %v2278 = vand.u32 %v84, 4294901760
    %v2279 = vsub.f32 %v84, %v2278
    %v2280 = vand.u32 %v2279, 4294901760
    %v2281 = vsub.f32 %v2279, %v2280
    %v2282 = vand.u32 %v2281, 4294901760
    %2283 = vmatpush1.msra.mxu0 %v2282
    %2284 = vmatprep.subr.mxu0 0.0
    %v2285 = vand.u32 %v85, 4294901760
    %v2286 = vsub.f32 %v85, %v2285
    %v2287 = vand.u32 %v2286, 4294901760
    %v2288 = vsub.f32 %v2286, %v2287
    %v2289 = vand.u32 %v2288, 4294901760
    %2290 = vmatpush1.msra.mxu0 %v2289
    %2291 = vmatprep.subr.mxu0 0.0
    %v2292 = vand.u32 %v86, 4294901760
    %v2293 = vsub.f32 %v86, %v2292
    %v2294 = vand.u32 %v2293, 4294901760
    %v2295 = vsub.f32 %v2293, %v2294
    %v2296 = vand.u32 %v2295, 4294901760
    %2297 = vmatpush1.msra.mxu0 %v2296
    %2298 = vmatprep.subr.mxu0 0.0
    %2299 = vmatpush1.msra.mxu0 0.0
    %2300 = vmatprep.subr.mxu0 0.0
    %2301 = vmatpush1.msra.mxu0 0.0
    %2302 = vmatprep.subr.mxu0 0.0
    %2303 = vmatpush1.msra.mxu0 0.0
    %2304 = vmatprep.subr.mxu0 0.0
    %2305 = vmatpush1.msra.mxu0 0.0
    %2306 = vmatprep.subr.mxu0 0.0
    %2307 = vmatpush1.msra.mxu0 0.0
    %2308 = vmatprep.subr.mxu0 0.0
    %2309 = vmatpush1.msra.mxu0 0.0
    %2310 = vmatprep.subr.mxu0 0.0
    %2311 = vmatpush1.msra.mxu0 0.0
    %2312 = vmatprep.subr.mxu0 0.0
    %2313 = vmatpush1.msra.mxu0 0.0
    %2314 = vmatprep.subr.mxu0 0.0
    %2315 = vmatpush1.msra.mxu0 0.0
    %2316 = vmatprep.subr.mxu0 0.0
    %2317 = vmatpush1.msra.mxu0 0.0
    %2318 = vmatprep.subr.mxu0 0.0
    %2319 = vmatpush1.msra.mxu0 0.0
    %2320 = vmatprep.subr.mxu0 0.0
    %2321 = vmatpush1.msra.mxu0 0.0
    %2322 = vmatprep.subr.mxu0 0.0
    %2323 = vmatpush1.msra.mxu0 0.0
    %2324 = vmatprep.subr.mxu0 0.0
    %2325 = vmatpush1.msra.mxu0 0.0
    %2326 = vmatprep.subr.mxu0 0.0
    %2327 = vmatpush1.msra.mxu0 0.0
    %2328 = vmatprep.subr.mxu0 0.0
    %2329 = vmatpush1.msra.mxu0 0.0
    %2330 = vmatprep.mubr.f32.mxu0 0.0
    %v2331 = vand.u32 %v1830, 4294901760
    %2332 = vmatmul.mubr.f32.gmra.mrb[0].mxu0 %v2331
    %v2333 = vpop.f32.mrb[0].mxu0
    %v2334 = vadd.f32 %v1943, %v2333
    %v2335 = vpop.f32.mrb[0].mxu0
    %2336 = vmatprep.mubr.f32.mxu0 0.0
    %v2337 = vand.u32 %v1831, 4294901760
    %2338 = vmatmul.mubr.f32.gmra.mrb[0].mxu0 %v2337
    %v2339 = vpop.f32.mrb[0].mxu0
    %v2340 = vadd.f32 %v1953, %v2339
    %v2341 = vpop.f32.mrb[0].mxu0
    %2342 = vmatprep.mubr.f32.mxu0 0.0
    %v2343 = vand.u32 %v1832, 4294901760
    %2344 = vmatmul.mubr.f32.gmra.mrb[0].mxu0 %v2343
    %v2345 = vpop.f32.mrb[0].mxu0
    %v2346 = vadd.f32 %v1963, %v2345
    %v2347 = vpop.f32.mrb[0].mxu0
    %2348 = vmatprep.mubr.f32.mxu0 0.0
    %v2349 = vand.u32 %v1833, 4294901760
    %2350 = vmatmul.mubr.f32.gmra.mrb[0].mxu0 %v2349
    %v2351 = vpop.f32.mrb[0].mxu0
    %v2352 = vadd.f32 %v1973, %v2351
    %v2353 = vpop.f32.mrb[0].mxu0
    %2354 = vmatprep.mubr.f32.mxu0 0.0
    %v2355 = vand.u32 %v1834, 4294901760
    %2356 = vmatmul.mubr.f32.gmra.mrb[0].mxu0 %v2355
    %v2357 = vpop.f32.mrb[0].mxu0
    %v2358 = vadd.f32 %v1983, %v2357
    %v2359 = vpop.f32.mrb[0].mxu0
    %2360 = vmatprep.mubr.f32.mxu0 0.0
    %v2361 = vand.u32 %v1835, 4294901760
    %2362 = vmatmul.mubr.f32.gmra.mrb[0].mxu0 %v2361
    %v2363 = vpop.f32.mrb[0].mxu0
    %v2364 = vadd.f32 %v1993, %v2363
    %v2365 = vpop.f32.mrb[0].mxu0
    %2366 = vmatprep.mubr.f32.mxu0 0.0
    %v2367 = vand.u32 %v1836, 4294901760
    %2368 = vmatmul.mubr.f32.gmra.mrb[0].mxu0 %v2367
    %v2369 = vpop.f32.mrb[0].mxu0
    %v2370 = vadd.f32 %v2003, %v2369
    %v2371 = vpop.f32.mrb[0].mxu0
    %2372 = vmatprep.mubr.f32.mxu0 0.0
    %v2373 = vand.u32 %v1837, 4294901760
    %2374 = vmatmul.mubr.f32.gmra.mrb[0].mxu0 %v2373
    %v2375 = vpop.f32.mrb[0].mxu0
    %v2376 = vadd.f32 %v2013, %v2375
    %v2377 = vpop.f32.mrb[0].mxu0
    %2378 = vmatprep.mubr.f32.mxu0 0.0
    %v2379 = vand.u32 %v1838, 4294901760
    %2380 = vmatmul.mubr.f32.gmra.mrb[0].mxu0 %v2379
    %v2381 = vpop.f32.mrb[0].mxu0
    %v2382 = vadd.f32 %v2023, %v2381
    %v2383 = vpop.f32.mrb[0].mxu0
    %2384 = vmatprep.mubr.f32.mxu0 0.0
    %v2385 = vand.u32 %v1839, 4294901760
    %2386 = vmatmul.mubr.f32.gmra.mrb[0].mxu0 %v2385
    %v2387 = vpop.f32.mrb[0].mxu0
    %v2388 = vadd.f32 %v2033, %v2387
    %v2389 = vpop.f32.mrb[0].mxu0
    %2390 = vmatprep.mubr.f32.mxu0 0.0
    %v2391 = vand.u32 %v1840, 4294901760
    %2392 = vmatmul.mubr.f32.gmra.mrb[0].mxu0 %v2391
    %v2393 = vpop.f32.mrb[0].mxu0
    %v2394 = vadd.f32 %v2043, %v2393
    %v2395 = vpop.f32.mrb[0].mxu0
    %2396 = vmatprep.mubr.f32.mxu0 0.0
    %v2397 = vand.u32 %v1841, 4294901760
    %2398 = vmatmul.mubr.f32.gmra.mrb[0].mxu0 %v2397
    %v2399 = vpop.f32.mrb[0].mxu0
    %v2400 = vadd.f32 %v2053, %v2399
    %v2401 = vpop.f32.mrb[0].mxu0
    %2402 = vmatprep.mubr.f32.mxu0 0.0
    %v2403 = vand.u32 %v1842, 4294901760
    %2404 = vmatmul.mubr.f32.gmra.mrb[0].mxu0 %v2403
    %v2405 = vpop.f32.mrb[0].mxu0
    %v2406 = vadd.f32 %v2063, %v2405
    %v2407 = vpop.f32.mrb[0].mxu0
    %2408 = vmatprep.mubr.f32.mxu0 0.0
    %v2409 = vand.u32 %v1843, 4294901760
    %2410 = vmatmul.mubr.f32.gmra.mrb[0].mxu0 %v2409
    %v2411 = vpop.f32.mrb[0].mxu0
    %v2412 = vadd.f32 %v2073, %v2411
    %v2413 = vpop.f32.mrb[0].mxu0
    %2414 = vmatprep.mubr.f32.mxu0 0.0
    %v2415 = vand.u32 %v1844, 4294901760
    %2416 = vmatmul.mubr.f32.gmra.mrb[0].mxu0 %v2415
    %v2417 = vpop.f32.mrb[0].mxu0
    %v2418 = vadd.f32 %v2083, %v2417
    %v2419 = vpop.f32.mrb[0].mxu0
    %2420 = vmatprep.mubr.f32.mxu0 0.0
    %v2421 = vand.u32 %v1845, 4294901760
    %2422 = vmatmul.mubr.f32.gmra.mrb[0].mxu0 %v2421
    %v2423 = vpop.f32.mrb[0].mxu0
    %v2424 = vadd.f32 %v2093, %v2423
    %v2425 = vpop.f32.mrb[0].mxu0
    %2426 = vmatprep.mubr.f32.mxu0 0.0
    %v2427 = vand.u32 %v1846, 4294901760
    %2428 = vmatmul.mubr.f32.gmra.mrb[0].mxu0 %v2427
    %v2429 = vpop.f32.mrb[0].mxu0
    %v2430 = vadd.f32 %v2103, %v2429
    %v2431 = vpop.f32.mrb[0].mxu0
    %2432 = vmatprep.mubr.f32.mxu0 0.0
    %v2433 = vand.u32 %v1847, 4294901760
    %2434 = vmatmul.mubr.f32.gmra.mrb[0].mxu0 %v2433
    %v2435 = vpop.f32.mrb[0].mxu0
    %v2436 = vadd.f32 %v2113, %v2435
    %v2437 = vpop.f32.mrb[0].mxu0
    %2438 = vmatprep.mubr.f32.mxu0 0.0
    %v2439 = vand.u32 %v1848, 4294901760
    %2440 = vmatmul.mubr.f32.gmra.mrb[0].mxu0 %v2439
    %v2441 = vpop.f32.mrb[0].mxu0
    %v2442 = vadd.f32 %v2123, %v2441
    %v2443 = vpop.f32.mrb[0].mxu0
    %2444 = vmatprep.mubr.f32.mxu0 0.0
    %v2445 = vand.u32 %v1849, 4294901760
    %2446 = vmatmul.mubr.f32.gmra.mrb[0].mxu0 %v2445
    %v2447 = vpop.f32.mrb[0].mxu0
    %v2448 = vadd.f32 %v2133, %v2447
    %v2449 = vpop.f32.mrb[0].mxu0
    %2450 = vmatprep.mubr.f32.mxu0 0.0
    %v2451 = vand.u32 %v1850, 4294901760
    %2452 = vmatmul.mubr.f32.gmra.mrb[0].mxu0 %v2451
    %v2453 = vpop.f32.mrb[0].mxu0
    %v2454 = vadd.f32 %v2143, %v2453
    %v2455 = vpop.f32.mrb[0].mxu0
    %2456 = vmatprep.mubr.f32.mxu0 0.0
    %v2457 = vand.u32 %v1851, 4294901760
    %2458 = vmatmul.mubr.f32.gmra.mrb[0].mxu0 %v2457
    %v2459 = vpop.f32.mrb[0].mxu0
    %v2460 = vadd.f32 %v2153, %v2459
    %v2461 = vpop.f32.mrb[0].mxu0
    %2462 = vmatprep.mubr.f32.mxu0 0.0
    %v2463 = vand.u32 %v1852, 4294901760
    %2464 = vmatmul.mubr.f32.gmra.mrb[0].mxu0 %v2463
    %v2465 = vpop.f32.mrb[0].mxu0
    %v2466 = vadd.f32 %v2163, %v2465
    %v2467 = vpop.f32.mrb[0].mxu0
    %2468 = vmatprep.mubr.f32.mxu0 0.0
    %v2469 = vand.u32 %v1853, 4294901760
    %2470 = vmatmul.mubr.f32.gmra.mrb[0].mxu0 %v2469
    %v2471 = vpop.f32.mrb[0].mxu0
    %v2472 = vadd.f32 %v2173, %v2471
    %v2473 = vpop.f32.mrb[0].mxu0
    %2474 = vmatprep.mubr.f32.mxu0 0.0
    %v2475 = vand.u32 %v1854, 4294901760
    %2476 = vmatmul.mubr.f32.gmra.mrb[0].mxu0 %v2475
    %v2477 = vpop.f32.mrb[0].mxu0
    %v2478 = vadd.f32 %v2183, %v2477
    %v2479 = vpop.f32.mrb[0].mxu0
    %2480 = vdwg.mxu0
    %2481 = vmatprep.subr.mxu0 0.0
    %v2482 = vand.u32 %v71, 4294901760
    %v2483 = vsub.f32 %v71, %v2482
    %2484 = vmatpush1.msra.mxu0 %v2483
    %2485 = vmatprep.subr.mxu0 0.0
    %v2486 = vand.u32 %v72, 4294901760
    %v2487 = vsub.f32 %v72, %v2486
    %2488 = vmatpush1.msra.mxu0 %v2487
    %2489 = vmatprep.subr.mxu0 0.0
    %v2490 = vand.u32 %v73, 4294901760
    %v2491 = vsub.f32 %v73, %v2490
    %2492 = vmatpush1.msra.mxu0 %v2491
    %2493 = vmatprep.subr.mxu0 0.0
    %v2494 = vand.u32 %v74, 4294901760
    %v2495 = vsub.f32 %v74, %v2494
    %2496 = vmatpush1.msra.mxu0 %v2495
    %2497 = vmatprep.subr.mxu0 0.0
    %v2498 = vand.u32 %v75, 4294901760
    %v2499 = vsub.f32 %v75, %v2498
    %2500 = vmatpush1.msra.mxu0 %v2499
    %2501 = vmatprep.subr.mxu0 0.0
    %v2502 = vand.u32 %v76, 4294901760
    %v2503 = vsub.f32 %v76, %v2502
    %2504 = vmatpush1.msra.mxu0 %v2503
    %2505 = vmatprep.subr.mxu0 0.0
    %v2506 = vand.u32 %v77, 4294901760
    %v2507 = vsub.f32 %v77, %v2506
    %2508 = vmatpush1.msra.mxu0 %v2507
    %2509 = vmatprep.subr.mxu0 0.0
    %v2510 = vand.u32 %v78, 4294901760
    %v2511 = vsub.f32 %v78, %v2510
    %2512 = vmatpush1.msra.mxu0 %v2511
    %2513 = vmatprep.subr.mxu0 0.0
    %v2514 = vand.u32 %v79, 4294901760
    %v2515 = vsub.f32 %v79, %v2514
    %2516 = vmatpush1.msra.mxu0 %v2515
    %2517 = vmatprep.subr.mxu0 0.0
    %v2518 = vand.u32 %v80, 4294901760
    %v2519 = vsub.f32 %v80, %v2518
    %2520 = vmatpush1.msra.mxu0 %v2519
    %2521 = vmatprep.subr.mxu0 0.0
    %v2522 = vand.u32 %v81, 4294901760
    %v2523 = vsub.f32 %v81, %v2522
    %2524 = vmatpush1.msra.mxu0 %v2523
    %2525 = vmatprep.subr.mxu0 0.0
    %v2526 = vand.u32 %v82, 4294901760
    %v2527 = vsub.f32 %v82, %v2526
    %2528 = vmatpush1.msra.mxu0 %v2527
    %2529 = vmatprep.subr.mxu0 0.0
    %v2530 = vand.u32 %v83, 4294901760
    %v2531 = vsub.f32 %v83, %v2530
    %2532 = vmatpush1.msra.mxu0 %v2531
    %2533 = vmatprep.subr.mxu0 0.0
    %v2534 = vand.u32 %v84, 4294901760
    %v2535 = vsub.f32 %v84, %v2534
    %2536 = vmatpush1.msra.mxu0 %v2535
    %2537 = vmatprep.subr.mxu0 0.0
    %v2538 = vand.u32 %v85, 4294901760
    %v2539 = vsub.f32 %v85, %v2538
    %2540 = vmatpush1.msra.mxu0 %v2539
    %2541 = vmatprep.subr.mxu0 0.0
    %v2542 = vand.u32 %v86, 4294901760
    %v2543 = vsub.f32 %v86, %v2542
    %2544 = vmatpush1.msra.mxu0 %v2543
    %2545 = vmatprep.subr.mxu0 0.0
    %2546 = vmatpush1.msra.mxu0 0.0
    %2547 = vmatprep.subr.mxu0 0.0
    %2548 = vmatpush1.msra.mxu0 0.0
    %2549 = vmatprep.subr.mxu0 0.0
    %2550 = vmatpush1.msra.mxu0 0.0
    %2551 = vmatprep.subr.mxu0 0.0
    %2552 = vmatpush1.msra.mxu0 0.0
    %2553 = vmatprep.subr.mxu0 0.0
    %2554 = vmatpush1.msra.mxu0 0.0
    %2555 = vmatprep.subr.mxu0 0.0
    %2556 = vmatpush1.msra.mxu0 0.0
    %2557 = vmatprep.subr.mxu0 0.0
    %2558 = vmatpush1.msra.mxu0 0.0
    %2559 = vmatprep.subr.mxu0 0.0
    %2560 = vmatpush1.msra.mxu0 0.0
    %2561 = vmatprep.subr.mxu0 0.0
    %2562 = vmatpush1.msra.mxu0 0.0
    %2563 = vmatprep.subr.mxu0 0.0
    %2564 = vmatpush1.msra.mxu0 0.0
    %2565 = vmatprep.subr.mxu0 0.0
    %2566 = vmatpush1.msra.mxu0 0.0
    %2567 = vmatprep.subr.mxu0 0.0
    %2568 = vmatpush1.msra.mxu0 0.0
    %2569 = vmatprep.subr.mxu0 0.0
    %2570 = vmatpush1.msra.mxu0 0.0
    %2571 = vmatprep.subr.mxu0 0.0
    %2572 = vmatpush1.msra.mxu0 0.0
    %2573 = vmatprep.subr.mxu0 0.0
    %2574 = vmatpush1.msra.mxu0 0.0
    %2575 = vmatprep.subr.mxu0 0.0
    %2576 = vmatpush1.msra.mxu0 0.0
    %2577 = vmatprep.mubr.f32.mxu0 0.0
    %v2578 = vand.u32 %v1830, 4294901760
    %v2579 = vsub.f32 %v1830, %v2578
    %2580 = vmatmul.mubr.f32.gmra.mrb[0].mxu0 %v2579
    %v2581 = vpop.f32.mrb[0].mxu0
    %v2582 = vadd.f32 %v2334, %v2581
    %v2583 = vpop.f32.mrb[0].mxu0
    %2584 = vmatprep.mubr.f32.mxu0 0.0
    %v2585 = vand.u32 %v1831, 4294901760
    %v2586 = vsub.f32 %v1831, %v2585
    %2587 = vmatmul.mubr.f32.gmra.mrb[0].mxu0 %v2586
    %v2588 = vpop.f32.mrb[0].mxu0
    %v2589 = vadd.f32 %v2340, %v2588
    %v2590 = vpop.f32.mrb[0].mxu0
    %2591 = vmatprep.mubr.f32.mxu0 0.0
    %v2592 = vand.u32 %v1832, 4294901760
    %v2593 = vsub.f32 %v1832, %v2592
    %2594 = vmatmul.mubr.f32.gmra.mrb[0].mxu0 %v2593
    %v2595 = vpop.f32.mrb[0].mxu0
    %v2596 = vadd.f32 %v2346, %v2595
    %v2597 = vpop.f32.mrb[0].mxu0
    %2598 = vmatprep.mubr.f32.mxu0 0.0
    %v2599 = vand.u32 %v1833, 4294901760
    %v2600 = vsub.f32 %v1833, %v2599
    %2601 = vmatmul.mubr.f32.gmra.mrb[0].mxu0 %v2600
    %v2602 = vpop.f32.mrb[0].mxu0
    %v2603 = vadd.f32 %v2352, %v2602
    %v2604 = vpop.f32.mrb[0].mxu0
    %2605 = vmatprep.mubr.f32.mxu0 0.0
    %v2606 = vand.u32 %v1834, 4294901760
    %v2607 = vsub.f32 %v1834, %v2606
    %2608 = vmatmul.mubr.f32.gmra.mrb[0].mxu0 %v2607
    %v2609 = vpop.f32.mrb[0].mxu0
    %v2610 = vadd.f32 %v2358, %v2609
    %v2611 = vpop.f32.mrb[0].mxu0
    %2612 = vmatprep.mubr.f32.mxu0 0.0
    %v2613 = vand.u32 %v1835, 4294901760
    %v2614 = vsub.f32 %v1835, %v2613
    %2615 = vmatmul.mubr.f32.gmra.mrb[0].mxu0 %v2614
    %v2616 = vpop.f32.mrb[0].mxu0
    %v2617 = vadd.f32 %v2364, %v2616
    %v2618 = vpop.f32.mrb[0].mxu0
    %2619 = vmatprep.mubr.f32.mxu0 0.0
    %v2620 = vand.u32 %v1836, 4294901760
    %v2621 = vsub.f32 %v1836, %v2620
    %2622 = vmatmul.mubr.f32.gmra.mrb[0].mxu0 %v2621
    %v2623 = vpop.f32.mrb[0].mxu0
    %v2624 = vadd.f32 %v2370, %v2623
    %v2625 = vpop.f32.mrb[0].mxu0
    %2626 = vmatprep.mubr.f32.mxu0 0.0
    %v2627 = vand.u32 %v1837, 4294901760
    %v2628 = vsub.f32 %v1837, %v2627
    %2629 = vmatmul.mubr.f32.gmra.mrb[0].mxu0 %v2628
    %v2630 = vpop.f32.mrb[0].mxu0
    %v2631 = vadd.f32 %v2376, %v2630
    %v2632 = vpop.f32.mrb[0].mxu0
    %2633 = vmatprep.mubr.f32.mxu0 0.0
    %v2634 = vand.u32 %v1838, 4294901760
    %v2635 = vsub.f32 %v1838, %v2634
    %2636 = vmatmul.mubr.f32.gmra.mrb[0].mxu0 %v2635
    %v2637 = vpop.f32.mrb[0].mxu0
    %v2638 = vadd.f32 %v2382, %v2637
    %v2639 = vpop.f32.mrb[0].mxu0
    %2640 = vmatprep.mubr.f32.mxu0 0.0
    %v2641 = vand.u32 %v1839, 4294901760
    %v2642 = vsub.f32 %v1839, %v2641
    %2643 = vmatmul.mubr.f32.gmra.mrb[0].mxu0 %v2642
    %v2644 = vpop.f32.mrb[0].mxu0
    %v2645 = vadd.f32 %v2388, %v2644
    %v2646 = vpop.f32.mrb[0].mxu0
    %2647 = vmatprep.mubr.f32.mxu0 0.0
    %v2648 = vand.u32 %v1840, 4294901760
    %v2649 = vsub.f32 %v1840, %v2648
    %2650 = vmatmul.mubr.f32.gmra.mrb[0].mxu0 %v2649
    %v2651 = vpop.f32.mrb[0].mxu0
    %v2652 = vadd.f32 %v2394, %v2651
    %v2653 = vpop.f32.mrb[0].mxu0
    %2654 = vmatprep.mubr.f32.mxu0 0.0
    %v2655 = vand.u32 %v1841, 4294901760
    %v2656 = vsub.f32 %v1841, %v2655
    %2657 = vmatmul.mubr.f32.gmra.mrb[0].mxu0 %v2656
    %v2658 = vpop.f32.mrb[0].mxu0
    %v2659 = vadd.f32 %v2400, %v2658
    %v2660 = vpop.f32.mrb[0].mxu0
    %2661 = vmatprep.mubr.f32.mxu0 0.0
    %v2662 = vand.u32 %v1842, 4294901760
    %v2663 = vsub.f32 %v1842, %v2662
    %2664 = vmatmul.mubr.f32.gmra.mrb[0].mxu0 %v2663
    %v2665 = vpop.f32.mrb[0].mxu0
    %v2666 = vadd.f32 %v2406, %v2665
    %v2667 = vpop.f32.mrb[0].mxu0
    %2668 = vmatprep.mubr.f32.mxu0 0.0
    %v2669 = vand.u32 %v1843, 4294901760
    %v2670 = vsub.f32 %v1843, %v2669
    %2671 = vmatmul.mubr.f32.gmra.mrb[0].mxu0 %v2670
    %v2672 = vpop.f32.mrb[0].mxu0
    %v2673 = vadd.f32 %v2412, %v2672
    %v2674 = vpop.f32.mrb[0].mxu0
    %2675 = vmatprep.mubr.f32.mxu0 0.0
    %v2676 = vand.u32 %v1844, 4294901760
    %v2677 = vsub.f32 %v1844, %v2676
    %2678 = vmatmul.mubr.f32.gmra.mrb[0].mxu0 %v2677
    %v2679 = vpop.f32.mrb[0].mxu0
    %v2680 = vadd.f32 %v2418, %v2679
    %v2681 = vpop.f32.mrb[0].mxu0
    %2682 = vmatprep.mubr.f32.mxu0 0.0
    %v2683 = vand.u32 %v1845, 4294901760
    %v2684 = vsub.f32 %v1845, %v2683
    %2685 = vmatmul.mubr.f32.gmra.mrb[0].mxu0 %v2684
    %v2686 = vpop.f32.mrb[0].mxu0
    %v2687 = vadd.f32 %v2424, %v2686
    %v2688 = vpop.f32.mrb[0].mxu0
    %2689 = vmatprep.mubr.f32.mxu0 0.0
    %v2690 = vand.u32 %v1846, 4294901760
    %v2691 = vsub.f32 %v1846, %v2690
    %2692 = vmatmul.mubr.f32.gmra.mrb[0].mxu0 %v2691
    %v2693 = vpop.f32.mrb[0].mxu0
    %v2694 = vadd.f32 %v2430, %v2693
    %v2695 = vpop.f32.mrb[0].mxu0
    %2696 = vmatprep.mubr.f32.mxu0 0.0
    %v2697 = vand.u32 %v1847, 4294901760
    %v2698 = vsub.f32 %v1847, %v2697
    %2699 = vmatmul.mubr.f32.gmra.mrb[0].mxu0 %v2698
    %v2700 = vpop.f32.mrb[0].mxu0
    %v2701 = vadd.f32 %v2436, %v2700
    %v2702 = vpop.f32.mrb[0].mxu0
    %2703 = vmatprep.mubr.f32.mxu0 0.0
    %v2704 = vand.u32 %v1848, 4294901760
    %v2705 = vsub.f32 %v1848, %v2704
    %2706 = vmatmul.mubr.f32.gmra.mrb[0].mxu0 %v2705
    %v2707 = vpop.f32.mrb[0].mxu0
    %v2708 = vadd.f32 %v2442, %v2707
    %v2709 = vpop.f32.mrb[0].mxu0
    %2710 = vmatprep.mubr.f32.mxu0 0.0
    %v2711 = vand.u32 %v1849, 4294901760
    %v2712 = vsub.f32 %v1849, %v2711
    %2713 = vmatmul.mubr.f32.gmra.mrb[0].mxu0 %v2712
    %v2714 = vpop.f32.mrb[0].mxu0
    %v2715 = vadd.f32 %v2448, %v2714
    %v2716 = vpop.f32.mrb[0].mxu0
    %2717 = vmatprep.mubr.f32.mxu0 0.0
    %v2718 = vand.u32 %v1850, 4294901760
    %v2719 = vsub.f32 %v1850, %v2718
    %2720 = vmatmul.mubr.f32.gmra.mrb[0].mxu0 %v2719
    %v2721 = vpop.f32.mrb[0].mxu0
    %v2722 = vadd.f32 %v2454, %v2721
    %v2723 = vpop.f32.mrb[0].mxu0
    %2724 = vmatprep.mubr.f32.mxu0 0.0
    %v2725 = vand.u32 %v1851, 4294901760
    %v2726 = vsub.f32 %v1851, %v2725
    %2727 = vmatmul.mubr.f32.gmra.mrb[0].mxu0 %v2726
    %v2728 = vpop.f32.mrb[0].mxu0
    %v2729 = vadd.f32 %v2460, %v2728
    %v2730 = vpop.f32.mrb[0].mxu0
    %2731 = vmatprep.mubr.f32.mxu0 0.0
    %v2732 = vand.u32 %v1852, 4294901760
    %v2733 = vsub.f32 %v1852, %v2732
    %2734 = vmatmul.mubr.f32.gmra.mrb[0].mxu0 %v2733
    %v2735 = vpop.f32.mrb[0].mxu0
    %v2736 = vadd.f32 %v2466, %v2735
    %v2737 = vpop.f32.mrb[0].mxu0
    %2738 = vmatprep.mubr.f32.mxu0 0.0
    %v2739 = vand.u32 %v1853, 4294901760
    %v2740 = vsub.f32 %v1853, %v2739
    %2741 = vmatmul.mubr.f32.gmra.mrb[0].mxu0 %v2740
    %v2742 = vpop.f32.mrb[0].mxu0
    %v2743 = vadd.f32 %v2472, %v2742
    %v2744 = vpop.f32.mrb[0].mxu0
    %2745 = vmatprep.mubr.f32.mxu0 0.0
    %v2746 = vand.u32 %v1854, 4294901760
    %v2747 = vsub.f32 %v1854, %v2746
    %2748 = vmatmul.mubr.f32.gmra.mrb[0].mxu0 %v2747
    %v2749 = vpop.f32.mrb[0].mxu0
    %v2750 = vadd.f32 %v2478, %v2749
    %v2751 = vpop.f32.mrb[0].mxu0
    %2752 = vdwg.mxu0
    %2753 = vmatprep.subr.mxu0 0.0
    %v2754 = vand.u32 %v71, 4294901760
    %2755 = vmatpush1.msra.mxu0 %v2754
    %2756 = vmatprep.subr.mxu0 0.0
    %v2757 = vand.u32 %v72, 4294901760
    %2758 = vmatpush1.msra.mxu0 %v2757
    %2759 = vmatprep.subr.mxu0 0.0
    %v2760 = vand.u32 %v73, 4294901760
    %2761 = vmatpush1.msra.mxu0 %v2760
    %2762 = vmatprep.subr.mxu0 0.0
    %v2763 = vand.u32 %v74, 4294901760
    %2764 = vmatpush1.msra.mxu0 %v2763
    %2765 = vmatprep.subr.mxu0 0.0
    %v2766 = vand.u32 %v75, 4294901760
    %2767 = vmatpush1.msra.mxu0 %v2766
    %2768 = vmatprep.subr.mxu0 0.0
    %v2769 = vand.u32 %v76, 4294901760
    %2770 = vmatpush1.msra.mxu0 %v2769
    %2771 = vmatprep.subr.mxu0 0.0
    %v2772 = vand.u32 %v77, 4294901760
    %2773 = vmatpush1.msra.mxu0 %v2772
    %2774 = vmatprep.subr.mxu0 0.0
    %v2775 = vand.u32 %v78, 4294901760
    %2776 = vmatpush1.msra.mxu0 %v2775
    %2777 = vmatprep.subr.mxu0 0.0
    %v2778 = vand.u32 %v79, 4294901760
    %2779 = vmatpush1.msra.mxu0 %v2778
    %2780 = vmatprep.subr.mxu0 0.0
    %v2781 = vand.u32 %v80, 4294901760
    %2782 = vmatpush1.msra.mxu0 %v2781
    %2783 = vmatprep.subr.mxu0 0.0
    %v2784 = vand.u32 %v81, 4294901760
    %2785 = vmatpush1.msra.mxu0 %v2784
    %2786 = vmatprep.subr.mxu0 0.0
    %v2787 = vand.u32 %v82, 4294901760
    %2788 = vmatpush1.msra.mxu0 %v2787
    %2789 = vmatprep.subr.mxu0 0.0
    %v2790 = vand.u32 %v83, 4294901760
    %2791 = vmatpush1.msra.mxu0 %v2790
    %2792 = vmatprep.subr.mxu0 0.0
    %v2793 = vand.u32 %v84, 4294901760
    %2794 = vmatpush1.msra.mxu0 %v2793
    %2795 = vmatprep.subr.mxu0 0.0
    %v2796 = vand.u32 %v85, 4294901760
    %2797 = vmatpush1.msra.mxu0 %v2796
    %2798 = vmatprep.subr.mxu0 0.0
    %v2799 = vand.u32 %v86, 4294901760
    %2800 = vmatpush1.msra.mxu0 %v2799
    %2801 = vmatprep.subr.mxu0 0.0
    %2802 = vmatpush1.msra.mxu0 0.0
    %2803 = vmatprep.subr.mxu0 0.0
    %2804 = vmatpush1.msra.mxu0 0.0
    %2805 = vmatprep.subr.mxu0 0.0
    %2806 = vmatpush1.msra.mxu0 0.0
    %2807 = vmatprep.subr.mxu0 0.0
    %2808 = vmatpush1.msra.mxu0 0.0
    %2809 = vmatprep.subr.mxu0 0.0
    %2810 = vmatpush1.msra.mxu0 0.0
    %2811 = vmatprep.subr.mxu0 0.0
    %2812 = vmatpush1.msra.mxu0 0.0
    %2813 = vmatprep.subr.mxu0 0.0
    %2814 = vmatpush1.msra.mxu0 0.0
    %2815 = vmatprep.subr.mxu0 0.0
    %2816 = vmatpush1.msra.mxu0 0.0
    %2817 = vmatprep.subr.mxu0 0.0
    %2818 = vmatpush1.msra.mxu0 0.0
    %2819 = vmatprep.subr.mxu0 0.0
    %2820 = vmatpush1.msra.mxu0 0.0
    %2821 = vmatprep.subr.mxu0 0.0
    %2822 = vmatpush1.msra.mxu0 0.0
    %2823 = vmatprep.subr.mxu0 0.0
    %2824 = vmatpush1.msra.mxu0 0.0
    %2825 = vmatprep.subr.mxu0 0.0
    %2826 = vmatpush1.msra.mxu0 0.0
    %2827 = vmatprep.subr.mxu0 0.0
    %2828 = vmatpush1.msra.mxu0 0.0
    %2829 = vmatprep.subr.mxu0 0.0
    %2830 = vmatpush1.msra.mxu0 0.0
    %2831 = vmatprep.subr.mxu0 0.0
    %2832 = vmatpush1.msra.mxu0 0.0
    %2833 = vmatprep.mubr.f32.mxu0 0.0
    %v2834 = vand.u32 %v1830, 4294901760
    %v2835 = vsub.f32 %v1830, %v2834
    %v2836 = vand.u32 %v2835, 4294901760
    %2837 = vmatmul.mubr.f32.gmra.mrb[0].mxu0 %v2836
    %v2838 = vpop.f32.mrb[0].mxu0
    %v2839 = vadd.f32 %v2582, %v2838
    %v2840 = vpop.f32.mrb[0].mxu0
    %2841 = vmatprep.mubr.f32.mxu0 0.0
    %v2842 = vand.u32 %v1831, 4294901760
    %v2843 = vsub.f32 %v1831, %v2842
    %v2844 = vand.u32 %v2843, 4294901760
    %2845 = vmatmul.mubr.f32.gmra.mrb[0].mxu0 %v2844
    %v2846 = vpop.f32.mrb[0].mxu0
    %v2847 = vadd.f32 %v2589, %v2846
    %v2848 = vpop.f32.mrb[0].mxu0
    %2849 = vmatprep.mubr.f32.mxu0 0.0
    %v2850 = vand.u32 %v1832, 4294901760
    %v2851 = vsub.f32 %v1832, %v2850
    %v2852 = vand.u32 %v2851, 4294901760
    %2853 = vmatmul.mubr.f32.gmra.mrb[0].mxu0 %v2852
    %v2854 = vpop.f32.mrb[0].mxu0
    %v2855 = vadd.f32 %v2596, %v2854
    %v2856 = vpop.f32.mrb[0].mxu0
    %2857 = vmatprep.mubr.f32.mxu0 0.0
    %v2858 = vand.u32 %v1833, 4294901760
    %v2859 = vsub.f32 %v1833, %v2858
    %v2860 = vand.u32 %v2859, 4294901760
    %2861 = vmatmul.mubr.f32.gmra.mrb[0].mxu0 %v2860
    %v2862 = vpop.f32.mrb[0].mxu0
    %v2863 = vadd.f32 %v2603, %v2862
    %v2864 = vpop.f32.mrb[0].mxu0
    %2865 = vmatprep.mubr.f32.mxu0 0.0
    %v2866 = vand.u32 %v1834, 4294901760
    %v2867 = vsub.f32 %v1834, %v2866
    %v2868 = vand.u32 %v2867, 4294901760
    %2869 = vmatmul.mubr.f32.gmra.mrb[0].mxu0 %v2868
    %v2870 = vpop.f32.mrb[0].mxu0
    %v2871 = vadd.f32 %v2610, %v2870
    %v2872 = vpop.f32.mrb[0].mxu0
    %2873 = vmatprep.mubr.f32.mxu0 0.0
    %v2874 = vand.u32 %v1835, 4294901760
    %v2875 = vsub.f32 %v1835, %v2874
    %v2876 = vand.u32 %v2875, 4294901760
    %2877 = vmatmul.mubr.f32.gmra.mrb[0].mxu0 %v2876
    %v2878 = vpop.f32.mrb[0].mxu0
    %v2879 = vadd.f32 %v2617, %v2878
    %v2880 = vpop.f32.mrb[0].mxu0
    %2881 = vmatprep.mubr.f32.mxu0 0.0
    %v2882 = vand.u32 %v1836, 4294901760
    %v2883 = vsub.f32 %v1836, %v2882
    %v2884 = vand.u32 %v2883, 4294901760
    %2885 = vmatmul.mubr.f32.gmra.mrb[0].mxu0 %v2884
    %v2886 = vpop.f32.mrb[0].mxu0
    %v2887 = vadd.f32 %v2624, %v2886
    %v2888 = vpop.f32.mrb[0].mxu0
    %2889 = vmatprep.mubr.f32.mxu0 0.0
    %v2890 = vand.u32 %v1837, 4294901760
    %v2891 = vsub.f32 %v1837, %v2890
    %v2892 = vand.u32 %v2891, 4294901760
    %2893 = vmatmul.mubr.f32.gmra.mrb[0].mxu0 %v2892
    %v2894 = vpop.f32.mrb[0].mxu0
    %v2895 = vadd.f32 %v2631, %v2894
    %v2896 = vpop.f32.mrb[0].mxu0
    %2897 = vmatprep.mubr.f32.mxu0 0.0
    %v2898 = vand.u32 %v1838, 4294901760
    %v2899 = vsub.f32 %v1838, %v2898
    %v2900 = vand.u32 %v2899, 4294901760
    %2901 = vmatmul.mubr.f32.gmra.mrb[0].mxu0 %v2900
    %v2902 = vpop.f32.mrb[0].mxu0
    %v2903 = vadd.f32 %v2638, %v2902
    %v2904 = vpop.f32.mrb[0].mxu0
    %2905 = vmatprep.mubr.f32.mxu0 0.0
    %v2906 = vand.u32 %v1839, 4294901760
    %v2907 = vsub.f32 %v1839, %v2906
    %v2908 = vand.u32 %v2907, 4294901760
    %2909 = vmatmul.mubr.f32.gmra.mrb[0].mxu0 %v2908
    %v2910 = vpop.f32.mrb[0].mxu0
    %v2911 = vadd.f32 %v2645, %v2910
    %v2912 = vpop.f32.mrb[0].mxu0
    %2913 = vmatprep.mubr.f32.mxu0 0.0
    %v2914 = vand.u32 %v1840, 4294901760
    %v2915 = vsub.f32 %v1840, %v2914
    %v2916 = vand.u32 %v2915, 4294901760
    %2917 = vmatmul.mubr.f32.gmra.mrb[0].mxu0 %v2916
    %v2918 = vpop.f32.mrb[0].mxu0
    %v2919 = vadd.f32 %v2652, %v2918
    %v2920 = vpop.f32.mrb[0].mxu0
    %2921 = vmatprep.mubr.f32.mxu0 0.0
    %v2922 = vand.u32 %v1841, 4294901760
    %v2923 = vsub.f32 %v1841, %v2922
    %v2924 = vand.u32 %v2923, 4294901760
    %2925 = vmatmul.mubr.f32.gmra.mrb[0].mxu0 %v2924
    %v2926 = vpop.f32.mrb[0].mxu0
    %v2927 = vadd.f32 %v2659, %v2926
    %v2928 = vpop.f32.mrb[0].mxu0
    %2929 = vmatprep.mubr.f32.mxu0 0.0
    %v2930 = vand.u32 %v1842, 4294901760
    %v2931 = vsub.f32 %v1842, %v2930
    %v2932 = vand.u32 %v2931, 4294901760
    %2933 = vmatmul.mubr.f32.gmra.mrb[0].mxu0 %v2932
    %v2934 = vpop.f32.mrb[0].mxu0
    %v2935 = vadd.f32 %v2666, %v2934
    %v2936 = vpop.f32.mrb[0].mxu0
    %2937 = vmatprep.mubr.f32.mxu0 0.0
    %v2938 = vand.u32 %v1843, 4294901760
    %v2939 = vsub.f32 %v1843, %v2938
    %v2940 = vand.u32 %v2939, 4294901760
    %2941 = vmatmul.mubr.f32.gmra.mrb[0].mxu0 %v2940
    %v2942 = vpop.f32.mrb[0].mxu0
    %v2943 = vadd.f32 %v2673, %v2942
    %v2944 = vpop.f32.mrb[0].mxu0
    %2945 = vmatprep.mubr.f32.mxu0 0.0
    %v2946 = vand.u32 %v1844, 4294901760
    %v2947 = vsub.f32 %v1844, %v2946
    %v2948 = vand.u32 %v2947, 4294901760
    %2949 = vmatmul.mubr.f32.gmra.mrb[0].mxu0 %v2948
    %v2950 = vpop.f32.mrb[0].mxu0
    %v2951 = vadd.f32 %v2680, %v2950
    %v2952 = vpop.f32.mrb[0].mxu0
    %2953 = vmatprep.mubr.f32.mxu0 0.0
    %v2954 = vand.u32 %v1845, 4294901760
    %v2955 = vsub.f32 %v1845, %v2954
    %v2956 = vand.u32 %v2955, 4294901760
    %2957 = vmatmul.mubr.f32.gmra.mrb[0].mxu0 %v2956
    %v2958 = vpop.f32.mrb[0].mxu0
    %v2959 = vadd.f32 %v2687, %v2958
    %v2960 = vpop.f32.mrb[0].mxu0
    %2961 = vmatprep.mubr.f32.mxu0 0.0
    %v2962 = vand.u32 %v1846, 4294901760
    %v2963 = vsub.f32 %v1846, %v2962
    %v2964 = vand.u32 %v2963, 4294901760
    %2965 = vmatmul.mubr.f32.gmra.mrb[0].mxu0 %v2964
    %v2966 = vpop.f32.mrb[0].mxu0
    %v2967 = vadd.f32 %v2694, %v2966
    %v2968 = vpop.f32.mrb[0].mxu0
    %2969 = vmatprep.mubr.f32.mxu0 0.0
    %v2970 = vand.u32 %v1847, 4294901760
    %v2971 = vsub.f32 %v1847, %v2970
    %v2972 = vand.u32 %v2971, 4294901760
    %2973 = vmatmul.mubr.f32.gmra.mrb[0].mxu0 %v2972
    %v2974 = vpop.f32.mrb[0].mxu0
    %v2975 = vadd.f32 %v2701, %v2974
    %v2976 = vpop.f32.mrb[0].mxu0
    %2977 = vmatprep.mubr.f32.mxu0 0.0
    %v2978 = vand.u32 %v1848, 4294901760
    %v2979 = vsub.f32 %v1848, %v2978
    %v2980 = vand.u32 %v2979, 4294901760
    %2981 = vmatmul.mubr.f32.gmra.mrb[0].mxu0 %v2980
    %v2982 = vpop.f32.mrb[0].mxu0
    %v2983 = vadd.f32 %v2708, %v2982
    %v2984 = vpop.f32.mrb[0].mxu0
    %2985 = vmatprep.mubr.f32.mxu0 0.0
    %v2986 = vand.u32 %v1849, 4294901760
    %v2987 = vsub.f32 %v1849, %v2986
    %v2988 = vand.u32 %v2987, 4294901760
    %2989 = vmatmul.mubr.f32.gmra.mrb[0].mxu0 %v2988
    %v2990 = vpop.f32.mrb[0].mxu0
    %v2991 = vadd.f32 %v2715, %v2990
    %v2992 = vpop.f32.mrb[0].mxu0
    %2993 = vmatprep.mubr.f32.mxu0 0.0
    %v2994 = vand.u32 %v1850, 4294901760
    %v2995 = vsub.f32 %v1850, %v2994
    %v2996 = vand.u32 %v2995, 4294901760
    %2997 = vmatmul.mubr.f32.gmra.mrb[0].mxu0 %v2996
    %v2998 = vpop.f32.mrb[0].mxu0
    %v2999 = vadd.f32 %v2722, %v2998
    %v3000 = vpop.f32.mrb[0].mxu0
    %3001 = vmatprep.mubr.f32.mxu0 0.0
    %v3002 = vand.u32 %v1851, 4294901760
    %v3003 = vsub.f32 %v1851, %v3002
    %v3004 = vand.u32 %v3003, 4294901760
    %3005 = vmatmul.mubr.f32.gmra.mrb[0].mxu0 %v3004
    %v3006 = vpop.f32.mrb[0].mxu0
    %v3007 = vadd.f32 %v2729, %v3006
    %v3008 = vpop.f32.mrb[0].mxu0
    %3009 = vmatprep.mubr.f32.mxu0 0.0
    %v3010 = vand.u32 %v1852, 4294901760
    %v3011 = vsub.f32 %v1852, %v3010
    %v3012 = vand.u32 %v3011, 4294901760
    %3013 = vmatmul.mubr.f32.gmra.mrb[0].mxu0 %v3012
    %v3014 = vpop.f32.mrb[0].mxu0
    %v3015 = vadd.f32 %v2736, %v3014
    %v3016 = vpop.f32.mrb[0].mxu0
    %3017 = vmatprep.mubr.f32.mxu0 0.0
    %v3018 = vand.u32 %v1853, 4294901760
    %v3019 = vsub.f32 %v1853, %v3018
    %v3020 = vand.u32 %v3019, 4294901760
    %3021 = vmatmul.mubr.f32.gmra.mrb[0].mxu0 %v3020
    %v3022 = vpop.f32.mrb[0].mxu0
    %v3023 = vadd.f32 %v2743, %v3022
    %v3024 = vpop.f32.mrb[0].mxu0
    %3025 = vmatprep.mubr.f32.mxu0 0.0
    %v3026 = vand.u32 %v1854, 4294901760
    %v3027 = vsub.f32 %v1854, %v3026
    %v3028 = vand.u32 %v3027, 4294901760
    %3029 = vmatmul.mubr.f32.gmra.mrb[0].mxu0 %v3028
    %v3030 = vpop.f32.mrb[0].mxu0
    %v3031 = vadd.f32 %v2750, %v3030
    %v3032 = vpop.f32.mrb[0].mxu0
    %3033 = vdwg.mxu0
    %3034 = vmatprep.subr.mxu0 0.0
    %v3035 = vand.u32 %v71, 4294901760
    %v3036 = vsub.f32 %v71, %v3035
    %v3037 = vand.u32 %v3036, 4294901760
    %3038 = vmatpush1.msra.mxu0 %v3037
    %3039 = vmatprep.subr.mxu0 0.0
    %v3040 = vand.u32 %v72, 4294901760
    %v3041 = vsub.f32 %v72, %v3040
    %v3042 = vand.u32 %v3041, 4294901760
    %3043 = vmatpush1.msra.mxu0 %v3042
    %3044 = vmatprep.subr.mxu0 0.0
    %v3045 = vand.u32 %v73, 4294901760
    %v3046 = vsub.f32 %v73, %v3045
    %v3047 = vand.u32 %v3046, 4294901760
    %3048 = vmatpush1.msra.mxu0 %v3047
    %3049 = vmatprep.subr.mxu0 0.0
    %v3050 = vand.u32 %v74, 4294901760
    %v3051 = vsub.f32 %v74, %v3050
    %v3052 = vand.u32 %v3051, 4294901760
    %3053 = vmatpush1.msra.mxu0 %v3052
    %3054 = vmatprep.subr.mxu0 0.0
    %v3055 = vand.u32 %v75, 4294901760
    %v3056 = vsub.f32 %v75, %v3055
    %v3057 = vand.u32 %v3056, 4294901760
    %3058 = vmatpush1.msra.mxu0 %v3057
    %3059 = vmatprep.subr.mxu0 0.0
    %v3060 = vand.u32 %v76, 4294901760
    %v3061 = vsub.f32 %v76, %v3060
    %v3062 = vand.u32 %v3061, 4294901760
    %3063 = vmatpush1.msra.mxu0 %v3062
    %3064 = vmatprep.subr.mxu0 0.0
    %v3065 = vand.u32 %v77, 4294901760
    %v3066 = vsub.f32 %v77, %v3065
    %v3067 = vand.u32 %v3066, 4294901760
    %3068 = vmatpush1.msra.mxu0 %v3067
    %3069 = vmatprep.subr.mxu0 0.0
    %v3070 = vand.u32 %v78, 4294901760
    %v3071 = vsub.f32 %v78, %v3070
    %v3072 = vand.u32 %v3071, 4294901760
    %3073 = vmatpush1.msra.mxu0 %v3072
    %3074 = vmatprep.subr.mxu0 0.0
    %v3075 = vand.u32 %v79, 4294901760
    %v3076 = vsub.f32 %v79, %v3075
    %v3077 = vand.u32 %v3076, 4294901760
    %3078 = vmatpush1.msra.mxu0 %v3077
    %3079 = vmatprep.subr.mxu0 0.0
    %v3080 = vand.u32 %v80, 4294901760
    %v3081 = vsub.f32 %v80, %v3080
    %v3082 = vand.u32 %v3081, 4294901760
    %3083 = vmatpush1.msra.mxu0 %v3082
    %3084 = vmatprep.subr.mxu0 0.0
    %v3085 = vand.u32 %v81, 4294901760
    %v3086 = vsub.f32 %v81, %v3085
    %v3087 = vand.u32 %v3086, 4294901760
    %3088 = vmatpush1.msra.mxu0 %v3087
    %3089 = vmatprep.subr.mxu0 0.0
    %v3090 = vand.u32 %v82, 4294901760
    %v3091 = vsub.f32 %v82, %v3090
    %v3092 = vand.u32 %v3091, 4294901760
    %3093 = vmatpush1.msra.mxu0 %v3092
    %3094 = vmatprep.subr.mxu0 0.0
    %v3095 = vand.u32 %v83, 4294901760
    %v3096 = vsub.f32 %v83, %v3095
    %v3097 = vand.u32 %v3096, 4294901760
    %3098 = vmatpush1.msra.mxu0 %v3097
    %3099 = vmatprep.subr.mxu0 0.0
    %v3100 = vand.u32 %v84, 4294901760
    %v3101 = vsub.f32 %v84, %v3100
    %v3102 = vand.u32 %v3101, 4294901760
    %3103 = vmatpush1.msra.mxu0 %v3102
    %3104 = vmatprep.subr.mxu0 0.0
    %v3105 = vand.u32 %v85, 4294901760
    %v3106 = vsub.f32 %v85, %v3105
    %v3107 = vand.u32 %v3106, 4294901760
    %3108 = vmatpush1.msra.mxu0 %v3107
    %3109 = vmatprep.subr.mxu0 0.0
    %v3110 = vand.u32 %v86, 4294901760
    %v3111 = vsub.f32 %v86, %v3110
    %v3112 = vand.u32 %v3111, 4294901760
    %3113 = vmatpush1.msra.mxu0 %v3112
    %3114 = vmatprep.subr.mxu0 0.0
    %3115 = vmatpush1.msra.mxu0 0.0
    %3116 = vmatprep.subr.mxu0 0.0
    %3117 = vmatpush1.msra.mxu0 0.0
    %3118 = vmatprep.subr.mxu0 0.0
    %3119 = vmatpush1.msra.mxu0 0.0
    %3120 = vmatprep.subr.mxu0 0.0
    %3121 = vmatpush1.msra.mxu0 0.0
    %3122 = vmatprep.subr.mxu0 0.0
    %3123 = vmatpush1.msra.mxu0 0.0
    %3124 = vmatprep.subr.mxu0 0.0
    %3125 = vmatpush1.msra.mxu0 0.0
    %3126 = vmatprep.subr.mxu0 0.0
    %3127 = vmatpush1.msra.mxu0 0.0
    %3128 = vmatprep.subr.mxu0 0.0
    %3129 = vmatpush1.msra.mxu0 0.0
    %3130 = vmatprep.subr.mxu0 0.0
    %3131 = vmatpush1.msra.mxu0 0.0
    %3132 = vmatprep.subr.mxu0 0.0
    %3133 = vmatpush1.msra.mxu0 0.0
    %3134 = vmatprep.subr.mxu0 0.0
    %3135 = vmatpush1.msra.mxu0 0.0
    %3136 = vmatprep.subr.mxu0 0.0
    %3137 = vmatpush1.msra.mxu0 0.0
    %3138 = vmatprep.subr.mxu0 0.0
    %3139 = vmatpush1.msra.mxu0 0.0
    %3140 = vmatprep.subr.mxu0 0.0
    %3141 = vmatpush1.msra.mxu0 0.0
    %3142 = vmatprep.subr.mxu0 0.0
    %3143 = vmatpush1.msra.mxu0 0.0
    %3144 = vmatprep.subr.mxu0 0.0
    %3145 = vmatpush1.msra.mxu0 0.0
    %3146 = vmatprep.mubr.f32.mxu0 0.0
    %v3147 = vand.u32 %v1830, 4294901760
    %3148 = vmatmul.mubr.f32.gmra.mrb[0].mxu0 %v3147
    %v3149 = vpop.f32.mrb[0].mxu0
    %v3150 = vadd.f32 %v2839, %v3149
    %v3151 = vpop.f32.mrb[0].mxu0
    %3152 = vmatprep.mubr.f32.mxu0 0.0
    %v3153 = vand.u32 %v1831, 4294901760
    %3154 = vmatmul.mubr.f32.gmra.mrb[0].mxu0 %v3153
    %v3155 = vpop.f32.mrb[0].mxu0
    %v3156 = vadd.f32 %v2847, %v3155
    %v3157 = vpop.f32.mrb[0].mxu0
    %3158 = vmatprep.mubr.f32.mxu0 0.0
    %v3159 = vand.u32 %v1832, 4294901760
    %3160 = vmatmul.mubr.f32.gmra.mrb[0].mxu0 %v3159
    %v3161 = vpop.f32.mrb[0].mxu0
    %v3162 = vadd.f32 %v2855, %v3161
    %v3163 = vpop.f32.mrb[0].mxu0
    %3164 = vmatprep.mubr.f32.mxu0 0.0
    %v3165 = vand.u32 %v1833, 4294901760
    %3166 = vmatmul.mubr.f32.gmra.mrb[0].mxu0 %v3165
    %v3167 = vpop.f32.mrb[0].mxu0
    %v3168 = vadd.f32 %v2863, %v3167
    %v3169 = vpop.f32.mrb[0].mxu0
    %3170 = vmatprep.mubr.f32.mxu0 0.0
    %v3171 = vand.u32 %v1834, 4294901760
    %3172 = vmatmul.mubr.f32.gmra.mrb[0].mxu0 %v3171
    %v3173 = vpop.f32.mrb[0].mxu0
    %v3174 = vadd.f32 %v2871, %v3173
    %v3175 = vpop.f32.mrb[0].mxu0
    %3176 = vmatprep.mubr.f32.mxu0 0.0
    %v3177 = vand.u32 %v1835, 4294901760
    %3178 = vmatmul.mubr.f32.gmra.mrb[0].mxu0 %v3177
    %v3179 = vpop.f32.mrb[0].mxu0
    %v3180 = vadd.f32 %v2879, %v3179
    %v3181 = vpop.f32.mrb[0].mxu0
    %3182 = vmatprep.mubr.f32.mxu0 0.0
    %v3183 = vand.u32 %v1836, 4294901760
    %3184 = vmatmul.mubr.f32.gmra.mrb[0].mxu0 %v3183
    %v3185 = vpop.f32.mrb[0].mxu0
    %v3186 = vadd.f32 %v2887, %v3185
    %v3187 = vpop.f32.mrb[0].mxu0
    %3188 = vmatprep.mubr.f32.mxu0 0.0
    %v3189 = vand.u32 %v1837, 4294901760
    %3190 = vmatmul.mubr.f32.gmra.mrb[0].mxu0 %v3189
    %v3191 = vpop.f32.mrb[0].mxu0
    %v3192 = vadd.f32 %v2895, %v3191
    %v3193 = vpop.f32.mrb[0].mxu0
    %3194 = vmatprep.mubr.f32.mxu0 0.0
    %v3195 = vand.u32 %v1838, 4294901760
    %3196 = vmatmul.mubr.f32.gmra.mrb[0].mxu0 %v3195
    %v3197 = vpop.f32.mrb[0].mxu0
    %v3198 = vadd.f32 %v2903, %v3197
    %v3199 = vpop.f32.mrb[0].mxu0
    %3200 = vmatprep.mubr.f32.mxu0 0.0
    %v3201 = vand.u32 %v1839, 4294901760
    %3202 = vmatmul.mubr.f32.gmra.mrb[0].mxu0 %v3201
    %v3203 = vpop.f32.mrb[0].mxu0
    %v3204 = vadd.f32 %v2911, %v3203
    %v3205 = vpop.f32.mrb[0].mxu0
    %3206 = vmatprep.mubr.f32.mxu0 0.0
    %v3207 = vand.u32 %v1840, 4294901760
    %3208 = vmatmul.mubr.f32.gmra.mrb[0].mxu0 %v3207
    %v3209 = vpop.f32.mrb[0].mxu0
    %v3210 = vadd.f32 %v2919, %v3209
    %v3211 = vpop.f32.mrb[0].mxu0
    %3212 = vmatprep.mubr.f32.mxu0 0.0
    %v3213 = vand.u32 %v1841, 4294901760
    %3214 = vmatmul.mubr.f32.gmra.mrb[0].mxu0 %v3213
    %v3215 = vpop.f32.mrb[0].mxu0
    %v3216 = vadd.f32 %v2927, %v3215
    %v3217 = vpop.f32.mrb[0].mxu0
    %3218 = vmatprep.mubr.f32.mxu0 0.0
    %v3219 = vand.u32 %v1842, 4294901760
    %3220 = vmatmul.mubr.f32.gmra.mrb[0].mxu0 %v3219
    %v3221 = vpop.f32.mrb[0].mxu0
    %v3222 = vadd.f32 %v2935, %v3221
    %v3223 = vpop.f32.mrb[0].mxu0
    %3224 = vmatprep.mubr.f32.mxu0 0.0
    %v3225 = vand.u32 %v1843, 4294901760
    %3226 = vmatmul.mubr.f32.gmra.mrb[0].mxu0 %v3225
    %v3227 = vpop.f32.mrb[0].mxu0
    %v3228 = vadd.f32 %v2943, %v3227
    %v3229 = vpop.f32.mrb[0].mxu0
    %3230 = vmatprep.mubr.f32.mxu0 0.0
    %v3231 = vand.u32 %v1844, 4294901760
    %3232 = vmatmul.mubr.f32.gmra.mrb[0].mxu0 %v3231
    %v3233 = vpop.f32.mrb[0].mxu0
    %v3234 = vadd.f32 %v2951, %v3233
    %v3235 = vpop.f32.mrb[0].mxu0
    %3236 = vmatprep.mubr.f32.mxu0 0.0
    %v3237 = vand.u32 %v1845, 4294901760
    %3238 = vmatmul.mubr.f32.gmra.mrb[0].mxu0 %v3237
    %v3239 = vpop.f32.mrb[0].mxu0
    %v3240 = vadd.f32 %v2959, %v3239
    %v3241 = vpop.f32.mrb[0].mxu0
    %3242 = vmatprep.mubr.f32.mxu0 0.0
    %v3243 = vand.u32 %v1846, 4294901760
    %3244 = vmatmul.mubr.f32.gmra.mrb[0].mxu0 %v3243
    %v3245 = vpop.f32.mrb[0].mxu0
    %v3246 = vadd.f32 %v2967, %v3245
    %v3247 = vpop.f32.mrb[0].mxu0
    %3248 = vmatprep.mubr.f32.mxu0 0.0
    %v3249 = vand.u32 %v1847, 4294901760
    %3250 = vmatmul.mubr.f32.gmra.mrb[0].mxu0 %v3249
    %v3251 = vpop.f32.mrb[0].mxu0
    %v3252 = vadd.f32 %v2975, %v3251
    %v3253 = vpop.f32.mrb[0].mxu0
    %3254 = vmatprep.mubr.f32.mxu0 0.0
    %v3255 = vand.u32 %v1848, 4294901760
    %3256 = vmatmul.mubr.f32.gmra.mrb[0].mxu0 %v3255
    %v3257 = vpop.f32.mrb[0].mxu0
    %v3258 = vadd.f32 %v2983, %v3257
    %v3259 = vpop.f32.mrb[0].mxu0
    %3260 = vmatprep.mubr.f32.mxu0 0.0
    %v3261 = vand.u32 %v1849, 4294901760
    %3262 = vmatmul.mubr.f32.gmra.mrb[0].mxu0 %v3261
    %v3263 = vpop.f32.mrb[0].mxu0
    %v3264 = vadd.f32 %v2991, %v3263
    %v3265 = vpop.f32.mrb[0].mxu0
    %3266 = vmatprep.mubr.f32.mxu0 0.0
    %v3267 = vand.u32 %v1850, 4294901760
    %3268 = vmatmul.mubr.f32.gmra.mrb[0].mxu0 %v3267
    %v3269 = vpop.f32.mrb[0].mxu0
    %v3270 = vadd.f32 %v2999, %v3269
    %v3271 = vpop.f32.mrb[0].mxu0
    %3272 = vmatprep.mubr.f32.mxu0 0.0
    %v3273 = vand.u32 %v1851, 4294901760
    %3274 = vmatmul.mubr.f32.gmra.mrb[0].mxu0 %v3273
    %v3275 = vpop.f32.mrb[0].mxu0
    %v3276 = vadd.f32 %v3007, %v3275
    %v3277 = vpop.f32.mrb[0].mxu0
    %3278 = vmatprep.mubr.f32.mxu0 0.0
    %v3279 = vand.u32 %v1852, 4294901760
    %3280 = vmatmul.mubr.f32.gmra.mrb[0].mxu0 %v3279
    %v3281 = vpop.f32.mrb[0].mxu0
    %v3282 = vadd.f32 %v3015, %v3281
    %v3283 = vpop.f32.mrb[0].mxu0
    %3284 = vmatprep.mubr.f32.mxu0 0.0
    %v3285 = vand.u32 %v1853, 4294901760
    %3286 = vmatmul.mubr.f32.gmra.mrb[0].mxu0 %v3285
    %v3287 = vpop.f32.mrb[0].mxu0
    %v3288 = vadd.f32 %v3023, %v3287
    %v3289 = vpop.f32.mrb[0].mxu0
    %3290 = vmatprep.mubr.f32.mxu0 0.0
    %v3291 = vand.u32 %v1854, 4294901760
    %3292 = vmatmul.mubr.f32.gmra.mrb[0].mxu0 %v3291
    %v3293 = vpop.f32.mrb[0].mxu0
    %v3294 = vadd.f32 %v3031, %v3293
    %v3295 = vpop.f32.mrb[0].mxu0
    %3296 = vdwg.mxu0
    %3297 = vmatprep.subr.mxu0 0.0
    %v3298 = vand.u32 %v71, 4294901760
    %3299 = vmatpush1.msra.mxu0 %v3298
    %3300 = vmatprep.subr.mxu0 0.0
    %v3301 = vand.u32 %v72, 4294901760
    %3302 = vmatpush1.msra.mxu0 %v3301
    %3303 = vmatprep.subr.mxu0 0.0
    %v3304 = vand.u32 %v73, 4294901760
    %3305 = vmatpush1.msra.mxu0 %v3304
    %3306 = vmatprep.subr.mxu0 0.0
    %v3307 = vand.u32 %v74, 4294901760
    %3308 = vmatpush1.msra.mxu0 %v3307
    %3309 = vmatprep.subr.mxu0 0.0
    %v3310 = vand.u32 %v75, 4294901760
    %3311 = vmatpush1.msra.mxu0 %v3310
    %3312 = vmatprep.subr.mxu0 0.0
    %v3313 = vand.u32 %v76, 4294901760
    %3314 = vmatpush1.msra.mxu0 %v3313
    %3315 = vmatprep.subr.mxu0 0.0
    %v3316 = vand.u32 %v77, 4294901760
    %3317 = vmatpush1.msra.mxu0 %v3316
    %3318 = vmatprep.subr.mxu0 0.0
    %v3319 = vand.u32 %v78, 4294901760
    %3320 = vmatpush1.msra.mxu0 %v3319
    %3321 = vmatprep.subr.mxu0 0.0
    %v3322 = vand.u32 %v79, 4294901760
    %3323 = vmatpush1.msra.mxu0 %v3322
    %3324 = vmatprep.subr.mxu0 0.0
    %v3325 = vand.u32 %v80, 4294901760
    %3326 = vmatpush1.msra.mxu0 %v3325
    %3327 = vmatprep.subr.mxu0 0.0
    %v3328 = vand.u32 %v81, 4294901760
    %3329 = vmatpush1.msra.mxu0 %v3328
    %3330 = vmatprep.subr.mxu0 0.0
    %v3331 = vand.u32 %v82, 4294901760
    %3332 = vmatpush1.msra.mxu0 %v3331
    %3333 = vmatprep.subr.mxu0 0.0
    %v3334 = vand.u32 %v83, 4294901760
    %3335 = vmatpush1.msra.mxu0 %v3334
    %3336 = vmatprep.subr.mxu0 0.0
    %v3337 = vand.u32 %v84, 4294901760
    %3338 = vmatpush1.msra.mxu0 %v3337
    %3339 = vmatprep.subr.mxu0 0.0
    %v3340 = vand.u32 %v85, 4294901760
    %3341 = vmatpush1.msra.mxu0 %v3340
    %3342 = vmatprep.subr.mxu0 0.0
    %v3343 = vand.u32 %v86, 4294901760
    %3344 = vmatpush1.msra.mxu0 %v3343
    %3345 = vmatprep.subr.mxu0 0.0
    %3346 = vmatpush1.msra.mxu0 0.0
    %3347 = vmatprep.subr.mxu0 0.0
    %3348 = vmatpush1.msra.mxu0 0.0
    %3349 = vmatprep.subr.mxu0 0.0
    %3350 = vmatpush1.msra.mxu0 0.0
    %3351 = vmatprep.subr.mxu0 0.0
    %3352 = vmatpush1.msra.mxu0 0.0
    %3353 = vmatprep.subr.mxu0 0.0
    %3354 = vmatpush1.msra.mxu0 0.0
    %3355 = vmatprep.subr.mxu0 0.0
    %3356 = vmatpush1.msra.mxu0 0.0
    %3357 = vmatprep.subr.mxu0 0.0
    %3358 = vmatpush1.msra.mxu0 0.0
    %3359 = vmatprep.subr.mxu0 0.0
    %3360 = vmatpush1.msra.mxu0 0.0
    %3361 = vmatprep.subr.mxu0 0.0
    %3362 = vmatpush1.msra.mxu0 0.0
    %3363 = vmatprep.subr.mxu0 0.0
    %3364 = vmatpush1.msra.mxu0 0.0
    %3365 = vmatprep.subr.mxu0 0.0
    %3366 = vmatpush1.msra.mxu0 0.0
    %3367 = vmatprep.subr.mxu0 0.0
    %3368 = vmatpush1.msra.mxu0 0.0
    %3369 = vmatprep.subr.mxu0 0.0
    %3370 = vmatpush1.msra.mxu0 0.0
    %3371 = vmatprep.subr.mxu0 0.0
    %3372 = vmatpush1.msra.mxu0 0.0
    %3373 = vmatprep.subr.mxu0 0.0
    %3374 = vmatpush1.msra.mxu0 0.0
    %3375 = vmatprep.subr.mxu0 0.0
    %3376 = vmatpush1.msra.mxu0 0.0
    %3377 = vmatprep.mubr.f32.mxu0 0.0
    %v3378 = vand.u32 %v1830, 4294901760
    %3379 = vmatmul.mubr.f32.gmra.mrb[0].mxu0 %v3378
    %v3380 = vpop.f32.mrb[0].mxu0
    %v3381 = vadd.f32 %v3150, %v3380
    %v3382 = vpop.f32.mrb[0].mxu0
    %3383 = vmatprep.mubr.f32.mxu0 0.0
    %v3384 = vand.u32 %v1831, 4294901760
    %3385 = vmatmul.mubr.f32.gmra.mrb[0].mxu0 %v3384
    %v3386 = vpop.f32.mrb[0].mxu0
    %v3387 = vadd.f32 %v3156, %v3386
    %v3388 = vpop.f32.mrb[0].mxu0
    %3389 = vmatprep.mubr.f32.mxu0 0.0
    %v3390 = vand.u32 %v1832, 4294901760
    %3391 = vmatmul.mubr.f32.gmra.mrb[0].mxu0 %v3390
    %v3392 = vpop.f32.mrb[0].mxu0
    %v3393 = vadd.f32 %v3162, %v3392
    %v3394 = vpop.f32.mrb[0].mxu0
    %3395 = vmatprep.mubr.f32.mxu0 0.0
    %v3396 = vand.u32 %v1833, 4294901760
    %3397 = vmatmul.mubr.f32.gmra.mrb[0].mxu0 %v3396
    %v3398 = vpop.f32.mrb[0].mxu0
    %v3399 = vadd.f32 %v3168, %v3398
    %v3400 = vpop.f32.mrb[0].mxu0
    %3401 = vmatprep.mubr.f32.mxu0 0.0
    %v3402 = vand.u32 %v1834, 4294901760
    %3403 = vmatmul.mubr.f32.gmra.mrb[0].mxu0 %v3402
    %v3404 = vpop.f32.mrb[0].mxu0
    %v3405 = vadd.f32 %v3174, %v3404
    %v3406 = vpop.f32.mrb[0].mxu0
    %3407 = vmatprep.mubr.f32.mxu0 0.0
    %v3408 = vand.u32 %v1835, 4294901760
    %3409 = vmatmul.mubr.f32.gmra.mrb[0].mxu0 %v3408
    %v3410 = vpop.f32.mrb[0].mxu0
    %v3411 = vadd.f32 %v3180, %v3410
    %v3412 = vpop.f32.mrb[0].mxu0
    %3413 = vmatprep.mubr.f32.mxu0 0.0
    %v3414 = vand.u32 %v1836, 4294901760
    %3415 = vmatmul.mubr.f32.gmra.mrb[0].mxu0 %v3414
    %v3416 = vpop.f32.mrb[0].mxu0
    %v3417 = vadd.f32 %v3186, %v3416
    %v3418 = vpop.f32.mrb[0].mxu0
    %3419 = vmatprep.mubr.f32.mxu0 0.0
    %v3420 = vand.u32 %v1837, 4294901760
    %3421 = vmatmul.mubr.f32.gmra.mrb[0].mxu0 %v3420
    %v3422 = vpop.f32.mrb[0].mxu0
    %v3423 = vadd.f32 %v3192, %v3422
    %v3424 = vpop.f32.mrb[0].mxu0
    %3425 = vmatprep.mubr.f32.mxu0 0.0
    %v3426 = vand.u32 %v1838, 4294901760
    %3427 = vmatmul.mubr.f32.gmra.mrb[0].mxu0 %v3426
    %v3428 = vpop.f32.mrb[0].mxu0
    %v3429 = vadd.f32 %v3198, %v3428
    %v3430 = vpop.f32.mrb[0].mxu0
    %3431 = vmatprep.mubr.f32.mxu0 0.0
    %v3432 = vand.u32 %v1839, 4294901760
    %3433 = vmatmul.mubr.f32.gmra.mrb[0].mxu0 %v3432
    %v3434 = vpop.f32.mrb[0].mxu0
    %v3435 = vadd.f32 %v3204, %v3434
    %v3436 = vpop.f32.mrb[0].mxu0
    %3437 = vmatprep.mubr.f32.mxu0 0.0
    %v3438 = vand.u32 %v1840, 4294901760
    %3439 = vmatmul.mubr.f32.gmra.mrb[0].mxu0 %v3438
    %v3440 = vpop.f32.mrb[0].mxu0
    %v3441 = vadd.f32 %v3210, %v3440
    %v3442 = vpop.f32.mrb[0].mxu0
    %3443 = vmatprep.mubr.f32.mxu0 0.0
    %v3444 = vand.u32 %v1841, 4294901760
    %3445 = vmatmul.mubr.f32.gmra.mrb[0].mxu0 %v3444
    %v3446 = vpop.f32.mrb[0].mxu0
    %v3447 = vadd.f32 %v3216, %v3446
    %v3448 = vpop.f32.mrb[0].mxu0
    %3449 = vmatprep.mubr.f32.mxu0 0.0
    %v3450 = vand.u32 %v1842, 4294901760
    %3451 = vmatmul.mubr.f32.gmra.mrb[0].mxu0 %v3450
    %v3452 = vpop.f32.mrb[0].mxu0
    %v3453 = vadd.f32 %v3222, %v3452
    %v3454 = vpop.f32.mrb[0].mxu0
    %3455 = vmatprep.mubr.f32.mxu0 0.0
    %v3456 = vand.u32 %v1843, 4294901760
    %3457 = vmatmul.mubr.f32.gmra.mrb[0].mxu0 %v3456
    %v3458 = vpop.f32.mrb[0].mxu0
    %v3459 = vadd.f32 %v3228, %v3458
    %v3460 = vpop.f32.mrb[0].mxu0
    %3461 = vmatprep.mubr.f32.mxu0 0.0
    %v3462 = vand.u32 %v1844, 4294901760
    %3463 = vmatmul.mubr.f32.gmra.mrb[0].mxu0 %v3462
    %v3464 = vpop.f32.mrb[0].mxu0
    %v3465 = vadd.f32 %v3234, %v3464
    %v3466 = vpop.f32.mrb[0].mxu0
    %3467 = vmatprep.mubr.f32.mxu0 0.0
    %v3468 = vand.u32 %v1845, 4294901760
    %3469 = vmatmul.mubr.f32.gmra.mrb[0].mxu0 %v3468
    %v3470 = vpop.f32.mrb[0].mxu0
    %v3471 = vadd.f32 %v3240, %v3470
    %v3472 = vpop.f32.mrb[0].mxu0
    %3473 = vmatprep.mubr.f32.mxu0 0.0
    %v3474 = vand.u32 %v1846, 4294901760
    %3475 = vmatmul.mubr.f32.gmra.mrb[0].mxu0 %v3474
    %v3476 = vpop.f32.mrb[0].mxu0
    %v3477 = vadd.f32 %v3246, %v3476
    %v3478 = vpop.f32.mrb[0].mxu0
    %3479 = vmatprep.mubr.f32.mxu0 0.0
    %v3480 = vand.u32 %v1847, 4294901760
    %3481 = vmatmul.mubr.f32.gmra.mrb[0].mxu0 %v3480
    %v3482 = vpop.f32.mrb[0].mxu0
    %v3483 = vadd.f32 %v3252, %v3482
    %v3484 = vpop.f32.mrb[0].mxu0
    %3485 = vmatprep.mubr.f32.mxu0 0.0
    %v3486 = vand.u32 %v1848, 4294901760
    %3487 = vmatmul.mubr.f32.gmra.mrb[0].mxu0 %v3486
    %v3488 = vpop.f32.mrb[0].mxu0
    %v3489 = vadd.f32 %v3258, %v3488
    %v3490 = vpop.f32.mrb[0].mxu0
    %3491 = vmatprep.mubr.f32.mxu0 0.0
    %v3492 = vand.u32 %v1849, 4294901760
    %3493 = vmatmul.mubr.f32.gmra.mrb[0].mxu0 %v3492
    %v3494 = vpop.f32.mrb[0].mxu0
    %v3495 = vadd.f32 %v3264, %v3494
    %v3496 = vpop.f32.mrb[0].mxu0
    %3497 = vmatprep.mubr.f32.mxu0 0.0
    %v3498 = vand.u32 %v1850, 4294901760
    %3499 = vmatmul.mubr.f32.gmra.mrb[0].mxu0 %v3498
    %v3500 = vpop.f32.mrb[0].mxu0
    %v3501 = vadd.f32 %v3270, %v3500
    %v3502 = vpop.f32.mrb[0].mxu0
    %3503 = vmatprep.mubr.f32.mxu0 0.0
    %v3504 = vand.u32 %v1851, 4294901760
    %3505 = vmatmul.mubr.f32.gmra.mrb[0].mxu0 %v3504
    %v3506 = vpop.f32.mrb[0].mxu0
    %v3507 = vadd.f32 %v3276, %v3506
    %v3508 = vpop.f32.mrb[0].mxu0
    %3509 = vmatprep.mubr.f32.mxu0 0.0
    %v3510 = vand.u32 %v1852, 4294901760
    %3511 = vmatmul.mubr.f32.gmra.mrb[0].mxu0 %v3510
    %v3512 = vpop.f32.mrb[0].mxu0
    %v3513 = vadd.f32 %v3282, %v3512
    %v3514 = vpop.f32.mrb[0].mxu0
    %3515 = vmatprep.mubr.f32.mxu0 0.0
    %v3516 = vand.u32 %v1853, 4294901760
    %3517 = vmatmul.mubr.f32.gmra.mrb[0].mxu0 %v3516
    %v3518 = vpop.f32.mrb[0].mxu0
    %v3519 = vadd.f32 %v3288, %v3518
    %v3520 = vpop.f32.mrb[0].mxu0
    %3521 = vmatprep.mubr.f32.mxu0 0.0
    %v3522 = vand.u32 %v1854, 4294901760
    %3523 = vmatmul.mubr.f32.gmra.mrb[0].mxu0 %v3522
    %v3524 = vpop.f32.mrb[0].mxu0
    %v3525 = vadd.f32 %v3294, %v3524
    %v3526 = vpop.f32.mrb[0].mxu0
    %3527 = vdwg.mxu0
    %v3528 = vtanh.pop %v3381
    %v3529 = vtanh.pop %v3387
    %v3530 = vtanh.pop %v3393
    %v3531 = vtanh.pop %v3399
    %v3532 = vtanh.pop %v3405
    %v3533 = vtanh.pop %v3411
    %v3534 = vtanh.pop %v3417
    %v3535 = vtanh.pop %v3423
    %v3536 = vtanh.pop %v3429
    %v3537 = vtanh.pop %v3435
    %v3538 = vtanh.pop %v3441
    %v3539 = vtanh.pop %v3447
    %v3540 = vtanh.pop %v3453
    %v3541 = vtanh.pop %v3459
    %v3542 = vtanh.pop %v3465
    %v3543 = vtanh.pop %v3471
    %v3544 = vtanh.pop %v3477
    %v3545 = vtanh.pop %v3483
    %v3546 = vtanh.pop %v3489
    %v3547 = vtanh.pop %v3495
    %v3548 = vtanh.pop %v3501
    %v3549 = vtanh.pop %v3507
    %v3550 = vtanh.pop %v3513
    %v3551 = vtanh.pop %v3519
    %v3552 = vtanh.pop %v3525
    %v3553 = vadd.f32 %v3528, %v3529
    %v3554 = vadd.f32 %v3553, %v3530
    %v3555 = vadd.f32 %v3554, %v3531
    %v3556 = vadd.f32 %v3555, %v3532
    %v3557 = vadd.f32 %v3556, %v3533
    %v3558 = vadd.f32 %v3557, %v3534
    %v3559 = vadd.f32 %v3558, %v3535
    %v3560 = vadd.f32 %v3559, %v3536
    %v3561 = vadd.f32 %v3560, %v3537
    %v3562 = vadd.f32 %v3561, %v3538
    %v3563 = vadd.f32 %v3562, %v3539
    %v3564 = vadd.f32 %v3563, %v3540
    %v3565 = vadd.f32 %v3564, %v3541
    %v3566 = vadd.f32 %v3565, %v3542
    %v3567 = vadd.f32 %v3566, %v3543
    %v3568 = vadd.f32 %v3567, %v3544
    %v3569 = vadd.f32 %v3568, %v3545
    %v3570 = vadd.f32 %v3569, %v3546
    %v3571 = vadd.f32 %v3570, %v3547
    %v3572 = vadd.f32 %v3571, %v3548
    %v3573 = vadd.f32 %v3572, %v3549
    %v3574 = vadd.f32 %v3573, %v3550
    %v3575 = vadd.f32 %v3574, %v3551
    %v3576 = vadd.f32 %v3575, %v3552
    %v3577 = vrot.slane %v3576, 4
    %v3578 = vadd.f32 %v3576, %v3577
    %v3579 = vrot.slane %v3578, 2
    %v3580 = vadd.f32 %v3578, %v3579
    %v3581 = vrot.slane %v3580, 1
    %v3582 = vadd.f32 %v3580, %v3581
    %v3583 = vmul.f32 %v3582, %v1822
    %v3584 = vsel %vm1824, %v3583, 0.0
    %3585 = vadd.xlane.f32.xlu0 %v3584
    %v3586 = vpop.xlane.xlu0 %3585
    %v3587 = vmul.f32 %v3586, %v1828
    %v3588 = vld [vmem:[#allocation2 + $0x10] sm:$0xff]
    %v3589 = vld [vmem:[#allocation2 + $0x30] sm:$0xff]
    %v3590 = vld [vmem:[#allocation2 + $0x50] sm:$0xff]
    %v3591 = vld [vmem:[#allocation2 + $0x70] sm:$0xff]
    %v3592 = vld [vmem:[#allocation2 + $0x90] sm:$0xff]
    %v3593 = vld [vmem:[#allocation2 + $0xb0] sm:$0xff]
    %v3594 = vld [vmem:[#allocation2 + $0xd0] sm:$0xff]
    %v3595 = vld [vmem:[#allocation2 + $0xf0] sm:$0xff]
    %v3596 = vld [vmem:[#allocation2 + $0x110] sm:$0xff]
    %v3597 = vld [vmem:[#allocation2 + $0x130] sm:$0xff]
    %v3598 = vld [vmem:[#allocation2 + $0x150] sm:$0xff]
    %v3599 = vld [vmem:[#allocation2 + $0x170] sm:$0xff]
    %v3600 = vld [vmem:[#allocation2 + $0x190] sm:$0xff]
    %v3601 = vld [vmem:[#allocation2 + $0x1b0] sm:$0xff]
    %v3602 = vld [vmem:[#allocation2 + $0x1d0] sm:$0xff]
    %v3603 = vld [vmem:[#allocation2 + $0x1f0] sm:$0xff]
    %v3604 = vld [vmem:[#allocation2 + $0x210] sm:$0xff]
    %v3605 = vld [vmem:[#allocation2 + $0x230] sm:$0xff]
    %v3606 = vld [vmem:[#allocation2 + $0x250] sm:$0xff]
    %v3607 = vld [vmem:[#allocation2 + $0x270] sm:$0xff]
    %v3608 = vld [vmem:[#allocation2 + $0x290] sm:$0xff]
    %v3609 = vld [vmem:[#allocation2 + $0x2b0] sm:$0xff]
    %v3610 = vld [vmem:[#allocation2 + $0x2d0] sm:$0xff]
    %v3611 = vld [vmem:[#allocation2 + $0x2f0] sm:$0xff]
    %v3612 = vld [vmem:[#allocation2 + $0x310] sm:$0xff]
    %3613 = vmatprep.subr.mxu0 0.0
    %v3614 = vand.u32 %v71, 4294901760
    %3615 = vmatpush1.msra.mxu0 %v3614
    %3616 = vmatprep.subr.mxu0 0.0
    %v3617 = vand.u32 %v72, 4294901760
    %3618 = vmatpush1.msra.mxu0 %v3617
    %3619 = vmatprep.subr.mxu0 0.0
    %v3620 = vand.u32 %v73, 4294901760
    %3621 = vmatpush1.msra.mxu0 %v3620
    %3622 = vmatprep.subr.mxu0 0.0
    %v3623 = vand.u32 %v74, 4294901760
    %3624 = vmatpush1.msra.mxu0 %v3623
    %3625 = vmatprep.subr.mxu0 0.0
    %v3626 = vand.u32 %v75, 4294901760
    %3627 = vmatpush1.msra.mxu0 %v3626
    %3628 = vmatprep.subr.mxu0 0.0
    %v3629 = vand.u32 %v76, 4294901760
    %3630 = vmatpush1.msra.mxu0 %v3629
    %3631 = vmatprep.subr.mxu0 0.0
    %v3632 = vand.u32 %v77, 4294901760
    %3633 = vmatpush1.msra.mxu0 %v3632
    %3634 = vmatprep.subr.mxu0 0.0
    %v3635 = vand.u32 %v78, 4294901760
    %3636 = vmatpush1.msra.mxu0 %v3635
    %3637 = vmatprep.subr.mxu0 0.0
    %v3638 = vand.u32 %v79, 4294901760
    %3639 = vmatpush1.msra.mxu0 %v3638
    %3640 = vmatprep.subr.mxu0 0.0
    %v3641 = vand.u32 %v80, 4294901760
    %3642 = vmatpush1.msra.mxu0 %v3641
    %3643 = vmatprep.subr.mxu0 0.0
    %v3644 = vand.u32 %v81, 4294901760
    %3645 = vmatpush1.msra.mxu0 %v3644
    %3646 = vmatprep.subr.mxu0 0.0
    %v3647 = vand.u32 %v82, 4294901760
    %3648 = vmatpush1.msra.mxu0 %v3647
    %3649 = vmatprep.subr.mxu0 0.0
    %v3650 = vand.u32 %v83, 4294901760
    %3651 = vmatpush1.msra.mxu0 %v3650
    %3652 = vmatprep.subr.mxu0 0.0
    %v3653 = vand.u32 %v84, 4294901760
    %3654 = vmatpush1.msra.mxu0 %v3653
    %3655 = vmatprep.subr.mxu0 0.0
    %v3656 = vand.u32 %v85, 4294901760
    %3657 = vmatpush1.msra.mxu0 %v3656
    %3658 = vmatprep.subr.mxu0 0.0
    %v3659 = vand.u32 %v86, 4294901760
    %3660 = vmatpush1.msra.mxu0 %v3659
    %3661 = vmatprep.subr.mxu0 0.0
    %3662 = vmatpush1.msra.mxu0 0.0
    %3663 = vmatprep.subr.mxu0 0.0
    %3664 = vmatpush1.msra.mxu0 0.0
    %3665 = vmatprep.subr.mxu0 0.0
    %3666 = vmatpush1.msra.mxu0 0.0
    %3667 = vmatprep.subr.mxu0 0.0
    %3668 = vmatpush1.msra.mxu0 0.0
    %3669 = vmatprep.subr.mxu0 0.0
    %3670 = vmatpush1.msra.mxu0 0.0
    %3671 = vmatprep.subr.mxu0 0.0
    %3672 = vmatpush1.msra.mxu0 0.0
    %3673 = vmatprep.subr.mxu0 0.0
    %3674 = vmatpush1.msra.mxu0 0.0
    %3675 = vmatprep.subr.mxu0 0.0
    %3676 = vmatpush1.msra.mxu0 0.0
    %3677 = vmatprep.subr.mxu0 0.0
    %3678 = vmatpush1.msra.mxu0 0.0
    %3679 = vmatprep.subr.mxu0 0.0
    %3680 = vmatpush1.msra.mxu0 0.0
    %3681 = vmatprep.subr.mxu0 0.0
    %3682 = vmatpush1.msra.mxu0 0.0
    %3683 = vmatprep.subr.mxu0 0.0
    %3684 = vmatpush1.msra.mxu0 0.0
    %3685 = vmatprep.subr.mxu0 0.0
    %3686 = vmatpush1.msra.mxu0 0.0
    %3687 = vmatprep.subr.mxu0 0.0
    %3688 = vmatpush1.msra.mxu0 0.0
    %3689 = vmatprep.subr.mxu0 0.0
    %3690 = vmatpush1.msra.mxu0 0.0
    %3691 = vmatprep.subr.mxu0 0.0
    %3692 = vmatpush1.msra.mxu0 0.0
    %3693 = vmatprep.mubr.f32.mxu0 0.0
    %v3694 = vand.u32 %v3588, 4294901760
    %v3695 = vsub.f32 %v3588, %v3694
    %v3696 = vand.u32 %v3695, 4294901760
    %v3697 = vsub.f32 %v3695, %v3696
    %v3698 = vand.u32 %v3697, 4294901760
    %3699 = vmatmul.mubr.f32.gmra.mrb[0].mxu0 %v3698
    %v3700 = vpop.f32.mrb[0].mxu0
    %v3701 = vadd.f32 %v92, %v3700
    %v3702 = vpop.f32.mrb[0].mxu0
    %3703 = vmatprep.mubr.f32.mxu0 0.0
    %v3704 = vand.u32 %v3589, 4294901760
    %v3705 = vsub.f32 %v3589, %v3704
    %v3706 = vand.u32 %v3705, 4294901760
    %v3707 = vsub.f32 %v3705, %v3706
    %v3708 = vand.u32 %v3707, 4294901760
    %3709 = vmatmul.mubr.f32.gmra.mrb[0].mxu0 %v3708
    %v3710 = vpop.f32.mrb[0].mxu0
    %v3711 = vadd.f32 %v92, %v3710
    %v3712 = vpop.f32.mrb[0].mxu0
    %3713 = vmatprep.mubr.f32.mxu0 0.0
    %v3714 = vand.u32 %v3590, 4294901760
    %v3715 = vsub.f32 %v3590, %v3714
    %v3716 = vand.u32 %v3715, 4294901760
    %v3717 = vsub.f32 %v3715, %v3716
    %v3718 = vand.u32 %v3717, 4294901760
    %3719 = vmatmul.mubr.f32.gmra.mrb[0].mxu0 %v3718
    %v3720 = vpop.f32.mrb[0].mxu0
    %v3721 = vadd.f32 %v92, %v3720
    %v3722 = vpop.f32.mrb[0].mxu0
    %3723 = vmatprep.mubr.f32.mxu0 0.0
    %v3724 = vand.u32 %v3591, 4294901760
    %v3725 = vsub.f32 %v3591, %v3724
    %v3726 = vand.u32 %v3725, 4294901760
    %v3727 = vsub.f32 %v3725, %v3726
    %v3728 = vand.u32 %v3727, 4294901760
    %3729 = vmatmul.mubr.f32.gmra.mrb[0].mxu0 %v3728
    %v3730 = vpop.f32.mrb[0].mxu0
    %v3731 = vadd.f32 %v92, %v3730
    %v3732 = vpop.f32.mrb[0].mxu0
    %3733 = vmatprep.mubr.f32.mxu0 0.0
    %v3734 = vand.u32 %v3592, 4294901760
    %v3735 = vsub.f32 %v3592, %v3734
    %v3736 = vand.u32 %v3735, 4294901760
    %v3737 = vsub.f32 %v3735, %v3736
    %v3738 = vand.u32 %v3737, 4294901760
    %3739 = vmatmul.mubr.f32.gmra.mrb[0].mxu0 %v3738
    %v3740 = vpop.f32.mrb[0].mxu0
    %v3741 = vadd.f32 %v92, %v3740
    %v3742 = vpop.f32.mrb[0].mxu0
    %3743 = vmatprep.mubr.f32.mxu0 0.0
    %v3744 = vand.u32 %v3593, 4294901760
    %v3745 = vsub.f32 %v3593, %v3744
    %v3746 = vand.u32 %v3745, 4294901760
    %v3747 = vsub.f32 %v3745, %v3746
    %v3748 = vand.u32 %v3747, 4294901760
    %3749 = vmatmul.mubr.f32.gmra.mrb[0].mxu0 %v3748
    %v3750 = vpop.f32.mrb[0].mxu0
    %v3751 = vadd.f32 %v92, %v3750
    %v3752 = vpop.f32.mrb[0].mxu0
    %3753 = vmatprep.mubr.f32.mxu0 0.0
    %v3754 = vand.u32 %v3594, 4294901760
    %v3755 = vsub.f32 %v3594, %v3754
    %v3756 = vand.u32 %v3755, 4294901760
    %v3757 = vsub.f32 %v3755, %v3756
    %v3758 = vand.u32 %v3757, 4294901760
    %3759 = vmatmul.mubr.f32.gmra.mrb[0].mxu0 %v3758
    %v3760 = vpop.f32.mrb[0].mxu0
    %v3761 = vadd.f32 %v92, %v3760
    %v3762 = vpop.f32.mrb[0].mxu0
    %3763 = vmatprep.mubr.f32.mxu0 0.0
    %v3764 = vand.u32 %v3595, 4294901760
    %v3765 = vsub.f32 %v3595, %v3764
    %v3766 = vand.u32 %v3765, 4294901760
    %v3767 = vsub.f32 %v3765, %v3766
    %v3768 = vand.u32 %v3767, 4294901760
    %3769 = vmatmul.mubr.f32.gmra.mrb[0].mxu0 %v3768
    %v3770 = vpop.f32.mrb[0].mxu0
    %v3771 = vadd.f32 %v92, %v3770
    %v3772 = vpop.f32.mrb[0].mxu0
    %3773 = vmatprep.mubr.f32.mxu0 0.0
    %v3774 = vand.u32 %v3596, 4294901760
    %v3775 = vsub.f32 %v3596, %v3774
    %v3776 = vand.u32 %v3775, 4294901760
    %v3777 = vsub.f32 %v3775, %v3776
    %v3778 = vand.u32 %v3777, 4294901760
    %3779 = vmatmul.mubr.f32.gmra.mrb[0].mxu0 %v3778
    %v3780 = vpop.f32.mrb[0].mxu0
    %v3781 = vadd.f32 %v92, %v3780
    %v3782 = vpop.f32.mrb[0].mxu0
    %3783 = vmatprep.mubr.f32.mxu0 0.0
    %v3784 = vand.u32 %v3597, 4294901760
    %v3785 = vsub.f32 %v3597, %v3784
    %v3786 = vand.u32 %v3785, 4294901760
    %v3787 = vsub.f32 %v3785, %v3786
    %v3788 = vand.u32 %v3787, 4294901760
    %3789 = vmatmul.mubr.f32.gmra.mrb[0].mxu0 %v3788
    %v3790 = vpop.f32.mrb[0].mxu0
    %v3791 = vadd.f32 %v92, %v3790
    %v3792 = vpop.f32.mrb[0].mxu0
    %3793 = vmatprep.mubr.f32.mxu0 0.0
    %v3794 = vand.u32 %v3598, 4294901760
    %v3795 = vsub.f32 %v3598, %v3794
    %v3796 = vand.u32 %v3795, 4294901760
    %v3797 = vsub.f32 %v3795, %v3796
    %v3798 = vand.u32 %v3797, 4294901760
    %3799 = vmatmul.mubr.f32.gmra.mrb[0].mxu0 %v3798
    %v3800 = vpop.f32.mrb[0].mxu0
    %v3801 = vadd.f32 %v92, %v3800
    %v3802 = vpop.f32.mrb[0].mxu0
    %3803 = vmatprep.mubr.f32.mxu0 0.0
    %v3804 = vand.u32 %v3599, 4294901760
    %v3805 = vsub.f32 %v3599, %v3804
    %v3806 = vand.u32 %v3805, 4294901760
    %v3807 = vsub.f32 %v3805, %v3806
    %v3808 = vand.u32 %v3807, 4294901760
    %3809 = vmatmul.mubr.f32.gmra.mrb[0].mxu0 %v3808
    %v3810 = vpop.f32.mrb[0].mxu0
    %v3811 = vadd.f32 %v92, %v3810
    %v3812 = vpop.f32.mrb[0].mxu0
    %3813 = vmatprep.mubr.f32.mxu0 0.0
    %v3814 = vand.u32 %v3600, 4294901760
    %v3815 = vsub.f32 %v3600, %v3814
    %v3816 = vand.u32 %v3815, 4294901760
    %v3817 = vsub.f32 %v3815, %v3816
    %v3818 = vand.u32 %v3817, 4294901760
    %3819 = vmatmul.mubr.f32.gmra.mrb[0].mxu0 %v3818
    %v3820 = vpop.f32.mrb[0].mxu0
    %v3821 = vadd.f32 %v92, %v3820
    %v3822 = vpop.f32.mrb[0].mxu0
    %3823 = vmatprep.mubr.f32.mxu0 0.0
    %v3824 = vand.u32 %v3601, 4294901760
    %v3825 = vsub.f32 %v3601, %v3824
    %v3826 = vand.u32 %v3825, 4294901760
    %v3827 = vsub.f32 %v3825, %v3826
    %v3828 = vand.u32 %v3827, 4294901760
    %3829 = vmatmul.mubr.f32.gmra.mrb[0].mxu0 %v3828
    %v3830 = vpop.f32.mrb[0].mxu0
    %v3831 = vadd.f32 %v92, %v3830
    %v3832 = vpop.f32.mrb[0].mxu0
    %3833 = vmatprep.mubr.f32.mxu0 0.0
    %v3834 = vand.u32 %v3602, 4294901760
    %v3835 = vsub.f32 %v3602, %v3834
    %v3836 = vand.u32 %v3835, 4294901760
    %v3837 = vsub.f32 %v3835, %v3836
    %v3838 = vand.u32 %v3837, 4294901760
    %3839 = vmatmul.mubr.f32.gmra.mrb[0].mxu0 %v3838
    %v3840 = vpop.f32.mrb[0].mxu0
    %v3841 = vadd.f32 %v92, %v3840
    %v3842 = vpop.f32.mrb[0].mxu0
    %3843 = vmatprep.mubr.f32.mxu0 0.0
    %v3844 = vand.u32 %v3603, 4294901760
    %v3845 = vsub.f32 %v3603, %v3844
    %v3846 = vand.u32 %v3845, 4294901760
    %v3847 = vsub.f32 %v3845, %v3846
    %v3848 = vand.u32 %v3847, 4294901760
    %3849 = vmatmul.mubr.f32.gmra.mrb[0].mxu0 %v3848
    %v3850 = vpop.f32.mrb[0].mxu0
    %v3851 = vadd.f32 %v92, %v3850
    %v3852 = vpop.f32.mrb[0].mxu0
    %3853 = vmatprep.mubr.f32.mxu0 0.0
    %v3854 = vand.u32 %v3604, 4294901760
    %v3855 = vsub.f32 %v3604, %v3854
    %v3856 = vand.u32 %v3855, 4294901760
    %v3857 = vsub.f32 %v3855, %v3856
    %v3858 = vand.u32 %v3857, 4294901760
    %3859 = vmatmul.mubr.f32.gmra.mrb[0].mxu0 %v3858
    %v3860 = vpop.f32.mrb[0].mxu0
    %v3861 = vadd.f32 %v92, %v3860
    %v3862 = vpop.f32.mrb[0].mxu0
    %3863 = vmatprep.mubr.f32.mxu0 0.0
    %v3864 = vand.u32 %v3605, 4294901760
    %v3865 = vsub.f32 %v3605, %v3864
    %v3866 = vand.u32 %v3865, 4294901760
    %v3867 = vsub.f32 %v3865, %v3866
    %v3868 = vand.u32 %v3867, 4294901760
    %3869 = vmatmul.mubr.f32.gmra.mrb[0].mxu0 %v3868
    %v3870 = vpop.f32.mrb[0].mxu0
    %v3871 = vadd.f32 %v92, %v3870
    %v3872 = vpop.f32.mrb[0].mxu0
    %3873 = vmatprep.mubr.f32.mxu0 0.0
    %v3874 = vand.u32 %v3606, 4294901760
    %v3875 = vsub.f32 %v3606, %v3874
    %v3876 = vand.u32 %v3875, 4294901760
    %v3877 = vsub.f32 %v3875, %v3876
    %v3878 = vand.u32 %v3877, 4294901760
    %3879 = vmatmul.mubr.f32.gmra.mrb[0].mxu0 %v3878
    %v3880 = vpop.f32.mrb[0].mxu0
    %v3881 = vadd.f32 %v92, %v3880
    %v3882 = vpop.f32.mrb[0].mxu0
    %3883 = vmatprep.mubr.f32.mxu0 0.0
    %v3884 = vand.u32 %v3607, 4294901760
    %v3885 = vsub.f32 %v3607, %v3884
    %v3886 = vand.u32 %v3885, 4294901760
    %v3887 = vsub.f32 %v3885, %v3886
    %v3888 = vand.u32 %v3887, 4294901760
    %3889 = vmatmul.mubr.f32.gmra.mrb[0].mxu0 %v3888
    %v3890 = vpop.f32.mrb[0].mxu0
    %v3891 = vadd.f32 %v92, %v3890
    %v3892 = vpop.f32.mrb[0].mxu0
    %3893 = vmatprep.mubr.f32.mxu0 0.0
    %v3894 = vand.u32 %v3608, 4294901760
    %v3895 = vsub.f32 %v3608, %v3894
    %v3896 = vand.u32 %v3895, 4294901760
    %v3897 = vsub.f32 %v3895, %v3896
    %v3898 = vand.u32 %v3897, 4294901760
    %3899 = vmatmul.mubr.f32.gmra.mrb[0].mxu0 %v3898
    %v3900 = vpop.f32.mrb[0].mxu0
    %v3901 = vadd.f32 %v92, %v3900
    %v3902 = vpop.f32.mrb[0].mxu0
    %3903 = vmatprep.mubr.f32.mxu0 0.0
    %v3904 = vand.u32 %v3609, 4294901760
    %v3905 = vsub.f32 %v3609, %v3904
    %v3906 = vand.u32 %v3905, 4294901760
    %v3907 = vsub.f32 %v3905, %v3906
    %v3908 = vand.u32 %v3907, 4294901760
    %3909 = vmatmul.mubr.f32.gmra.mrb[0].mxu0 %v3908
    %v3910 = vpop.f32.mrb[0].mxu0
    %v3911 = vadd.f32 %v92, %v3910
    %v3912 = vpop.f32.mrb[0].mxu0
    %3913 = vmatprep.mubr.f32.mxu0 0.0
    %v3914 = vand.u32 %v3610, 4294901760
    %v3915 = vsub.f32 %v3610, %v3914
    %v3916 = vand.u32 %v3915, 4294901760
    %v3917 = vsub.f32 %v3915, %v3916
    %v3918 = vand.u32 %v3917, 4294901760
    %3919 = vmatmul.mubr.f32.gmra.mrb[0].mxu0 %v3918
    %v3920 = vpop.f32.mrb[0].mxu0
    %v3921 = vadd.f32 %v92, %v3920
    %v3922 = vpop.f32.mrb[0].mxu0
    %3923 = vmatprep.mubr.f32.mxu0 0.0
    %v3924 = vand.u32 %v3611, 4294901760
    %v3925 = vsub.f32 %v3611, %v3924
    %v3926 = vand.u32 %v3925, 4294901760
    %v3927 = vsub.f32 %v3925, %v3926
    %v3928 = vand.u32 %v3927, 4294901760
    %3929 = vmatmul.mubr.f32.gmra.mrb[0].mxu0 %v3928
    %v3930 = vpop.f32.mrb[0].mxu0
    %v3931 = vadd.f32 %v92, %v3930
    %v3932 = vpop.f32.mrb[0].mxu0
    %3933 = vmatprep.mubr.f32.mxu0 0.0
    %v3934 = vand.u32 %v3612, 4294901760
    %v3935 = vsub.f32 %v3612, %v3934
    %v3936 = vand.u32 %v3935, 4294901760
    %v3937 = vsub.f32 %v3935, %v3936
    %v3938 = vand.u32 %v3937, 4294901760
    %3939 = vmatmul.mubr.f32.gmra.mrb[0].mxu0 %v3938
    %v3940 = vpop.f32.mrb[0].mxu0
    %v3941 = vadd.f32 %v92, %v3940
    %v3942 = vpop.f32.mrb[0].mxu0
    %3943 = vdwg.mxu0
    %3944 = vmatprep.subr.mxu0 0.0
    %v3945 = vand.u32 %v71, 4294901760
    %v3946 = vsub.f32 %v71, %v3945
    %v3947 = vand.u32 %v3946, 4294901760
    %v3948 = vsub.f32 %v3946, %v3947
    %v3949 = vand.u32 %v3948, 4294901760
    %3950 = vmatpush1.msra.mxu0 %v3949
    %3951 = vmatprep.subr.mxu0 0.0
    %v3952 = vand.u32 %v72, 4294901760
    %v3953 = vsub.f32 %v72, %v3952
    %v3954 = vand.u32 %v3953, 4294901760
    %v3955 = vsub.f32 %v3953, %v3954
    %v3956 = vand.u32 %v3955, 4294901760
    %3957 = vmatpush1.msra.mxu0 %v3956
    %3958 = vmatprep.subr.mxu0 0.0
    %v3959 = vand.u32 %v73, 4294901760
    %v3960 = vsub.f32 %v73, %v3959
    %v3961 = vand.u32 %v3960, 4294901760
    %v3962 = vsub.f32 %v3960, %v3961
    %v3963 = vand.u32 %v3962, 4294901760
    %3964 = vmatpush1.msra.mxu0 %v3963
    %3965 = vmatprep.subr.mxu0 0.0
    %v3966 = vand.u32 %v74, 4294901760
    %v3967 = vsub.f32 %v74, %v3966
    %v3968 = vand.u32 %v3967, 4294901760
    %v3969 = vsub.f32 %v3967, %v3968
    %v3970 = vand.u32 %v3969, 4294901760
    %3971 = vmatpush1.msra.mxu0 %v3970
    %3972 = vmatprep.subr.mxu0 0.0
    %v3973 = vand.u32 %v75, 4294901760
    %v3974 = vsub.f32 %v75, %v3973
    %v3975 = vand.u32 %v3974, 4294901760
    %v3976 = vsub.f32 %v3974, %v3975
    %v3977 = vand.u32 %v3976, 4294901760
    %3978 = vmatpush1.msra.mxu0 %v3977
    %3979 = vmatprep.subr.mxu0 0.0
    %v3980 = vand.u32 %v76, 4294901760
    %v3981 = vsub.f32 %v76, %v3980
    %v3982 = vand.u32 %v3981, 4294901760
    %v3983 = vsub.f32 %v3981, %v3982
    %v3984 = vand.u32 %v3983, 4294901760
    %3985 = vmatpush1.msra.mxu0 %v3984
    %3986 = vmatprep.subr.mxu0 0.0
    %v3987 = vand.u32 %v77, 4294901760
    %v3988 = vsub.f32 %v77, %v3987
    %v3989 = vand.u32 %v3988, 4294901760
    %v3990 = vsub.f32 %v3988, %v3989
    %v3991 = vand.u32 %v3990, 4294901760
    %3992 = vmatpush1.msra.mxu0 %v3991
    %3993 = vmatprep.subr.mxu0 0.0
    %v3994 = vand.u32 %v78, 4294901760
    %v3995 = vsub.f32 %v78, %v3994
    %v3996 = vand.u32 %v3995, 4294901760
    %v3997 = vsub.f32 %v3995, %v3996
    %v3998 = vand.u32 %v3997, 4294901760
    %3999 = vmatpush1.msra.mxu0 %v3998
    %4000 = vmatprep.subr.mxu0 0.0
    %v4001 = vand.u32 %v79, 4294901760
    %v4002 = vsub.f32 %v79, %v4001
    %v4003 = vand.u32 %v4002, 4294901760
    %v4004 = vsub.f32 %v4002, %v4003
    %v4005 = vand.u32 %v4004, 4294901760
    %4006 = vmatpush1.msra.mxu0 %v4005
    %4007 = vmatprep.subr.mxu0 0.0
    %v4008 = vand.u32 %v80, 4294901760
    %v4009 = vsub.f32 %v80, %v4008
    %v4010 = vand.u32 %v4009, 4294901760
    %v4011 = vsub.f32 %v4009, %v4010
    %v4012 = vand.u32 %v4011, 4294901760
    %4013 = vmatpush1.msra.mxu0 %v4012
    %4014 = vmatprep.subr.mxu0 0.0
    %v4015 = vand.u32 %v81, 4294901760
    %v4016 = vsub.f32 %v81, %v4015
    %v4017 = vand.u32 %v4016, 4294901760
    %v4018 = vsub.f32 %v4016, %v4017
    %v4019 = vand.u32 %v4018, 4294901760
    %4020 = vmatpush1.msra.mxu0 %v4019
    %4021 = vmatprep.subr.mxu0 0.0
    %v4022 = vand.u32 %v82, 4294901760
    %v4023 = vsub.f32 %v82, %v4022
    %v4024 = vand.u32 %v4023, 4294901760
    %v4025 = vsub.f32 %v4023, %v4024
    %v4026 = vand.u32 %v4025, 4294901760
    %4027 = vmatpush1.msra.mxu0 %v4026
    %4028 = vmatprep.subr.mxu0 0.0
    %v4029 = vand.u32 %v83, 4294901760
    %v4030 = vsub.f32 %v83, %v4029
    %v4031 = vand.u32 %v4030, 4294901760
    %v4032 = vsub.f32 %v4030, %v4031
    %v4033 = vand.u32 %v4032, 4294901760
    %4034 = vmatpush1.msra.mxu0 %v4033
    %4035 = vmatprep.subr.mxu0 0.0
    %v4036 = vand.u32 %v84, 4294901760
    %v4037 = vsub.f32 %v84, %v4036
    %v4038 = vand.u32 %v4037, 4294901760
    %v4039 = vsub.f32 %v4037, %v4038
    %v4040 = vand.u32 %v4039, 4294901760
    %4041 = vmatpush1.msra.mxu0 %v4040
    %4042 = vmatprep.subr.mxu0 0.0
    %v4043 = vand.u32 %v85, 4294901760
    %v4044 = vsub.f32 %v85, %v4043
    %v4045 = vand.u32 %v4044, 4294901760
    %v4046 = vsub.f32 %v4044, %v4045
    %v4047 = vand.u32 %v4046, 4294901760
    %4048 = vmatpush1.msra.mxu0 %v4047
    %4049 = vmatprep.subr.mxu0 0.0
    %v4050 = vand.u32 %v86, 4294901760
    %v4051 = vsub.f32 %v86, %v4050
    %v4052 = vand.u32 %v4051, 4294901760
    %v4053 = vsub.f32 %v4051, %v4052
    %v4054 = vand.u32 %v4053, 4294901760
    %4055 = vmatpush1.msra.mxu0 %v4054
    %4056 = vmatprep.subr.mxu0 0.0
    %4057 = vmatpush1.msra.mxu0 0.0
    %4058 = vmatprep.subr.mxu0 0.0
    %4059 = vmatpush1.msra.mxu0 0.0
    %4060 = vmatprep.subr.mxu0 0.0
    %4061 = vmatpush1.msra.mxu0 0.0
    %4062 = vmatprep.subr.mxu0 0.0
    %4063 = vmatpush1.msra.mxu0 0.0
    %4064 = vmatprep.subr.mxu0 0.0
    %4065 = vmatpush1.msra.mxu0 0.0
    %4066 = vmatprep.subr.mxu0 0.0
    %4067 = vmatpush1.msra.mxu0 0.0
    %4068 = vmatprep.subr.mxu0 0.0
    %4069 = vmatpush1.msra.mxu0 0.0
    %4070 = vmatprep.subr.mxu0 0.0
    %4071 = vmatpush1.msra.mxu0 0.0
    %4072 = vmatprep.subr.mxu0 0.0
    %4073 = vmatpush1.msra.mxu0 0.0
    %4074 = vmatprep.subr.mxu0 0.0
    %4075 = vmatpush1.msra.mxu0 0.0
    %4076 = vmatprep.subr.mxu0 0.0
    %4077 = vmatpush1.msra.mxu0 0.0
    %4078 = vmatprep.subr.mxu0 0.0
    %4079 = vmatpush1.msra.mxu0 0.0
    %4080 = vmatprep.subr.mxu0 0.0
    %4081 = vmatpush1.msra.mxu0 0.0
    %4082 = vmatprep.subr.mxu0 0.0
    %4083 = vmatpush1.msra.mxu0 0.0
    %4084 = vmatprep.subr.mxu0 0.0
    %4085 = vmatpush1.msra.mxu0 0.0
    %4086 = vmatprep.subr.mxu0 0.0
    %4087 = vmatpush1.msra.mxu0 0.0
    %4088 = vmatprep.mubr.f32.mxu0 0.0
    %v4089 = vand.u32 %v3588, 4294901760
    %4090 = vmatmul.mubr.f32.gmra.mrb[0].mxu0 %v4089
    %v4091 = vpop.f32.mrb[0].mxu0
    %v4092 = vadd.f32 %v3701, %v4091
    %v4093 = vpop.f32.mrb[0].mxu0
    %4094 = vmatprep.mubr.f32.mxu0 0.0
    %v4095 = vand.u32 %v3589, 4294901760
    %4096 = vmatmul.mubr.f32.gmra.mrb[0].mxu0 %v4095
    %v4097 = vpop.f32.mrb[0].mxu0
    %v4098 = vadd.f32 %v3711, %v4097
    %v4099 = vpop.f32.mrb[0].mxu0
    %4100 = vmatprep.mubr.f32.mxu0 0.0
    %v4101 = vand.u32 %v3590, 4294901760
    %4102 = vmatmul.mubr.f32.gmra.mrb[0].mxu0 %v4101
    %v4103 = vpop.f32.mrb[0].mxu0
    %v4104 = vadd.f32 %v3721, %v4103
    %v4105 = vpop.f32.mrb[0].mxu0
    %4106 = vmatprep.mubr.f32.mxu0 0.0
    %v4107 = vand.u32 %v3591, 4294901760
    %4108 = vmatmul.mubr.f32.gmra.mrb[0].mxu0 %v4107
    %v4109 = vpop.f32.mrb[0].mxu0
    %v4110 = vadd.f32 %v3731, %v4109
    %v4111 = vpop.f32.mrb[0].mxu0
    %4112 = vmatprep.mubr.f32.mxu0 0.0
    %v4113 = vand.u32 %v3592, 4294901760
    %4114 = vmatmul.mubr.f32.gmra.mrb[0].mxu0 %v4113
    %v4115 = vpop.f32.mrb[0].mxu0
    %v4116 = vadd.f32 %v3741, %v4115
    %v4117 = vpop.f32.mrb[0].mxu0
    %4118 = vmatprep.mubr.f32.mxu0 0.0
    %v4119 = vand.u32 %v3593, 4294901760
    %4120 = vmatmul.mubr.f32.gmra.mrb[0].mxu0 %v4119
    %v4121 = vpop.f32.mrb[0].mxu0
    %v4122 = vadd.f32 %v3751, %v4121
    %v4123 = vpop.f32.mrb[0].mxu0
    %4124 = vmatprep.mubr.f32.mxu0 0.0
    %v4125 = vand.u32 %v3594, 4294901760
    %4126 = vmatmul.mubr.f32.gmra.mrb[0].mxu0 %v4125
    %v4127 = vpop.f32.mrb[0].mxu0
    %v4128 = vadd.f32 %v3761, %v4127
    %v4129 = vpop.f32.mrb[0].mxu0
    %4130 = vmatprep.mubr.f32.mxu0 0.0
    %v4131 = vand.u32 %v3595, 4294901760
    %4132 = vmatmul.mubr.f32.gmra.mrb[0].mxu0 %v4131
    %v4133 = vpop.f32.mrb[0].mxu0
    %v4134 = vadd.f32 %v3771, %v4133
    %v4135 = vpop.f32.mrb[0].mxu0
    %4136 = vmatprep.mubr.f32.mxu0 0.0
    %v4137 = vand.u32 %v3596, 4294901760
    %4138 = vmatmul.mubr.f32.gmra.mrb[0].mxu0 %v4137
    %v4139 = vpop.f32.mrb[0].mxu0
    %v4140 = vadd.f32 %v3781, %v4139
    %v4141 = vpop.f32.mrb[0].mxu0
    %4142 = vmatprep.mubr.f32.mxu0 0.0
    %v4143 = vand.u32 %v3597, 4294901760
    %4144 = vmatmul.mubr.f32.gmra.mrb[0].mxu0 %v4143
    %v4145 = vpop.f32.mrb[0].mxu0
    %v4146 = vadd.f32 %v3791, %v4145
    %v4147 = vpop.f32.mrb[0].mxu0
    %4148 = vmatprep.mubr.f32.mxu0 0.0
    %v4149 = vand.u32 %v3598, 4294901760
    %4150 = vmatmul.mubr.f32.gmra.mrb[0].mxu0 %v4149
    %v4151 = vpop.f32.mrb[0].mxu0
    %v4152 = vadd.f32 %v3801, %v4151
    %v4153 = vpop.f32.mrb[0].mxu0
    %4154 = vmatprep.mubr.f32.mxu0 0.0
    %v4155 = vand.u32 %v3599, 4294901760
    %4156 = vmatmul.mubr.f32.gmra.mrb[0].mxu0 %v4155
    %v4157 = vpop.f32.mrb[0].mxu0
    %v4158 = vadd.f32 %v3811, %v4157
    %v4159 = vpop.f32.mrb[0].mxu0
    %4160 = vmatprep.mubr.f32.mxu0 0.0
    %v4161 = vand.u32 %v3600, 4294901760
    %4162 = vmatmul.mubr.f32.gmra.mrb[0].mxu0 %v4161
    %v4163 = vpop.f32.mrb[0].mxu0
    %v4164 = vadd.f32 %v3821, %v4163
    %v4165 = vpop.f32.mrb[0].mxu0
    %4166 = vmatprep.mubr.f32.mxu0 0.0
    %v4167 = vand.u32 %v3601, 4294901760
    %4168 = vmatmul.mubr.f32.gmra.mrb[0].mxu0 %v4167
    %v4169 = vpop.f32.mrb[0].mxu0
    %v4170 = vadd.f32 %v3831, %v4169
    %v4171 = vpop.f32.mrb[0].mxu0
    %4172 = vmatprep.mubr.f32.mxu0 0.0
    %v4173 = vand.u32 %v3602, 4294901760
    %4174 = vmatmul.mubr.f32.gmra.mrb[0].mxu0 %v4173
    %v4175 = vpop.f32.mrb[0].mxu0
    %v4176 = vadd.f32 %v3841, %v4175
    %v4177 = vpop.f32.mrb[0].mxu0
    %4178 = vmatprep.mubr.f32.mxu0 0.0
    %v4179 = vand.u32 %v3603, 4294901760
    %4180 = vmatmul.mubr.f32.gmra.mrb[0].mxu0 %v4179
    %v4181 = vpop.f32.mrb[0].mxu0
    %v4182 = vadd.f32 %v3851, %v4181
    %v4183 = vpop.f32.mrb[0].mxu0
    %4184 = vmatprep.mubr.f32.mxu0 0.0
    %v4185 = vand.u32 %v3604, 4294901760
    %4186 = vmatmul.mubr.f32.gmra.mrb[0].mxu0 %v4185
    %v4187 = vpop.f32.mrb[0].mxu0
    %v4188 = vadd.f32 %v3861, %v4187
    %v4189 = vpop.f32.mrb[0].mxu0
    %4190 = vmatprep.mubr.f32.mxu0 0.0
    %v4191 = vand.u32 %v3605, 4294901760
    %4192 = vmatmul.mubr.f32.gmra.mrb[0].mxu0 %v4191
    %v4193 = vpop.f32.mrb[0].mxu0
    %v4194 = vadd.f32 %v3871, %v4193
    %v4195 = vpop.f32.mrb[0].mxu0
    %4196 = vmatprep.mubr.f32.mxu0 0.0
    %v4197 = vand.u32 %v3606, 4294901760
    %4198 = vmatmul.mubr.f32.gmra.mrb[0].mxu0 %v4197
    %v4199 = vpop.f32.mrb[0].mxu0
    %v4200 = vadd.f32 %v3881, %v4199
    %v4201 = vpop.f32.mrb[0].mxu0
    %4202 = vmatprep.mubr.f32.mxu0 0.0
    %v4203 = vand.u32 %v3607, 4294901760
    %4204 = vmatmul.mubr.f32.gmra.mrb[0].mxu0 %v4203
    %v4205 = vpop.f32.mrb[0].mxu0
    %v4206 = vadd.f32 %v3891, %v4205
    %v4207 = vpop.f32.mrb[0].mxu0
    %4208 = vmatprep.mubr.f32.mxu0 0.0
    %v4209 = vand.u32 %v3608, 4294901760
    %4210 = vmatmul.mubr.f32.gmra.mrb[0].mxu0 %v4209
    %v4211 = vpop.f32.mrb[0].mxu0
    %v4212 = vadd.f32 %v3901, %v4211
    %v4213 = vpop.f32.mrb[0].mxu0
    %4214 = vmatprep.mubr.f32.mxu0 0.0
    %v4215 = vand.u32 %v3609, 4294901760
    %4216 = vmatmul.mubr.f32.gmra.mrb[0].mxu0 %v4215
    %v4217 = vpop.f32.mrb[0].mxu0
    %v4218 = vadd.f32 %v3911, %v4217
    %v4219 = vpop.f32.mrb[0].mxu0
    %4220 = vmatprep.mubr.f32.mxu0 0.0
    %v4221 = vand.u32 %v3610, 4294901760
    %4222 = vmatmul.mubr.f32.gmra.mrb[0].mxu0 %v4221
    %v4223 = vpop.f32.mrb[0].mxu0
    %v4224 = vadd.f32 %v3921, %v4223
    %v4225 = vpop.f32.mrb[0].mxu0
    %4226 = vmatprep.mubr.f32.mxu0 0.0
    %v4227 = vand.u32 %v3611, 4294901760
    %4228 = vmatmul.mubr.f32.gmra.mrb[0].mxu0 %v4227
    %v4229 = vpop.f32.mrb[0].mxu0
    %v4230 = vadd.f32 %v3931, %v4229
    %v4231 = vpop.f32.mrb[0].mxu0
    %4232 = vmatprep.mubr.f32.mxu0 0.0
    %v4233 = vand.u32 %v3612, 4294901760
    %4234 = vmatmul.mubr.f32.gmra.mrb[0].mxu0 %v4233
    %v4235 = vpop.f32.mrb[0].mxu0
    %v4236 = vadd.f32 %v3941, %v4235
    %v4237 = vpop.f32.mrb[0].mxu0
    %4238 = vdwg.mxu0
    %4239 = vmatprep.subr.mxu0 0.0
    %v4240 = vand.u32 %v71, 4294901760
    %v4241 = vsub.f32 %v71, %v4240
    %4242 = vmatpush1.msra.mxu0 %v4241
    %4243 = vmatprep.subr.mxu0 0.0
    %v4244 = vand.u32 %v72, 4294901760
    %v4245 = vsub.f32 %v72, %v4244
    %4246 = vmatpush1.msra.mxu0 %v4245
    %4247 = vmatprep.subr.mxu0 0.0
    %v4248 = vand.u32 %v73, 4294901760
    %v4249 = vsub.f32 %v73, %v4248
    %4250 = vmatpush1.msra.mxu0 %v4249
    %4251 = vmatprep.subr.mxu0 0.0
    %v4252 = vand.u32 %v74, 4294901760
    %v4253 = vsub.f32 %v74, %v4252
    %4254 = vmatpush1.msra.mxu0 %v4253
    %4255 = vmatprep.subr.mxu0 0.0
    %v4256 = vand.u32 %v75, 4294901760
    %v4257 = vsub.f32 %v75, %v4256
    %4258 = vmatpush1.msra.mxu0 %v4257
    %4259 = vmatprep.subr.mxu0 0.0
    %v4260 = vand.u32 %v76, 4294901760
    %v4261 = vsub.f32 %v76, %v4260
    %4262 = vmatpush1.msra.mxu0 %v4261
    %4263 = vmatprep.subr.mxu0 0.0
    %v4264 = vand.u32 %v77, 4294901760
    %v4265 = vsub.f32 %v77, %v4264
    %4266 = vmatpush1.msra.mxu0 %v4265
    %4267 = vmatprep.subr.mxu0 0.0
    %v4268 = vand.u32 %v78, 4294901760
    %v4269 = vsub.f32 %v78, %v4268
    %4270 = vmatpush1.msra.mxu0 %v4269
    %4271 = vmatprep.subr.mxu0 0.0
    %v4272 = vand.u32 %v79, 4294901760
    %v4273 = vsub.f32 %v79, %v4272
    %4274 = vmatpush1.msra.mxu0 %v4273
    %4275 = vmatprep.subr.mxu0 0.0
    %v4276 = vand.u32 %v80, 4294901760
    %v4277 = vsub.f32 %v80, %v4276
    %4278 = vmatpush1.msra.mxu0 %v4277
    %4279 = vmatprep.subr.mxu0 0.0
    %v4280 = vand.u32 %v81, 4294901760
    %v4281 = vsub.f32 %v81, %v4280
    %4282 = vmatpush1.msra.mxu0 %v4281
    %4283 = vmatprep.subr.mxu0 0.0
    %v4284 = vand.u32 %v82, 4294901760
    %v4285 = vsub.f32 %v82, %v4284
    %4286 = vmatpush1.msra.mxu0 %v4285
    %4287 = vmatprep.subr.mxu0 0.0
    %v4288 = vand.u32 %v83, 4294901760
    %v4289 = vsub.f32 %v83, %v4288
    %4290 = vmatpush1.msra.mxu0 %v4289
    %4291 = vmatprep.subr.mxu0 0.0
    %v4292 = vand.u32 %v84, 4294901760
    %v4293 = vsub.f32 %v84, %v4292
    %4294 = vmatpush1.msra.mxu0 %v4293
    %4295 = vmatprep.subr.mxu0 0.0
    %v4296 = vand.u32 %v85, 4294901760
    %v4297 = vsub.f32 %v85, %v4296
    %4298 = vmatpush1.msra.mxu0 %v4297
    %4299 = vmatprep.subr.mxu0 0.0
    %v4300 = vand.u32 %v86, 4294901760
    %v4301 = vsub.f32 %v86, %v4300
    %4302 = vmatpush1.msra.mxu0 %v4301
    %4303 = vmatprep.subr.mxu0 0.0
    %4304 = vmatpush1.msra.mxu0 0.0
    %4305 = vmatprep.subr.mxu0 0.0
    %4306 = vmatpush1.msra.mxu0 0.0
    %4307 = vmatprep.subr.mxu0 0.0
    %4308 = vmatpush1.msra.mxu0 0.0
    %4309 = vmatprep.subr.mxu0 0.0
    %4310 = vmatpush1.msra.mxu0 0.0
    %4311 = vmatprep.subr.mxu0 0.0
    %4312 = vmatpush1.msra.mxu0 0.0
    %4313 = vmatprep.subr.mxu0 0.0
    %4314 = vmatpush1.msra.mxu0 0.0
    %4315 = vmatprep.subr.mxu0 0.0
    %4316 = vmatpush1.msra.mxu0 0.0
    %4317 = vmatprep.subr.mxu0 0.0
    %4318 = vmatpush1.msra.mxu0 0.0
    %4319 = vmatprep.subr.mxu0 0.0
    %4320 = vmatpush1.msra.mxu0 0.0
    %4321 = vmatprep.subr.mxu0 0.0
    %4322 = vmatpush1.msra.mxu0 0.0
    %4323 = vmatprep.subr.mxu0 0.0
    %4324 = vmatpush1.msra.mxu0 0.0
    %4325 = vmatprep.subr.mxu0 0.0
    %4326 = vmatpush1.msra.mxu0 0.0
    %4327 = vmatprep.subr.mxu0 0.0
    %4328 = vmatpush1.msra.mxu0 0.0
    %4329 = vmatprep.subr.mxu0 0.0
    %4330 = vmatpush1.msra.mxu0 0.0
    %4331 = vmatprep.subr.mxu0 0.0
    %4332 = vmatpush1.msra.mxu0 0.0
    %4333 = vmatprep.subr.mxu0 0.0
    %4334 = vmatpush1.msra.mxu0 0.0
    %4335 = vmatprep.mubr.f32.mxu0 0.0
    %v4336 = vand.u32 %v3588, 4294901760
    %v4337 = vsub.f32 %v3588, %v4336
    %4338 = vmatmul.mubr.f32.gmra.mrb[0].mxu0 %v4337
    %v4339 = vpop.f32.mrb[0].mxu0
    %v4340 = vadd.f32 %v4092, %v4339
    %v4341 = vpop.f32.mrb[0].mxu0
    %4342 = vmatprep.mubr.f32.mxu0 0.0
    %v4343 = vand.u32 %v3589, 4294901760
    %v4344 = vsub.f32 %v3589, %v4343
    %4345 = vmatmul.mubr.f32.gmra.mrb[0].mxu0 %v4344
    %v4346 = vpop.f32.mrb[0].mxu0
    %v4347 = vadd.f32 %v4098, %v4346
    %v4348 = vpop.f32.mrb[0].mxu0
    %4349 = vmatprep.mubr.f32.mxu0 0.0
    %v4350 = vand.u32 %v3590, 4294901760
    %v4351 = vsub.f32 %v3590, %v4350
    %4352 = vmatmul.mubr.f32.gmra.mrb[0].mxu0 %v4351
    %v4353 = vpop.f32.mrb[0].mxu0
    %v4354 = vadd.f32 %v4104, %v4353
    %v4355 = vpop.f32.mrb[0].mxu0
    %4356 = vmatprep.mubr.f32.mxu0 0.0
    %v4357 = vand.u32 %v3591, 4294901760
    %v4358 = vsub.f32 %v3591, %v4357
    %4359 = vmatmul.mubr.f32.gmra.mrb[0].mxu0 %v4358
    %v4360 = vpop.f32.mrb[0].mxu0
    %v4361 = vadd.f32 %v4110, %v4360
    %v4362 = vpop.f32.mrb[0].mxu0
    %4363 = vmatprep.mubr.f32.mxu0 0.0
    %v4364 = vand.u32 %v3592, 4294901760
    %v4365 = vsub.f32 %v3592, %v4364
    %4366 = vmatmul.mubr.f32.gmra.mrb[0].mxu0 %v4365
    %v4367 = vpop.f32.mrb[0].mxu0
    %v4368 = vadd.f32 %v4116, %v4367
    %v4369 = vpop.f32.mrb[0].mxu0
    %4370 = vmatprep.mubr.f32.mxu0 0.0
    %v4371 = vand.u32 %v3593, 4294901760
    %v4372 = vsub.f32 %v3593, %v4371
    %4373 = vmatmul.mubr.f32.gmra.mrb[0].mxu0 %v4372
    %v4374 = vpop.f32.mrb[0].mxu0
    %v4375 = vadd.f32 %v4122, %v4374
    %v4376 = vpop.f32.mrb[0].mxu0
    %4377 = vmatprep.mubr.f32.mxu0 0.0
    %v4378 = vand.u32 %v3594, 4294901760
    %v4379 = vsub.f32 %v3594, %v4378
    %4380 = vmatmul.mubr.f32.gmra.mrb[0].mxu0 %v4379
    %v4381 = vpop.f32.mrb[0].mxu0
    %v4382 = vadd.f32 %v4128, %v4381
    %v4383 = vpop.f32.mrb[0].mxu0
    %4384 = vmatprep.mubr.f32.mxu0 0.0
    %v4385 = vand.u32 %v3595, 4294901760
    %v4386 = vsub.f32 %v3595, %v4385
    %4387 = vmatmul.mubr.f32.gmra.mrb[0].mxu0 %v4386
    %v4388 = vpop.f32.mrb[0].mxu0
    %v4389 = vadd.f32 %v4134, %v4388
    %v4390 = vpop.f32.mrb[0].mxu0
    %4391 = vmatprep.mubr.f32.mxu0 0.0
    %v4392 = vand.u32 %v3596, 4294901760
    %v4393 = vsub.f32 %v3596, %v4392
    %4394 = vmatmul.mubr.f32.gmra.mrb[0].mxu0 %v4393
    %v4395 = vpop.f32.mrb[0].mxu0
    %v4396 = vadd.f32 %v4140, %v4395
    %v4397 = vpop.f32.mrb[0].mxu0
    %4398 = vmatprep.mubr.f32.mxu0 0.0
    %v4399 = vand.u32 %v3597, 4294901760
    %v4400 = vsub.f32 %v3597, %v4399
    %4401 = vmatmul.mubr.f32.gmra.mrb[0].mxu0 %v4400
    %v4402 = vpop.f32.mrb[0].mxu0
    %v4403 = vadd.f32 %v4146, %v4402
    %v4404 = vpop.f32.mrb[0].mxu0
    %4405 = vmatprep.mubr.f32.mxu0 0.0
    %v4406 = vand.u32 %v3598, 4294901760
    %v4407 = vsub.f32 %v3598, %v4406
    %4408 = vmatmul.mubr.f32.gmra.mrb[0].mxu0 %v4407
    %v4409 = vpop.f32.mrb[0].mxu0
    %v4410 = vadd.f32 %v4152, %v4409
    %v4411 = vpop.f32.mrb[0].mxu0
    %4412 = vmatprep.mubr.f32.mxu0 0.0
    %v4413 = vand.u32 %v3599, 4294901760
    %v4414 = vsub.f32 %v3599, %v4413
    %4415 = vmatmul.mubr.f32.gmra.mrb[0].mxu0 %v4414
    %v4416 = vpop.f32.mrb[0].mxu0
    %v4417 = vadd.f32 %v4158, %v4416
    %v4418 = vpop.f32.mrb[0].mxu0
    %4419 = vmatprep.mubr.f32.mxu0 0.0
    %v4420 = vand.u32 %v3600, 4294901760
    %v4421 = vsub.f32 %v3600, %v4420
    %4422 = vmatmul.mubr.f32.gmra.mrb[0].mxu0 %v4421
    %v4423 = vpop.f32.mrb[0].mxu0
    %v4424 = vadd.f32 %v4164, %v4423
    %v4425 = vpop.f32.mrb[0].mxu0
    %4426 = vmatprep.mubr.f32.mxu0 0.0
    %v4427 = vand.u32 %v3601, 4294901760
    %v4428 = vsub.f32 %v3601, %v4427
    %4429 = vmatmul.mubr.f32.gmra.mrb[0].mxu0 %v4428
    %v4430 = vpop.f32.mrb[0].mxu0
    %v4431 = vadd.f32 %v4170, %v4430
    %v4432 = vpop.f32.mrb[0].mxu0
    %4433 = vmatprep.mubr.f32.mxu0 0.0
    %v4434 = vand.u32 %v3602, 4294901760
    %v4435 = vsub.f32 %v3602, %v4434
    %4436 = vmatmul.mubr.f32.gmra.mrb[0].mxu0 %v4435
    %v4437 = vpop.f32.mrb[0].mxu0
    %v4438 = vadd.f32 %v4176, %v4437
    %v4439 = vpop.f32.mrb[0].mxu0
    %4440 = vmatprep.mubr.f32.mxu0 0.0
    %v4441 = vand.u32 %v3603, 4294901760
    %v4442 = vsub.f32 %v3603, %v4441
    %4443 = vmatmul.mubr.f32.gmra.mrb[0].mxu0 %v4442
    %v4444 = vpop.f32.mrb[0].mxu0
    %v4445 = vadd.f32 %v4182, %v4444
    %v4446 = vpop.f32.mrb[0].mxu0
    %4447 = vmatprep.mubr.f32.mxu0 0.0
    %v4448 = vand.u32 %v3604, 4294901760
    %v4449 = vsub.f32 %v3604, %v4448
    %4450 = vmatmul.mubr.f32.gmra.mrb[0].mxu0 %v4449
    %v4451 = vpop.f32.mrb[0].mxu0
    %v4452 = vadd.f32 %v4188, %v4451
    %v4453 = vpop.f32.mrb[0].mxu0
    %4454 = vmatprep.mubr.f32.mxu0 0.0
    %v4455 = vand.u32 %v3605, 4294901760
    %v4456 = vsub.f32 %v3605, %v4455
    %4457 = vmatmul.mubr.f32.gmra.mrb[0].mxu0 %v4456
    %v4458 = vpop.f32.mrb[0].mxu0
    %v4459 = vadd.f32 %v4194, %v4458
    %v4460 = vpop.f32.mrb[0].mxu0
    %4461 = vmatprep.mubr.f32.mxu0 0.0
    %v4462 = vand.u32 %v3606, 4294901760
    %v4463 = vsub.f32 %v3606, %v4462
    %4464 = vmatmul.mubr.f32.gmra.mrb[0].mxu0 %v4463
    %v4465 = vpop.f32.mrb[0].mxu0
    %v4466 = vadd.f32 %v4200, %v4465
    %v4467 = vpop.f32.mrb[0].mxu0
    %4468 = vmatprep.mubr.f32.mxu0 0.0
    %v4469 = vand.u32 %v3607, 4294901760
    %v4470 = vsub.f32 %v3607, %v4469
    %4471 = vmatmul.mubr.f32.gmra.mrb[0].mxu0 %v4470
    %v4472 = vpop.f32.mrb[0].mxu0
    %v4473 = vadd.f32 %v4206, %v4472
    %v4474 = vpop.f32.mrb[0].mxu0
    %4475 = vmatprep.mubr.f32.mxu0 0.0
    %v4476 = vand.u32 %v3608, 4294901760
    %v4477 = vsub.f32 %v3608, %v4476
    %4478 = vmatmul.mubr.f32.gmra.mrb[0].mxu0 %v4477
    %v4479 = vpop.f32.mrb[0].mxu0
    %v4480 = vadd.f32 %v4212, %v4479
    %v4481 = vpop.f32.mrb[0].mxu0
    %4482 = vmatprep.mubr.f32.mxu0 0.0
    %v4483 = vand.u32 %v3609, 4294901760
    %v4484 = vsub.f32 %v3609, %v4483
    %4485 = vmatmul.mubr.f32.gmra.mrb[0].mxu0 %v4484
    %v4486 = vpop.f32.mrb[0].mxu0
    %v4487 = vadd.f32 %v4218, %v4486
    %v4488 = vpop.f32.mrb[0].mxu0
    %4489 = vmatprep.mubr.f32.mxu0 0.0
    %v4490 = vand.u32 %v3610, 4294901760
    %v4491 = vsub.f32 %v3610, %v4490
    %4492 = vmatmul.mubr.f32.gmra.mrb[0].mxu0 %v4491
    %v4493 = vpop.f32.mrb[0].mxu0
    %v4494 = vadd.f32 %v4224, %v4493
    %v4495 = vpop.f32.mrb[0].mxu0
    %4496 = vmatprep.mubr.f32.mxu0 0.0
    %v4497 = vand.u32 %v3611, 4294901760
    %v4498 = vsub.f32 %v3611, %v4497
    %4499 = vmatmul.mubr.f32.gmra.mrb[0].mxu0 %v4498
    %v4500 = vpop.f32.mrb[0].mxu0
    %v4501 = vadd.f32 %v4230, %v4500
    %v4502 = vpop.f32.mrb[0].mxu0
    %4503 = vmatprep.mubr.f32.mxu0 0.0
    %v4504 = vand.u32 %v3612, 4294901760
    %v4505 = vsub.f32 %v3612, %v4504
    %4506 = vmatmul.mubr.f32.gmra.mrb[0].mxu0 %v4505
    %v4507 = vpop.f32.mrb[0].mxu0
    %v4508 = vadd.f32 %v4236, %v4507
    %v4509 = vpop.f32.mrb[0].mxu0
    %4510 = vdwg.mxu0
    %4511 = vmatprep.subr.mxu0 0.0
    %v4512 = vand.u32 %v71, 4294901760
    %4513 = vmatpush1.msra.mxu0 %v4512
    %4514 = vmatprep.subr.mxu0 0.0
    %v4515 = vand.u32 %v72, 4294901760
    %4516 = vmatpush1.msra.mxu0 %v4515
    %4517 = vmatprep.subr.mxu0 0.0
    %v4518 = vand.u32 %v73, 4294901760
    %4519 = vmatpush1.msra.mxu0 %v4518
    %4520 = vmatprep.subr.mxu0 0.0
    %v4521 = vand.u32 %v74, 4294901760
    %4522 = vmatpush1.msra.mxu0 %v4521
    %4523 = vmatprep.subr.mxu0 0.0
    %v4524 = vand.u32 %v75, 4294901760
    %4525 = vmatpush1.msra.mxu0 %v4524
    %4526 = vmatprep.subr.mxu0 0.0
    %v4527 = vand.u32 %v76, 4294901760
    %4528 = vmatpush1.msra.mxu0 %v4527
    %4529 = vmatprep.subr.mxu0 0.0
    %v4530 = vand.u32 %v77, 4294901760
    %4531 = vmatpush1.msra.mxu0 %v4530
    %4532 = vmatprep.subr.mxu0 0.0
    %v4533 = vand.u32 %v78, 4294901760
    %4534 = vmatpush1.msra.mxu0 %v4533
    %4535 = vmatprep.subr.mxu0 0.0
    %v4536 = vand.u32 %v79, 4294901760
    %4537 = vmatpush1.msra.mxu0 %v4536
    %4538 = vmatprep.subr.mxu0 0.0
    %v4539 = vand.u32 %v80, 4294901760
    %4540 = vmatpush1.msra.mxu0 %v4539
    %4541 = vmatprep.subr.mxu0 0.0
    %v4542 = vand.u32 %v81, 4294901760
    %4543 = vmatpush1.msra.mxu0 %v4542
    %4544 = vmatprep.subr.mxu0 0.0
    %v4545 = vand.u32 %v82, 4294901760
    %4546 = vmatpush1.msra.mxu0 %v4545
    %4547 = vmatprep.subr.mxu0 0.0
    %v4548 = vand.u32 %v83, 4294901760
    %4549 = vmatpush1.msra.mxu0 %v4548
    %4550 = vmatprep.subr.mxu0 0.0
    %v4551 = vand.u32 %v84, 4294901760
    %4552 = vmatpush1.msra.mxu0 %v4551
    %4553 = vmatprep.subr.mxu0 0.0
    %v4554 = vand.u32 %v85, 4294901760
    %4555 = vmatpush1.msra.mxu0 %v4554
    %4556 = vmatprep.subr.mxu0 0.0
    %v4557 = vand.u32 %v86, 4294901760
    %4558 = vmatpush1.msra.mxu0 %v4557
    %4559 = vmatprep.subr.mxu0 0.0
    %4560 = vmatpush1.msra.mxu0 0.0
    %4561 = vmatprep.subr.mxu0 0.0
    %4562 = vmatpush1.msra.mxu0 0.0
    %4563 = vmatprep.subr.mxu0 0.0
    %4564 = vmatpush1.msra.mxu0 0.0
    %4565 = vmatprep.subr.mxu0 0.0
    %4566 = vmatpush1.msra.mxu0 0.0
    %4567 = vmatprep.subr.mxu0 0.0
    %4568 = vmatpush1.msra.mxu0 0.0
    %4569 = vmatprep.subr.mxu0 0.0
    %4570 = vmatpush1.msra.mxu0 0.0
    %4571 = vmatprep.subr.mxu0 0.0
    %4572 = vmatpush1.msra.mxu0 0.0
    %4573 = vmatprep.subr.mxu0 0.0
    %4574 = vmatpush1.msra.mxu0 0.0
    %4575 = vmatprep.subr.mxu0 0.0
    %4576 = vmatpush1.msra.mxu0 0.0
    %4577 = vmatprep.subr.mxu0 0.0
    %4578 = vmatpush1.msra.mxu0 0.0
    %4579 = vmatprep.subr.mxu0 0.0
    %4580 = vmatpush1.msra.mxu0 0.0
    %4581 = vmatprep.subr.mxu0 0.0
    %4582 = vmatpush1.msra.mxu0 0.0
    %4583 = vmatprep.subr.mxu0 0.0
    %4584 = vmatpush1.msra.mxu0 0.0
    %4585 = vmatprep.subr.mxu0 0.0
    %4586 = vmatpush1.msra.mxu0 0.0
    %4587 = vmatprep.subr.mxu0 0.0
    %4588 = vmatpush1.msra.mxu0 0.0
    %4589 = vmatprep.subr.mxu0 0.0
    %4590 = vmatpush1.msra.mxu0 0.0
    %4591 = vmatprep.mubr.f32.mxu0 0.0
    %v4592 = vand.u32 %v3588, 4294901760
    %v4593 = vsub.f32 %v3588, %v4592
    %v4594 = vand.u32 %v4593, 4294901760
    %4595 = vmatmul.mubr.f32.gmra.mrb[0].mxu0 %v4594
    %v4596 = vpop.f32.mrb[0].mxu0
    %v4597 = vadd.f32 %v4340, %v4596
    %v4598 = vpop.f32.mrb[0].mxu0
    %4599 = vmatprep.mubr.f32.mxu0 0.0
    %v4600 = vand.u32 %v3589, 4294901760
    %v4601 = vsub.f32 %v3589, %v4600
    %v4602 = vand.u32 %v4601, 4294901760
    %4603 = vmatmul.mubr.f32.gmra.mrb[0].mxu0 %v4602
    %v4604 = vpop.f32.mrb[0].mxu0
    %v4605 = vadd.f32 %v4347, %v4604
    %v4606 = vpop.f32.mrb[0].mxu0
    %4607 = vmatprep.mubr.f32.mxu0 0.0
    %v4608 = vand.u32 %v3590, 4294901760
    %v4609 = vsub.f32 %v3590, %v4608
    %v4610 = vand.u32 %v4609, 4294901760
    %4611 = vmatmul.mubr.f32.gmra.mrb[0].mxu0 %v4610
    %v4612 = vpop.f32.mrb[0].mxu0
    %v4613 = vadd.f32 %v4354, %v4612
    %v4614 = vpop.f32.mrb[0].mxu0
    %4615 = vmatprep.mubr.f32.mxu0 0.0
    %v4616 = vand.u32 %v3591, 4294901760
    %v4617 = vsub.f32 %v3591, %v4616
    %v4618 = vand.u32 %v4617, 4294901760
    %4619 = vmatmul.mubr.f32.gmra.mrb[0].mxu0 %v4618
    %v4620 = vpop.f32.mrb[0].mxu0
    %v4621 = vadd.f32 %v4361, %v4620
    %v4622 = vpop.f32.mrb[0].mxu0
    %4623 = vmatprep.mubr.f32.mxu0 0.0
    %v4624 = vand.u32 %v3592, 4294901760
    %v4625 = vsub.f32 %v3592, %v4624
    %v4626 = vand.u32 %v4625, 4294901760
    %4627 = vmatmul.mubr.f32.gmra.mrb[0].mxu0 %v4626
    %v4628 = vpop.f32.mrb[0].mxu0
    %v4629 = vadd.f32 %v4368, %v4628
    %v4630 = vpop.f32.mrb[0].mxu0
    %4631 = vmatprep.mubr.f32.mxu0 0.0
    %v4632 = vand.u32 %v3593, 4294901760
    %v4633 = vsub.f32 %v3593, %v4632
    %v4634 = vand.u32 %v4633, 4294901760
    %4635 = vmatmul.mubr.f32.gmra.mrb[0].mxu0 %v4634
    %v4636 = vpop.f32.mrb[0].mxu0
    %v4637 = vadd.f32 %v4375, %v4636
    %v4638 = vpop.f32.mrb[0].mxu0
    %4639 = vmatprep.mubr.f32.mxu0 0.0
    %v4640 = vand.u32 %v3594, 4294901760
    %v4641 = vsub.f32 %v3594, %v4640
    %v4642 = vand.u32 %v4641, 4294901760
    %4643 = vmatmul.mubr.f32.gmra.mrb[0].mxu0 %v4642
    %v4644 = vpop.f32.mrb[0].mxu0
    %v4645 = vadd.f32 %v4382, %v4644
    %v4646 = vpop.f32.mrb[0].mxu0
    %4647 = vmatprep.mubr.f32.mxu0 0.0
    %v4648 = vand.u32 %v3595, 4294901760
    %v4649 = vsub.f32 %v3595, %v4648
    %v4650 = vand.u32 %v4649, 4294901760
    %4651 = vmatmul.mubr.f32.gmra.mrb[0].mxu0 %v4650
    %v4652 = vpop.f32.mrb[0].mxu0
    %v4653 = vadd.f32 %v4389, %v4652
    %v4654 = vpop.f32.mrb[0].mxu0
    %4655 = vmatprep.mubr.f32.mxu0 0.0
    %v4656 = vand.u32 %v3596, 4294901760
    %v4657 = vsub.f32 %v3596, %v4656
    %v4658 = vand.u32 %v4657, 4294901760
    %4659 = vmatmul.mubr.f32.gmra.mrb[0].mxu0 %v4658
    %v4660 = vpop.f32.mrb[0].mxu0
    %v4661 = vadd.f32 %v4396, %v4660
    %v4662 = vpop.f32.mrb[0].mxu0
    %4663 = vmatprep.mubr.f32.mxu0 0.0
    %v4664 = vand.u32 %v3597, 4294901760
    %v4665 = vsub.f32 %v3597, %v4664
    %v4666 = vand.u32 %v4665, 4294901760
    %4667 = vmatmul.mubr.f32.gmra.mrb[0].mxu0 %v4666
    %v4668 = vpop.f32.mrb[0].mxu0
    %v4669 = vadd.f32 %v4403, %v4668
    %v4670 = vpop.f32.mrb[0].mxu0
    %4671 = vmatprep.mubr.f32.mxu0 0.0
    %v4672 = vand.u32 %v3598, 4294901760
    %v4673 = vsub.f32 %v3598, %v4672
    %v4674 = vand.u32 %v4673, 4294901760
    %4675 = vmatmul.mubr.f32.gmra.mrb[0].mxu0 %v4674
    %v4676 = vpop.f32.mrb[0].mxu0
    %v4677 = vadd.f32 %v4410, %v4676
    %v4678 = vpop.f32.mrb[0].mxu0
    %4679 = vmatprep.mubr.f32.mxu0 0.0
    %v4680 = vand.u32 %v3599, 4294901760
    %v4681 = vsub.f32 %v3599, %v4680
    %v4682 = vand.u32 %v4681, 4294901760
    %4683 = vmatmul.mubr.f32.gmra.mrb[0].mxu0 %v4682
    %v4684 = vpop.f32.mrb[0].mxu0
    %v4685 = vadd.f32 %v4417, %v4684
    %v4686 = vpop.f32.mrb[0].mxu0
    %4687 = vmatprep.mubr.f32.mxu0 0.0
    %v4688 = vand.u32 %v3600, 4294901760
    %v4689 = vsub.f32 %v3600, %v4688
    %v4690 = vand.u32 %v4689, 4294901760
    %4691 = vmatmul.mubr.f32.gmra.mrb[0].mxu0 %v4690
    %v4692 = vpop.f32.mrb[0].mxu0
    %v4693 = vadd.f32 %v4424, %v4692
    %v4694 = vpop.f32.mrb[0].mxu0
    %4695 = vmatprep.mubr.f32.mxu0 0.0
    %v4696 = vand.u32 %v3601, 4294901760
    %v4697 = vsub.f32 %v3601, %v4696
    %v4698 = vand.u32 %v4697, 4294901760
    %4699 = vmatmul.mubr.f32.gmra.mrb[0].mxu0 %v4698
    %v4700 = vpop.f32.mrb[0].mxu0
    %v4701 = vadd.f32 %v4431, %v4700
    %v4702 = vpop.f32.mrb[0].mxu0
    %4703 = vmatprep.mubr.f32.mxu0 0.0
    %v4704 = vand.u32 %v3602, 4294901760
    %v4705 = vsub.f32 %v3602, %v4704
    %v4706 = vand.u32 %v4705, 4294901760
    %4707 = vmatmul.mubr.f32.gmra.mrb[0].mxu0 %v4706
    %v4708 = vpop.f32.mrb[0].mxu0
    %v4709 = vadd.f32 %v4438, %v4708
    %v4710 = vpop.f32.mrb[0].mxu0
    %4711 = vmatprep.mubr.f32.mxu0 0.0
    %v4712 = vand.u32 %v3603, 4294901760
    %v4713 = vsub.f32 %v3603, %v4712
    %v4714 = vand.u32 %v4713, 4294901760
    %4715 = vmatmul.mubr.f32.gmra.mrb[0].mxu0 %v4714
    %v4716 = vpop.f32.mrb[0].mxu0
    %v4717 = vadd.f32 %v4445, %v4716
    %v4718 = vpop.f32.mrb[0].mxu0
    %4719 = vmatprep.mubr.f32.mxu0 0.0
    %v4720 = vand.u32 %v3604, 4294901760
    %v4721 = vsub.f32 %v3604, %v4720
    %v4722 = vand.u32 %v4721, 4294901760
    %4723 = vmatmul.mubr.f32.gmra.mrb[0].mxu0 %v4722
    %v4724 = vpop.f32.mrb[0].mxu0
    %v4725 = vadd.f32 %v4452, %v4724
    %v4726 = vpop.f32.mrb[0].mxu0
    %4727 = vmatprep.mubr.f32.mxu0 0.0
    %v4728 = vand.u32 %v3605, 4294901760
    %v4729 = vsub.f32 %v3605, %v4728
    %v4730 = vand.u32 %v4729, 4294901760
    %4731 = vmatmul.mubr.f32.gmra.mrb[0].mxu0 %v4730
    %v4732 = vpop.f32.mrb[0].mxu0
    %v4733 = vadd.f32 %v4459, %v4732
    %v4734 = vpop.f32.mrb[0].mxu0
    %4735 = vmatprep.mubr.f32.mxu0 0.0
    %v4736 = vand.u32 %v3606, 4294901760
    %v4737 = vsub.f32 %v3606, %v4736
    %v4738 = vand.u32 %v4737, 4294901760
    %4739 = vmatmul.mubr.f32.gmra.mrb[0].mxu0 %v4738
    %v4740 = vpop.f32.mrb[0].mxu0
    %v4741 = vadd.f32 %v4466, %v4740
    %v4742 = vpop.f32.mrb[0].mxu0
    %4743 = vmatprep.mubr.f32.mxu0 0.0
    %v4744 = vand.u32 %v3607, 4294901760
    %v4745 = vsub.f32 %v3607, %v4744
    %v4746 = vand.u32 %v4745, 4294901760
    %4747 = vmatmul.mubr.f32.gmra.mrb[0].mxu0 %v4746
    %v4748 = vpop.f32.mrb[0].mxu0
    %v4749 = vadd.f32 %v4473, %v4748
    %v4750 = vpop.f32.mrb[0].mxu0
    %4751 = vmatprep.mubr.f32.mxu0 0.0
    %v4752 = vand.u32 %v3608, 4294901760
    %v4753 = vsub.f32 %v3608, %v4752
    %v4754 = vand.u32 %v4753, 4294901760
    %4755 = vmatmul.mubr.f32.gmra.mrb[0].mxu0 %v4754
    %v4756 = vpop.f32.mrb[0].mxu0
    %v4757 = vadd.f32 %v4480, %v4756
    %v4758 = vpop.f32.mrb[0].mxu0
    %4759 = vmatprep.mubr.f32.mxu0 0.0
    %v4760 = vand.u32 %v3609, 4294901760
    %v4761 = vsub.f32 %v3609, %v4760
    %v4762 = vand.u32 %v4761, 4294901760
    %4763 = vmatmul.mubr.f32.gmra.mrb[0].mxu0 %v4762
    %v4764 = vpop.f32.mrb[0].mxu0
    %v4765 = vadd.f32 %v4487, %v4764
    %v4766 = vpop.f32.mrb[0].mxu0
    %4767 = vmatprep.mubr.f32.mxu0 0.0
    %v4768 = vand.u32 %v3610, 4294901760
    %v4769 = vsub.f32 %v3610, %v4768
    %v4770 = vand.u32 %v4769, 4294901760
    %4771 = vmatmul.mubr.f32.gmra.mrb[0].mxu0 %v4770
    %v4772 = vpop.f32.mrb[0].mxu0
    %v4773 = vadd.f32 %v4494, %v4772
    %v4774 = vpop.f32.mrb[0].mxu0
    %4775 = vmatprep.mubr.f32.mxu0 0.0
    %v4776 = vand.u32 %v3611, 4294901760
    %v4777 = vsub.f32 %v3611, %v4776
    %v4778 = vand.u32 %v4777, 4294901760
    %4779 = vmatmul.mubr.f32.gmra.mrb[0].mxu0 %v4778
    %v4780 = vpop.f32.mrb[0].mxu0
    %v4781 = vadd.f32 %v4501, %v4780
    %v4782 = vpop.f32.mrb[0].mxu0
    %4783 = vmatprep.mubr.f32.mxu0 0.0
    %v4784 = vand.u32 %v3612, 4294901760
    %v4785 = vsub.f32 %v3612, %v4784
    %v4786 = vand.u32 %v4785, 4294901760
    %4787 = vmatmul.mubr.f32.gmra.mrb[0].mxu0 %v4786
    %v4788 = vpop.f32.mrb[0].mxu0
    %v4789 = vadd.f32 %v4508, %v4788
    %v4790 = vpop.f32.mrb[0].mxu0
    %4791 = vdwg.mxu0
    %4792 = vmatprep.subr.mxu0 0.0
    %v4793 = vand.u32 %v71, 4294901760
    %v4794 = vsub.f32 %v71, %v4793
    %v4795 = vand.u32 %v4794, 4294901760
    %4796 = vmatpush1.msra.mxu0 %v4795
    %4797 = vmatprep.subr.mxu0 0.0
    %v4798 = vand.u32 %v72, 4294901760
    %v4799 = vsub.f32 %v72, %v4798
    %v4800 = vand.u32 %v4799, 4294901760
    %4801 = vmatpush1.msra.mxu0 %v4800
    %4802 = vmatprep.subr.mxu0 0.0
    %v4803 = vand.u32 %v73, 4294901760
    %v4804 = vsub.f32 %v73, %v4803
    %v4805 = vand.u32 %v4804, 4294901760
    %4806 = vmatpush1.msra.mxu0 %v4805
    %4807 = vmatprep.subr.mxu0 0.0
    %v4808 = vand.u32 %v74, 4294901760
    %v4809 = vsub.f32 %v74, %v4808
    %v4810 = vand.u32 %v4809, 4294901760
    %4811 = vmatpush1.msra.mxu0 %v4810
    %4812 = vmatprep.subr.mxu0 0.0
    %v4813 = vand.u32 %v75, 4294901760
    %v4814 = vsub.f32 %v75, %v4813
    %v4815 = vand.u32 %v4814, 4294901760
    %4816 = vmatpush1.msra.mxu0 %v4815
    %4817 = vmatprep.subr.mxu0 0.0
    %v4818 = vand.u32 %v76, 4294901760
    %v4819 = vsub.f32 %v76, %v4818
    %v4820 = vand.u32 %v4819, 4294901760
    %4821 = vmatpush1.msra.mxu0 %v4820
    %4822 = vmatprep.subr.mxu0 0.0
    %v4823 = vand.u32 %v77, 4294901760
    %v4824 = vsub.f32 %v77, %v4823
    %v4825 = vand.u32 %v4824, 4294901760
    %4826 = vmatpush1.msra.mxu0 %v4825
    %4827 = vmatprep.subr.mxu0 0.0
    %v4828 = vand.u32 %v78, 4294901760
    %v4829 = vsub.f32 %v78, %v4828
    %v4830 = vand.u32 %v4829, 4294901760
    %4831 = vmatpush1.msra.mxu0 %v4830
    %4832 = vmatprep.subr.mxu0 0.0
    %v4833 = vand.u32 %v79, 4294901760
    %v4834 = vsub.f32 %v79, %v4833
    %v4835 = vand.u32 %v4834, 4294901760
    %4836 = vmatpush1.msra.mxu0 %v4835
    %4837 = vmatprep.subr.mxu0 0.0
    %v4838 = vand.u32 %v80, 4294901760
    %v4839 = vsub.f32 %v80, %v4838
    %v4840 = vand.u32 %v4839, 4294901760
    %4841 = vmatpush1.msra.mxu0 %v4840
    %4842 = vmatprep.subr.mxu0 0.0
    %v4843 = vand.u32 %v81, 4294901760
    %v4844 = vsub.f32 %v81, %v4843
    %v4845 = vand.u32 %v4844, 4294901760
    %4846 = vmatpush1.msra.mxu0 %v4845
    %4847 = vmatprep.subr.mxu0 0.0
    %v4848 = vand.u32 %v82, 4294901760
    %v4849 = vsub.f32 %v82, %v4848
    %v4850 = vand.u32 %v4849, 4294901760
    %4851 = vmatpush1.msra.mxu0 %v4850
    %4852 = vmatprep.subr.mxu0 0.0
    %v4853 = vand.u32 %v83, 4294901760
    %v4854 = vsub.f32 %v83, %v4853
    %v4855 = vand.u32 %v4854, 4294901760
    %4856 = vmatpush1.msra.mxu0 %v4855
    %4857 = vmatprep.subr.mxu0 0.0
    %v4858 = vand.u32 %v84, 4294901760
    %v4859 = vsub.f32 %v84, %v4858
    %v4860 = vand.u32 %v4859, 4294901760
    %4861 = vmatpush1.msra.mxu0 %v4860
    %4862 = vmatprep.subr.mxu0 0.0
    %v4863 = vand.u32 %v85, 4294901760
    %v4864 = vsub.f32 %v85, %v4863
    %v4865 = vand.u32 %v4864, 4294901760
    %4866 = vmatpush1.msra.mxu0 %v4865
    %4867 = vmatprep.subr.mxu0 0.0
    %v4868 = vand.u32 %v86, 4294901760
    %v4869 = vsub.f32 %v86, %v4868
    %v4870 = vand.u32 %v4869, 4294901760
    %4871 = vmatpush1.msra.mxu0 %v4870
    %4872 = vmatprep.subr.mxu0 0.0
    %4873 = vmatpush1.msra.mxu0 0.0
    %4874 = vmatprep.subr.mxu0 0.0
    %4875 = vmatpush1.msra.mxu0 0.0
    %4876 = vmatprep.subr.mxu0 0.0
    %4877 = vmatpush1.msra.mxu0 0.0
    %4878 = vmatprep.subr.mxu0 0.0
    %4879 = vmatpush1.msra.mxu0 0.0
    %4880 = vmatprep.subr.mxu0 0.0
    %4881 = vmatpush1.msra.mxu0 0.0
    %4882 = vmatprep.subr.mxu0 0.0
    %4883 = vmatpush1.msra.mxu0 0.0
    %4884 = vmatprep.subr.mxu0 0.0
    %4885 = vmatpush1.msra.mxu0 0.0
    %4886 = vmatprep.subr.mxu0 0.0
    %4887 = vmatpush1.msra.mxu0 0.0
    %4888 = vmatprep.subr.mxu0 0.0
    %4889 = vmatpush1.msra.mxu0 0.0
    %4890 = vmatprep.subr.mxu0 0.0
    %4891 = vmatpush1.msra.mxu0 0.0
    %4892 = vmatprep.subr.mxu0 0.0
    %4893 = vmatpush1.msra.mxu0 0.0
    %4894 = vmatprep.subr.mxu0 0.0
    %4895 = vmatpush1.msra.mxu0 0.0
    %4896 = vmatprep.subr.mxu0 0.0
    %4897 = vmatpush1.msra.mxu0 0.0
    %4898 = vmatprep.subr.mxu0 0.0
    %4899 = vmatpush1.msra.mxu0 0.0
    %4900 = vmatprep.subr.mxu0 0.0
    %4901 = vmatpush1.msra.mxu0 0.0
    %4902 = vmatprep.subr.mxu0 0.0
    %4903 = vmatpush1.msra.mxu0 0.0
    %4904 = vmatprep.mubr.f32.mxu0 0.0
    %v4905 = vand.u32 %v3588, 4294901760
    %4906 = vmatmul.mubr.f32.gmra.mrb[0].mxu0 %v4905
    %v4907 = vpop.f32.mrb[0].mxu0
    %v4908 = vadd.f32 %v4597, %v4907
    %v4909 = vpop.f32.mrb[0].mxu0
    %4910 = vmatprep.mubr.f32.mxu0 0.0
    %v4911 = vand.u32 %v3589, 4294901760
    %4912 = vmatmul.mubr.f32.gmra.mrb[0].mxu0 %v4911
    %v4913 = vpop.f32.mrb[0].mxu0
    %v4914 = vadd.f32 %v4605, %v4913
    %v4915 = vpop.f32.mrb[0].mxu0
    %4916 = vmatprep.mubr.f32.mxu0 0.0
    %v4917 = vand.u32 %v3590, 4294901760
    %4918 = vmatmul.mubr.f32.gmra.mrb[0].mxu0 %v4917
    %v4919 = vpop.f32.mrb[0].mxu0
    %v4920 = vadd.f32 %v4613, %v4919
    %v4921 = vpop.f32.mrb[0].mxu0
    %4922 = vmatprep.mubr.f32.mxu0 0.0
    %v4923 = vand.u32 %v3591, 4294901760
    %4924 = vmatmul.mubr.f32.gmra.mrb[0].mxu0 %v4923
    %v4925 = vpop.f32.mrb[0].mxu0
    %v4926 = vadd.f32 %v4621, %v4925
    %v4927 = vpop.f32.mrb[0].mxu0
    %4928 = vmatprep.mubr.f32.mxu0 0.0
    %v4929 = vand.u32 %v3592, 4294901760
    %4930 = vmatmul.mubr.f32.gmra.mrb[0].mxu0 %v4929
    %v4931 = vpop.f32.mrb[0].mxu0
    %v4932 = vadd.f32 %v4629, %v4931
    %v4933 = vpop.f32.mrb[0].mxu0
    %4934 = vmatprep.mubr.f32.mxu0 0.0
    %v4935 = vand.u32 %v3593, 4294901760
    %4936 = vmatmul.mubr.f32.gmra.mrb[0].mxu0 %v4935
    %v4937 = vpop.f32.mrb[0].mxu0
    %v4938 = vadd.f32 %v4637, %v4937
    %v4939 = vpop.f32.mrb[0].mxu0
    %4940 = vmatprep.mubr.f32.mxu0 0.0
    %v4941 = vand.u32 %v3594, 4294901760
    %4942 = vmatmul.mubr.f32.gmra.mrb[0].mxu0 %v4941
    %v4943 = vpop.f32.mrb[0].mxu0
    %v4944 = vadd.f32 %v4645, %v4943
    %v4945 = vpop.f32.mrb[0].mxu0
    %4946 = vmatprep.mubr.f32.mxu0 0.0
    %v4947 = vand.u32 %v3595, 4294901760
    %4948 = vmatmul.mubr.f32.gmra.mrb[0].mxu0 %v4947
    %v4949 = vpop.f32.mrb[0].mxu0
    %v4950 = vadd.f32 %v4653, %v4949
    %v4951 = vpop.f32.mrb[0].mxu0
    %4952 = vmatprep.mubr.f32.mxu0 0.0
    %v4953 = vand.u32 %v3596, 4294901760
    %4954 = vmatmul.mubr.f32.gmra.mrb[0].mxu0 %v4953
    %v4955 = vpop.f32.mrb[0].mxu0
    %v4956 = vadd.f32 %v4661, %v4955
    %v4957 = vpop.f32.mrb[0].mxu0
    %4958 = vmatprep.mubr.f32.mxu0 0.0
    %v4959 = vand.u32 %v3597, 4294901760
    %4960 = vmatmul.mubr.f32.gmra.mrb[0].mxu0 %v4959
    %v4961 = vpop.f32.mrb[0].mxu0
    %v4962 = vadd.f32 %v4669, %v4961
    %v4963 = vpop.f32.mrb[0].mxu0
    %4964 = vmatprep.mubr.f32.mxu0 0.0
    %v4965 = vand.u32 %v3598, 4294901760
    %4966 = vmatmul.mubr.f32.gmra.mrb[0].mxu0 %v4965
    %v4967 = vpop.f32.mrb[0].mxu0
    %v4968 = vadd.f32 %v4677, %v4967
    %v4969 = vpop.f32.mrb[0].mxu0
    %4970 = vmatprep.mubr.f32.mxu0 0.0
    %v4971 = vand.u32 %v3599, 4294901760
    %4972 = vmatmul.mubr.f32.gmra.mrb[0].mxu0 %v4971
    %v4973 = vpop.f32.mrb[0].mxu0
    %v4974 = vadd.f32 %v4685, %v4973
    %v4975 = vpop.f32.mrb[0].mxu0
    %4976 = vmatprep.mubr.f32.mxu0 0.0
    %v4977 = vand.u32 %v3600, 4294901760
    %4978 = vmatmul.mubr.f32.gmra.mrb[0].mxu0 %v4977
    %v4979 = vpop.f32.mrb[0].mxu0
    %v4980 = vadd.f32 %v4693, %v4979
    %v4981 = vpop.f32.mrb[0].mxu0
    %4982 = vmatprep.mubr.f32.mxu0 0.0
    %v4983 = vand.u32 %v3601, 4294901760
    %4984 = vmatmul.mubr.f32.gmra.mrb[0].mxu0 %v4983
    %v4985 = vpop.f32.mrb[0].mxu0
    %v4986 = vadd.f32 %v4701, %v4985
    %v4987 = vpop.f32.mrb[0].mxu0
    %4988 = vmatprep.mubr.f32.mxu0 0.0
    %v4989 = vand.u32 %v3602, 4294901760
    %4990 = vmatmul.mubr.f32.gmra.mrb[0].mxu0 %v4989
    %v4991 = vpop.f32.mrb[0].mxu0
    %v4992 = vadd.f32 %v4709, %v4991
    %v4993 = vpop.f32.mrb[0].mxu0
    %4994 = vmatprep.mubr.f32.mxu0 0.0
    %v4995 = vand.u32 %v3603, 4294901760
    %4996 = vmatmul.mubr.f32.gmra.mrb[0].mxu0 %v4995
    %v4997 = vpop.f32.mrb[0].mxu0
    %v4998 = vadd.f32 %v4717, %v4997
    %v4999 = vpop.f32.mrb[0].mxu0
    %5000 = vmatprep.mubr.f32.mxu0 0.0
    %v5001 = vand.u32 %v3604, 4294901760
    %5002 = vmatmul.mubr.f32.gmra.mrb[0].mxu0 %v5001
    %v5003 = vpop.f32.mrb[0].mxu0
    %v5004 = vadd.f32 %v4725, %v5003
    %v5005 = vpop.f32.mrb[0].mxu0
    %5006 = vmatprep.mubr.f32.mxu0 0.0
    %v5007 = vand.u32 %v3605, 4294901760
    %5008 = vmatmul.mubr.f32.gmra.mrb[0].mxu0 %v5007
    %v5009 = vpop.f32.mrb[0].mxu0
    %v5010 = vadd.f32 %v4733, %v5009
    %v5011 = vpop.f32.mrb[0].mxu0
    %5012 = vmatprep.mubr.f32.mxu0 0.0
    %v5013 = vand.u32 %v3606, 4294901760
    %5014 = vmatmul.mubr.f32.gmra.mrb[0].mxu0 %v5013
    %v5015 = vpop.f32.mrb[0].mxu0
    %v5016 = vadd.f32 %v4741, %v5015
    %v5017 = vpop.f32.mrb[0].mxu0
    %5018 = vmatprep.mubr.f32.mxu0 0.0
    %v5019 = vand.u32 %v3607, 4294901760
    %5020 = vmatmul.mubr.f32.gmra.mrb[0].mxu0 %v5019
    %v5021 = vpop.f32.mrb[0].mxu0
    %v5022 = vadd.f32 %v4749, %v5021
    %v5023 = vpop.f32.mrb[0].mxu0
    %5024 = vmatprep.mubr.f32.mxu0 0.0
    %v5025 = vand.u32 %v3608, 4294901760
    %5026 = vmatmul.mubr.f32.gmra.mrb[0].mxu0 %v5025
    %v5027 = vpop.f32.mrb[0].mxu0
    %v5028 = vadd.f32 %v4757, %v5027
    %v5029 = vpop.f32.mrb[0].mxu0
    %5030 = vmatprep.mubr.f32.mxu0 0.0
    %v5031 = vand.u32 %v3609, 4294901760
    %5032 = vmatmul.mubr.f32.gmra.mrb[0].mxu0 %v5031
    %v5033 = vpop.f32.mrb[0].mxu0
    %v5034 = vadd.f32 %v4765, %v5033
    %v5035 = vpop.f32.mrb[0].mxu0
    %5036 = vmatprep.mubr.f32.mxu0 0.0
    %v5037 = vand.u32 %v3610, 4294901760
    %5038 = vmatmul.mubr.f32.gmra.mrb[0].mxu0 %v5037
    %v5039 = vpop.f32.mrb[0].mxu0
    %v5040 = vadd.f32 %v4773, %v5039
    %v5041 = vpop.f32.mrb[0].mxu0
    %5042 = vmatprep.mubr.f32.mxu0 0.0
    %v5043 = vand.u32 %v3611, 4294901760
    %5044 = vmatmul.mubr.f32.gmra.mrb[0].mxu0 %v5043
    %v5045 = vpop.f32.mrb[0].mxu0
    %v5046 = vadd.f32 %v4781, %v5045
    %v5047 = vpop.f32.mrb[0].mxu0
    %5048 = vmatprep.mubr.f32.mxu0 0.0
    %v5049 = vand.u32 %v3612, 4294901760
    %5050 = vmatmul.mubr.f32.gmra.mrb[0].mxu0 %v5049
    %v5051 = vpop.f32.mrb[0].mxu0
    %v5052 = vadd.f32 %v4789, %v5051
    %v5053 = vpop.f32.mrb[0].mxu0
    %5054 = vdwg.mxu0
    %5055 = vmatprep.subr.mxu0 0.0
    %v5056 = vand.u32 %v71, 4294901760
    %5057 = vmatpush1.msra.mxu0 %v5056
    %5058 = vmatprep.subr.mxu0 0.0
    %v5059 = vand.u32 %v72, 4294901760
    %5060 = vmatpush1.msra.mxu0 %v5059
    %5061 = vmatprep.subr.mxu0 0.0
    %v5062 = vand.u32 %v73, 4294901760
    %5063 = vmatpush1.msra.mxu0 %v5062
    %5064 = vmatprep.subr.mxu0 0.0
    %v5065 = vand.u32 %v74, 4294901760
    %5066 = vmatpush1.msra.mxu0 %v5065
    %5067 = vmatprep.subr.mxu0 0.0
    %v5068 = vand.u32 %v75, 4294901760
    %5069 = vmatpush1.msra.mxu0 %v5068
    %5070 = vmatprep.subr.mxu0 0.0
    %v5071 = vand.u32 %v76, 4294901760
    %5072 = vmatpush1.msra.mxu0 %v5071
    %5073 = vmatprep.subr.mxu0 0.0
    %v5074 = vand.u32 %v77, 4294901760
    %5075 = vmatpush1.msra.mxu0 %v5074
    %5076 = vmatprep.subr.mxu0 0.0
    %v5077 = vand.u32 %v78, 4294901760
    %5078 = vmatpush1.msra.mxu0 %v5077
    %5079 = vmatprep.subr.mxu0 0.0
    %v5080 = vand.u32 %v79, 4294901760
    %5081 = vmatpush1.msra.mxu0 %v5080
    %5082 = vmatprep.subr.mxu0 0.0
    %v5083 = vand.u32 %v80, 4294901760
    %5084 = vmatpush1.msra.mxu0 %v5083
    %5085 = vmatprep.subr.mxu0 0.0
    %v5086 = vand.u32 %v81, 4294901760
    %5087 = vmatpush1.msra.mxu0 %v5086
    %5088 = vmatprep.subr.mxu0 0.0
    %v5089 = vand.u32 %v82, 4294901760
    %5090 = vmatpush1.msra.mxu0 %v5089
    %5091 = vmatprep.subr.mxu0 0.0
    %v5092 = vand.u32 %v83, 4294901760
    %5093 = vmatpush1.msra.mxu0 %v5092
    %5094 = vmatprep.subr.mxu0 0.0
    %v5095 = vand.u32 %v84, 4294901760
    %5096 = vmatpush1.msra.mxu0 %v5095
    %5097 = vmatprep.subr.mxu0 0.0
    %v5098 = vand.u32 %v85, 4294901760
    %5099 = vmatpush1.msra.mxu0 %v5098
    %5100 = vmatprep.subr.mxu0 0.0
    %v5101 = vand.u32 %v86, 4294901760
    %5102 = vmatpush1.msra.mxu0 %v5101
    %5103 = vmatprep.subr.mxu0 0.0
    %5104 = vmatpush1.msra.mxu0 0.0
    %5105 = vmatprep.subr.mxu0 0.0
    %5106 = vmatpush1.msra.mxu0 0.0
    %5107 = vmatprep.subr.mxu0 0.0
    %5108 = vmatpush1.msra.mxu0 0.0
    %5109 = vmatprep.subr.mxu0 0.0
    %5110 = vmatpush1.msra.mxu0 0.0
    %5111 = vmatprep.subr.mxu0 0.0
    %5112 = vmatpush1.msra.mxu0 0.0
    %5113 = vmatprep.subr.mxu0 0.0
    %5114 = vmatpush1.msra.mxu0 0.0
    %5115 = vmatprep.subr.mxu0 0.0
    %5116 = vmatpush1.msra.mxu0 0.0
    %5117 = vmatprep.subr.mxu0 0.0
    %5118 = vmatpush1.msra.mxu0 0.0
    %5119 = vmatprep.subr.mxu0 0.0
    %5120 = vmatpush1.msra.mxu0 0.0
    %5121 = vmatprep.subr.mxu0 0.0
    %5122 = vmatpush1.msra.mxu0 0.0
    %5123 = vmatprep.subr.mxu0 0.0
    %5124 = vmatpush1.msra.mxu0 0.0
    %5125 = vmatprep.subr.mxu0 0.0
    %5126 = vmatpush1.msra.mxu0 0.0
    %5127 = vmatprep.subr.mxu0 0.0
    %5128 = vmatpush1.msra.mxu0 0.0
    %5129 = vmatprep.subr.mxu0 0.0
    %5130 = vmatpush1.msra.mxu0 0.0
    %5131 = vmatprep.subr.mxu0 0.0
    %5132 = vmatpush1.msra.mxu0 0.0
    %5133 = vmatprep.subr.mxu0 0.0
    %5134 = vmatpush1.msra.mxu0 0.0
    %5135 = vmatprep.mubr.f32.mxu0 0.0
    %v5136 = vand.u32 %v3588, 4294901760
    %5137 = vmatmul.mubr.f32.gmra.mrb[0].mxu0 %v5136
    %v5138 = vpop.f32.mrb[0].mxu0
    %v5139 = vadd.f32 %v4908, %v5138
    %v5140 = vpop.f32.mrb[0].mxu0
    %5141 = vmatprep.mubr.f32.mxu0 0.0
    %v5142 = vand.u32 %v3589, 4294901760
    %5143 = vmatmul.mubr.f32.gmra.mrb[0].mxu0 %v5142
    %v5144 = vpop.f32.mrb[0].mxu0
    %v5145 = vadd.f32 %v4914, %v5144
    %v5146 = vpop.f32.mrb[0].mxu0
    %5147 = vmatprep.mubr.f32.mxu0 0.0
    %v5148 = vand.u32 %v3590, 4294901760
    %5149 = vmatmul.mubr.f32.gmra.mrb[0].mxu0 %v5148
    %v5150 = vpop.f32.mrb[0].mxu0
    %v5151 = vadd.f32 %v4920, %v5150
    %v5152 = vpop.f32.mrb[0].mxu0
    %5153 = vmatprep.mubr.f32.mxu0 0.0
    %v5154 = vand.u32 %v3591, 4294901760
    %5155 = vmatmul.mubr.f32.gmra.mrb[0].mxu0 %v5154
    %v5156 = vpop.f32.mrb[0].mxu0
    %v5157 = vadd.f32 %v4926, %v5156
    %v5158 = vpop.f32.mrb[0].mxu0
    %5159 = vmatprep.mubr.f32.mxu0 0.0
    %v5160 = vand.u32 %v3592, 4294901760
    %5161 = vmatmul.mubr.f32.gmra.mrb[0].mxu0 %v5160
    %v5162 = vpop.f32.mrb[0].mxu0
    %v5163 = vadd.f32 %v4932, %v5162
    %v5164 = vpop.f32.mrb[0].mxu0
    %5165 = vmatprep.mubr.f32.mxu0 0.0
    %v5166 = vand.u32 %v3593, 4294901760
    %5167 = vmatmul.mubr.f32.gmra.mrb[0].mxu0 %v5166
    %v5168 = vpop.f32.mrb[0].mxu0
    %v5169 = vadd.f32 %v4938, %v5168
    %v5170 = vpop.f32.mrb[0].mxu0
    %5171 = vmatprep.mubr.f32.mxu0 0.0
    %v5172 = vand.u32 %v3594, 4294901760
    %5173 = vmatmul.mubr.f32.gmra.mrb[0].mxu0 %v5172
    %v5174 = vpop.f32.mrb[0].mxu0
    %v5175 = vadd.f32 %v4944, %v5174
    %v5176 = vpop.f32.mrb[0].mxu0
    %5177 = vmatprep.mubr.f32.mxu0 0.0
    %v5178 = vand.u32 %v3595, 4294901760
    %5179 = vmatmul.mubr.f32.gmra.mrb[0].mxu0 %v5178
    %v5180 = vpop.f32.mrb[0].mxu0
    %v5181 = vadd.f32 %v4950, %v5180
    %v5182 = vpop.f32.mrb[0].mxu0
    %5183 = vmatprep.mubr.f32.mxu0 0.0
    %v5184 = vand.u32 %v3596, 4294901760
    %5185 = vmatmul.mubr.f32.gmra.mrb[0].mxu0 %v5184
    %v5186 = vpop.f32.mrb[0].mxu0
    %v5187 = vadd.f32 %v4956, %v5186
    %v5188 = vpop.f32.mrb[0].mxu0
    %5189 = vmatprep.mubr.f32.mxu0 0.0
    %v5190 = vand.u32 %v3597, 4294901760
    %5191 = vmatmul.mubr.f32.gmra.mrb[0].mxu0 %v5190
    %v5192 = vpop.f32.mrb[0].mxu0
    %v5193 = vadd.f32 %v4962, %v5192
    %v5194 = vpop.f32.mrb[0].mxu0
    %5195 = vmatprep.mubr.f32.mxu0 0.0
    %v5196 = vand.u32 %v3598, 4294901760
    %5197 = vmatmul.mubr.f32.gmra.mrb[0].mxu0 %v5196
    %v5198 = vpop.f32.mrb[0].mxu0
    %v5199 = vadd.f32 %v4968, %v5198
    %v5200 = vpop.f32.mrb[0].mxu0
    %5201 = vmatprep.mubr.f32.mxu0 0.0
    %v5202 = vand.u32 %v3599, 4294901760
    %5203 = vmatmul.mubr.f32.gmra.mrb[0].mxu0 %v5202
    %v5204 = vpop.f32.mrb[0].mxu0
    %v5205 = vadd.f32 %v4974, %v5204
    %v5206 = vpop.f32.mrb[0].mxu0
    %5207 = vmatprep.mubr.f32.mxu0 0.0
    %v5208 = vand.u32 %v3600, 4294901760
    %5209 = vmatmul.mubr.f32.gmra.mrb[0].mxu0 %v5208
    %v5210 = vpop.f32.mrb[0].mxu0
    %v5211 = vadd.f32 %v4980, %v5210
    %v5212 = vpop.f32.mrb[0].mxu0
    %5213 = vmatprep.mubr.f32.mxu0 0.0
    %v5214 = vand.u32 %v3601, 4294901760
    %5215 = vmatmul.mubr.f32.gmra.mrb[0].mxu0 %v5214
    %v5216 = vpop.f32.mrb[0].mxu0
    %v5217 = vadd.f32 %v4986, %v5216
    %v5218 = vpop.f32.mrb[0].mxu0
    %5219 = vmatprep.mubr.f32.mxu0 0.0
    %v5220 = vand.u32 %v3602, 4294901760
    %5221 = vmatmul.mubr.f32.gmra.mrb[0].mxu0 %v5220
    %v5222 = vpop.f32.mrb[0].mxu0
    %v5223 = vadd.f32 %v4992, %v5222
    %v5224 = vpop.f32.mrb[0].mxu0
    %5225 = vmatprep.mubr.f32.mxu0 0.0
    %v5226 = vand.u32 %v3603, 4294901760
    %5227 = vmatmul.mubr.f32.gmra.mrb[0].mxu0 %v5226
    %v5228 = vpop.f32.mrb[0].mxu0
    %v5229 = vadd.f32 %v4998, %v5228
    %v5230 = vpop.f32.mrb[0].mxu0
    %5231 = vmatprep.mubr.f32.mxu0 0.0
    %v5232 = vand.u32 %v3604, 4294901760
    %5233 = vmatmul.mubr.f32.gmra.mrb[0].mxu0 %v5232
    %v5234 = vpop.f32.mrb[0].mxu0
    %v5235 = vadd.f32 %v5004, %v5234
    %v5236 = vpop.f32.mrb[0].mxu0
    %5237 = vmatprep.mubr.f32.mxu0 0.0
    %v5238 = vand.u32 %v3605, 4294901760
    %5239 = vmatmul.mubr.f32.gmra.mrb[0].mxu0 %v5238
    %v5240 = vpop.f32.mrb[0].mxu0
    %v5241 = vadd.f32 %v5010, %v5240
    %v5242 = vpop.f32.mrb[0].mxu0
    %5243 = vmatprep.mubr.f32.mxu0 0.0
    %v5244 = vand.u32 %v3606, 4294901760
    %5245 = vmatmul.mubr.f32.gmra.mrb[0].mxu0 %v5244
    %v5246 = vpop.f32.mrb[0].mxu0
    %v5247 = vadd.f32 %v5016, %v5246
    %v5248 = vpop.f32.mrb[0].mxu0
    %5249 = vmatprep.mubr.f32.mxu0 0.0
    %v5250 = vand.u32 %v3607, 4294901760
    %5251 = vmatmul.mubr.f32.gmra.mrb[0].mxu0 %v5250
    %v5252 = vpop.f32.mrb[0].mxu0
    %v5253 = vadd.f32 %v5022, %v5252
    %v5254 = vpop.f32.mrb[0].mxu0
    %5255 = vmatprep.mubr.f32.mxu0 0.0
    %v5256 = vand.u32 %v3608, 4294901760
    %5257 = vmatmul.mubr.f32.gmra.mrb[0].mxu0 %v5256
    %v5258 = vpop.f32.mrb[0].mxu0
    %v5259 = vadd.f32 %v5028, %v5258
    %v5260 = vpop.f32.mrb[0].mxu0
    %5261 = vmatprep.mubr.f32.mxu0 0.0
    %v5262 = vand.u32 %v3609, 4294901760
    %5263 = vmatmul.mubr.f32.gmra.mrb[0].mxu0 %v5262
    %v5264 = vpop.f32.mrb[0].mxu0
    %v5265 = vadd.f32 %v5034, %v5264
    %v5266 = vpop.f32.mrb[0].mxu0
    %5267 = vmatprep.mubr.f32.mxu0 0.0
    %v5268 = vand.u32 %v3610, 4294901760
    %5269 = vmatmul.mubr.f32.gmra.mrb[0].mxu0 %v5268
    %v5270 = vpop.f32.mrb[0].mxu0
    %v5271 = vadd.f32 %v5040, %v5270
    %v5272 = vpop.f32.mrb[0].mxu0
    %5273 = vmatprep.mubr.f32.mxu0 0.0
    %v5274 = vand.u32 %v3611, 4294901760
    %5275 = vmatmul.mubr.f32.gmra.mrb[0].mxu0 %v5274
    %v5276 = vpop.f32.mrb[0].mxu0
    %v5277 = vadd.f32 %v5046, %v5276
    %v5278 = vpop.f32.mrb[0].mxu0
    %5279 = vmatprep.mubr.f32.mxu0 0.0
    %v5280 = vand.u32 %v3612, 4294901760
    %5281 = vmatmul.mubr.f32.gmra.mrb[0].mxu0 %v5280
    %v5282 = vpop.f32.mrb[0].mxu0
    %v5283 = vadd.f32 %v5052, %v5282
    %v5284 = vpop.f32.mrb[0].mxu0
    %5285 = vdwg.mxu0
    %v5286 = vtanh.pop %v5139
    %v5287 = vtanh.pop %v5145
    %v5288 = vtanh.pop %v5151
    %v5289 = vtanh.pop %v5157
    %v5290 = vtanh.pop %v5163
    %v5291 = vtanh.pop %v5169
    %v5292 = vtanh.pop %v5175
    %v5293 = vtanh.pop %v5181
    %v5294 = vtanh.pop %v5187
    %v5295 = vtanh.pop %v5193
    %v5296 = vtanh.pop %v5199
    %v5297 = vtanh.pop %v5205
    %v5298 = vtanh.pop %v5211
    %v5299 = vtanh.pop %v5217
    %v5300 = vtanh.pop %v5223
    %v5301 = vtanh.pop %v5229
    %v5302 = vtanh.pop %v5235
    %v5303 = vtanh.pop %v5241
    %v5304 = vtanh.pop %v5247
    %v5305 = vtanh.pop %v5253
    %v5306 = vtanh.pop %v5259
    %v5307 = vtanh.pop %v5265
    %v5308 = vtanh.pop %v5271
    %v5309 = vtanh.pop %v5277
    %v5310 = vtanh.pop %v5283
    %v5311 = vadd.f32 %v5286, %v5287
    %v5312 = vadd.f32 %v5311, %v5288
    %v5313 = vadd.f32 %v5312, %v5289
    %v5314 = vadd.f32 %v5313, %v5290
    %v5315 = vadd.f32 %v5314, %v5291
    %v5316 = vadd.f32 %v5315, %v5292
    %v5317 = vadd.f32 %v5316, %v5293
    %v5318 = vadd.f32 %v5317, %v5294
    %v5319 = vadd.f32 %v5318, %v5295
    %v5320 = vadd.f32 %v5319, %v5296
    %v5321 = vadd.f32 %v5320, %v5297
    %v5322 = vadd.f32 %v5321, %v5298
    %v5323 = vadd.f32 %v5322, %v5299
    %v5324 = vadd.f32 %v5323, %v5300
    %v5325 = vadd.f32 %v5324, %v5301
    %v5326 = vadd.f32 %v5325, %v5302
    %v5327 = vadd.f32 %v5326, %v5303
    %v5328 = vadd.f32 %v5327, %v5304
    %v5329 = vadd.f32 %v5328, %v5305
    %v5330 = vadd.f32 %v5329, %v5306
    %v5331 = vadd.f32 %v5330, %v5307
    %v5332 = vadd.f32 %v5331, %v5308
    %v5333 = vadd.f32 %v5332, %v5309
    %v5334 = vadd.f32 %v5333, %v5310
    %v5335 = vrot.slane %v5334, 4
    %v5336 = vadd.f32 %v5334, %v5335
    %v5337 = vrot.slane %v5336, 2
    %v5338 = vadd.f32 %v5336, %v5337
    %v5339 = vrot.slane %v5338, 1
    %v5340 = vadd.f32 %v5338, %v5339
    %v5341 = vmul.f32 %v5340, %v1822
    %v5342 = vsel %vm1824, %v5341, 0.0
    %5343 = vadd.xlane.f32.xlu0 %v5342
    %v5344 = vpop.xlane.xlu0 %5343
    %v5345 = vmul.f32 %v5344, %v1828
    %v5346 = vld [vmem:[#allocation2 + $0x18] sm:$0xff]
    %v5347 = vld [vmem:[#allocation2 + $0x38] sm:$0xff]
    %v5348 = vld [vmem:[#allocation2 + $0x58] sm:$0xff]
    %v5349 = vld [vmem:[#allocation2 + $0x78] sm:$0xff]
    %v5350 = vld [vmem:[#allocation2 + $0x98] sm:$0xff]
    %v5351 = vld [vmem:[#allocation2 + $0xb8] sm:$0xff]
    %v5352 = vld [vmem:[#allocation2 + $0xd8] sm:$0xff]
    %v5353 = vld [vmem:[#allocation2 + $0xf8] sm:$0xff]
    %v5354 = vld [vmem:[#allocation2 + $0x118] sm:$0xff]
    %v5355 = vld [vmem:[#allocation2 + $0x138] sm:$0xff]
    %v5356 = vld [vmem:[#allocation2 + $0x158] sm:$0xff]
    %v5357 = vld [vmem:[#allocation2 + $0x178] sm:$0xff]
    %v5358 = vld [vmem:[#allocation2 + $0x198] sm:$0xff]
    %v5359 = vld [vmem:[#allocation2 + $0x1b8] sm:$0xff]
    %v5360 = vld [vmem:[#allocation2 + $0x1d8] sm:$0xff]
    %v5361 = vld [vmem:[#allocation2 + $0x1f8] sm:$0xff]
    %v5362 = vld [vmem:[#allocation2 + $0x218] sm:$0xff]
    %v5363 = vld [vmem:[#allocation2 + $0x238] sm:$0xff]
    %v5364 = vld [vmem:[#allocation2 + $0x258] sm:$0xff]
    %v5365 = vld [vmem:[#allocation2 + $0x278] sm:$0xff]
    %v5366 = vld [vmem:[#allocation2 + $0x298] sm:$0xff]
    %v5367 = vld [vmem:[#allocation2 + $0x2b8] sm:$0xff]
    %v5368 = vld [vmem:[#allocation2 + $0x2d8] sm:$0xff]
    %v5369 = vld [vmem:[#allocation2 + $0x2f8] sm:$0xff]
    %v5370 = vld [vmem:[#allocation2 + $0x318] sm:$0xff]
    %5371 = vmatprep.subr.mxu0 0.0
    %v5372 = vand.u32 %v71, 4294901760
    %5373 = vmatpush1.msra.mxu0 %v5372
    %5374 = vmatprep.subr.mxu0 0.0
    %v5375 = vand.u32 %v72, 4294901760
    %5376 = vmatpush1.msra.mxu0 %v5375
    %5377 = vmatprep.subr.mxu0 0.0
    %v5378 = vand.u32 %v73, 4294901760
    %5379 = vmatpush1.msra.mxu0 %v5378
    %5380 = vmatprep.subr.mxu0 0.0
    %v5381 = vand.u32 %v74, 4294901760
    %5382 = vmatpush1.msra.mxu0 %v5381
    %5383 = vmatprep.subr.mxu0 0.0
    %v5384 = vand.u32 %v75, 4294901760
    %5385 = vmatpush1.msra.mxu0 %v5384
    %5386 = vmatprep.subr.mxu0 0.0
    %v5387 = vand.u32 %v76, 4294901760
    %5388 = vmatpush1.msra.mxu0 %v5387
    %5389 = vmatprep.subr.mxu0 0.0
    %v5390 = vand.u32 %v77, 4294901760
    %5391 = vmatpush1.msra.mxu0 %v5390
    %5392 = vmatprep.subr.mxu0 0.0
    %v5393 = vand.u32 %v78, 4294901760
    %5394 = vmatpush1.msra.mxu0 %v5393
    %5395 = vmatprep.subr.mxu0 0.0
    %v5396 = vand.u32 %v79, 4294901760
    %5397 = vmatpush1.msra.mxu0 %v5396
    %5398 = vmatprep.subr.mxu0 0.0
    %v5399 = vand.u32 %v80, 4294901760
    %5400 = vmatpush1.msra.mxu0 %v5399
    %5401 = vmatprep.subr.mxu0 0.0
    %v5402 = vand.u32 %v81, 4294901760
    %5403 = vmatpush1.msra.mxu0 %v5402
    %5404 = vmatprep.subr.mxu0 0.0
    %v5405 = vand.u32 %v82, 4294901760
    %5406 = vmatpush1.msra.mxu0 %v5405
    %5407 = vmatprep.subr.mxu0 0.0
    %v5408 = vand.u32 %v83, 4294901760
    %5409 = vmatpush1.msra.mxu0 %v5408
    %5410 = vmatprep.subr.mxu0 0.0
    %v5411 = vand.u32 %v84, 4294901760
    %5412 = vmatpush1.msra.mxu0 %v5411
    %5413 = vmatprep.subr.mxu0 0.0
    %v5414 = vand.u32 %v85, 4294901760
    %5415 = vmatpush1.msra.mxu0 %v5414
    %5416 = vmatprep.subr.mxu0 0.0
    %v5417 = vand.u32 %v86, 4294901760
    %5418 = vmatpush1.msra.mxu0 %v5417
    %5419 = vmatprep.subr.mxu0 0.0
    %5420 = vmatpush1.msra.mxu0 0.0
    %5421 = vmatprep.subr.mxu0 0.0
    %5422 = vmatpush1.msra.mxu0 0.0
    %5423 = vmatprep.subr.mxu0 0.0
    %5424 = vmatpush1.msra.mxu0 0.0
    %5425 = vmatprep.subr.mxu0 0.0
    %5426 = vmatpush1.msra.mxu0 0.0
    %5427 = vmatprep.subr.mxu0 0.0
    %5428 = vmatpush1.msra.mxu0 0.0
    %5429 = vmatprep.subr.mxu0 0.0
    %5430 = vmatpush1.msra.mxu0 0.0
    %5431 = vmatprep.subr.mxu0 0.0
    %5432 = vmatpush1.msra.mxu0 0.0
    %5433 = vmatprep.subr.mxu0 0.0
    %5434 = vmatpush1.msra.mxu0 0.0
    %5435 = vmatprep.subr.mxu0 0.0
    %5436 = vmatpush1.msra.mxu0 0.0
    %5437 = vmatprep.subr.mxu0 0.0
    %5438 = vmatpush1.msra.mxu0 0.0
    %5439 = vmatprep.subr.mxu0 0.0
    %5440 = vmatpush1.msra.mxu0 0.0
    %5441 = vmatprep.subr.mxu0 0.0
    %5442 = vmatpush1.msra.mxu0 0.0
    %5443 = vmatprep.subr.mxu0 0.0
    %5444 = vmatpush1.msra.mxu0 0.0
    %5445 = vmatprep.subr.mxu0 0.0
    %5446 = vmatpush1.msra.mxu0 0.0
    %5447 = vmatprep.subr.mxu0 0.0
    %5448 = vmatpush1.msra.mxu0 0.0
    %5449 = vmatprep.subr.mxu0 0.0
    %5450 = vmatpush1.msra.mxu0 0.0
    %5451 = vmatprep.mubr.f32.mxu0 0.0
    %v5452 = vand.u32 %v5346, 4294901760
    %v5453 = vsub.f32 %v5346, %v5452
    %v5454 = vand.u32 %v5453, 4294901760
    %v5455 = vsub.f32 %v5453, %v5454
    %v5456 = vand.u32 %v5455, 4294901760
    %5457 = vmatmul.mubr.f32.gmra.mrb[0].mxu0 %v5456
    %v5458 = vpop.f32.mrb[0].mxu0
    %v5459 = vadd.f32 %v92, %v5458
    %v5460 = vpop.f32.mrb[0].mxu0
    %5461 = vmatprep.mubr.f32.mxu0 0.0
    %v5462 = vand.u32 %v5347, 4294901760
    %v5463 = vsub.f32 %v5347, %v5462
    %v5464 = vand.u32 %v5463, 4294901760
    %v5465 = vsub.f32 %v5463, %v5464
    %v5466 = vand.u32 %v5465, 4294901760
    %5467 = vmatmul.mubr.f32.gmra.mrb[0].mxu0 %v5466
    %v5468 = vpop.f32.mrb[0].mxu0
    %v5469 = vadd.f32 %v92, %v5468
    %v5470 = vpop.f32.mrb[0].mxu0
    %5471 = vmatprep.mubr.f32.mxu0 0.0
    %v5472 = vand.u32 %v5348, 4294901760
    %v5473 = vsub.f32 %v5348, %v5472
    %v5474 = vand.u32 %v5473, 4294901760
    %v5475 = vsub.f32 %v5473, %v5474
    %v5476 = vand.u32 %v5475, 4294901760
    %5477 = vmatmul.mubr.f32.gmra.mrb[0].mxu0 %v5476
    %v5478 = vpop.f32.mrb[0].mxu0
    %v5479 = vadd.f32 %v92, %v5478
    %v5480 = vpop.f32.mrb[0].mxu0
    %5481 = vmatprep.mubr.f32.mxu0 0.0
    %v5482 = vand.u32 %v5349, 4294901760
    %v5483 = vsub.f32 %v5349, %v5482
    %v5484 = vand.u32 %v5483, 4294901760
    %v5485 = vsub.f32 %v5483, %v5484
    %v5486 = vand.u32 %v5485, 4294901760
    %5487 = vmatmul.mubr.f32.gmra.mrb[0].mxu0 %v5486
    %v5488 = vpop.f32.mrb[0].mxu0
    %v5489 = vadd.f32 %v92, %v5488
    %v5490 = vpop.f32.mrb[0].mxu0
    %5491 = vmatprep.mubr.f32.mxu0 0.0
    %v5492 = vand.u32 %v5350, 4294901760
    %v5493 = vsub.f32 %v5350, %v5492
    %v5494 = vand.u32 %v5493, 4294901760
    %v5495 = vsub.f32 %v5493, %v5494
    %v5496 = vand.u32 %v5495, 4294901760
    %5497 = vmatmul.mubr.f32.gmra.mrb[0].mxu0 %v5496
    %v5498 = vpop.f32.mrb[0].mxu0
    %v5499 = vadd.f32 %v92, %v5498
    %v5500 = vpop.f32.mrb[0].mxu0
    %5501 = vmatprep.mubr.f32.mxu0 0.0
    %v5502 = vand.u32 %v5351, 4294901760
    %v5503 = vsub.f32 %v5351, %v5502
    %v5504 = vand.u32 %v5503, 4294901760
    %v5505 = vsub.f32 %v5503, %v5504
    %v5506 = vand.u32 %v5505, 4294901760
    %5507 = vmatmul.mubr.f32.gmra.mrb[0].mxu0 %v5506
    %v5508 = vpop.f32.mrb[0].mxu0
    %v5509 = vadd.f32 %v92, %v5508
    %v5510 = vpop.f32.mrb[0].mxu0
    %5511 = vmatprep.mubr.f32.mxu0 0.0
    %v5512 = vand.u32 %v5352, 4294901760
    %v5513 = vsub.f32 %v5352, %v5512
    %v5514 = vand.u32 %v5513, 4294901760
    %v5515 = vsub.f32 %v5513, %v5514
    %v5516 = vand.u32 %v5515, 4294901760
    %5517 = vmatmul.mubr.f32.gmra.mrb[0].mxu0 %v5516
    %v5518 = vpop.f32.mrb[0].mxu0
    %v5519 = vadd.f32 %v92, %v5518
    %v5520 = vpop.f32.mrb[0].mxu0
    %5521 = vmatprep.mubr.f32.mxu0 0.0
    %v5522 = vand.u32 %v5353, 4294901760
    %v5523 = vsub.f32 %v5353, %v5522
    %v5524 = vand.u32 %v5523, 4294901760
    %v5525 = vsub.f32 %v5523, %v5524
    %v5526 = vand.u32 %v5525, 4294901760
    %5527 = vmatmul.mubr.f32.gmra.mrb[0].mxu0 %v5526
    %v5528 = vpop.f32.mrb[0].mxu0
    %v5529 = vadd.f32 %v92, %v5528
    %v5530 = vpop.f32.mrb[0].mxu0
    %5531 = vmatprep.mubr.f32.mxu0 0.0
    %v5532 = vand.u32 %v5354, 4294901760
    %v5533 = vsub.f32 %v5354, %v5532
    %v5534 = vand.u32 %v5533, 4294901760
    %v5535 = vsub.f32 %v5533, %v5534
    %v5536 = vand.u32 %v5535, 4294901760
    %5537 = vmatmul.mubr.f32.gmra.mrb[0].mxu0 %v5536
    %v5538 = vpop.f32.mrb[0].mxu0
    %v5539 = vadd.f32 %v92, %v5538
    %v5540 = vpop.f32.mrb[0].mxu0
    %5541 = vmatprep.mubr.f32.mxu0 0.0
    %v5542 = vand.u32 %v5355, 4294901760
    %v5543 = vsub.f32 %v5355, %v5542
    %v5544 = vand.u32 %v5543, 4294901760
    %v5545 = vsub.f32 %v5543, %v5544
    %v5546 = vand.u32 %v5545, 4294901760
    %5547 = vmatmul.mubr.f32.gmra.mrb[0].mxu0 %v5546
    %v5548 = vpop.f32.mrb[0].mxu0
    %v5549 = vadd.f32 %v92, %v5548
    %v5550 = vpop.f32.mrb[0].mxu0
    %5551 = vmatprep.mubr.f32.mxu0 0.0
    %v5552 = vand.u32 %v5356, 4294901760
    %v5553 = vsub.f32 %v5356, %v5552
    %v5554 = vand.u32 %v5553, 4294901760
    %v5555 = vsub.f32 %v5553, %v5554
    %v5556 = vand.u32 %v5555, 4294901760
    %5557 = vmatmul.mubr.f32.gmra.mrb[0].mxu0 %v5556
    %v5558 = vpop.f32.mrb[0].mxu0
    %v5559 = vadd.f32 %v92, %v5558
    %v5560 = vpop.f32.mrb[0].mxu0
    %5561 = vmatprep.mubr.f32.mxu0 0.0
    %v5562 = vand.u32 %v5357, 4294901760
    %v5563 = vsub.f32 %v5357, %v5562
    %v5564 = vand.u32 %v5563, 4294901760
    %v5565 = vsub.f32 %v5563, %v5564
    %v5566 = vand.u32 %v5565, 4294901760
    %5567 = vmatmul.mubr.f32.gmra.mrb[0].mxu0 %v5566
    %v5568 = vpop.f32.mrb[0].mxu0
    %v5569 = vadd.f32 %v92, %v5568
    %v5570 = vpop.f32.mrb[0].mxu0
    %5571 = vmatprep.mubr.f32.mxu0 0.0
    %v5572 = vand.u32 %v5358, 4294901760
    %v5573 = vsub.f32 %v5358, %v5572
    %v5574 = vand.u32 %v5573, 4294901760
    %v5575 = vsub.f32 %v5573, %v5574
    %v5576 = vand.u32 %v5575, 4294901760
    %5577 = vmatmul.mubr.f32.gmra.mrb[0].mxu0 %v5576
    %v5578 = vpop.f32.mrb[0].mxu0
    %v5579 = vadd.f32 %v92, %v5578
    %v5580 = vpop.f32.mrb[0].mxu0
    %5581 = vmatprep.mubr.f32.mxu0 0.0
    %v5582 = vand.u32 %v5359, 4294901760
    %v5583 = vsub.f32 %v5359, %v5582
    %v5584 = vand.u32 %v5583, 4294901760
    %v5585 = vsub.f32 %v5583, %v5584
    %v5586 = vand.u32 %v5585, 4294901760
    %5587 = vmatmul.mubr.f32.gmra.mrb[0].mxu0 %v5586
    %v5588 = vpop.f32.mrb[0].mxu0
    %v5589 = vadd.f32 %v92, %v5588
    %v5590 = vpop.f32.mrb[0].mxu0
    %5591 = vmatprep.mubr.f32.mxu0 0.0
    %v5592 = vand.u32 %v5360, 4294901760
    %v5593 = vsub.f32 %v5360, %v5592
    %v5594 = vand.u32 %v5593, 4294901760
    %v5595 = vsub.f32 %v5593, %v5594
    %v5596 = vand.u32 %v5595, 4294901760
    %5597 = vmatmul.mubr.f32.gmra.mrb[0].mxu0 %v5596
    %v5598 = vpop.f32.mrb[0].mxu0
    %v5599 = vadd.f32 %v92, %v5598
    %v5600 = vpop.f32.mrb[0].mxu0
    %5601 = vmatprep.mubr.f32.mxu0 0.0
    %v5602 = vand.u32 %v5361, 4294901760
    %v5603 = vsub.f32 %v5361, %v5602
    %v5604 = vand.u32 %v5603, 4294901760
    %v5605 = vsub.f32 %v5603, %v5604
    %v5606 = vand.u32 %v5605, 4294901760
    %5607 = vmatmul.mubr.f32.gmra.mrb[0].mxu0 %v5606
    %v5608 = vpop.f32.mrb[0].mxu0
    %v5609 = vadd.f32 %v92, %v5608
    %v5610 = vpop.f32.mrb[0].mxu0
    %5611 = vmatprep.mubr.f32.mxu0 0.0
    %v5612 = vand.u32 %v5362, 4294901760
    %v5613 = vsub.f32 %v5362, %v5612
    %v5614 = vand.u32 %v5613, 4294901760
    %v5615 = vsub.f32 %v5613, %v5614
    %v5616 = vand.u32 %v5615, 4294901760
    %5617 = vmatmul.mubr.f32.gmra.mrb[0].mxu0 %v5616
    %v5618 = vpop.f32.mrb[0].mxu0
    %v5619 = vadd.f32 %v92, %v5618
    %v5620 = vpop.f32.mrb[0].mxu0
    %5621 = vmatprep.mubr.f32.mxu0 0.0
    %v5622 = vand.u32 %v5363, 4294901760
    %v5623 = vsub.f32 %v5363, %v5622
    %v5624 = vand.u32 %v5623, 4294901760
    %v5625 = vsub.f32 %v5623, %v5624
    %v5626 = vand.u32 %v5625, 4294901760
    %5627 = vmatmul.mubr.f32.gmra.mrb[0].mxu0 %v5626
    %v5628 = vpop.f32.mrb[0].mxu0
    %v5629 = vadd.f32 %v92, %v5628
    %v5630 = vpop.f32.mrb[0].mxu0
    %5631 = vmatprep.mubr.f32.mxu0 0.0
    %v5632 = vand.u32 %v5364, 4294901760
    %v5633 = vsub.f32 %v5364, %v5632
    %v5634 = vand.u32 %v5633, 4294901760
    %v5635 = vsub.f32 %v5633, %v5634
    %v5636 = vand.u32 %v5635, 4294901760
    %5637 = vmatmul.mubr.f32.gmra.mrb[0].mxu0 %v5636
    %v5638 = vpop.f32.mrb[0].mxu0
    %v5639 = vadd.f32 %v92, %v5638
    %v5640 = vpop.f32.mrb[0].mxu0
    %5641 = vmatprep.mubr.f32.mxu0 0.0
    %v5642 = vand.u32 %v5365, 4294901760
    %v5643 = vsub.f32 %v5365, %v5642
    %v5644 = vand.u32 %v5643, 4294901760
    %v5645 = vsub.f32 %v5643, %v5644
    %v5646 = vand.u32 %v5645, 4294901760
    %5647 = vmatmul.mubr.f32.gmra.mrb[0].mxu0 %v5646
    %v5648 = vpop.f32.mrb[0].mxu0
    %v5649 = vadd.f32 %v92, %v5648
    %v5650 = vpop.f32.mrb[0].mxu0
    %5651 = vmatprep.mubr.f32.mxu0 0.0
    %v5652 = vand.u32 %v5366, 4294901760
    %v5653 = vsub.f32 %v5366, %v5652
    %v5654 = vand.u32 %v5653, 4294901760
    %v5655 = vsub.f32 %v5653, %v5654
    %v5656 = vand.u32 %v5655, 4294901760
    %5657 = vmatmul.mubr.f32.gmra.mrb[0].mxu0 %v5656
    %v5658 = vpop.f32.mrb[0].mxu0
    %v5659 = vadd.f32 %v92, %v5658
    %v5660 = vpop.f32.mrb[0].mxu0
    %5661 = vmatprep.mubr.f32.mxu0 0.0
    %v5662 = vand.u32 %v5367, 4294901760
    %v5663 = vsub.f32 %v5367, %v5662
    %v5664 = vand.u32 %v5663, 4294901760
    %v5665 = vsub.f32 %v5663, %v5664
    %v5666 = vand.u32 %v5665, 4294901760
    %5667 = vmatmul.mubr.f32.gmra.mrb[0].mxu0 %v5666
    %v5668 = vpop.f32.mrb[0].mxu0
    %v5669 = vadd.f32 %v92, %v5668
    %v5670 = vpop.f32.mrb[0].mxu0
    %5671 = vmatprep.mubr.f32.mxu0 0.0
    %v5672 = vand.u32 %v5368, 4294901760
    %v5673 = vsub.f32 %v5368, %v5672
    %v5674 = vand.u32 %v5673, 4294901760
    %v5675 = vsub.f32 %v5673, %v5674
    %v5676 = vand.u32 %v5675, 4294901760
    %5677 = vmatmul.mubr.f32.gmra.mrb[0].mxu0 %v5676
    %v5678 = vpop.f32.mrb[0].mxu0
    %v5679 = vadd.f32 %v92, %v5678
    %v5680 = vpop.f32.mrb[0].mxu0
    %5681 = vmatprep.mubr.f32.mxu0 0.0
    %v5682 = vand.u32 %v5369, 4294901760
    %v5683 = vsub.f32 %v5369, %v5682
    %v5684 = vand.u32 %v5683, 4294901760
    %v5685 = vsub.f32 %v5683, %v5684
    %v5686 = vand.u32 %v5685, 4294901760
    %5687 = vmatmul.mubr.f32.gmra.mrb[0].mxu0 %v5686
    %v5688 = vpop.f32.mrb[0].mxu0
    %v5689 = vadd.f32 %v92, %v5688
    %v5690 = vpop.f32.mrb[0].mxu0
    %5691 = vmatprep.mubr.f32.mxu0 0.0
    %v5692 = vand.u32 %v5370, 4294901760
    %v5693 = vsub.f32 %v5370, %v5692
    %v5694 = vand.u32 %v5693, 4294901760
    %v5695 = vsub.f32 %v5693, %v5694
    %v5696 = vand.u32 %v5695, 4294901760
    %5697 = vmatmul.mubr.f32.gmra.mrb[0].mxu0 %v5696
    %v5698 = vpop.f32.mrb[0].mxu0
    %v5699 = vadd.f32 %v92, %v5698
    %v5700 = vpop.f32.mrb[0].mxu0
    %5701 = vdwg.mxu0
    %5702 = vmatprep.subr.mxu0 0.0
    %v5703 = vand.u32 %v71, 4294901760
    %v5704 = vsub.f32 %v71, %v5703
    %v5705 = vand.u32 %v5704, 4294901760
    %v5706 = vsub.f32 %v5704, %v5705
    %v5707 = vand.u32 %v5706, 4294901760
    %5708 = vmatpush1.msra.mxu0 %v5707
    %5709 = vmatprep.subr.mxu0 0.0
    %v5710 = vand.u32 %v72, 4294901760
    %v5711 = vsub.f32 %v72, %v5710
    %v5712 = vand.u32 %v5711, 4294901760
    %v5713 = vsub.f32 %v5711, %v5712
    %v5714 = vand.u32 %v5713, 4294901760
    %5715 = vmatpush1.msra.mxu0 %v5714
    %5716 = vmatprep.subr.mxu0 0.0
    %v5717 = vand.u32 %v73, 4294901760
    %v5718 = vsub.f32 %v73, %v5717
    %v5719 = vand.u32 %v5718, 4294901760
    %v5720 = vsub.f32 %v5718, %v5719
    %v5721 = vand.u32 %v5720, 4294901760
    %5722 = vmatpush1.msra.mxu0 %v5721
    %5723 = vmatprep.subr.mxu0 0.0
    %v5724 = vand.u32 %v74, 4294901760
    %v5725 = vsub.f32 %v74, %v5724
    %v5726 = vand.u32 %v5725, 4294901760
    %v5727 = vsub.f32 %v5725, %v5726
    %v5728 = vand.u32 %v5727, 4294901760
    %5729 = vmatpush1.msra.mxu0 %v5728
    %5730 = vmatprep.subr.mxu0 0.0
    %v5731 = vand.u32 %v75, 4294901760
    %v5732 = vsub.f32 %v75, %v5731
    %v5733 = vand.u32 %v5732, 4294901760
    %v5734 = vsub.f32 %v5732, %v5733
    %v5735 = vand.u32 %v5734, 4294901760
    %5736 = vmatpush1.msra.mxu0 %v5735
    %5737 = vmatprep.subr.mxu0 0.0
    %v5738 = vand.u32 %v76, 4294901760
    %v5739 = vsub.f32 %v76, %v5738
    %v5740 = vand.u32 %v5739, 4294901760
    %v5741 = vsub.f32 %v5739, %v5740
    %v5742 = vand.u32 %v5741, 4294901760
    %5743 = vmatpush1.msra.mxu0 %v5742
    %5744 = vmatprep.subr.mxu0 0.0
    %v5745 = vand.u32 %v77, 4294901760
    %v5746 = vsub.f32 %v77, %v5745
    %v5747 = vand.u32 %v5746, 4294901760
    %v5748 = vsub.f32 %v5746, %v5747
    %v5749 = vand.u32 %v5748, 4294901760
    %5750 = vmatpush1.msra.mxu0 %v5749
    %5751 = vmatprep.subr.mxu0 0.0
    %v5752 = vand.u32 %v78, 4294901760
    %v5753 = vsub.f32 %v78, %v5752
    %v5754 = vand.u32 %v5753, 4294901760
    %v5755 = vsub.f32 %v5753, %v5754
    %v5756 = vand.u32 %v5755, 4294901760
    %5757 = vmatpush1.msra.mxu0 %v5756
    %5758 = vmatprep.subr.mxu0 0.0
    %v5759 = vand.u32 %v79, 4294901760
    %v5760 = vsub.f32 %v79, %v5759
    %v5761 = vand.u32 %v5760, 4294901760
    %v5762 = vsub.f32 %v5760, %v5761
    %v5763 = vand.u32 %v5762, 4294901760
    %5764 = vmatpush1.msra.mxu0 %v5763
    %5765 = vmatprep.subr.mxu0 0.0
    %v5766 = vand.u32 %v80, 4294901760
    %v5767 = vsub.f32 %v80, %v5766
    %v5768 = vand.u32 %v5767, 4294901760
    %v5769 = vsub.f32 %v5767, %v5768
    %v5770 = vand.u32 %v5769, 4294901760
    %5771 = vmatpush1.msra.mxu0 %v5770
    %5772 = vmatprep.subr.mxu0 0.0
    %v5773 = vand.u32 %v81, 4294901760
    %v5774 = vsub.f32 %v81, %v5773
    %v5775 = vand.u32 %v5774, 4294901760
    %v5776 = vsub.f32 %v5774, %v5775
    %v5777 = vand.u32 %v5776, 4294901760
    %5778 = vmatpush1.msra.mxu0 %v5777
    %5779 = vmatprep.subr.mxu0 0.0
    %v5780 = vand.u32 %v82, 4294901760
    %v5781 = vsub.f32 %v82, %v5780
    %v5782 = vand.u32 %v5781, 4294901760
    %v5783 = vsub.f32 %v5781, %v5782
    %v5784 = vand.u32 %v5783, 4294901760
    %5785 = vmatpush1.msra.mxu0 %v5784
    %5786 = vmatprep.subr.mxu0 0.0
    %v5787 = vand.u32 %v83, 4294901760
    %v5788 = vsub.f32 %v83, %v5787
    %v5789 = vand.u32 %v5788, 4294901760
    %v5790 = vsub.f32 %v5788, %v5789
    %v5791 = vand.u32 %v5790, 4294901760
    %5792 = vmatpush1.msra.mxu0 %v5791
    %5793 = vmatprep.subr.mxu0 0.0
    %v5794 = vand.u32 %v84, 4294901760
    %v5795 = vsub.f32 %v84, %v5794
    %v5796 = vand.u32 %v5795, 4294901760
    %v5797 = vsub.f32 %v5795, %v5796
    %v5798 = vand.u32 %v5797, 4294901760
    %5799 = vmatpush1.msra.mxu0 %v5798
    %5800 = vmatprep.subr.mxu0 0.0
    %v5801 = vand.u32 %v85, 4294901760
    %v5802 = vsub.f32 %v85, %v5801
    %v5803 = vand.u32 %v5802, 4294901760
    %v5804 = vsub.f32 %v5802, %v5803
    %v5805 = vand.u32 %v5804, 4294901760
    %5806 = vmatpush1.msra.mxu0 %v5805
    %5807 = vmatprep.subr.mxu0 0.0
    %v5808 = vand.u32 %v86, 4294901760
    %v5809 = vsub.f32 %v86, %v5808
    %v5810 = vand.u32 %v5809, 4294901760
    %v5811 = vsub.f32 %v5809, %v5810
    %v5812 = vand.u32 %v5811, 4294901760
    %5813 = vmatpush1.msra.mxu0 %v5812
    %5814 = vmatprep.subr.mxu0 0.0
    %5815 = vmatpush1.msra.mxu0 0.0
    %5816 = vmatprep.subr.mxu0 0.0
    %5817 = vmatpush1.msra.mxu0 0.0
    %5818 = vmatprep.subr.mxu0 0.0
    %5819 = vmatpush1.msra.mxu0 0.0
    %5820 = vmatprep.subr.mxu0 0.0
    %5821 = vmatpush1.msra.mxu0 0.0
    %5822 = vmatprep.subr.mxu0 0.0
    %5823 = vmatpush1.msra.mxu0 0.0
    %5824 = vmatprep.subr.mxu0 0.0
    %5825 = vmatpush1.msra.mxu0 0.0
    %5826 = vmatprep.subr.mxu0 0.0
    %5827 = vmatpush1.msra.mxu0 0.0
    %5828 = vmatprep.subr.mxu0 0.0
    %5829 = vmatpush1.msra.mxu0 0.0
    %5830 = vmatprep.subr.mxu0 0.0
    %5831 = vmatpush1.msra.mxu0 0.0
    %5832 = vmatprep.subr.mxu0 0.0
    %5833 = vmatpush1.msra.mxu0 0.0
    %5834 = vmatprep.subr.mxu0 0.0
    %5835 = vmatpush1.msra.mxu0 0.0
    %5836 = vmatprep.subr.mxu0 0.0
    %5837 = vmatpush1.msra.mxu0 0.0
    %5838 = vmatprep.subr.mxu0 0.0
    %5839 = vmatpush1.msra.mxu0 0.0
    %5840 = vmatprep.subr.mxu0 0.0
    %5841 = vmatpush1.msra.mxu0 0.0
    %5842 = vmatprep.subr.mxu0 0.0
    %5843 = vmatpush1.msra.mxu0 0.0
    %5844 = vmatprep.subr.mxu0 0.0
    %5845 = vmatpush1.msra.mxu0 0.0
    %5846 = vmatprep.mubr.f32.mxu0 0.0
    %v5847 = vand.u32 %v5346, 4294901760
    %5848 = vmatmul.mubr.f32.gmra.mrb[0].mxu0 %v5847
    %v5849 = vpop.f32.mrb[0].mxu0
    %v5850 = vadd.f32 %v5459, %v5849
    %v5851 = vpop.f32.mrb[0].mxu0
    %5852 = vmatprep.mubr.f32.mxu0 0.0
    %v5853 = vand.u32 %v5347, 4294901760
    %5854 = vmatmul.mubr.f32.gmra.mrb[0].mxu0 %v5853
    %v5855 = vpop.f32.mrb[0].mxu0
    %v5856 = vadd.f32 %v5469, %v5855
    %v5857 = vpop.f32.mrb[0].mxu0
    %5858 = vmatprep.mubr.f32.mxu0 0.0
    %v5859 = vand.u32 %v5348, 4294901760
    %5860 = vmatmul.mubr.f32.gmra.mrb[0].mxu0 %v5859
    %v5861 = vpop.f32.mrb[0].mxu0
    %v5862 = vadd.f32 %v5479, %v5861
    %v5863 = vpop.f32.mrb[0].mxu0
    %5864 = vmatprep.mubr.f32.mxu0 0.0
    %v5865 = vand.u32 %v5349, 4294901760
    %5866 = vmatmul.mubr.f32.gmra.mrb[0].mxu0 %v5865
    %v5867 = vpop.f32.mrb[0].mxu0
    %v5868 = vadd.f32 %v5489, %v5867
    %v5869 = vpop.f32.mrb[0].mxu0
    %5870 = vmatprep.mubr.f32.mxu0 0.0
    %v5871 = vand.u32 %v5350, 4294901760
    %5872 = vmatmul.mubr.f32.gmra.mrb[0].mxu0 %v5871
    %v5873 = vpop.f32.mrb[0].mxu0
    %v5874 = vadd.f32 %v5499, %v5873
    %v5875 = vpop.f32.mrb[0].mxu0
    %5876 = vmatprep.mubr.f32.mxu0 0.0
    %v5877 = vand.u32 %v5351, 4294901760
    %5878 = vmatmul.mubr.f32.gmra.mrb[0].mxu0 %v5877
    %v5879 = vpop.f32.mrb[0].mxu0
    %v5880 = vadd.f32 %v5509, %v5879
    %v5881 = vpop.f32.mrb[0].mxu0
    %5882 = vmatprep.mubr.f32.mxu0 0.0
    %v5883 = vand.u32 %v5352, 4294901760
    %5884 = vmatmul.mubr.f32.gmra.mrb[0].mxu0 %v5883
    %v5885 = vpop.f32.mrb[0].mxu0
    %v5886 = vadd.f32 %v5519, %v5885
    %v5887 = vpop.f32.mrb[0].mxu0
    %5888 = vmatprep.mubr.f32.mxu0 0.0
    %v5889 = vand.u32 %v5353, 4294901760
    %5890 = vmatmul.mubr.f32.gmra.mrb[0].mxu0 %v5889
    %v5891 = vpop.f32.mrb[0].mxu0
    %v5892 = vadd.f32 %v5529, %v5891
    %v5893 = vpop.f32.mrb[0].mxu0
    %5894 = vmatprep.mubr.f32.mxu0 0.0
    %v5895 = vand.u32 %v5354, 4294901760
    %5896 = vmatmul.mubr.f32.gmra.mrb[0].mxu0 %v5895
    %v5897 = vpop.f32.mrb[0].mxu0
    %v5898 = vadd.f32 %v5539, %v5897
    %v5899 = vpop.f32.mrb[0].mxu0
    %5900 = vmatprep.mubr.f32.mxu0 0.0
    %v5901 = vand.u32 %v5355, 4294901760
    %5902 = vmatmul.mubr.f32.gmra.mrb[0].mxu0 %v5901
    %v5903 = vpop.f32.mrb[0].mxu0
    %v5904 = vadd.f32 %v5549, %v5903
    %v5905 = vpop.f32.mrb[0].mxu0
    %5906 = vmatprep.mubr.f32.mxu0 0.0
    %v5907 = vand.u32 %v5356, 4294901760
    %5908 = vmatmul.mubr.f32.gmra.mrb[0].mxu0 %v5907
    %v5909 = vpop.f32.mrb[0].mxu0
    %v5910 = vadd.f32 %v5559, %v5909
    %v5911 = vpop.f32.mrb[0].mxu0
    %5912 = vmatprep.mubr.f32.mxu0 0.0
    %v5913 = vand.u32 %v5357, 4294901760
    %5914 = vmatmul.mubr.f32.gmra.mrb[0].mxu0 %v5913
    %v5915 = vpop.f32.mrb[0].mxu0
    %v5916 = vadd.f32 %v5569, %v5915
    %v5917 = vpop.f32.mrb[0].mxu0
    %5918 = vmatprep.mubr.f32.mxu0 0.0
    %v5919 = vand.u32 %v5358, 4294901760
    %5920 = vmatmul.mubr.f32.gmra.mrb[0].mxu0 %v5919
    %v5921 = vpop.f32.mrb[0].mxu0
    %v5922 = vadd.f32 %v5579, %v5921
    %v5923 = vpop.f32.mrb[0].mxu0
    %5924 = vmatprep.mubr.f32.mxu0 0.0
    %v5925 = vand.u32 %v5359, 4294901760
    %5926 = vmatmul.mubr.f32.gmra.mrb[0].mxu0 %v5925
    %v5927 = vpop.f32.mrb[0].mxu0
    %v5928 = vadd.f32 %v5589, %v5927
    %v5929 = vpop.f32.mrb[0].mxu0
    %5930 = vmatprep.mubr.f32.mxu0 0.0
    %v5931 = vand.u32 %v5360, 4294901760
    %5932 = vmatmul.mubr.f32.gmra.mrb[0].mxu0 %v5931
    %v5933 = vpop.f32.mrb[0].mxu0
    %v5934 = vadd.f32 %v5599, %v5933
    %v5935 = vpop.f32.mrb[0].mxu0
    %5936 = vmatprep.mubr.f32.mxu0 0.0
    %v5937 = vand.u32 %v5361, 4294901760
    %5938 = vmatmul.mubr.f32.gmra.mrb[0].mxu0 %v5937
    %v5939 = vpop.f32.mrb[0].mxu0
    %v5940 = vadd.f32 %v5609, %v5939
    %v5941 = vpop.f32.mrb[0].mxu0
    %5942 = vmatprep.mubr.f32.mxu0 0.0
    %v5943 = vand.u32 %v5362, 4294901760
    %5944 = vmatmul.mubr.f32.gmra.mrb[0].mxu0 %v5943
    %v5945 = vpop.f32.mrb[0].mxu0
    %v5946 = vadd.f32 %v5619, %v5945
    %v5947 = vpop.f32.mrb[0].mxu0
    %5948 = vmatprep.mubr.f32.mxu0 0.0
    %v5949 = vand.u32 %v5363, 4294901760
    %5950 = vmatmul.mubr.f32.gmra.mrb[0].mxu0 %v5949
    %v5951 = vpop.f32.mrb[0].mxu0
    %v5952 = vadd.f32 %v5629, %v5951
    %v5953 = vpop.f32.mrb[0].mxu0
    %5954 = vmatprep.mubr.f32.mxu0 0.0
    %v5955 = vand.u32 %v5364, 4294901760
    %5956 = vmatmul.mubr.f32.gmra.mrb[0].mxu0 %v5955
    %v5957 = vpop.f32.mrb[0].mxu0
    %v5958 = vadd.f32 %v5639, %v5957
    %v5959 = vpop.f32.mrb[0].mxu0
    %5960 = vmatprep.mubr.f32.mxu0 0.0
    %v5961 = vand.u32 %v5365, 4294901760
    %5962 = vmatmul.mubr.f32.gmra.mrb[0].mxu0 %v5961
    %v5963 = vpop.f32.mrb[0].mxu0
    %v5964 = vadd.f32 %v5649, %v5963
    %v5965 = vpop.f32.mrb[0].mxu0
    %5966 = vmatprep.mubr.f32.mxu0 0.0
    %v5967 = vand.u32 %v5366, 4294901760
    %5968 = vmatmul.mubr.f32.gmra.mrb[0].mxu0 %v5967
    %v5969 = vpop.f32.mrb[0].mxu0
    %v5970 = vadd.f32 %v5659, %v5969
    %v5971 = vpop.f32.mrb[0].mxu0
    %5972 = vmatprep.mubr.f32.mxu0 0.0
    %v5973 = vand.u32 %v5367, 4294901760
    %5974 = vmatmul.mubr.f32.gmra.mrb[0].mxu0 %v5973
    %v5975 = vpop.f32.mrb[0].mxu0
    %v5976 = vadd.f32 %v5669, %v5975
    %v5977 = vpop.f32.mrb[0].mxu0
    %5978 = vmatprep.mubr.f32.mxu0 0.0
    %v5979 = vand.u32 %v5368, 4294901760
    %5980 = vmatmul.mubr.f32.gmra.mrb[0].mxu0 %v5979
    %v5981 = vpop.f32.mrb[0].mxu0
    %v5982 = vadd.f32 %v5679, %v5981
    %v5983 = vpop.f32.mrb[0].mxu0
    %5984 = vmatprep.mubr.f32.mxu0 0.0
    %v5985 = vand.u32 %v5369, 4294901760
    %5986 = vmatmul.mubr.f32.gmra.mrb[0].mxu0 %v5985
    %v5987 = vpop.f32.mrb[0].mxu0
    %v5988 = vadd.f32 %v5689, %v5987
    %v5989 = vpop.f32.mrb[0].mxu0
    %5990 = vmatprep.mubr.f32.mxu0 0.0
    %v5991 = vand.u32 %v5370, 4294901760
    %5992 = vmatmul.mubr.f32.gmra.mrb[0].mxu0 %v5991
    %v5993 = vpop.f32.mrb[0].mxu0
    %v5994 = vadd.f32 %v5699, %v5993
    %v5995 = vpop.f32.mrb[0].mxu0
    %5996 = vdwg.mxu0
    %5997 = vmatprep.subr.mxu0 0.0
    %v5998 = vand.u32 %v71, 4294901760
    %v5999 = vsub.f32 %v71, %v5998
    %6000 = vmatpush1.msra.mxu0 %v5999
    %6001 = vmatprep.subr.mxu0 0.0
    %v6002 = vand.u32 %v72, 4294901760
    %v6003 = vsub.f32 %v72, %v6002
    %6004 = vmatpush1.msra.mxu0 %v6003
    %6005 = vmatprep.subr.mxu0 0.0
    %v6006 = vand.u32 %v73, 4294901760
    %v6007 = vsub.f32 %v73, %v6006
    %6008 = vmatpush1.msra.mxu0 %v6007
    %6009 = vmatprep.subr.mxu0 0.0
    %v6010 = vand.u32 %v74, 4294901760
    %v6011 = vsub.f32 %v74, %v6010
    %6012 = vmatpush1.msra.mxu0 %v6011
    %6013 = vmatprep.subr.mxu0 0.0
    %v6014 = vand.u32 %v75, 4294901760
    %v6015 = vsub.f32 %v75, %v6014
    %6016 = vmatpush1.msra.mxu0 %v6015
    %6017 = vmatprep.subr.mxu0 0.0
    %v6018 = vand.u32 %v76, 4294901760
    %v6019 = vsub.f32 %v76, %v6018
    %6020 = vmatpush1.msra.mxu0 %v6019
    %6021 = vmatprep.subr.mxu0 0.0
    %v6022 = vand.u32 %v77, 4294901760
    %v6023 = vsub.f32 %v77, %v6022
    %6024 = vmatpush1.msra.mxu0 %v6023
    %6025 = vmatprep.subr.mxu0 0.0
    %v6026 = vand.u32 %v78, 4294901760
    %v6027 = vsub.f32 %v78, %v6026
    %6028 = vmatpush1.msra.mxu0 %v6027
    %6029 = vmatprep.subr.mxu0 0.0
    %v6030 = vand.u32 %v79, 4294901760
    %v6031 = vsub.f32 %v79, %v6030
    %6032 = vmatpush1.msra.mxu0 %v6031
    %6033 = vmatprep.subr.mxu0 0.0
    %v6034 = vand.u32 %v80, 4294901760
    %v6035 = vsub.f32 %v80, %v6034
    %6036 = vmatpush1.msra.mxu0 %v6035
    %6037 = vmatprep.subr.mxu0 0.0
    %v6038 = vand.u32 %v81, 4294901760
    %v6039 = vsub.f32 %v81, %v6038
    %6040 = vmatpush1.msra.mxu0 %v6039
    %6041 = vmatprep.subr.mxu0 0.0
    %v6042 = vand.u32 %v82, 4294901760
    %v6043 = vsub.f32 %v82, %v6042
    %6044 = vmatpush1.msra.mxu0 %v6043
    %6045 = vmatprep.subr.mxu0 0.0
    %v6046 = vand.u32 %v83, 4294901760
    %v6047 = vsub.f32 %v83, %v6046
    %6048 = vmatpush1.msra.mxu0 %v6047
    %6049 = vmatprep.subr.mxu0 0.0
    %v6050 = vand.u32 %v84, 4294901760
    %v6051 = vsub.f32 %v84, %v6050
    %6052 = vmatpush1.msra.mxu0 %v6051
    %6053 = vmatprep.subr.mxu0 0.0
    %v6054 = vand.u32 %v85, 4294901760
    %v6055 = vsub.f32 %v85, %v6054
    %6056 = vmatpush1.msra.mxu0 %v6055
    %6057 = vmatprep.subr.mxu0 0.0
    %v6058 = vand.u32 %v86, 4294901760
    %v6059 = vsub.f32 %v86, %v6058
    %6060 = vmatpush1.msra.mxu0 %v6059
    %6061 = vmatprep.subr.mxu0 0.0
    %6062 = vmatpush1.msra.mxu0 0.0
    %6063 = vmatprep.subr.mxu0 0.0
    %6064 = vmatpush1.msra.mxu0 0.0
    %6065 = vmatprep.subr.mxu0 0.0
    %6066 = vmatpush1.msra.mxu0 0.0
    %6067 = vmatprep.subr.mxu0 0.0
    %6068 = vmatpush1.msra.mxu0 0.0
    %6069 = vmatprep.subr.mxu0 0.0
    %6070 = vmatpush1.msra.mxu0 0.0
    %6071 = vmatprep.subr.mxu0 0.0
    %6072 = vmatpush1.msra.mxu0 0.0
    %6073 = vmatprep.subr.mxu0 0.0
    %6074 = vmatpush1.msra.mxu0 0.0
    %6075 = vmatprep.subr.mxu0 0.0
    %6076 = vmatpush1.msra.mxu0 0.0
    %6077 = vmatprep.subr.mxu0 0.0
    %6078 = vmatpush1.msra.mxu0 0.0
    %6079 = vmatprep.subr.mxu0 0.0
    %6080 = vmatpush1.msra.mxu0 0.0
    %6081 = vmatprep.subr.mxu0 0.0
    %6082 = vmatpush1.msra.mxu0 0.0
    %6083 = vmatprep.subr.mxu0 0.0
    %6084 = vmatpush1.msra.mxu0 0.0
    %6085 = vmatprep.subr.mxu0 0.0
    %6086 = vmatpush1.msra.mxu0 0.0
    %6087 = vmatprep.subr.mxu0 0.0
    %6088 = vmatpush1.msra.mxu0 0.0
    %6089 = vmatprep.subr.mxu0 0.0
    %6090 = vmatpush1.msra.mxu0 0.0
    %6091 = vmatprep.subr.mxu0 0.0
    %6092 = vmatpush1.msra.mxu0 0.0
    %6093 = vmatprep.mubr.f32.mxu0 0.0
    %v6094 = vand.u32 %v5346, 4294901760
    %v6095 = vsub.f32 %v5346, %v6094
    %6096 = vmatmul.mubr.f32.gmra.mrb[0].mxu0 %v6095
    %v6097 = vpop.f32.mrb[0].mxu0
    %v6098 = vadd.f32 %v5850, %v6097
    %v6099 = vpop.f32.mrb[0].mxu0
    %6100 = vmatprep.mubr.f32.mxu0 0.0
    %v6101 = vand.u32 %v5347, 4294901760
    %v6102 = vsub.f32 %v5347, %v6101
    %6103 = vmatmul.mubr.f32.gmra.mrb[0].mxu0 %v6102
    %v6104 = vpop.f32.mrb[0].mxu0
    %v6105 = vadd.f32 %v5856, %v6104
    %v6106 = vpop.f32.mrb[0].mxu0
    %6107 = vmatprep.mubr.f32.mxu0 0.0
    %v6108 = vand.u32 %v5348, 4294901760
    %v6109 = vsub.f32 %v5348, %v6108
    %6110 = vmatmul.mubr.f32.gmra.mrb[0].mxu0 %v6109
    %v6111 = vpop.f32.mrb[0].mxu0
    %v6112 = vadd.f32 %v5862, %v6111
    %v6113 = vpop.f32.mrb[0].mxu0
    %6114 = vmatprep.mubr.f32.mxu0 0.0
    %v6115 = vand.u32 %v5349, 4294901760
    %v6116 = vsub.f32 %v5349, %v6115
    %6117 = vmatmul.mubr.f32.gmra.mrb[0].mxu0 %v6116
    %v6118 = vpop.f32.mrb[0].mxu0
    %v6119 = vadd.f32 %v5868, %v6118
    %v6120 = vpop.f32.mrb[0].mxu0
    %6121 = vmatprep.mubr.f32.mxu0 0.0
    %v6122 = vand.u32 %v5350, 4294901760
    %v6123 = vsub.f32 %v5350, %v6122
    %6124 = vmatmul.mubr.f32.gmra.mrb[0].mxu0 %v6123
    %v6125 = vpop.f32.mrb[0].mxu0
    %v6126 = vadd.f32 %v5874, %v6125
    %v6127 = vpop.f32.mrb[0].mxu0
    %6128 = vmatprep.mubr.f32.mxu0 0.0
    %v6129 = vand.u32 %v5351, 4294901760
    %v6130 = vsub.f32 %v5351, %v6129
    %6131 = vmatmul.mubr.f32.gmra.mrb[0].mxu0 %v6130
    %v6132 = vpop.f32.mrb[0].mxu0
    %v6133 = vadd.f32 %v5880, %v6132
    %v6134 = vpop.f32.mrb[0].mxu0
    %6135 = vmatprep.mubr.f32.mxu0 0.0
    %v6136 = vand.u32 %v5352, 4294901760
    %v6137 = vsub.f32 %v5352, %v6136
    %6138 = vmatmul.mubr.f32.gmra.mrb[0].mxu0 %v6137
    %v6139 = vpop.f32.mrb[0].mxu0
    %v6140 = vadd.f32 %v5886, %v6139
    %v6141 = vpop.f32.mrb[0].mxu0
    %6142 = vmatprep.mubr.f32.mxu0 0.0
    %v6143 = vand.u32 %v5353, 4294901760
    %v6144 = vsub.f32 %v5353, %v6143
    %6145 = vmatmul.mubr.f32.gmra.mrb[0].mxu0 %v6144
    %v6146 = vpop.f32.mrb[0].mxu0
    %v6147 = vadd.f32 %v5892, %v6146
    %v6148 = vpop.f32.mrb[0].mxu0
    %6149 = vmatprep.mubr.f32.mxu0 0.0
    %v6150 = vand.u32 %v5354, 4294901760
    %v6151 = vsub.f32 %v5354, %v6150
    %6152 = vmatmul.mubr.f32.gmra.mrb[0].mxu0 %v6151
    %v6153 = vpop.f32.mrb[0].mxu0
    %v6154 = vadd.f32 %v5898, %v6153
    %v6155 = vpop.f32.mrb[0].mxu0
    %6156 = vmatprep.mubr.f32.mxu0 0.0
    %v6157 = vand.u32 %v5355, 4294901760
    %v6158 = vsub.f32 %v5355, %v6157
    %6159 = vmatmul.mubr.f32.gmra.mrb[0].mxu0 %v6158
    %v6160 = vpop.f32.mrb[0].mxu0
    %v6161 = vadd.f32 %v5904, %v6160
    %v6162 = vpop.f32.mrb[0].mxu0
    %6163 = vmatprep.mubr.f32.mxu0 0.0
    %v6164 = vand.u32 %v5356, 4294901760
    %v6165 = vsub.f32 %v5356, %v6164
    %6166 = vmatmul.mubr.f32.gmra.mrb[0].mxu0 %v6165
    %v6167 = vpop.f32.mrb[0].mxu0
    %v6168 = vadd.f32 %v5910, %v6167
    %v6169 = vpop.f32.mrb[0].mxu0
    %6170 = vmatprep.mubr.f32.mxu0 0.0
    %v6171 = vand.u32 %v5357, 4294901760
    %v6172 = vsub.f32 %v5357, %v6171
    %6173 = vmatmul.mubr.f32.gmra.mrb[0].mxu0 %v6172
    %v6174 = vpop.f32.mrb[0].mxu0
    %v6175 = vadd.f32 %v5916, %v6174
    %v6176 = vpop.f32.mrb[0].mxu0
    %6177 = vmatprep.mubr.f32.mxu0 0.0
    %v6178 = vand.u32 %v5358, 4294901760
    %v6179 = vsub.f32 %v5358, %v6178
    %6180 = vmatmul.mubr.f32.gmra.mrb[0].mxu0 %v6179
    %v6181 = vpop.f32.mrb[0].mxu0
    %v6182 = vadd.f32 %v5922, %v6181
    %v6183 = vpop.f32.mrb[0].mxu0
    %6184 = vmatprep.mubr.f32.mxu0 0.0
    %v6185 = vand.u32 %v5359, 4294901760
    %v6186 = vsub.f32 %v5359, %v6185
    %6187 = vmatmul.mubr.f32.gmra.mrb[0].mxu0 %v6186
    %v6188 = vpop.f32.mrb[0].mxu0
    %v6189 = vadd.f32 %v5928, %v6188
    %v6190 = vpop.f32.mrb[0].mxu0
    %6191 = vmatprep.mubr.f32.mxu0 0.0
    %v6192 = vand.u32 %v5360, 4294901760
    %v6193 = vsub.f32 %v5360, %v6192
    %6194 = vmatmul.mubr.f32.gmra.mrb[0].mxu0 %v6193
    %v6195 = vpop.f32.mrb[0].mxu0
    %v6196 = vadd.f32 %v5934, %v6195
    %v6197 = vpop.f32.mrb[0].mxu0
    %6198 = vmatprep.mubr.f32.mxu0 0.0
    %v6199 = vand.u32 %v5361, 4294901760
    %v6200 = vsub.f32 %v5361, %v6199
    %6201 = vmatmul.mubr.f32.gmra.mrb[0].mxu0 %v6200
    %v6202 = vpop.f32.mrb[0].mxu0
    %v6203 = vadd.f32 %v5940, %v6202
    %v6204 = vpop.f32.mrb[0].mxu0
    %6205 = vmatprep.mubr.f32.mxu0 0.0
    %v6206 = vand.u32 %v5362, 4294901760
    %v6207 = vsub.f32 %v5362, %v6206
    %6208 = vmatmul.mubr.f32.gmra.mrb[0].mxu0 %v6207
    %v6209 = vpop.f32.mrb[0].mxu0
    %v6210 = vadd.f32 %v5946, %v6209
    %v6211 = vpop.f32.mrb[0].mxu0
    %6212 = vmatprep.mubr.f32.mxu0 0.0
    %v6213 = vand.u32 %v5363, 4294901760
    %v6214 = vsub.f32 %v5363, %v6213
    %6215 = vmatmul.mubr.f32.gmra.mrb[0].mxu0 %v6214
    %v6216 = vpop.f32.mrb[0].mxu0
    %v6217 = vadd.f32 %v5952, %v6216
    %v6218 = vpop.f32.mrb[0].mxu0
    %6219 = vmatprep.mubr.f32.mxu0 0.0
    %v6220 = vand.u32 %v5364, 4294901760
    %v6221 = vsub.f32 %v5364, %v6220
    %6222 = vmatmul.mubr.f32.gmra.mrb[0].mxu0 %v6221
    %v6223 = vpop.f32.mrb[0].mxu0
    %v6224 = vadd.f32 %v5958, %v6223
    %v6225 = vpop.f32.mrb[0].mxu0
    %6226 = vmatprep.mubr.f32.mxu0 0.0
    %v6227 = vand.u32 %v5365, 4294901760
    %v6228 = vsub.f32 %v5365, %v6227
    %6229 = vmatmul.mubr.f32.gmra.mrb[0].mxu0 %v6228
    %v6230 = vpop.f32.mrb[0].mxu0
    %v6231 = vadd.f32 %v5964, %v6230
    %v6232 = vpop.f32.mrb[0].mxu0
    %6233 = vmatprep.mubr.f32.mxu0 0.0
    %v6234 = vand.u32 %v5366, 4294901760
    %v6235 = vsub.f32 %v5366, %v6234
    %6236 = vmatmul.mubr.f32.gmra.mrb[0].mxu0 %v6235
    %v6237 = vpop.f32.mrb[0].mxu0
    %v6238 = vadd.f32 %v5970, %v6237
    %v6239 = vpop.f32.mrb[0].mxu0
    %6240 = vmatprep.mubr.f32.mxu0 0.0
    %v6241 = vand.u32 %v5367, 4294901760
    %v6242 = vsub.f32 %v5367, %v6241
    %6243 = vmatmul.mubr.f32.gmra.mrb[0].mxu0 %v6242
    %v6244 = vpop.f32.mrb[0].mxu0
    %v6245 = vadd.f32 %v5976, %v6244
    %v6246 = vpop.f32.mrb[0].mxu0
    %6247 = vmatprep.mubr.f32.mxu0 0.0
    %v6248 = vand.u32 %v5368, 4294901760
    %v6249 = vsub.f32 %v5368, %v6248
    %6250 = vmatmul.mubr.f32.gmra.mrb[0].mxu0 %v6249
    %v6251 = vpop.f32.mrb[0].mxu0
    %v6252 = vadd.f32 %v5982, %v6251
    %v6253 = vpop.f32.mrb[0].mxu0
    %6254 = vmatprep.mubr.f32.mxu0 0.0
    %v6255 = vand.u32 %v5369, 4294901760
    %v6256 = vsub.f32 %v5369, %v6255
    %6257 = vmatmul.mubr.f32.gmra.mrb[0].mxu0 %v6256
    %v6258 = vpop.f32.mrb[0].mxu0
    %v6259 = vadd.f32 %v5988, %v6258
    %v6260 = vpop.f32.mrb[0].mxu0
    %6261 = vmatprep.mubr.f32.mxu0 0.0
    %v6262 = vand.u32 %v5370, 4294901760
    %v6263 = vsub.f32 %v5370, %v6262
    %6264 = vmatmul.mubr.f32.gmra.mrb[0].mxu0 %v6263
    %v6265 = vpop.f32.mrb[0].mxu0
    %v6266 = vadd.f32 %v5994, %v6265
    %v6267 = vpop.f32.mrb[0].mxu0
    %6268 = vdwg.mxu0
    %6269 = vmatprep.subr.mxu0 0.0
    %v6270 = vand.u32 %v71, 4294901760
    %6271 = vmatpush1.msra.mxu0 %v6270
    %6272 = vmatprep.subr.mxu0 0.0
    %v6273 = vand.u32 %v72, 4294901760
    %6274 = vmatpush1.msra.mxu0 %v6273
    %6275 = vmatprep.subr.mxu0 0.0
    %v6276 = vand.u32 %v73, 4294901760
    %6277 = vmatpush1.msra.mxu0 %v6276
    %6278 = vmatprep.subr.mxu0 0.0
    %v6279 = vand.u32 %v74, 4294901760
    %6280 = vmatpush1.msra.mxu0 %v6279
    %6281 = vmatprep.subr.mxu0 0.0
    %v6282 = vand.u32 %v75, 4294901760
    %6283 = vmatpush1.msra.mxu0 %v6282
    %6284 = vmatprep.subr.mxu0 0.0
    %v6285 = vand.u32 %v76, 4294901760
    %6286 = vmatpush1.msra.mxu0 %v6285
    %6287 = vmatprep.subr.mxu0 0.0
    %v6288 = vand.u32 %v77, 4294901760
    %6289 = vmatpush1.msra.mxu0 %v6288
    %6290 = vmatprep.subr.mxu0 0.0
    %v6291 = vand.u32 %v78, 4294901760
    %6292 = vmatpush1.msra.mxu0 %v6291
    %6293 = vmatprep.subr.mxu0 0.0
    %v6294 = vand.u32 %v79, 4294901760
    %6295 = vmatpush1.msra.mxu0 %v6294
    %6296 = vmatprep.subr.mxu0 0.0
    %v6297 = vand.u32 %v80, 4294901760
    %6298 = vmatpush1.msra.mxu0 %v6297
    %6299 = vmatprep.subr.mxu0 0.0
    %v6300 = vand.u32 %v81, 4294901760
    %6301 = vmatpush1.msra.mxu0 %v6300
    %6302 = vmatprep.subr.mxu0 0.0
    %v6303 = vand.u32 %v82, 4294901760
    %6304 = vmatpush1.msra.mxu0 %v6303
    %6305 = vmatprep.subr.mxu0 0.0
    %v6306 = vand.u32 %v83, 4294901760
    %6307 = vmatpush1.msra.mxu0 %v6306
    %6308 = vmatprep.subr.mxu0 0.0
    %v6309 = vand.u32 %v84, 4294901760
    %6310 = vmatpush1.msra.mxu0 %v6309
    %6311 = vmatprep.subr.mxu0 0.0
    %v6312 = vand.u32 %v85, 4294901760
    %6313 = vmatpush1.msra.mxu0 %v6312
    %6314 = vmatprep.subr.mxu0 0.0
    %v6315 = vand.u32 %v86, 4294901760
    %6316 = vmatpush1.msra.mxu0 %v6315
    %6317 = vmatprep.subr.mxu0 0.0
    %6318 = vmatpush1.msra.mxu0 0.0
    %6319 = vmatprep.subr.mxu0 0.0
    %6320 = vmatpush1.msra.mxu0 0.0
    %6321 = vmatprep.subr.mxu0 0.0
    %6322 = vmatpush1.msra.mxu0 0.0
    %6323 = vmatprep.subr.mxu0 0.0
    %6324 = vmatpush1.msra.mxu0 0.0
    %6325 = vmatprep.subr.mxu0 0.0
    %6326 = vmatpush1.msra.mxu0 0.0
    %6327 = vmatprep.subr.mxu0 0.0
    %6328 = vmatpush1.msra.mxu0 0.0
    %6329 = vmatprep.subr.mxu0 0.0
    %6330 = vmatpush1.msra.mxu0 0.0
    %6331 = vmatprep.subr.mxu0 0.0
    %6332 = vmatpush1.msra.mxu0 0.0
    %6333 = vmatprep.subr.mxu0 0.0
    %6334 = vmatpush1.msra.mxu0 0.0
    %6335 = vmatprep.subr.mxu0 0.0
    %6336 = vmatpush1.msra.mxu0 0.0
    %6337 = vmatprep.subr.mxu0 0.0
    %6338 = vmatpush1.msra.mxu0 0.0
    %6339 = vmatprep.subr.mxu0 0.0
    %6340 = vmatpush1.msra.mxu0 0.0
    %6341 = vmatprep.subr.mxu0 0.0
    %6342 = vmatpush1.msra.mxu0 0.0
    %6343 = vmatprep.subr.mxu0 0.0
    %6344 = vmatpush1.msra.mxu0 0.0
    %6345 = vmatprep.subr.mxu0 0.0
    %6346 = vmatpush1.msra.mxu0 0.0
    %6347 = vmatprep.subr.mxu0 0.0
    %6348 = vmatpush1.msra.mxu0 0.0
    %6349 = vmatprep.mubr.f32.mxu0 0.0
    %v6350 = vand.u32 %v5346, 4294901760
    %v6351 = vsub.f32 %v5346, %v6350
    %v6352 = vand.u32 %v6351, 4294901760
    %6353 = vmatmul.mubr.f32.gmra.mrb[0].mxu0 %v6352
    %v6354 = vpop.f32.mrb[0].mxu0
    %v6355 = vadd.f32 %v6098, %v6354
    %v6356 = vpop.f32.mrb[0].mxu0
    %6357 = vmatprep.mubr.f32.mxu0 0.0
    %v6358 = vand.u32 %v5347, 4294901760
    %v6359 = vsub.f32 %v5347, %v6358
    %v6360 = vand.u32 %v6359, 4294901760
    %6361 = vmatmul.mubr.f32.gmra.mrb[0].mxu0 %v6360
    %v6362 = vpop.f32.mrb[0].mxu0
    %v6363 = vadd.f32 %v6105, %v6362
    %v6364 = vpop.f32.mrb[0].mxu0
    %6365 = vmatprep.mubr.f32.mxu0 0.0
    %v6366 = vand.u32 %v5348, 4294901760
    %v6367 = vsub.f32 %v5348, %v6366
    %v6368 = vand.u32 %v6367, 4294901760
    %6369 = vmatmul.mubr.f32.gmra.mrb[0].mxu0 %v6368
    %v6370 = vpop.f32.mrb[0].mxu0
    %v6371 = vadd.f32 %v6112, %v6370
    %v6372 = vpop.f32.mrb[0].mxu0
    %6373 = vmatprep.mubr.f32.mxu0 0.0
    %v6374 = vand.u32 %v5349, 4294901760
    %v6375 = vsub.f32 %v5349, %v6374
    %v6376 = vand.u32 %v6375, 4294901760
    %6377 = vmatmul.mubr.f32.gmra.mrb[0].mxu0 %v6376
    %v6378 = vpop.f32.mrb[0].mxu0
    %v6379 = vadd.f32 %v6119, %v6378
    %v6380 = vpop.f32.mrb[0].mxu0
    %6381 = vmatprep.mubr.f32.mxu0 0.0
    %v6382 = vand.u32 %v5350, 4294901760
    %v6383 = vsub.f32 %v5350, %v6382
    %v6384 = vand.u32 %v6383, 4294901760
    %6385 = vmatmul.mubr.f32.gmra.mrb[0].mxu0 %v6384
    %v6386 = vpop.f32.mrb[0].mxu0
    %v6387 = vadd.f32 %v6126, %v6386
    %v6388 = vpop.f32.mrb[0].mxu0
    %6389 = vmatprep.mubr.f32.mxu0 0.0
    %v6390 = vand.u32 %v5351, 4294901760
    %v6391 = vsub.f32 %v5351, %v6390
    %v6392 = vand.u32 %v6391, 4294901760
    %6393 = vmatmul.mubr.f32.gmra.mrb[0].mxu0 %v6392
    %v6394 = vpop.f32.mrb[0].mxu0
    %v6395 = vadd.f32 %v6133, %v6394
    %v6396 = vpop.f32.mrb[0].mxu0
    %6397 = vmatprep.mubr.f32.mxu0 0.0
    %v6398 = vand.u32 %v5352, 4294901760
    %v6399 = vsub.f32 %v5352, %v6398
    %v6400 = vand.u32 %v6399, 4294901760
    %6401 = vmatmul.mubr.f32.gmra.mrb[0].mxu0 %v6400
    %v6402 = vpop.f32.mrb[0].mxu0
    %v6403 = vadd.f32 %v6140, %v6402
    %v6404 = vpop.f32.mrb[0].mxu0
    %6405 = vmatprep.mubr.f32.mxu0 0.0
    %v6406 = vand.u32 %v5353, 4294901760
    %v6407 = vsub.f32 %v5353, %v6406
    %v6408 = vand.u32 %v6407, 4294901760
    %6409 = vmatmul.mubr.f32.gmra.mrb[0].mxu0 %v6408
    %v6410 = vpop.f32.mrb[0].mxu0
    %v6411 = vadd.f32 %v6147, %v6410
    %v6412 = vpop.f32.mrb[0].mxu0
    %6413 = vmatprep.mubr.f32.mxu0 0.0
    %v6414 = vand.u32 %v5354, 4294901760
    %v6415 = vsub.f32 %v5354, %v6414
    %v6416 = vand.u32 %v6415, 4294901760
    %6417 = vmatmul.mubr.f32.gmra.mrb[0].mxu0 %v6416
    %v6418 = vpop.f32.mrb[0].mxu0
    %v6419 = vadd.f32 %v6154, %v6418
    %v6420 = vpop.f32.mrb[0].mxu0
    %6421 = vmatprep.mubr.f32.mxu0 0.0
    %v6422 = vand.u32 %v5355, 4294901760
    %v6423 = vsub.f32 %v5355, %v6422
    %v6424 = vand.u32 %v6423, 4294901760
    %6425 = vmatmul.mubr.f32.gmra.mrb[0].mxu0 %v6424
    %v6426 = vpop.f32.mrb[0].mxu0
    %v6427 = vadd.f32 %v6161, %v6426
    %v6428 = vpop.f32.mrb[0].mxu0
    %6429 = vmatprep.mubr.f32.mxu0 0.0
    %v6430 = vand.u32 %v5356, 4294901760
    %v6431 = vsub.f32 %v5356, %v6430
    %v6432 = vand.u32 %v6431, 4294901760
    %6433 = vmatmul.mubr.f32.gmra.mrb[0].mxu0 %v6432
    %v6434 = vpop.f32.mrb[0].mxu0
    %v6435 = vadd.f32 %v6168, %v6434
    %v6436 = vpop.f32.mrb[0].mxu0
    %6437 = vmatprep.mubr.f32.mxu0 0.0
    %v6438 = vand.u32 %v5357, 4294901760
    %v6439 = vsub.f32 %v5357, %v6438
    %v6440 = vand.u32 %v6439, 4294901760
    %6441 = vmatmul.mubr.f32.gmra.mrb[0].mxu0 %v6440
    %v6442 = vpop.f32.mrb[0].mxu0
    %v6443 = vadd.f32 %v6175, %v6442
    %v6444 = vpop.f32.mrb[0].mxu0
    %6445 = vmatprep.mubr.f32.mxu0 0.0
    %v6446 = vand.u32 %v5358, 4294901760
    %v6447 = vsub.f32 %v5358, %v6446
    %v6448 = vand.u32 %v6447, 4294901760
    %6449 = vmatmul.mubr.f32.gmra.mrb[0].mxu0 %v6448
    %v6450 = vpop.f32.mrb[0].mxu0
    %v6451 = vadd.f32 %v6182, %v6450
    %v6452 = vpop.f32.mrb[0].mxu0
    %6453 = vmatprep.mubr.f32.mxu0 0.0
    %v6454 = vand.u32 %v5359, 4294901760
    %v6455 = vsub.f32 %v5359, %v6454
    %v6456 = vand.u32 %v6455, 4294901760
    %6457 = vmatmul.mubr.f32.gmra.mrb[0].mxu0 %v6456
    %v6458 = vpop.f32.mrb[0].mxu0
    %v6459 = vadd.f32 %v6189, %v6458
    %v6460 = vpop.f32.mrb[0].mxu0
    %6461 = vmatprep.mubr.f32.mxu0 0.0
    %v6462 = vand.u32 %v5360, 4294901760
    %v6463 = vsub.f32 %v5360, %v6462
    %v6464 = vand.u32 %v6463, 4294901760
    %6465 = vmatmul.mubr.f32.gmra.mrb[0].mxu0 %v6464
    %v6466 = vpop.f32.mrb[0].mxu0
    %v6467 = vadd.f32 %v6196, %v6466
    %v6468 = vpop.f32.mrb[0].mxu0
    %6469 = vmatprep.mubr.f32.mxu0 0.0
    %v6470 = vand.u32 %v5361, 4294901760
    %v6471 = vsub.f32 %v5361, %v6470
    %v6472 = vand.u32 %v6471, 4294901760
    %6473 = vmatmul.mubr.f32.gmra.mrb[0].mxu0 %v6472
    %v6474 = vpop.f32.mrb[0].mxu0
    %v6475 = vadd.f32 %v6203, %v6474
    %v6476 = vpop.f32.mrb[0].mxu0
    %6477 = vmatprep.mubr.f32.mxu0 0.0
    %v6478 = vand.u32 %v5362, 4294901760
    %v6479 = vsub.f32 %v5362, %v6478
    %v6480 = vand.u32 %v6479, 4294901760
    %6481 = vmatmul.mubr.f32.gmra.mrb[0].mxu0 %v6480
    %v6482 = vpop.f32.mrb[0].mxu0
    %v6483 = vadd.f32 %v6210, %v6482
    %v6484 = vpop.f32.mrb[0].mxu0
    %6485 = vmatprep.mubr.f32.mxu0 0.0
    %v6486 = vand.u32 %v5363, 4294901760
    %v6487 = vsub.f32 %v5363, %v6486
    %v6488 = vand.u32 %v6487, 4294901760
    %6489 = vmatmul.mubr.f32.gmra.mrb[0].mxu0 %v6488
    %v6490 = vpop.f32.mrb[0].mxu0
    %v6491 = vadd.f32 %v6217, %v6490
    %v6492 = vpop.f32.mrb[0].mxu0
    %6493 = vmatprep.mubr.f32.mxu0 0.0
    %v6494 = vand.u32 %v5364, 4294901760
    %v6495 = vsub.f32 %v5364, %v6494
    %v6496 = vand.u32 %v6495, 4294901760
    %6497 = vmatmul.mubr.f32.gmra.mrb[0].mxu0 %v6496
    %v6498 = vpop.f32.mrb[0].mxu0
    %v6499 = vadd.f32 %v6224, %v6498
    %v6500 = vpop.f32.mrb[0].mxu0
    %6501 = vmatprep.mubr.f32.mxu0 0.0
    %v6502 = vand.u32 %v5365, 4294901760
    %v6503 = vsub.f32 %v5365, %v6502
    %v6504 = vand.u32 %v6503, 4294901760
    %6505 = vmatmul.mubr.f32.gmra.mrb[0].mxu0 %v6504
    %v6506 = vpop.f32.mrb[0].mxu0
    %v6507 = vadd.f32 %v6231, %v6506
    %v6508 = vpop.f32.mrb[0].mxu0
    %6509 = vmatprep.mubr.f32.mxu0 0.0
    %v6510 = vand.u32 %v5366, 4294901760
    %v6511 = vsub.f32 %v5366, %v6510
    %v6512 = vand.u32 %v6511, 4294901760
    %6513 = vmatmul.mubr.f32.gmra.mrb[0].mxu0 %v6512
    %v6514 = vpop.f32.mrb[0].mxu0
    %v6515 = vadd.f32 %v6238, %v6514
    %v6516 = vpop.f32.mrb[0].mxu0
    %6517 = vmatprep.mubr.f32.mxu0 0.0
    %v6518 = vand.u32 %v5367, 4294901760
    %v6519 = vsub.f32 %v5367, %v6518
    %v6520 = vand.u32 %v6519, 4294901760
    %6521 = vmatmul.mubr.f32.gmra.mrb[0].mxu0 %v6520
    %v6522 = vpop.f32.mrb[0].mxu0
    %v6523 = vadd.f32 %v6245, %v6522
    %v6524 = vpop.f32.mrb[0].mxu0
    %6525 = vmatprep.mubr.f32.mxu0 0.0
    %v6526 = vand.u32 %v5368, 4294901760
    %v6527 = vsub.f32 %v5368, %v6526
    %v6528 = vand.u32 %v6527, 4294901760
    %6529 = vmatmul.mubr.f32.gmra.mrb[0].mxu0 %v6528
    %v6530 = vpop.f32.mrb[0].mxu0
    %v6531 = vadd.f32 %v6252, %v6530
    %v6532 = vpop.f32.mrb[0].mxu0
    %6533 = vmatprep.mubr.f32.mxu0 0.0
    %v6534 = vand.u32 %v5369, 4294901760
    %v6535 = vsub.f32 %v5369, %v6534
    %v6536 = vand.u32 %v6535, 4294901760
    %6537 = vmatmul.mubr.f32.gmra.mrb[0].mxu0 %v6536
    %v6538 = vpop.f32.mrb[0].mxu0
    %v6539 = vadd.f32 %v6259, %v6538
    %v6540 = vpop.f32.mrb[0].mxu0
    %6541 = vmatprep.mubr.f32.mxu0 0.0
    %v6542 = vand.u32 %v5370, 4294901760
    %v6543 = vsub.f32 %v5370, %v6542
    %v6544 = vand.u32 %v6543, 4294901760
    %6545 = vmatmul.mubr.f32.gmra.mrb[0].mxu0 %v6544
    %v6546 = vpop.f32.mrb[0].mxu0
    %v6547 = vadd.f32 %v6266, %v6546
    %v6548 = vpop.f32.mrb[0].mxu0
    %6549 = vdwg.mxu0
    %6550 = vmatprep.subr.mxu0 0.0
    %v6551 = vand.u32 %v71, 4294901760
    %v6552 = vsub.f32 %v71, %v6551
    %v6553 = vand.u32 %v6552, 4294901760
    %6554 = vmatpush1.msra.mxu0 %v6553
    %6555 = vmatprep.subr.mxu0 0.0
    %v6556 = vand.u32 %v72, 4294901760
    %v6557 = vsub.f32 %v72, %v6556
    %v6558 = vand.u32 %v6557, 4294901760
    %6559 = vmatpush1.msra.mxu0 %v6558
    %6560 = vmatprep.subr.mxu0 0.0
    %v6561 = vand.u32 %v73, 4294901760
    %v6562 = vsub.f32 %v73, %v6561
    %v6563 = vand.u32 %v6562, 4294901760
    %6564 = vmatpush1.msra.mxu0 %v6563
    %6565 = vmatprep.subr.mxu0 0.0
    %v6566 = vand.u32 %v74, 4294901760
    %v6567 = vsub.f32 %v74, %v6566
    %v6568 = vand.u32 %v6567, 4294901760
    %6569 = vmatpush1.msra.mxu0 %v6568
    %6570 = vmatprep.subr.mxu0 0.0
    %v6571 = vand.u32 %v75, 4294901760
    %v6572 = vsub.f32 %v75, %v6571
    %v6573 = vand.u32 %v6572, 4294901760
    %6574 = vmatpush1.msra.mxu0 %v6573
    %6575 = vmatprep.subr.mxu0 0.0
    %v6576 = vand.u32 %v76, 4294901760
    %v6577 = vsub.f32 %v76, %v6576
    %v6578 = vand.u32 %v6577, 4294901760
    %6579 = vmatpush1.msra.mxu0 %v6578
    %6580 = vmatprep.subr.mxu0 0.0
    %v6581 = vand.u32 %v77, 4294901760
    %v6582 = vsub.f32 %v77, %v6581
    %v6583 = vand.u32 %v6582, 4294901760
    %6584 = vmatpush1.msra.mxu0 %v6583
    %6585 = vmatprep.subr.mxu0 0.0
    %v6586 = vand.u32 %v78, 4294901760
    %v6587 = vsub.f32 %v78, %v6586
    %v6588 = vand.u32 %v6587, 4294901760
    %6589 = vmatpush1.msra.mxu0 %v6588
    %6590 = vmatprep.subr.mxu0 0.0
    %v6591 = vand.u32 %v79, 4294901760
    %v6592 = vsub.f32 %v79, %v6591
    %v6593 = vand.u32 %v6592, 4294901760
    %6594 = vmatpush1.msra.mxu0 %v6593
    %6595 = vmatprep.subr.mxu0 0.0
    %v6596 = vand.u32 %v80, 4294901760
    %v6597 = vsub.f32 %v80, %v6596
    %v6598 = vand.u32 %v6597, 4294901760
    %6599 = vmatpush1.msra.mxu0 %v6598
    %6600 = vmatprep.subr.mxu0 0.0
    %v6601 = vand.u32 %v81, 4294901760
    %v6602 = vsub.f32 %v81, %v6601
    %v6603 = vand.u32 %v6602, 4294901760
    %6604 = vmatpush1.msra.mxu0 %v6603
    %6605 = vmatprep.subr.mxu0 0.0
    %v6606 = vand.u32 %v82, 4294901760
    %v6607 = vsub.f32 %v82, %v6606
    %v6608 = vand.u32 %v6607, 4294901760
    %6609 = vmatpush1.msra.mxu0 %v6608
    %6610 = vmatprep.subr.mxu0 0.0
    %v6611 = vand.u32 %v83, 4294901760
    %v6612 = vsub.f32 %v83, %v6611
    %v6613 = vand.u32 %v6612, 4294901760
    %6614 = vmatpush1.msra.mxu0 %v6613
    %6615 = vmatprep.subr.mxu0 0.0
    %v6616 = vand.u32 %v84, 4294901760
    %v6617 = vsub.f32 %v84, %v6616
    %v6618 = vand.u32 %v6617, 4294901760
    %6619 = vmatpush1.msra.mxu0 %v6618
    %6620 = vmatprep.subr.mxu0 0.0
    %v6621 = vand.u32 %v85, 4294901760
    %v6622 = vsub.f32 %v85, %v6621
    %v6623 = vand.u32 %v6622, 4294901760
    %6624 = vmatpush1.msra.mxu0 %v6623
    %6625 = vmatprep.subr.mxu0 0.0
    %v6626 = vand.u32 %v86, 4294901760
    %v6627 = vsub.f32 %v86, %v6626
    %v6628 = vand.u32 %v6627, 4294901760
    %6629 = vmatpush1.msra.mxu0 %v6628
    %6630 = vmatprep.subr.mxu0 0.0
    %6631 = vmatpush1.msra.mxu0 0.0
    %6632 = vmatprep.subr.mxu0 0.0
    %6633 = vmatpush1.msra.mxu0 0.0
    %6634 = vmatprep.subr.mxu0 0.0
    %6635 = vmatpush1.msra.mxu0 0.0
    %6636 = vmatprep.subr.mxu0 0.0
    %6637 = vmatpush1.msra.mxu0 0.0
    %6638 = vmatprep.subr.mxu0 0.0
    %6639 = vmatpush1.msra.mxu0 0.0
    %6640 = vmatprep.subr.mxu0 0.0
    %6641 = vmatpush1.msra.mxu0 0.0
    %6642 = vmatprep.subr.mxu0 0.0
    %6643 = vmatpush1.msra.mxu0 0.0
    %6644 = vmatprep.subr.mxu0 0.0
    %6645 = vmatpush1.msra.mxu0 0.0
    %6646 = vmatprep.subr.mxu0 0.0
    %6647 = vmatpush1.msra.mxu0 0.0
    %6648 = vmatprep.subr.mxu0 0.0
    %6649 = vmatpush1.msra.mxu0 0.0
    %6650 = vmatprep.subr.mxu0 0.0
    %6651 = vmatpush1.msra.mxu0 0.0
    %6652 = vmatprep.subr.mxu0 0.0
    %6653 = vmatpush1.msra.mxu0 0.0
    %6654 = vmatprep.subr.mxu0 0.0
    %6655 = vmatpush1.msra.mxu0 0.0
    %6656 = vmatprep.subr.mxu0 0.0
    %6657 = vmatpush1.msra.mxu0 0.0
    %6658 = vmatprep.subr.mxu0 0.0
    %6659 = vmatpush1.msra.mxu0 0.0
    %6660 = vmatprep.subr.mxu0 0.0
    %6661 = vmatpush1.msra.mxu0 0.0
    %6662 = vmatprep.mubr.f32.mxu0 0.0
    %v6663 = vand.u32 %v5346, 4294901760
    %6664 = vmatmul.mubr.f32.gmra.mrb[0].mxu0 %v6663
    %v6665 = vpop.f32.mrb[0].mxu0
    %v6666 = vadd.f32 %v6355, %v6665
    %v6667 = vpop.f32.mrb[0].mxu0
    %6668 = vmatprep.mubr.f32.mxu0 0.0
    %v6669 = vand.u32 %v5347, 4294901760
    %6670 = vmatmul.mubr.f32.gmra.mrb[0].mxu0 %v6669
    %v6671 = vpop.f32.mrb[0].mxu0
    %v6672 = vadd.f32 %v6363, %v6671
    %v6673 = vpop.f32.mrb[0].mxu0
    %6674 = vmatprep.mubr.f32.mxu0 0.0
    %v6675 = vand.u32 %v5348, 4294901760
    %6676 = vmatmul.mubr.f32.gmra.mrb[0].mxu0 %v6675
    %v6677 = vpop.f32.mrb[0].mxu0
    %v6678 = vadd.f32 %v6371, %v6677
    %v6679 = vpop.f32.mrb[0].mxu0
    %6680 = vmatprep.mubr.f32.mxu0 0.0
    %v6681 = vand.u32 %v5349, 4294901760
    %6682 = vmatmul.mubr.f32.gmra.mrb[0].mxu0 %v6681
    %v6683 = vpop.f32.mrb[0].mxu0
    %v6684 = vadd.f32 %v6379, %v6683
    %v6685 = vpop.f32.mrb[0].mxu0
    %6686 = vmatprep.mubr.f32.mxu0 0.0
    %v6687 = vand.u32 %v5350, 4294901760
    %6688 = vmatmul.mubr.f32.gmra.mrb[0].mxu0 %v6687
    %v6689 = vpop.f32.mrb[0].mxu0
    %v6690 = vadd.f32 %v6387, %v6689
    %v6691 = vpop.f32.mrb[0].mxu0
    %6692 = vmatprep.mubr.f32.mxu0 0.0
    %v6693 = vand.u32 %v5351, 4294901760
    %6694 = vmatmul.mubr.f32.gmra.mrb[0].mxu0 %v6693
    %v6695 = vpop.f32.mrb[0].mxu0
    %v6696 = vadd.f32 %v6395, %v6695
    %v6697 = vpop.f32.mrb[0].mxu0
    %6698 = vmatprep.mubr.f32.mxu0 0.0
    %v6699 = vand.u32 %v5352, 4294901760
    %6700 = vmatmul.mubr.f32.gmra.mrb[0].mxu0 %v6699
    %v6701 = vpop.f32.mrb[0].mxu0
    %v6702 = vadd.f32 %v6403, %v6701
    %v6703 = vpop.f32.mrb[0].mxu0
    %6704 = vmatprep.mubr.f32.mxu0 0.0
    %v6705 = vand.u32 %v5353, 4294901760
    %6706 = vmatmul.mubr.f32.gmra.mrb[0].mxu0 %v6705
    %v6707 = vpop.f32.mrb[0].mxu0
    %v6708 = vadd.f32 %v6411, %v6707
    %v6709 = vpop.f32.mrb[0].mxu0
    %6710 = vmatprep.mubr.f32.mxu0 0.0
    %v6711 = vand.u32 %v5354, 4294901760
    %6712 = vmatmul.mubr.f32.gmra.mrb[0].mxu0 %v6711
    %v6713 = vpop.f32.mrb[0].mxu0
    %v6714 = vadd.f32 %v6419, %v6713
    %v6715 = vpop.f32.mrb[0].mxu0
    %6716 = vmatprep.mubr.f32.mxu0 0.0
    %v6717 = vand.u32 %v5355, 4294901760
    %6718 = vmatmul.mubr.f32.gmra.mrb[0].mxu0 %v6717
    %v6719 = vpop.f32.mrb[0].mxu0
    %v6720 = vadd.f32 %v6427, %v6719
    %v6721 = vpop.f32.mrb[0].mxu0
    %6722 = vmatprep.mubr.f32.mxu0 0.0
    %v6723 = vand.u32 %v5356, 4294901760
    %6724 = vmatmul.mubr.f32.gmra.mrb[0].mxu0 %v6723
    %v6725 = vpop.f32.mrb[0].mxu0
    %v6726 = vadd.f32 %v6435, %v6725
    %v6727 = vpop.f32.mrb[0].mxu0
    %6728 = vmatprep.mubr.f32.mxu0 0.0
    %v6729 = vand.u32 %v5357, 4294901760
    %6730 = vmatmul.mubr.f32.gmra.mrb[0].mxu0 %v6729
    %v6731 = vpop.f32.mrb[0].mxu0
    %v6732 = vadd.f32 %v6443, %v6731
    %v6733 = vpop.f32.mrb[0].mxu0
    %6734 = vmatprep.mubr.f32.mxu0 0.0
    %v6735 = vand.u32 %v5358, 4294901760
    %6736 = vmatmul.mubr.f32.gmra.mrb[0].mxu0 %v6735
    %v6737 = vpop.f32.mrb[0].mxu0
    %v6738 = vadd.f32 %v6451, %v6737
    %v6739 = vpop.f32.mrb[0].mxu0
    %6740 = vmatprep.mubr.f32.mxu0 0.0
    %v6741 = vand.u32 %v5359, 4294901760
    %6742 = vmatmul.mubr.f32.gmra.mrb[0].mxu0 %v6741
    %v6743 = vpop.f32.mrb[0].mxu0
    %v6744 = vadd.f32 %v6459, %v6743
    %v6745 = vpop.f32.mrb[0].mxu0
    %6746 = vmatprep.mubr.f32.mxu0 0.0
    %v6747 = vand.u32 %v5360, 4294901760
    %6748 = vmatmul.mubr.f32.gmra.mrb[0].mxu0 %v6747
    %v6749 = vpop.f32.mrb[0].mxu0
    %v6750 = vadd.f32 %v6467, %v6749
    %v6751 = vpop.f32.mrb[0].mxu0
    %6752 = vmatprep.mubr.f32.mxu0 0.0
    %v6753 = vand.u32 %v5361, 4294901760
    %6754 = vmatmul.mubr.f32.gmra.mrb[0].mxu0 %v6753
    %v6755 = vpop.f32.mrb[0].mxu0
    %v6756 = vadd.f32 %v6475, %v6755
    %v6757 = vpop.f32.mrb[0].mxu0
    %6758 = vmatprep.mubr.f32.mxu0 0.0
    %v6759 = vand.u32 %v5362, 4294901760
    %6760 = vmatmul.mubr.f32.gmra.mrb[0].mxu0 %v6759
    %v6761 = vpop.f32.mrb[0].mxu0
    %v6762 = vadd.f32 %v6483, %v6761
    %v6763 = vpop.f32.mrb[0].mxu0
    %6764 = vmatprep.mubr.f32.mxu0 0.0
    %v6765 = vand.u32 %v5363, 4294901760
    %6766 = vmatmul.mubr.f32.gmra.mrb[0].mxu0 %v6765
    %v6767 = vpop.f32.mrb[0].mxu0
    %v6768 = vadd.f32 %v6491, %v6767
    %v6769 = vpop.f32.mrb[0].mxu0
    %6770 = vmatprep.mubr.f32.mxu0 0.0
    %v6771 = vand.u32 %v5364, 4294901760
    %6772 = vmatmul.mubr.f32.gmra.mrb[0].mxu0 %v6771
    %v6773 = vpop.f32.mrb[0].mxu0
    %v6774 = vadd.f32 %v6499, %v6773
    %v6775 = vpop.f32.mrb[0].mxu0
    %6776 = vmatprep.mubr.f32.mxu0 0.0
    %v6777 = vand.u32 %v5365, 4294901760
    %6778 = vmatmul.mubr.f32.gmra.mrb[0].mxu0 %v6777
    %v6779 = vpop.f32.mrb[0].mxu0
    %v6780 = vadd.f32 %v6507, %v6779
    %v6781 = vpop.f32.mrb[0].mxu0
    %6782 = vmatprep.mubr.f32.mxu0 0.0
    %v6783 = vand.u32 %v5366, 4294901760
    %6784 = vmatmul.mubr.f32.gmra.mrb[0].mxu0 %v6783
    %v6785 = vpop.f32.mrb[0].mxu0
    %v6786 = vadd.f32 %v6515, %v6785
    %v6787 = vpop.f32.mrb[0].mxu0
    %6788 = vmatprep.mubr.f32.mxu0 0.0
    %v6789 = vand.u32 %v5367, 4294901760
    %6790 = vmatmul.mubr.f32.gmra.mrb[0].mxu0 %v6789
    %v6791 = vpop.f32.mrb[0].mxu0
    %v6792 = vadd.f32 %v6523, %v6791
    %v6793 = vpop.f32.mrb[0].mxu0
    %6794 = vmatprep.mubr.f32.mxu0 0.0
    %v6795 = vand.u32 %v5368, 4294901760
    %6796 = vmatmul.mubr.f32.gmra.mrb[0].mxu0 %v6795
    %v6797 = vpop.f32.mrb[0].mxu0
    %v6798 = vadd.f32 %v6531, %v6797
    %v6799 = vpop.f32.mrb[0].mxu0
    %6800 = vmatprep.mubr.f32.mxu0 0.0
    %v6801 = vand.u32 %v5369, 4294901760
    %6802 = vmatmul.mubr.f32.gmra.mrb[0].mxu0 %v6801
    %v6803 = vpop.f32.mrb[0].mxu0
    %v6804 = vadd.f32 %v6539, %v6803
    %v6805 = vpop.f32.mrb[0].mxu0
    %6806 = vmatprep.mubr.f32.mxu0 0.0
    %v6807 = vand.u32 %v5370, 4294901760
    %6808 = vmatmul.mubr.f32.gmra.mrb[0].mxu0 %v6807
    %v6809 = vpop.f32.mrb[0].mxu0
    %v6810 = vadd.f32 %v6547, %v6809
    %v6811 = vpop.f32.mrb[0].mxu0
    %6812 = vdwg.mxu0
    %6813 = vmatprep.subr.mxu0 0.0
    %v6814 = vand.u32 %v71, 4294901760
    %6815 = vmatpush1.msra.mxu0 %v6814
    %6816 = vmatprep.subr.mxu0 0.0
    %v6817 = vand.u32 %v72, 4294901760
    %6818 = vmatpush1.msra.mxu0 %v6817
    %6819 = vmatprep.subr.mxu0 0.0
    %v6820 = vand.u32 %v73, 4294901760
    %6821 = vmatpush1.msra.mxu0 %v6820
    %6822 = vmatprep.subr.mxu0 0.0
    %v6823 = vand.u32 %v74, 4294901760
    %6824 = vmatpush1.msra.mxu0 %v6823
    %6825 = vmatprep.subr.mxu0 0.0
    %v6826 = vand.u32 %v75, 4294901760
    %6827 = vmatpush1.msra.mxu0 %v6826
    %6828 = vmatprep.subr.mxu0 0.0
    %v6829 = vand.u32 %v76, 4294901760
    %6830 = vmatpush1.msra.mxu0 %v6829
    %6831 = vmatprep.subr.mxu0 0.0
    %v6832 = vand.u32 %v77, 4294901760
    %6833 = vmatpush1.msra.mxu0 %v6832
    %6834 = vmatprep.subr.mxu0 0.0
    %v6835 = vand.u32 %v78, 4294901760
    %6836 = vmatpush1.msra.mxu0 %v6835
    %6837 = vmatprep.subr.mxu0 0.0
    %v6838 = vand.u32 %v79, 4294901760
    %6839 = vmatpush1.msra.mxu0 %v6838
    %6840 = vmatprep.subr.mxu0 0.0
    %v6841 = vand.u32 %v80, 4294901760
    %6842 = vmatpush1.msra.mxu0 %v6841
    %6843 = vmatprep.subr.mxu0 0.0
    %v6844 = vand.u32 %v81, 4294901760
    %6845 = vmatpush1.msra.mxu0 %v6844
    %6846 = vmatprep.subr.mxu0 0.0
    %v6847 = vand.u32 %v82, 4294901760
    %6848 = vmatpush1.msra.mxu0 %v6847
    %6849 = vmatprep.subr.mxu0 0.0
    %v6850 = vand.u32 %v83, 4294901760
    %6851 = vmatpush1.msra.mxu0 %v6850
    %6852 = vmatprep.subr.mxu0 0.0
    %v6853 = vand.u32 %v84, 4294901760
    %6854 = vmatpush1.msra.mxu0 %v6853
    %6855 = vmatprep.subr.mxu0 0.0
    %v6856 = vand.u32 %v85, 4294901760
    %6857 = vmatpush1.msra.mxu0 %v6856
    %6858 = vmatprep.subr.mxu0 0.0
    %v6859 = vand.u32 %v86, 4294901760
    %6860 = vmatpush1.msra.mxu0 %v6859
    %6861 = vmatprep.subr.mxu0 0.0
    %6862 = vmatpush1.msra.mxu0 0.0
    %6863 = vmatprep.subr.mxu0 0.0
    %6864 = vmatpush1.msra.mxu0 0.0
    %6865 = vmatprep.subr.mxu0 0.0
    %6866 = vmatpush1.msra.mxu0 0.0
    %6867 = vmatprep.subr.mxu0 0.0
    %6868 = vmatpush1.msra.mxu0 0.0
    %6869 = vmatprep.subr.mxu0 0.0
    %6870 = vmatpush1.msra.mxu0 0.0
    %6871 = vmatprep.subr.mxu0 0.0
    %6872 = vmatpush1.msra.mxu0 0.0
    %6873 = vmatprep.subr.mxu0 0.0
    %6874 = vmatpush1.msra.mxu0 0.0
    %6875 = vmatprep.subr.mxu0 0.0
    %6876 = vmatpush1.msra.mxu0 0.0
    %6877 = vmatprep.subr.mxu0 0.0
    %6878 = vmatpush1.msra.mxu0 0.0
    %6879 = vmatprep.subr.mxu0 0.0
    %6880 = vmatpush1.msra.mxu0 0.0
    %6881 = vmatprep.subr.mxu0 0.0
    %6882 = vmatpush1.msra.mxu0 0.0
    %6883 = vmatprep.subr.mxu0 0.0
    %6884 = vmatpush1.msra.mxu0 0.0
    %6885 = vmatprep.subr.mxu0 0.0
    %6886 = vmatpush1.msra.mxu0 0.0
    %6887 = vmatprep.subr.mxu0 0.0
    %6888 = vmatpush1.msra.mxu0 0.0
    %6889 = vmatprep.subr.mxu0 0.0
    %6890 = vmatpush1.msra.mxu0 0.0
    %6891 = vmatprep.subr.mxu0 0.0
    %6892 = vmatpush1.msra.mxu0 0.0
    %6893 = vmatprep.mubr.f32.mxu0 0.0
    %v6894 = vand.u32 %v5346, 4294901760
    %6895 = vmatmul.mubr.f32.gmra.mrb[0].mxu0 %v6894
    %v6896 = vpop.f32.mrb[0].mxu0
    %v6897 = vadd.f32 %v6666, %v6896
    %v6898 = vpop.f32.mrb[0].mxu0
    %6899 = vmatprep.mubr.f32.mxu0 0.0
    %v6900 = vand.u32 %v5347, 4294901760
    %6901 = vmatmul.mubr.f32.gmra.mrb[0].mxu0 %v6900
    %v6902 = vpop.f32.mrb[0].mxu0
    %v6903 = vadd.f32 %v6672, %v6902
    %v6904 = vpop.f32.mrb[0].mxu0
    %6905 = vmatprep.mubr.f32.mxu0 0.0
    %v6906 = vand.u32 %v5348, 4294901760
    %6907 = vmatmul.mubr.f32.gmra.mrb[0].mxu0 %v6906
    %v6908 = vpop.f32.mrb[0].mxu0
    %v6909 = vadd.f32 %v6678, %v6908
    %v6910 = vpop.f32.mrb[0].mxu0
    %6911 = vmatprep.mubr.f32.mxu0 0.0
    %v6912 = vand.u32 %v5349, 4294901760
    %6913 = vmatmul.mubr.f32.gmra.mrb[0].mxu0 %v6912
    %v6914 = vpop.f32.mrb[0].mxu0
    %v6915 = vadd.f32 %v6684, %v6914
    %v6916 = vpop.f32.mrb[0].mxu0
    %6917 = vmatprep.mubr.f32.mxu0 0.0
    %v6918 = vand.u32 %v5350, 4294901760
    %6919 = vmatmul.mubr.f32.gmra.mrb[0].mxu0 %v6918
    %v6920 = vpop.f32.mrb[0].mxu0
    %v6921 = vadd.f32 %v6690, %v6920
    %v6922 = vpop.f32.mrb[0].mxu0
    %6923 = vmatprep.mubr.f32.mxu0 0.0
    %v6924 = vand.u32 %v5351, 4294901760
    %6925 = vmatmul.mubr.f32.gmra.mrb[0].mxu0 %v6924
    %v6926 = vpop.f32.mrb[0].mxu0
    %v6927 = vadd.f32 %v6696, %v6926
    %v6928 = vpop.f32.mrb[0].mxu0
    %6929 = vmatprep.mubr.f32.mxu0 0.0
    %v6930 = vand.u32 %v5352, 4294901760
    %6931 = vmatmul.mubr.f32.gmra.mrb[0].mxu0 %v6930
    %v6932 = vpop.f32.mrb[0].mxu0
    %v6933 = vadd.f32 %v6702, %v6932
    %v6934 = vpop.f32.mrb[0].mxu0
    %6935 = vmatprep.mubr.f32.mxu0 0.0
    %v6936 = vand.u32 %v5353, 4294901760
    %6937 = vmatmul.mubr.f32.gmra.mrb[0].mxu0 %v6936
    %v6938 = vpop.f32.mrb[0].mxu0
    %v6939 = vadd.f32 %v6708, %v6938
    %v6940 = vpop.f32.mrb[0].mxu0
    %6941 = vmatprep.mubr.f32.mxu0 0.0
    %v6942 = vand.u32 %v5354, 4294901760
    %6943 = vmatmul.mubr.f32.gmra.mrb[0].mxu0 %v6942
    %v6944 = vpop.f32.mrb[0].mxu0
    %v6945 = vadd.f32 %v6714, %v6944
    %v6946 = vpop.f32.mrb[0].mxu0
    %6947 = vmatprep.mubr.f32.mxu0 0.0
    %v6948 = vand.u32 %v5355, 4294901760
    %6949 = vmatmul.mubr.f32.gmra.mrb[0].mxu0 %v6948
    %v6950 = vpop.f32.mrb[0].mxu0
    %v6951 = vadd.f32 %v6720, %v6950
    %v6952 = vpop.f32.mrb[0].mxu0
    %6953 = vmatprep.mubr.f32.mxu0 0.0
    %v6954 = vand.u32 %v5356, 4294901760
    %6955 = vmatmul.mubr.f32.gmra.mrb[0].mxu0 %v6954
    %v6956 = vpop.f32.mrb[0].mxu0
    %v6957 = vadd.f32 %v6726, %v6956
    %v6958 = vpop.f32.mrb[0].mxu0
    %6959 = vmatprep.mubr.f32.mxu0 0.0
    %v6960 = vand.u32 %v5357, 4294901760
    %6961 = vmatmul.mubr.f32.gmra.mrb[0].mxu0 %v6960
    %v6962 = vpop.f32.mrb[0].mxu0
    %v6963 = vadd.f32 %v6732, %v6962
    %v6964 = vpop.f32.mrb[0].mxu0
    %6965 = vmatprep.mubr.f32.mxu0 0.0
    %v6966 = vand.u32 %v5358, 4294901760
    %6967 = vmatmul.mubr.f32.gmra.mrb[0].mxu0 %v6966
    %v6968 = vpop.f32.mrb[0].mxu0
    %v6969 = vadd.f32 %v6738, %v6968
    %v6970 = vpop.f32.mrb[0].mxu0
    %6971 = vmatprep.mubr.f32.mxu0 0.0
    %v6972 = vand.u32 %v5359, 4294901760
    %6973 = vmatmul.mubr.f32.gmra.mrb[0].mxu0 %v6972
    %v6974 = vpop.f32.mrb[0].mxu0
    %v6975 = vadd.f32 %v6744, %v6974
    %v6976 = vpop.f32.mrb[0].mxu0
    %6977 = vmatprep.mubr.f32.mxu0 0.0
    %v6978 = vand.u32 %v5360, 4294901760
    %6979 = vmatmul.mubr.f32.gmra.mrb[0].mxu0 %v6978
    %v6980 = vpop.f32.mrb[0].mxu0
    %v6981 = vadd.f32 %v6750, %v6980
    %v6982 = vpop.f32.mrb[0].mxu0
    %6983 = vmatprep.mubr.f32.mxu0 0.0
    %v6984 = vand.u32 %v5361, 4294901760
    %6985 = vmatmul.mubr.f32.gmra.mrb[0].mxu0 %v6984
    %v6986 = vpop.f32.mrb[0].mxu0
    %v6987 = vadd.f32 %v6756, %v6986
    %v6988 = vpop.f32.mrb[0].mxu0
    %6989 = vmatprep.mubr.f32.mxu0 0.0
    %v6990 = vand.u32 %v5362, 4294901760
    %6991 = vmatmul.mubr.f32.gmra.mrb[0].mxu0 %v6990
    %v6992 = vpop.f32.mrb[0].mxu0
    %v6993 = vadd.f32 %v6762, %v6992
    %v6994 = vpop.f32.mrb[0].mxu0
    %6995 = vmatprep.mubr.f32.mxu0 0.0
    %v6996 = vand.u32 %v5363, 4294901760
    %6997 = vmatmul.mubr.f32.gmra.mrb[0].mxu0 %v6996
    %v6998 = vpop.f32.mrb[0].mxu0
    %v6999 = vadd.f32 %v6768, %v6998
    %v7000 = vpop.f32.mrb[0].mxu0
    %7001 = vmatprep.mubr.f32.mxu0 0.0
    %v7002 = vand.u32 %v5364, 4294901760
    %7003 = vmatmul.mubr.f32.gmra.mrb[0].mxu0 %v7002
    %v7004 = vpop.f32.mrb[0].mxu0
    %v7005 = vadd.f32 %v6774, %v7004
    %v7006 = vpop.f32.mrb[0].mxu0
    %7007 = vmatprep.mubr.f32.mxu0 0.0
    %v7008 = vand.u32 %v5365, 4294901760
    %7009 = vmatmul.mubr.f32.gmra.mrb[0].mxu0 %v7008
    %v7010 = vpop.f32.mrb[0].mxu0
    %v7011 = vadd.f32 %v6780, %v7010
    %v7012 = vpop.f32.mrb[0].mxu0
    %7013 = vmatprep.mubr.f32.mxu0 0.0
    %v7014 = vand.u32 %v5366, 4294901760
    %7015 = vmatmul.mubr.f32.gmra.mrb[0].mxu0 %v7014
    %v7016 = vpop.f32.mrb[0].mxu0
    %v7017 = vadd.f32 %v6786, %v7016
    %v7018 = vpop.f32.mrb[0].mxu0
    %7019 = vmatprep.mubr.f32.mxu0 0.0
    %v7020 = vand.u32 %v5367, 4294901760
    %7021 = vmatmul.mubr.f32.gmra.mrb[0].mxu0 %v7020
    %v7022 = vpop.f32.mrb[0].mxu0
    %v7023 = vadd.f32 %v6792, %v7022
    %v7024 = vpop.f32.mrb[0].mxu0
    %7025 = vmatprep.mubr.f32.mxu0 0.0
    %v7026 = vand.u32 %v5368, 4294901760
    %7027 = vmatmul.mubr.f32.gmra.mrb[0].mxu0 %v7026
    %v7028 = vpop.f32.mrb[0].mxu0
    %v7029 = vadd.f32 %v6798, %v7028
    %v7030 = vpop.f32.mrb[0].mxu0
    %7031 = vmatprep.mubr.f32.mxu0 0.0
    %v7032 = vand.u32 %v5369, 4294901760
    %7033 = vmatmul.mubr.f32.gmra.mrb[0].mxu0 %v7032
    %v7034 = vpop.f32.mrb[0].mxu0
    %v7035 = vadd.f32 %v6804, %v7034
    %v7036 = vpop.f32.mrb[0].mxu0
    %7037 = vmatprep.mubr.f32.mxu0 0.0
    %v7038 = vand.u32 %v5370, 4294901760
    %7039 = vmatmul.mubr.f32.gmra.mrb[0].mxu0 %v7038
    %v7040 = vpop.f32.mrb[0].mxu0
    %v7041 = vadd.f32 %v6810, %v7040
    %v7042 = vpop.f32.mrb[0].mxu0
    %7043 = vdwg.mxu0
    %v7044 = vtanh.pop %v6897
    %v7045 = vtanh.pop %v6903
    %v7046 = vtanh.pop %v6909
    %v7047 = vtanh.pop %v6915
    %v7048 = vtanh.pop %v6921
    %v7049 = vtanh.pop %v6927
    %v7050 = vtanh.pop %v6933
    %v7051 = vtanh.pop %v6939
    %v7052 = vtanh.pop %v6945
    %v7053 = vtanh.pop %v6951
    %v7054 = vtanh.pop %v6957
    %v7055 = vtanh.pop %v6963
    %v7056 = vtanh.pop %v6969
    %v7057 = vtanh.pop %v6975
    %v7058 = vtanh.pop %v6981
    %v7059 = vtanh.pop %v6987
    %v7060 = vtanh.pop %v6993
    %v7061 = vtanh.pop %v6999
    %v7062 = vtanh.pop %v7005
    %v7063 = vtanh.pop %v7011
    %v7064 = vtanh.pop %v7017
    %v7065 = vtanh.pop %v7023
    %v7066 = vtanh.pop %v7029
    %v7067 = vtanh.pop %v7035
    %v7068 = vtanh.pop %v7041
    %v7069 = vadd.f32 %v7044, %v7045
    %v7070 = vadd.f32 %v7069, %v7046
    %v7071 = vadd.f32 %v7070, %v7047
    %v7072 = vadd.f32 %v7071, %v7048
    %v7073 = vadd.f32 %v7072, %v7049
    %v7074 = vadd.f32 %v7073, %v7050
    %v7075 = vadd.f32 %v7074, %v7051
    %v7076 = vadd.f32 %v7075, %v7052
    %v7077 = vadd.f32 %v7076, %v7053
    %v7078 = vadd.f32 %v7077, %v7054
    %v7079 = vadd.f32 %v7078, %v7055
    %v7080 = vadd.f32 %v7079, %v7056
    %v7081 = vadd.f32 %v7080, %v7057
    %v7082 = vadd.f32 %v7081, %v7058
    %v7083 = vadd.f32 %v7082, %v7059
    %v7084 = vadd.f32 %v7083, %v7060
    %v7085 = vadd.f32 %v7084, %v7061
    %v7086 = vadd.f32 %v7085, %v7062
    %v7087 = vadd.f32 %v7086, %v7063
    %v7088 = vadd.f32 %v7087, %v7064
    %v7089 = vadd.f32 %v7088, %v7065
    %v7090 = vadd.f32 %v7089, %v7066
    %v7091 = vadd.f32 %v7090, %v7067
    %v7092 = vadd.f32 %v7091, %v7068
    %v7093 = vrot.slane %v7092, 4
    %v7094 = vadd.f32 %v7092, %v7093
    %v7095 = vrot.slane %v7094, 2
    %v7096 = vadd.f32 %v7094, %v7095
    %v7097 = vrot.slane %v7096, 1
    %v7098 = vadd.f32 %v7096, %v7097
    %v7099 = vmul.f32 %v7098, %v1822
    %v7100 = vsel %vm1824, %v7099, 0.0
    %7101 = vadd.xlane.f32.xlu0 %v7100
    %v7102 = vpop.xlane.xlu0 %7101
    %v7103 = vmul.f32 %v7102, %v1828
    %v7104 = vmax.f32 %v1829, %v3587
    %v7105 = vmax.f32 %v7104, %v5345
    %v7106 = vmax.f32 %v7105, %v7103
    %v7107 = vsub.f32 %v1829, %v7106
    %v7108 = vmul.f32 %v7107, 1.442695
    %v7109 = vpow.pop %v7108
    %v7110 = vsub.f32 %v3587, %v7106
    %v7111 = vmul.f32 %v7110, 1.442695
    %v7112 = vpow.pop %v7111
    %v7113 = vsub.f32 %v5345, %v7106
    %v7114 = vmul.f32 %v7113, 1.442695
    %v7115 = vpow.pop %v7114
    %v7116 = vsub.f32 %v7103, %v7106
    %v7117 = vmul.f32 %v7116, 1.442695
    %v7118 = vpow.pop %v7117
    %v7119 = vadd.f32 %v7109, %v7112
    %v7120 = vadd.f32 %v7119, %v7115
    %v7121 = vadd.f32 %v7120, %v7118
    %v7122 = vrcp.pop %v7121
    %v7123 = vmul.f32 1.0, %v7122
    %v7124 = vmul.f32 %v7109, %v7123
    %v7125 = vlaneseq
    %v7126 = vshrl.u32 %v7125, 7
    %v7127 = vsub.s32 0, %v7126
    %v7128 = vrot.slane %v7124, %v7127
    %v7129 = vmul.f32 %v46, %v7128
    %v7130 = vmul.f32 %v47, %v7128
    %v7131 = vmul.f32 %v48, %v7128
    %v7132 = vmul.f32 %v49, %v7128
    %v7133 = vmul.f32 %v50, %v7128
    %v7134 = vmul.f32 %v51, %v7128
    %v7135 = vmul.f32 %v52, %v7128
    %v7136 = vmul.f32 %v53, %v7128
    %v7137 = vmul.f32 %v54, %v7128
    %v7138 = vmul.f32 %v55, %v7128
    %v7139 = vmul.f32 %v56, %v7128
    %v7140 = vmul.f32 %v57, %v7128
    %v7141 = vmul.f32 %v58, %v7128
    %v7142 = vmul.f32 %v59, %v7128
    %v7143 = vmul.f32 %v60, %v7128
    %v7144 = vmul.f32 %v61, %v7128
    %v7145 = vmul.f32 %v62, %v7128
    %v7146 = vmul.f32 %v63, %v7128
    %v7147 = vmul.f32 %v64, %v7128
    %v7148 = vmul.f32 %v65, %v7128
    %v7149 = vmul.f32 %v66, %v7128
    %v7150 = vmul.f32 %v67, %v7128
    %v7151 = vmul.f32 %v68, %v7128
    %v7152 = vmul.f32 %v69, %v7128
    %v7153 = vmul.f32 %v70, %v7128
    %v7154 = vmul.f32 %v7112, %v7123
    %v7155 = vlaneseq
    %v7156 = vshrl.u32 %v7155, 7
    %v7157 = vsub.s32 0, %v7156
    %v7158 = vrot.slane %v7154, %v7157
    %v7159 = vmul.f32 %v1830, %v7158
    %v7160 = vmul.f32 %v1831, %v7158
    %v7161 = vmul.f32 %v1832, %v7158
    %v7162 = vmul.f32 %v1833, %v7158
    %v7163 = vmul.f32 %v1834, %v7158
    %v7164 = vmul.f32 %v1835, %v7158
    %v7165 = vmul.f32 %v1836, %v7158
    %v7166 = vmul.f32 %v1837, %v7158
    %v7167 = vmul.f32 %v1838, %v7158
    %v7168 = vmul.f32 %v1839, %v7158
    %v7169 = vmul.f32 %v1840, %v7158
    %v7170 = vmul.f32 %v1841, %v7158
    %v7171 = vmul.f32 %v1842, %v7158
    %v7172 = vmul.f32 %v1843, %v7158
    %v7173 = vmul.f32 %v1844, %v7158
    %v7174 = vmul.f32 %v1845, %v7158
    %v7175 = vmul.f32 %v1846, %v7158
    %v7176 = vmul.f32 %v1847, %v7158
    %v7177 = vmul.f32 %v1848, %v7158
    %v7178 = vmul.f32 %v1849, %v7158
    %v7179 = vmul.f32 %v1850, %v7158
    %v7180 = vmul.f32 %v1851, %v7158
    %v7181 = vmul.f32 %v1852, %v7158
    %v7182 = vmul.f32 %v1853, %v7158
    %v7183 = vmul.f32 %v1854, %v7158
    %v7184 = vadd.f32 %v7129, %v7159
    %v7185 = vadd.f32 %v7130, %v7160
    %v7186 = vadd.f32 %v7131, %v7161
    %v7187 = vadd.f32 %v7132, %v7162
    %v7188 = vadd.f32 %v7133, %v7163
    %v7189 = vadd.f32 %v7134, %v7164
    %v7190 = vadd.f32 %v7135, %v7165
    %v7191 = vadd.f32 %v7136, %v7166
    %v7192 = vadd.f32 %v7137, %v7167
    %v7193 = vadd.f32 %v7138, %v7168
    %v7194 = vadd.f32 %v7139, %v7169
    %v7195 = vadd.f32 %v7140, %v7170
    %v7196 = vadd.f32 %v7141, %v7171
    %v7197 = vadd.f32 %v7142, %v7172
    %v7198 = vadd.f32 %v7143, %v7173
    %v7199 = vadd.f32 %v7144, %v7174
    %v7200 = vadd.f32 %v7145, %v7175
    %v7201 = vadd.f32 %v7146, %v7176
    %v7202 = vadd.f32 %v7147, %v7177
    %v7203 = vadd.f32 %v7148, %v7178
    %v7204 = vadd.f32 %v7149, %v7179
    %v7205 = vadd.f32 %v7150, %v7180
    %v7206 = vadd.f32 %v7151, %v7181
    %v7207 = vadd.f32 %v7152, %v7182
    %v7208 = vadd.f32 %v7153, %v7183
    %v7209 = vmul.f32 %v7115, %v7123
    %v7210 = vlaneseq
    %v7211 = vshrl.u32 %v7210, 7
    %v7212 = vsub.s32 0, %v7211
    %v7213 = vrot.slane %v7209, %v7212
    %v7214 = vmul.f32 %v3588, %v7213
    %v7215 = vmul.f32 %v3589, %v7213
    %v7216 = vmul.f32 %v3590, %v7213
    %v7217 = vmul.f32 %v3591, %v7213
    %v7218 = vmul.f32 %v3592, %v7213
    %v7219 = vmul.f32 %v3593, %v7213
    %v7220 = vmul.f32 %v3594, %v7213
    %v7221 = vmul.f32 %v3595, %v7213
    %v7222 = vmul.f32 %v3596, %v7213
    %v7223 = vmul.f32 %v3597, %v7213
    %v7224 = vmul.f32 %v3598, %v7213
    %v7225 = vmul.f32 %v3599, %v7213
    %v7226 = vmul.f32 %v3600, %v7213
    %v7227 = vmul.f32 %v3601, %v7213
    %v7228 = vmul.f32 %v3602, %v7213
    %v7229 = vmul.f32 %v3603, %v7213
    %v7230 = vmul.f32 %v3604, %v7213
    %v7231 = vmul.f32 %v3605, %v7213
    %v7232 = vmul.f32 %v3606, %v7213
    %v7233 = vmul.f32 %v3607, %v7213
    %v7234 = vmul.f32 %v3608, %v7213
    %v7235 = vmul.f32 %v3609, %v7213
    %v7236 = vmul.f32 %v3610, %v7213
    %v7237 = vmul.f32 %v3611, %v7213
    %v7238 = vmul.f32 %v3612, %v7213
    %v7239 = vadd.f32 %v7184, %v7214
    %v7240 = vadd.f32 %v7185, %v7215
    %v7241 = vadd.f32 %v7186, %v7216
    %v7242 = vadd.f32 %v7187, %v7217
    %v7243 = vadd.f32 %v7188, %v7218
    %v7244 = vadd.f32 %v7189, %v7219
    %v7245 = vadd.f32 %v7190, %v7220
    %v7246 = vadd.f32 %v7191, %v7221
    %v7247 = vadd.f32 %v7192, %v7222
    %v7248 = vadd.f32 %v7193, %v7223
    %v7249 = vadd.f32 %v7194, %v7224
    %v7250 = vadd.f32 %v7195, %v7225
    %v7251 = vadd.f32 %v7196, %v7226
    %v7252 = vadd.f32 %v7197, %v7227
    %v7253 = vadd.f32 %v7198, %v7228
    %v7254 = vadd.f32 %v7199, %v7229
    %v7255 = vadd.f32 %v7200, %v7230
    %v7256 = vadd.f32 %v7201, %v7231
    %v7257 = vadd.f32 %v7202, %v7232
    %v7258 = vadd.f32 %v7203, %v7233
    %v7259 = vadd.f32 %v7204, %v7234
    %v7260 = vadd.f32 %v7205, %v7235
    %v7261 = vadd.f32 %v7206, %v7236
    %v7262 = vadd.f32 %v7207, %v7237
    %v7263 = vadd.f32 %v7208, %v7238
    %v7264 = vmul.f32 %v7118, %v7123
    %v7265 = vlaneseq
    %v7266 = vshrl.u32 %v7265, 7
    %v7267 = vsub.s32 0, %v7266
    %v7268 = vrot.slane %v7264, %v7267
    %v7269 = vmul.f32 %v5346, %v7268
    %v7270 = vmul.f32 %v5347, %v7268
    %v7271 = vmul.f32 %v5348, %v7268
    %v7272 = vmul.f32 %v5349, %v7268
    %v7273 = vmul.f32 %v5350, %v7268
    %v7274 = vmul.f32 %v5351, %v7268
    %v7275 = vmul.f32 %v5352, %v7268
    %v7276 = vmul.f32 %v5353, %v7268
    %v7277 = vmul.f32 %v5354, %v7268
    %v7278 = vmul.f32 %v5355, %v7268
    %v7279 = vmul.f32 %v5356, %v7268
    %v7280 = vmul.f32 %v5357, %v7268
    %v7281 = vmul.f32 %v5358, %v7268
    %v7282 = vmul.f32 %v5359, %v7268
    %v7283 = vmul.f32 %v5360, %v7268
    %v7284 = vmul.f32 %v5361, %v7268
    %v7285 = vmul.f32 %v5362, %v7268
    %v7286 = vmul.f32 %v5363, %v7268
    %v7287 = vmul.f32 %v5364, %v7268
    %v7288 = vmul.f32 %v5365, %v7268
    %v7289 = vmul.f32 %v5366, %v7268
    %v7290 = vmul.f32 %v5367, %v7268
    %v7291 = vmul.f32 %v5368, %v7268
    %v7292 = vmul.f32 %v5369, %v7268
    %v7293 = vmul.f32 %v5370, %v7268
    %v7294 = vadd.f32 %v7239, %v7269
    %v7295 = vadd.f32 %v7240, %v7270
    %v7296 = vadd.f32 %v7241, %v7271
    %v7297 = vadd.f32 %v7242, %v7272
    %v7298 = vadd.f32 %v7243, %v7273
    %v7299 = vadd.f32 %v7244, %v7274
    %v7300 = vadd.f32 %v7245, %v7275
    %v7301 = vadd.f32 %v7246, %v7276
    %v7302 = vadd.f32 %v7247, %v7277
    %v7303 = vadd.f32 %v7248, %v7278
    %v7304 = vadd.f32 %v7249, %v7279
    %v7305 = vadd.f32 %v7250, %v7280
    %v7306 = vadd.f32 %v7251, %v7281
    %v7307 = vadd.f32 %v7252, %v7282
    %v7308 = vadd.f32 %v7253, %v7283
    %v7309 = vadd.f32 %v7254, %v7284
    %v7310 = vadd.f32 %v7255, %v7285
    %v7311 = vadd.f32 %v7256, %v7286
    %v7312 = vadd.f32 %v7257, %v7287
    %v7313 = vadd.f32 %v7258, %v7288
    %v7314 = vadd.f32 %v7259, %v7289
    %v7315 = vadd.f32 %v7260, %v7290
    %v7316 = vadd.f32 %v7261, %v7291
    %v7317 = vadd.f32 %v7262, %v7292
    %v7318 = vadd.f32 %v7263, %v7293
    %7319 = vst [vmem:[#allocation7] sm:$0xff] %v7294
    %7320 = vst [vmem:[#allocation7 + $0x8] sm:$0xff] %v7295
    %7321 = vst [vmem:[#allocation7 + $0x10] sm:$0xff] %v7296
    %7322 = vst [vmem:[#allocation7 + $0x18] sm:$0xff] %v7297
    %7323 = vst [vmem:[#allocation7 + $0x20] sm:$0xff] %v7298
    %7324 = vst [vmem:[#allocation7 + $0x28] sm:$0xff] %v7299
    %7325 = vst [vmem:[#allocation7 + $0x30] sm:$0xff] %v7300
    %7326 = vst [vmem:[#allocation7 + $0x38] sm:$0xff] %v7301
    %7327 = vst [vmem:[#allocation7 + $0x40] sm:$0xff] %v7302
    %7328 = vst [vmem:[#allocation7 + $0x48] sm:$0xff] %v7303
    %7329 = vst [vmem:[#allocation7 + $0x50] sm:$0xff] %v7304
    %7330 = vst [vmem:[#allocation7 + $0x58] sm:$0xff] %v7305
    %7331 = vst [vmem:[#allocation7 + $0x60] sm:$0xff] %v7306
    %7332 = vst [vmem:[#allocation7 + $0x68] sm:$0xff] %v7307
    %7333 = vst [vmem:[#allocation7 + $0x70] sm:$0xff] %v7308
    %7334 = vst [vmem:[#allocation7 + $0x78] sm:$0xff] %v7309
    %7335 = vst [vmem:[#allocation7 + $0x80] sm:$0xff] %v7310
    %7336 = vst [vmem:[#allocation7 + $0x88] sm:$0xff] %v7311
    %7337 = vst [vmem:[#allocation7 + $0x90] sm:$0xff] %v7312
    %7338 = vst [vmem:[#allocation7 + $0x98] sm:$0xff] %v7313
    %7339 = vst [vmem:[#allocation7 + $0xa0] sm:$0xff] %v7314
    %7340 = vst [vmem:[#allocation7 + $0xa8] sm:$0xff] %v7315
    %7341 = vst [vmem:[#allocation7 + $0xb0] sm:$0xff] %v7316
    %7342 = vst [vmem:[#allocation7 + $0xb8] sm:$0xff] %v7317
    %7343 = vst [vmem:[#allocation7 + $0xc0] sm:$0xff] %v7318
    // Predicated region
    $region26: #{tpu_custom_call.1} parent=1 // pred_check
      _
    $region27: #{tpu_custom_call.1} parent=1 // pred_check_branch
      %7345 = sbr.rel (0) target = $region29
    $region28: #{tpu_custom_call.1} parent=1 // pred_region
      %s7347 = ssub.s32 3200, 3200
      %7348 = vsyncadd [#allocation4], %s7347
      %s7349 = sshll.u32 [#allocation7], 4
      %s7350 = int_to_ptr.vmem [resolvable:$true] %s7349
      %7355 = dma.vmem_to_hbm [thread:$0]  %s7350, 3200, %s4, [#allocation4], 128, 128, 8
    $region29: #{tpu_custom_call.1} parent=1 // pred_fallthru
      _
    // Predicated region
    $region30: #{tpu_custom_call.1} parent=1 // pred_check
      _
    $region31: #{tpu_custom_call.1} parent=1 // pred_check_branch
      %7357 = sbr.rel (0) target = $region33
    $region32: #{tpu_custom_call.1} parent=1 // pred_region
      %7358 = dma.done [#allocation4], 3200
    $region33: #{tpu_custom_call.1} parent=1 // pred_fallthru
      _
    %7359 = vsyncpa [#allocation3], 1
    %7360 = vsyncpa [#allocation6], 1
    %7361 = vsyncpa [#allocation4], 1

</llo_original>
